<compile_context>
chip_gen: v6e
topology: v6e:2x2x1
jax: 0.10.0
libtpu: 0.0.40
codegen_flags: <defaults>
</compile_context>

<pallas_src>
import jax
import jax.numpy as jnp
from jax.experimental import pallas as pl
from jax.experimental.pallas import tpu as pltpu

# Shapes implied by the module (fc1 expects 6*7*64 inputs -> 6x7 board, 2 planes)
H, W = 6, 7
CIN, C1, C2, F1 = 2, 32, 64, 128
N_OUT = 7
N_OUT_PAD = max(128, pl.cdiv(N_OUT, 128) * 128)   # lane-dense fc2 / output block
KH = KW = 3
K_COL = KH * KW * CIN          # 18    conv1 im2col contraction
K_CONV2 = KH * KW * C1         # 288   conv2 im2col contraction
K_FC1 = H * W * C2             # 2688 = 21 * 128 (lane dense)


def _pick_bt(batch):
    """Batch tile: multiple of 16 (bf16 sublane pack), <= 128, and >= 2 grid
    steps whenever the batch allows (v7x has 2 TensorCores on the parallel axis)."""
    if batch <= 16:
        return 16
    half = (batch + 1) // 2
    return min(128, pl.cdiv(half, 16) * 16)


def dqn_kernel(xcol_ref, w1_ref, b1_ref, w2_ref, b2_ref,
               fw1_ref, fb1_ref, fw2_ref, fb2_ref,
               out_ref, h1p_ref, x2col_ref, h2f_ref):
    """One batch tile (BT samples) of the fused DQN forward pass.

    xcol_ref  : (H*W, BT, 18)        bf16  conv1 im2col patches, rows (h,w), sublane b
    w1_ref    : (18, C1)             bf16
    w2_ref    : (288, C2)            bf16  conv2 im2col weight, rows (kh, kw, c1)
    fw1_ref   : (H*W*C2, F1)         bf16  fc1 weight, rows ordered (h, w, c2)
    fw2_ref   : (F1, N_OUT_PAD)      bf16  zero-padded in N
    biases    : (1, C)               f32   (fb2 zero-padded in N)
    h1p_ref   : (H+2, W+2, BT, C1)   bf16 scratch -- zero-padded conv1 output
    x2col_ref : (H, W, BT, 288)      bf16 scratch -- conv2 im2col patches
    h2f_ref   : (BT, H*W*C2)         bf16 scratch -- lane-dense flattened conv2 output
    """
    bt = out_ref.shape[0]
    rows = H * W * bt

    # ---- conv1 + ReLU : one (rows, 18) x (18, 32) MXU matmul ------------------
    x2d = xcol_ref[...].reshape(rows, K_COL)
    a1 = jnp.dot(x2d, w1_ref[...], preferred_element_type=jnp.float32)
    h1 = jnp.maximum(a1 + b1_ref[...], 0.0).astype(jnp.bfloat16)

    # ---- single padded store of conv1 output ----------------------------------
    # Halo zeros are re-written every grid step on purpose: the scratch persists
    # across the "parallel" axis (per-core scratch may never see step 0).
    h1p_ref[...] = jnp.pad(h1.reshape(H, W, bt, C1),
                           ((1, 1), (1, 1), (0, 0), (0, 0)))

    # ---- conv2 im2col staging: 9 shifted windows -> (rows, 288) LHS -----------
    for kh in range(KH):
        for kw in range(KW):
            t = kh * KW + kw
            x2col_ref[:, :, :, t * C1:(t + 1) * C1] = \
                h1p_ref[kh:kh + H, kw:kw + W, :, :]

    # ---- conv2 + ReLU : single K=288 matmul ------------------------------------
    a2 = jnp.dot(x2col_ref[...].reshape(rows, K_CONV2), w2_ref[...],
                 preferred_element_type=jnp.float32)
    h2 = jnp.maximum(a2 + b2_ref[...], 0.0).astype(jnp.bfloat16)    # (rows, C2)

    # TODO(synk): dropout(p=0.3) is the identity here (eval semantics); training
    # mode would mask h2 using pltpu.prng_seed / pltpu.prng_random_bits.

    # ---- repack to lane-dense (BT, 2688): pair positions -> 21 full-lane stores
    h2r = h2.reshape(H * W, bt, C2)
    for p in range(0, H * W, 2):
        h2f_ref[:, p * C2:(p + 2) * C2] = jnp.concatenate(
            [h2r[p], h2r[p + 1]], axis=1)

    # ---- fc1 + ReLU : (BT, 2688) x (2688, 128) ---------------------------------
    f1 = jnp.dot(h2f_ref[...], fw1_ref[...], preferred_element_type=jnp.float32)
    f1 = jnp.maximum(f1 + fb1_ref[...], 0.0).astype(jnp.bfloat16)

    # ---- fc2 (N padded to 128 -> unmasked, lane-dense output store) ------------
    out_ref[...] = (jnp.dot(f1, fw2_ref[...], preferred_element_type=jnp.float32)
                    + fb2_ref[...])


@jax.jit
def dqn_forward(x_nchw, w1, b1, w2, b2, fw1, fb1, fw2, fb2):
    """Layout plumbing (pure XLA, fused into the same jit) + one pallas_call."""
    B = x_nchw.shape[0]
    BT = _pick_bt(B)
    b_pad = pl.cdiv(B, BT) * BT

    x = x_nchw.astype(jnp.float32)
    if b_pad != B:
        x = jnp.pad(x, ((0, b_pad - B), (0, 0), (0, 0), (0, 0)))

    # conv1 im2col: (H*W, B, 9*CIN) with K ordered (kh, kw, cin); batch in sublanes.
    xp = jnp.pad(x, ((0, 0), (0, 0), (1, 1), (1, 1)))             # (B, CIN, H+2, W+2)
    taps = jnp.stack([xp[:, :, kh:kh + H, kw:kw + W]
                      for kh in range(KH) for kw in range(KW)], axis=0)  # (9,B,CIN,H,W)
    xcol = (jnp.transpose(taps, (3, 4, 1, 0, 2))                  # (H, W, B, 9, CIN)
              .reshape(H * W, b_pad, K_COL).astype(jnp.bfloat16))

    # conv weights: torch (Cout, Cin, kh, kw) -> contraction-major layouts.
    w1r = jnp.transpose(w1, (2, 3, 1, 0)).reshape(K_COL, C1).astype(jnp.bfloat16)
    w2r = jnp.transpose(w2, (2, 3, 1, 0)).reshape(K_CONV2, C2).astype(jnp.bfloat16)
    b1r = b1.reshape(1, C1).astype(jnp.float32)
    b2r = b2.reshape(1, C2).astype(jnp.float32)

    # fc1 weight: torch (F1, C2*H*W) with C-major flatten -> rows ordered (h, w, c2).
    fw1r = (jnp.transpose(fw1.reshape(F1, C2, H, W), (2, 3, 1, 0))
              .reshape(K_FC1, F1).astype(jnp.bfloat16))
    fb1r = fb1.reshape(1, F1).astype(jnp.float32)
    # fc2 weight/bias zero-padded to a lane-dense N.
    fw2r = jnp.pad(jnp.transpose(fw2, (1, 0)),
                   ((0, 0), (0, N_OUT_PAD - N_OUT))).astype(jnp.bfloat16)
    fb2r = jnp.pad(fb2.reshape(1, N_OUT),
                   ((0, 0), (0, N_OUT_PAD - N_OUT))).astype(jnp.float32)

    out = pl.pallas_call(
        dqn_kernel,
        out_shape=jax.ShapeDtypeStruct((b_pad, N_OUT_PAD), jnp.float32),
        grid_spec=pltpu.PrefetchScalarGridSpec(
            num_scalar_prefetch=0,
            grid=(b_pad // BT,),
            in_specs=[
                pl.BlockSpec((H * W, BT, K_COL), lambda i: (0, i, 0)),   # batch-tiled
                pl.BlockSpec((K_COL, C1), lambda i: (0, 0)),             # weights resident
                pl.BlockSpec((1, C1), lambda i: (0, 0)),
                pl.BlockSpec((K_CONV2, C2), lambda i: (0, 0)),
                pl.BlockSpec((1, C2), lambda i: (0, 0)),
                pl.BlockSpec((K_FC1, F1), lambda i: (0, 0)),
                pl.BlockSpec((1, F1), lambda i: (0, 0)),
                pl.BlockSpec((F1, N_OUT_PAD), lambda i: (0, 0)),
                pl.BlockSpec((1, N_OUT_PAD), lambda i: (0, 0)),
            ],
            out_specs=pl.BlockSpec((BT, N_OUT_PAD), lambda i: (i, 0)),
            scratch_shapes=[
                pltpu.VMEM((H + 2, W + 2, BT, C1), jnp.bfloat16),   # padded conv1 out
                pltpu.VMEM((H, W, BT, K_CONV2), jnp.bfloat16),      # conv2 im2col
                pltpu.VMEM((BT, K_FC1), jnp.bfloat16),              # flat conv2 out
            ],
        ),
        compiler_params=pltpu.CompilerParams(
            dimension_semantics=("parallel",),
            vmem_limit_bytes=64 * 1024 * 1024),
    )(xcol, w1r, b1r, w2r, b2r, fw1r, fb1r, fw2r, fb2r)
    return out[:B, :N_OUT]


def dqn_reference(x, w1, b1, w2, b2, fw1, fb1, fw2, fb2):
    """Pure-JAX f32 reference mirroring the PyTorch module exactly (NCHW)."""
    dn = ('NCHW', 'OIHW', 'NCHW')
    y = jax.lax.conv_general_dilated(x, w1, (1, 1), 'SAME', dimension_numbers=dn)
    y = jax.nn.relu(y + b1[None, :, None, None])
    y = jax.lax.conv_general_dilated(y, w2, (1, 1), 'SAME', dimension_numbers=dn)
    y = jax.nn.relu(y + b2[None, :, None, None])
    y = y.reshape(y.shape[0], -1)                 # C-major flatten, like torch .view
    y = jax.nn.relu(y @ fw1.T + fb1)
    return y @ fw2.T + fb2


if __name__ == "__main__":
    key = jax.random.PRNGKey(0)
    kx, k1, k2, k3, k4, k5, k6, k7, k8 = jax.random.split(key, 9)
    B = 20   # not a multiple of the tile: exercises batch padding and a 2-step grid

    x = jax.random.normal(kx, (B, CIN, H, W), jnp.float32)

    def init(k, shape, fan_in):
        return jax.random.normal(k, shape, jnp.float32) * (2.0 / fan_in) ** 0.5

    # PyTorch-layout parameters (deterministic synthetic init).
    w1 = init(k1, (C1, CIN, KH, KW), CIN * KH * KW)
    b1 = init(k2, (C1,), C1)
    w2 = init(k3, (C2, C1, KH, KW), C1 * KH * KW)
    b2 = init(k4, (C2,), C2)
    fw1 = init(k5, (F1, C2 * H * W), C2 * H * W)
    fb1 = init(k6, (F1,), F1)
    fw2 = init(k7, (N_OUT, F1), F1)
    fb2 = init(k8, (N_OUT,), N_OUT)

    out = dqn_forward(x, w1, b1, w2, b2, fw1, fb1, fw2, fb2)
    out = jax.block_until_ready(out)

    ref = dqn_reference(x, w1, b1, w2, b2, fw1, fb1, fw2, fb2)
    assert out.shape == (B, N_OUT), out.shape
    # bf16 activations/weights with f32 accumulation -> ~1% end-to-end rounding;
    # a layout bug would give O(1) errors, far outside this bound.
    err = float(jnp.max(jnp.abs(out - ref)))
    scale = float(jnp.maximum(1.0, jnp.max(jnp.abs(ref))))
    assert err <= 2e-2 * scale, f"max abs error {err} (ref scale {scale})"
    print("KERNEL_OK")
</pallas_src>

<mosaic_0001>
module attributes {stable_mosaic.version = 11 : i64} {
  func.func @dqn_kernel(%arg0: i32, %arg1: memref<42x16x18xbf16, #tpu.memory_space<vmem>>, %arg2: memref<18x32xbf16, #tpu.memory_space<vmem>>, %arg3: memref<1x32xf32, #tpu.memory_space<vmem>>, %arg4: memref<288x64xbf16, #tpu.memory_space<vmem>>, %arg5: memref<1x64xf32, #tpu.memory_space<vmem>>, %arg6: memref<2688x128xbf16, #tpu.memory_space<vmem>>, %arg7: memref<1x128xf32, #tpu.memory_space<vmem>>, %arg8: memref<128x128xbf16, #tpu.memory_space<vmem>>, %arg9: memref<1x128xf32, #tpu.memory_space<vmem>>, %arg10: memref<16x128xf32, #tpu.memory_space<vmem>>, %arg11: memref<8x9x16x32xbf16, #tpu.memory_space<vmem>>, %arg12: memref<6x7x16x288xbf16, #tpu.memory_space<vmem>>, %arg13: memref<16x2688xbf16, #tpu.memory_space<vmem>>) attributes {dimension_semantics = [#tpu.dimension_semantics<parallel>], iteration_bounds = array<i64: 2>, scalar_prefetch = 0 : i64, scratch_operands = 3 : i64, tpu.core_type = #tpu.core_type<tc>, window_params = [{transform_indices = @transform_0, window_bounds = array<i64: 42, 16, 18>}, {pipeline_mode = #tpu.pipeline_mode<synchronous>, transform_indices = @transform_1, window_bounds = array<i64: 18, 32>}, {pipeline_mode = #tpu.pipeline_mode<synchronous>, transform_indices = @transform_2, window_bounds = array<i64: 1, 32>}, {pipeline_mode = #tpu.pipeline_mode<synchronous>, transform_indices = @transform_3, window_bounds = array<i64: 288, 64>}, {pipeline_mode = #tpu.pipeline_mode<synchronous>, transform_indices = @transform_4, window_bounds = array<i64: 1, 64>}, {pipeline_mode = #tpu.pipeline_mode<synchronous>, transform_indices = @transform_5, window_bounds = array<i64: 2688, 128>}, {pipeline_mode = #tpu.pipeline_mode<synchronous>, transform_indices = @transform_6, window_bounds = array<i64: 1, 128>}, {pipeline_mode = #tpu.pipeline_mode<synchronous>, transform_indices = @transform_7, window_bounds = array<i64: 128, 128>}, {pipeline_mode = #tpu.pipeline_mode<synchronous>, transform_indices = @transform_8, window_bounds = array<i64: 1, 128>}, {transform_indices = @transform_9, window_bounds = array<i64: 16, 128>}]} {
    %c0 = arith.constant 0 : index
    %c0_0 = arith.constant 0 : index
    %c0_1 = arith.constant 0 : index
    %0 = vector.load %arg1[%c0, %c0_0, %c0_1] : memref<42x16x18xbf16, #tpu.memory_space<vmem>>, vector<42x16x18xbf16>
    %1 = vector.shape_cast %0 : vector<42x16x18xbf16> to vector<672x18xbf16>
    %c0_2 = arith.constant 0 : index
    %c0_3 = arith.constant 0 : index
    %2 = vector.load %arg2[%c0_2, %c0_3] : memref<18x32xbf16, #tpu.memory_space<vmem>>, vector<18x32xbf16>
    %cst = arith.constant dense<0.000000e+00> : vector<672x32xf32>
    %3 = tpu.matmul %1, %2, %cst {dimension_numbers = #tpu.dot_dimension_numbers<[1], [0], [0], [1], [0, 0, 1, 1], [], []>} : vector<672x18xbf16>, vector<18x32xbf16>, vector<672x32xf32> -> vector<672x32xf32>
    %c0_4 = arith.constant 0 : index
    %c0_5 = arith.constant 0 : index
    %4 = vector.load %arg3[%c0_4, %c0_5] : memref<1x32xf32, #tpu.memory_space<vmem>>, vector<1x32xf32>
    %5 = vector.broadcast %4 : vector<1x32xf32> to vector<672x32xf32>
    %6 = arith.addf %3, %5 : vector<672x32xf32>
    %cst_6 = arith.constant 0.000000e+00 : f32
    %7 = vector.broadcast %cst_6 : f32 to vector<672x32xf32>
    %8 = arith.maximumf %6, %7 : vector<672x32xf32>
    %9 = arith.truncf %8 : vector<672x32xf32> to vector<672x32xbf16>
    %10 = vector.shape_cast %9 : vector<672x32xbf16> to vector<6x7x16x32xbf16>
    %c0_i32 = arith.constant 0 : i32
    %11 = arith.sitofp %c0_i32 : i32 to bf16
    %12 = vector.broadcast %11 : bf16 to vector<1x7x16x32xbf16>
    %13 = tpu.concatenate %12, %10 in 0 : vector<1x7x16x32xbf16>, vector<6x7x16x32xbf16> -> vector<7x7x16x32xbf16>
    %14 = vector.broadcast %11 : bf16 to vector<1x7x16x32xbf16>
    %15 = tpu.concatenate %13, %14 in 0 : vector<7x7x16x32xbf16>, vector<1x7x16x32xbf16> -> vector<8x7x16x32xbf16>
    %16 = vector.broadcast %11 : bf16 to vector<8x1x16x32xbf16>
    %17 = tpu.concatenate %16, %15 in 1 : vector<8x1x16x32xbf16>, vector<8x7x16x32xbf16> -> vector<8x8x16x32xbf16>
    %18 = vector.broadcast %11 : bf16 to vector<8x1x16x32xbf16>
    %19 = tpu.concatenate %17, %18 in 1 : vector<8x8x16x32xbf16>, vector<8x1x16x32xbf16> -> vector<8x9x16x32xbf16>
    %c0_7 = arith.constant 0 : index
    %c0_8 = arith.constant 0 : index
    %c0_9 = arith.constant 0 : index
    %c0_10 = arith.constant 0 : index
    %20 = vector.load %arg11[%c0_7, %c0_8, %c0_9, %c0_10] : memref<8x9x16x32xbf16, #tpu.memory_space<vmem>>, vector<8x9x16x32xbf16>
    tpu.vector_store %arg11[%c0_7, %c0_8, %c0_9, %c0_10], %19 {strides = array<i32>} : memref<8x9x16x32xbf16, #tpu.memory_space<vmem>>, vector<8x9x16x32xbf16>,
    %c0_11 = arith.constant 0 : index
    %c0_12 = arith.constant 0 : index
    %c0_13 = arith.constant 0 : index
    %c0_14 = arith.constant 0 : index
    %21 = vector.load %arg11[%c0_11, %c0_12, %c0_13, %c0_14] : memref<8x9x16x32xbf16, #tpu.memory_space<vmem>>, vector<6x7x16x32xbf16>
    %c0_15 = arith.constant 0 : index
    %c0_16 = arith.constant 0 : index
    %c0_17 = arith.constant 0 : index
    %c0_18 = arith.constant 0 : index
    %22 = vector.load %arg12[%c0_15, %c0_16, %c0_17, %c0_18] : memref<6x7x16x288xbf16, #tpu.memory_space<vmem>>, vector<6x7x16x32xbf16>
    tpu.vector_store %arg12[%c0_15, %c0_16, %c0_17, %c0_18], %21 {strides = array<i32>} : memref<6x7x16x288xbf16, #tpu.memory_space<vmem>>, vector<6x7x16x32xbf16>,
    %c0_19 = arith.constant 0 : index
    %c1 = arith.constant 1 : index
    %c0_20 = arith.constant 0 : index
    %c0_21 = arith.constant 0 : index
    %23 = vector.load %arg11[%c0_19, %c1, %c0_20, %c0_21] : memref<8x9x16x32xbf16, #tpu.memory_space<vmem>>, vector<6x7x16x32xbf16>
    %c0_22 = arith.constant 0 : index
    %c0_23 = arith.constant 0 : index
    %c0_24 = arith.constant 0 : index
    %c32 = arith.constant 32 : index
    %24 = vector.load %arg12[%c0_22, %c0_23, %c0_24, %c32] : memref<6x7x16x288xbf16, #tpu.memory_space<vmem>>, vector<6x7x16x32xbf16>
    tpu.vector_store %arg12[%c0_22, %c0_23, %c0_24, %c32], %23 {strides = array<i32>} : memref<6x7x16x288xbf16, #tpu.memory_space<vmem>>, vector<6x7x16x32xbf16>,
    %c0_25 = arith.constant 0 : index
    %c2 = arith.constant 2 : index
    %c0_26 = arith.constant 0 : index
    %c0_27 = arith.constant 0 : index
    %25 = vector.load %arg11[%c0_25, %c2, %c0_26, %c0_27] : memref<8x9x16x32xbf16, #tpu.memory_space<vmem>>, vector<6x7x16x32xbf16>
    %c0_28 = arith.constant 0 : index
    %c0_29 = arith.constant 0 : index
    %c0_30 = arith.constant 0 : index
    %c64 = arith.constant 64 : index
    %26 = vector.load %arg12[%c0_28, %c0_29, %c0_30, %c64] : memref<6x7x16x288xbf16, #tpu.memory_space<vmem>>, vector<6x7x16x32xbf16>
    tpu.vector_store %arg12[%c0_28, %c0_29, %c0_30, %c64], %25 {strides = array<i32>} : memref<6x7x16x288xbf16, #tpu.memory_space<vmem>>, vector<6x7x16x32xbf16>,
    %c1_31 = arith.constant 1 : index
    %c0_32 = arith.constant 0 : index
    %c0_33 = arith.constant 0 : index
    %c0_34 = arith.constant 0 : index
    %27 = vector.load %arg11[%c1_31, %c0_32, %c0_33, %c0_34] : memref<8x9x16x32xbf16, #tpu.memory_space<vmem>>, vector<6x7x16x32xbf16>
    %c0_35 = arith.constant 0 : index
    %c0_36 = arith.constant 0 : index
    %c0_37 = arith.constant 0 : index
    %c96 = arith.constant 96 : index
    %28 = vector.load %arg12[%c0_35, %c0_36, %c0_37, %c96] : memref<6x7x16x288xbf16, #tpu.memory_space<vmem>>, vector<6x7x16x32xbf16>
    tpu.vector_store %arg12[%c0_35, %c0_36, %c0_37, %c96], %27 {strides = array<i32>} : memref<6x7x16x288xbf16, #tpu.memory_space<vmem>>, vector<6x7x16x32xbf16>,
    %c1_38 = arith.constant 1 : index
    %c1_39 = arith.constant 1 : index
    %c0_40 = arith.constant 0 : index
    %c0_41 = arith.constant 0 : index
    %29 = vector.load %arg11[%c1_38, %c1_39, %c0_40, %c0_41] : memref<8x9x16x32xbf16, #tpu.memory_space<vmem>>, vector<6x7x16x32xbf16>
    %c0_42 = arith.constant 0 : index
    %c0_43 = arith.constant 0 : index
    %c0_44 = arith.constant 0 : index
    %c128 = arith.constant 128 : index
    %30 = vector.load %arg12[%c0_42, %c0_43, %c0_44, %c128] : memref<6x7x16x288xbf16, #tpu.memory_space<vmem>>, vector<6x7x16x32xbf16>
    tpu.vector_store %arg12[%c0_42, %c0_43, %c0_44, %c128], %29 {strides = array<i32>} : memref<6x7x16x288xbf16, #tpu.memory_space<vmem>>, vector<6x7x16x32xbf16>,
    %c1_45 = arith.constant 1 : index
    %c2_46 = arith.constant 2 : index
    %c0_47 = arith.constant 0 : index
    %c0_48 = arith.constant 0 : index
    %31 = vector.load %arg11[%c1_45, %c2_46, %c0_47, %c0_48] : memref<8x9x16x32xbf16, #tpu.memory_space<vmem>>, vector<6x7x16x32xbf16>
    %c0_49 = arith.constant 0 : index
    %c0_50 = arith.constant 0 : index
    %c0_51 = arith.constant 0 : index
    %c160 = arith.constant 160 : index
    %32 = vector.load %arg12[%c0_49, %c0_50, %c0_51, %c160] : memref<6x7x16x288xbf16, #tpu.memory_space<vmem>>, vector<6x7x16x32xbf16>
    tpu.vector_store %arg12[%c0_49, %c0_50, %c0_51, %c160], %31 {strides = array<i32>} : memref<6x7x16x288xbf16, #tpu.memory_space<vmem>>, vector<6x7x16x32xbf16>,
    %c2_52 = arith.constant 2 : index
    %c0_53 = arith.constant 0 : index
    %c0_54 = arith.constant 0 : index
    %c0_55 = arith.constant 0 : index
    %33 = vector.load %arg11[%c2_52, %c0_53, %c0_54, %c0_55] : memref<8x9x16x32xbf16, #tpu.memory_space<vmem>>, vector<6x7x16x32xbf16>
    %c0_56 = arith.constant 0 : index
    %c0_57 = arith.constant 0 : index
    %c0_58 = arith.constant 0 : index
    %c192 = arith.constant 192 : index
    %34 = vector.load %arg12[%c0_56, %c0_57, %c0_58, %c192] : memref<6x7x16x288xbf16, #tpu.memory_space<vmem>>, vector<6x7x16x32xbf16>
    tpu.vector_store %arg12[%c0_56, %c0_57, %c0_58, %c192], %33 {strides = array<i32>} : memref<6x7x16x288xbf16, #tpu.memory_space<vmem>>, vector<6x7x16x32xbf16>,
    %c2_59 = arith.constant 2 : index
    %c1_60 = arith.constant 1 : index
    %c0_61 = arith.constant 0 : index
    %c0_62 = arith.constant 0 : index
    %35 = vector.load %arg11[%c2_59, %c1_60, %c0_61, %c0_62] : memref<8x9x16x32xbf16, #tpu.memory_space<vmem>>, vector<6x7x16x32xbf16>
    %c0_63 = arith.constant 0 : index
    %c0_64 = arith.constant 0 : index
    %c0_65 = arith.constant 0 : index
    %c224 = arith.constant 224 : index
    %36 = vector.load %arg12[%c0_63, %c0_64, %c0_65, %c224] : memref<6x7x16x288xbf16, #tpu.memory_space<vmem>>, vector<6x7x16x32xbf16>
    tpu.vector_store %arg12[%c0_63, %c0_64, %c0_65, %c224], %35 {strides = array<i32>} : memref<6x7x16x288xbf16, #tpu.memory_space<vmem>>, vector<6x7x16x32xbf16>,
    %c2_66 = arith.constant 2 : index
    %c2_67 = arith.constant 2 : index
    %c0_68 = arith.constant 0 : index
    %c0_69 = arith.constant 0 : index
    %37 = vector.load %arg11[%c2_66, %c2_67, %c0_68, %c0_69] : memref<8x9x16x32xbf16, #tpu.memory_space<vmem>>, vector<6x7x16x32xbf16>
    %c0_70 = arith.constant 0 : index
    %c0_71 = arith.constant 0 : index
    %c0_72 = arith.constant 0 : index
    %c256 = arith.constant 256 : index
    %38 = vector.load %arg12[%c0_70, %c0_71, %c0_72, %c256] : memref<6x7x16x288xbf16, #tpu.memory_space<vmem>>, vector<6x7x16x32xbf16>
    tpu.vector_store %arg12[%c0_70, %c0_71, %c0_72, %c256], %37 {strides = array<i32>} : memref<6x7x16x288xbf16, #tpu.memory_space<vmem>>, vector<6x7x16x32xbf16>,
    %c0_73 = arith.constant 0 : index
    %c0_74 = arith.constant 0 : index
    %c0_75 = arith.constant 0 : index
    %c0_76 = arith.constant 0 : index
    %39 = vector.load %arg12[%c0_73, %c0_74, %c0_75, %c0_76] : memref<6x7x16x288xbf16, #tpu.memory_space<vmem>>, vector<6x7x16x288xbf16>
    %40 = vector.shape_cast %39 : vector<6x7x16x288xbf16> to vector<672x288xbf16>
    %c0_77 = arith.constant 0 : index
    %c0_78 = arith.constant 0 : index
    %41 = vector.load %arg4[%c0_77, %c0_78] : memref<288x64xbf16, #tpu.memory_space<vmem>>, vector<288x64xbf16>
    %cst_79 = arith.constant dense<0.000000e+00> : vector<672x64xf32>
    %42 = tpu.matmul %40, %41, %cst_79 {dimension_numbers = #tpu.dot_dimension_numbers<[1], [0], [0], [1], [0, 0, 1, 1], [], []>} : vector<672x288xbf16>, vector<288x64xbf16>, vector<672x64xf32> -> vector<672x64xf32>
    %c0_80 = arith.constant 0 : index
    %c0_81 = arith.constant 0 : index
    %43 = vector.load %arg5[%c0_80, %c0_81] : memref<1x64xf32, #tpu.memory_space<vmem>>, vector<1x64xf32>
    %44 = vector.broadcast %43 : vector<1x64xf32> to vector<672x64xf32>
    %45 = arith.addf %42, %44 : vector<672x64xf32>
    %cst_82 = arith.constant 0.000000e+00 : f32
    %46 = vector.broadcast %cst_82 : f32 to vector<672x64xf32>
    %47 = arith.maximumf %45, %46 : vector<672x64xf32>
    %48 = arith.truncf %47 : vector<672x64xf32> to vector<672x64xbf16>
    %49 = vector.shape_cast %48 : vector<672x64xbf16> to vector<42x16x64xbf16>
    %50 = vector.extract_strided_slice %49 {offsets = [0, 0, 0], sizes = [1, 16, 64], strides = [1, 1, 1]} : vector<42x16x64xbf16> to vector<1x16x64xbf16>
    %51 = vector.shape_cast %50 : vector<1x16x64xbf16> to vector<16x64xbf16>
    %52 = vector.extract_strided_slice %49 {offsets = [1, 0, 0], sizes = [1, 16, 64], strides = [1, 1, 1]} : vector<42x16x64xbf16> to vector<1x16x64xbf16>
    %53 = vector.shape_cast %52 : vector<1x16x64xbf16> to vector<16x64xbf16>
    %54 = tpu.concatenate %51, %53 in 1 : vector<16x64xbf16>, vector<16x64xbf16> -> vector<16x128xbf16>
    %c0_83 = arith.constant 0 : index
    %c0_84 = arith.constant 0 : index
    %55 = vector.load %arg13[%c0_83, %c0_84] : memref<16x2688xbf16, #tpu.memory_space<vmem>>, vector<16x128xbf16>
    tpu.vector_store %arg13[%c0_83, %c0_84], %54 {strides = array<i32>} : memref<16x2688xbf16, #tpu.memory_space<vmem>>, vector<16x128xbf16>,
    %56 = vector.extract_strided_slice %49 {offsets = [2, 0, 0], sizes = [1, 16, 64], strides = [1, 1, 1]} : vector<42x16x64xbf16> to vector<1x16x64xbf16>
    %57 = vector.shape_cast %56 : vector<1x16x64xbf16> to vector<16x64xbf16>
    %58 = vector.extract_strided_slice %49 {offsets = [3, 0, 0], sizes = [1, 16, 64], strides = [1, 1, 1]} : vector<42x16x64xbf16> to vector<1x16x64xbf16>
    %59 = vector.shape_cast %58 : vector<1x16x64xbf16> to vector<16x64xbf16>
    %60 = tpu.concatenate %57, %59 in 1 : vector<16x64xbf16>, vector<16x64xbf16> -> vector<16x128xbf16>
    %c0_85 = arith.constant 0 : index
    %c128_86 = arith.constant 128 : index
    %61 = vector.load %arg13[%c0_85, %c128_86] : memref<16x2688xbf16, #tpu.memory_space<vmem>>, vector<16x128xbf16>
    tpu.vector_store %arg13[%c0_85, %c128_86], %60 {strides = array<i32>} : memref<16x2688xbf16, #tpu.memory_space<vmem>>, vector<16x128xbf16>,
    %62 = vector.extract_strided_slice %49 {offsets = [4, 0, 0], sizes = [1, 16, 64], strides = [1, 1, 1]} : vector<42x16x64xbf16> to vector<1x16x64xbf16>
    %63 = vector.shape_cast %62 : vector<1x16x64xbf16> to vector<16x64xbf16>
    %64 = vector.extract_strided_slice %49 {offsets = [5, 0, 0], sizes = [1, 16, 64], strides = [1, 1, 1]} : vector<42x16x64xbf16> to vector<1x16x64xbf16>
    %65 = vector.shape_cast %64 : vector<1x16x64xbf16> to vector<16x64xbf16>
    %66 = tpu.concatenate %63, %65 in 1 : vector<16x64xbf16>, vector<16x64xbf16> -> vector<16x128xbf16>
    %c0_87 = arith.constant 0 : index
    %c256_88 = arith.constant 256 : index
    %67 = vector.load %arg13[%c0_87, %c256_88] : memref<16x2688xbf16, #tpu.memory_space<vmem>>, vector<16x128xbf16>
    tpu.vector_store %arg13[%c0_87, %c256_88], %66 {strides = array<i32>} : memref<16x2688xbf16, #tpu.memory_space<vmem>>, vector<16x128xbf16>,
    %68 = vector.extract_strided_slice %49 {offsets = [6, 0, 0], sizes = [1, 16, 64], strides = [1, 1, 1]} : vector<42x16x64xbf16> to vector<1x16x64xbf16>
    %69 = vector.shape_cast %68 : vector<1x16x64xbf16> to vector<16x64xbf16>
    %70 = vector.extract_strided_slice %49 {offsets = [7, 0, 0], sizes = [1, 16, 64], strides = [1, 1, 1]} : vector<42x16x64xbf16> to vector<1x16x64xbf16>
    %71 = vector.shape_cast %70 : vector<1x16x64xbf16> to vector<16x64xbf16>
    %72 = tpu.concatenate %69, %71 in 1 : vector<16x64xbf16>, vector<16x64xbf16> -> vector<16x128xbf16>
    %c0_89 = arith.constant 0 : index
    %c384 = arith.constant 384 : index
    %73 = vector.load %arg13[%c0_89, %c384] : memref<16x2688xbf16, #tpu.memory_space<vmem>>, vector<16x128xbf16>
    tpu.vector_store %arg13[%c0_89, %c384], %72 {strides = array<i32>} : memref<16x2688xbf16, #tpu.memory_space<vmem>>, vector<16x128xbf16>,
    %74 = vector.extract_strided_slice %49 {offsets = [8, 0, 0], sizes = [1, 16, 64], strides = [1, 1, 1]} : vector<42x16x64xbf16> to vector<1x16x64xbf16>
    %75 = vector.shape_cast %74 : vector<1x16x64xbf16> to vector<16x64xbf16>
    %76 = vector.extract_strided_slice %49 {offsets = [9, 0, 0], sizes = [1, 16, 64], strides = [1, 1, 1]} : vector<42x16x64xbf16> to vector<1x16x64xbf16>
    %77 = vector.shape_cast %76 : vector<1x16x64xbf16> to vector<16x64xbf16>
    %78 = tpu.concatenate %75, %77 in 1 : vector<16x64xbf16>, vector<16x64xbf16> -> vector<16x128xbf16>
    %c0_90 = arith.constant 0 : index
    %c512 = arith.constant 512 : index
    %79 = vector.load %arg13[%c0_90, %c512] : memref<16x2688xbf16, #tpu.memory_space<vmem>>, vector<16x128xbf16>
    tpu.vector_store %arg13[%c0_90, %c512], %78 {strides = array<i32>} : memref<16x2688xbf16, #tpu.memory_space<vmem>>, vector<16x128xbf16>,
    %80 = vector.extract_strided_slice %49 {offsets = [10, 0, 0], sizes = [1, 16, 64], strides = [1, 1, 1]} : vector<42x16x64xbf16> to vector<1x16x64xbf16>
    %81 = vector.shape_cast %80 : vector<1x16x64xbf16> to vector<16x64xbf16>
    %82 = vector.extract_strided_slice %49 {offsets = [11, 0, 0], sizes = [1, 16, 64], strides = [1, 1, 1]} : vector<42x16x64xbf16> to vector<1x16x64xbf16>
    %83 = vector.shape_cast %82 : vector<1x16x64xbf16> to vector<16x64xbf16>
    %84 = tpu.concatenate %81, %83 in 1 : vector<16x64xbf16>, vector<16x64xbf16> -> vector<16x128xbf16>
    %c0_91 = arith.constant 0 : index
    %c640 = arith.constant 640 : index
    %85 = vector.load %arg13[%c0_91, %c640] : memref<16x2688xbf16, #tpu.memory_space<vmem>>, vector<16x128xbf16>
    tpu.vector_store %arg13[%c0_91, %c640], %84 {strides = array<i32>} : memref<16x2688xbf16, #tpu.memory_space<vmem>>, vector<16x128xbf16>,
    %86 = vector.extract_strided_slice %49 {offsets = [12, 0, 0], sizes = [1, 16, 64], strides = [1, 1, 1]} : vector<42x16x64xbf16> to vector<1x16x64xbf16>
    %87 = vector.shape_cast %86 : vector<1x16x64xbf16> to vector<16x64xbf16>
    %88 = vector.extract_strided_slice %49 {offsets = [13, 0, 0], sizes = [1, 16, 64], strides = [1, 1, 1]} : vector<42x16x64xbf16> to vector<1x16x64xbf16>
    %89 = vector.shape_cast %88 : vector<1x16x64xbf16> to vector<16x64xbf16>
    %90 = tpu.concatenate %87, %89 in 1 : vector<16x64xbf16>, vector<16x64xbf16> -> vector<16x128xbf16>
    %c0_92 = arith.constant 0 : index
    %c768 = arith.constant 768 : index
    %91 = vector.load %arg13[%c0_92, %c768] : memref<16x2688xbf16, #tpu.memory_space<vmem>>, vector<16x128xbf16>
    tpu.vector_store %arg13[%c0_92, %c768], %90 {strides = array<i32>} : memref<16x2688xbf16, #tpu.memory_space<vmem>>, vector<16x128xbf16>,
    %92 = vector.extract_strided_slice %49 {offsets = [14, 0, 0], sizes = [1, 16, 64], strides = [1, 1, 1]} : vector<42x16x64xbf16> to vector<1x16x64xbf16>
    %93 = vector.shape_cast %92 : vector<1x16x64xbf16> to vector<16x64xbf16>
    %94 = vector.extract_strided_slice %49 {offsets = [15, 0, 0], sizes = [1, 16, 64], strides = [1, 1, 1]} : vector<42x16x64xbf16> to vector<1x16x64xbf16>
    %95 = vector.shape_cast %94 : vector<1x16x64xbf16> to vector<16x64xbf16>
    %96 = tpu.concatenate %93, %95 in 1 : vector<16x64xbf16>, vector<16x64xbf16> -> vector<16x128xbf16>
    %c0_93 = arith.constant 0 : index
    %c896 = arith.constant 896 : index
    %97 = vector.load %arg13[%c0_93, %c896] : memref<16x2688xbf16, #tpu.memory_space<vmem>>, vector<16x128xbf16>
    tpu.vector_store %arg13[%c0_93, %c896], %96 {strides = array<i32>} : memref<16x2688xbf16, #tpu.memory_space<vmem>>, vector<16x128xbf16>,
    %98 = vector.extract_strided_slice %49 {offsets = [16, 0, 0], sizes = [1, 16, 64], strides = [1, 1, 1]} : vector<42x16x64xbf16> to vector<1x16x64xbf16>
    %99 = vector.shape_cast %98 : vector<1x16x64xbf16> to vector<16x64xbf16>
    %100 = vector.extract_strided_slice %49 {offsets = [17, 0, 0], sizes = [1, 16, 64], strides = [1, 1, 1]} : vector<42x16x64xbf16> to vector<1x16x64xbf16>
    %101 = vector.shape_cast %100 : vector<1x16x64xbf16> to vector<16x64xbf16>
    %102 = tpu.concatenate %99, %101 in 1 : vector<16x64xbf16>, vector<16x64xbf16> -> vector<16x128xbf16>
    %c0_94 = arith.constant 0 : index
    %c1024 = arith.constant 1024 : index
    %103 = vector.load %arg13[%c0_94, %c1024] : memref<16x2688xbf16, #tpu.memory_space<vmem>>, vector<16x128xbf16>
    tpu.vector_store %arg13[%c0_94, %c1024], %102 {strides = array<i32>} : memref<16x2688xbf16, #tpu.memory_space<vmem>>, vector<16x128xbf16>,
    %104 = vector.extract_strided_slice %49 {offsets = [18, 0, 0], sizes = [1, 16, 64], strides = [1, 1, 1]} : vector<42x16x64xbf16> to vector<1x16x64xbf16>
    %105 = vector.shape_cast %104 : vector<1x16x64xbf16> to vector<16x64xbf16>
    %106 = vector.extract_strided_slice %49 {offsets = [19, 0, 0], sizes = [1, 16, 64], strides = [1, 1, 1]} : vector<42x16x64xbf16> to vector<1x16x64xbf16>
    %107 = vector.shape_cast %106 : vector<1x16x64xbf16> to vector<16x64xbf16>
    %108 = tpu.concatenate %105, %107 in 1 : vector<16x64xbf16>, vector<16x64xbf16> -> vector<16x128xbf16>
    %c0_95 = arith.constant 0 : index
    %c1152 = arith.constant 1152 : index
    %109 = vector.load %arg13[%c0_95, %c1152] : memref<16x2688xbf16, #tpu.memory_space<vmem>>, vector<16x128xbf16>
    tpu.vector_store %arg13[%c0_95, %c1152], %108 {strides = array<i32>} : memref<16x2688xbf16, #tpu.memory_space<vmem>>, vector<16x128xbf16>,
    %110 = vector.extract_strided_slice %49 {offsets = [20, 0, 0], sizes = [1, 16, 64], strides = [1, 1, 1]} : vector<42x16x64xbf16> to vector<1x16x64xbf16>
    %111 = vector.shape_cast %110 : vector<1x16x64xbf16> to vector<16x64xbf16>
    %112 = vector.extract_strided_slice %49 {offsets = [21, 0, 0], sizes = [1, 16, 64], strides = [1, 1, 1]} : vector<42x16x64xbf16> to vector<1x16x64xbf16>
    %113 = vector.shape_cast %112 : vector<1x16x64xbf16> to vector<16x64xbf16>
    %114 = tpu.concatenate %111, %113 in 1 : vector<16x64xbf16>, vector<16x64xbf16> -> vector<16x128xbf16>
    %c0_96 = arith.constant 0 : index
    %c1280 = arith.constant 1280 : index
    %115 = vector.load %arg13[%c0_96, %c1280] : memref<16x2688xbf16, #tpu.memory_space<vmem>>, vector<16x128xbf16>
    tpu.vector_store %arg13[%c0_96, %c1280], %114 {strides = array<i32>} : memref<16x2688xbf16, #tpu.memory_space<vmem>>, vector<16x128xbf16>,
    %116 = vector.extract_strided_slice %49 {offsets = [22, 0, 0], sizes = [1, 16, 64], strides = [1, 1, 1]} : vector<42x16x64xbf16> to vector<1x16x64xbf16>
    %117 = vector.shape_cast %116 : vector<1x16x64xbf16> to vector<16x64xbf16>
    %118 = vector.extract_strided_slice %49 {offsets = [23, 0, 0], sizes = [1, 16, 64], strides = [1, 1, 1]} : vector<42x16x64xbf16> to vector<1x16x64xbf16>
    %119 = vector.shape_cast %118 : vector<1x16x64xbf16> to vector<16x64xbf16>
    %120 = tpu.concatenate %117, %119 in 1 : vector<16x64xbf16>, vector<16x64xbf16> -> vector<16x128xbf16>
    %c0_97 = arith.constant 0 : index
    %c1408 = arith.constant 1408 : index
    %121 = vector.load %arg13[%c0_97, %c1408] : memref<16x2688xbf16, #tpu.memory_space<vmem>>, vector<16x128xbf16>
    tpu.vector_store %arg13[%c0_97, %c1408], %120 {strides = array<i32>} : memref<16x2688xbf16, #tpu.memory_space<vmem>>, vector<16x128xbf16>,
    %122 = vector.extract_strided_slice %49 {offsets = [24, 0, 0], sizes = [1, 16, 64], strides = [1, 1, 1]} : vector<42x16x64xbf16> to vector<1x16x64xbf16>
    %123 = vector.shape_cast %122 : vector<1x16x64xbf16> to vector<16x64xbf16>
    %124 = vector.extract_strided_slice %49 {offsets = [25, 0, 0], sizes = [1, 16, 64], strides = [1, 1, 1]} : vector<42x16x64xbf16> to vector<1x16x64xbf16>
    %125 = vector.shape_cast %124 : vector<1x16x64xbf16> to vector<16x64xbf16>
    %126 = tpu.concatenate %123, %125 in 1 : vector<16x64xbf16>, vector<16x64xbf16> -> vector<16x128xbf16>
    %c0_98 = arith.constant 0 : index
    %c1536 = arith.constant 1536 : index
    %127 = vector.load %arg13[%c0_98, %c1536] : memref<16x2688xbf16, #tpu.memory_space<vmem>>, vector<16x128xbf16>
    tpu.vector_store %arg13[%c0_98, %c1536], %126 {strides = array<i32>} : memref<16x2688xbf16, #tpu.memory_space<vmem>>, vector<16x128xbf16>,
    %128 = vector.extract_strided_slice %49 {offsets = [26, 0, 0], sizes = [1, 16, 64], strides = [1, 1, 1]} : vector<42x16x64xbf16> to vector<1x16x64xbf16>
    %129 = vector.shape_cast %128 : vector<1x16x64xbf16> to vector<16x64xbf16>
    %130 = vector.extract_strided_slice %49 {offsets = [27, 0, 0], sizes = [1, 16, 64], strides = [1, 1, 1]} : vector<42x16x64xbf16> to vector<1x16x64xbf16>
    %131 = vector.shape_cast %130 : vector<1x16x64xbf16> to vector<16x64xbf16>
    %132 = tpu.concatenate %129, %131 in 1 : vector<16x64xbf16>, vector<16x64xbf16> -> vector<16x128xbf16>
    %c0_99 = arith.constant 0 : index
    %c1664 = arith.constant 1664 : index
    %133 = vector.load %arg13[%c0_99, %c1664] : memref<16x2688xbf16, #tpu.memory_space<vmem>>, vector<16x128xbf16>
    tpu.vector_store %arg13[%c0_99, %c1664], %132 {strides = array<i32>} : memref<16x2688xbf16, #tpu.memory_space<vmem>>, vector<16x128xbf16>,
    %134 = vector.extract_strided_slice %49 {offsets = [28, 0, 0], sizes = [1, 16, 64], strides = [1, 1, 1]} : vector<42x16x64xbf16> to vector<1x16x64xbf16>
    %135 = vector.shape_cast %134 : vector<1x16x64xbf16> to vector<16x64xbf16>
    %136 = vector.extract_strided_slice %49 {offsets = [29, 0, 0], sizes = [1, 16, 64], strides = [1, 1, 1]} : vector<42x16x64xbf16> to vector<1x16x64xbf16>
    %137 = vector.shape_cast %136 : vector<1x16x64xbf16> to vector<16x64xbf16>
    %138 = tpu.concatenate %135, %137 in 1 : vector<16x64xbf16>, vector<16x64xbf16> -> vector<16x128xbf16>
    %c0_100 = arith.constant 0 : index
    %c1792 = arith.constant 1792 : index
    %139 = vector.load %arg13[%c0_100, %c1792] : memref<16x2688xbf16, #tpu.memory_space<vmem>>, vector<16x128xbf16>
    tpu.vector_store %arg13[%c0_100, %c1792], %138 {strides = array<i32>} : memref<16x2688xbf16, #tpu.memory_space<vmem>>, vector<16x128xbf16>,
    %140 = vector.extract_strided_slice %49 {offsets = [30, 0, 0], sizes = [1, 16, 64], strides = [1, 1, 1]} : vector<42x16x64xbf16> to vector<1x16x64xbf16>
    %141 = vector.shape_cast %140 : vector<1x16x64xbf16> to vector<16x64xbf16>
    %142 = vector.extract_strided_slice %49 {offsets = [31, 0, 0], sizes = [1, 16, 64], strides = [1, 1, 1]} : vector<42x16x64xbf16> to vector<1x16x64xbf16>
    %143 = vector.shape_cast %142 : vector<1x16x64xbf16> to vector<16x64xbf16>
    %144 = tpu.concatenate %141, %143 in 1 : vector<16x64xbf16>, vector<16x64xbf16> -> vector<16x128xbf16>
    %c0_101 = arith.constant 0 : index
    %c1920 = arith.constant 1920 : index
    %145 = vector.load %arg13[%c0_101, %c1920] : memref<16x2688xbf16, #tpu.memory_space<vmem>>, vector<16x128xbf16>
    tpu.vector_store %arg13[%c0_101, %c1920], %144 {strides = array<i32>} : memref<16x2688xbf16, #tpu.memory_space<vmem>>, vector<16x128xbf16>,
    %146 = vector.extract_strided_slice %49 {offsets = [32, 0, 0], sizes = [1, 16, 64], strides = [1, 1, 1]} : vector<42x16x64xbf16> to vector<1x16x64xbf16>
    %147 = vector.shape_cast %146 : vector<1x16x64xbf16> to vector<16x64xbf16>
    %148 = vector.extract_strided_slice %49 {offsets = [33, 0, 0], sizes = [1, 16, 64], strides = [1, 1, 1]} : vector<42x16x64xbf16> to vector<1x16x64xbf16>
    %149 = vector.shape_cast %148 : vector<1x16x64xbf16> to vector<16x64xbf16>
    %150 = tpu.concatenate %147, %149 in 1 : vector<16x64xbf16>, vector<16x64xbf16> -> vector<16x128xbf16>
    %c0_102 = arith.constant 0 : index
    %c2048 = arith.constant 2048 : index
    %151 = vector.load %arg13[%c0_102, %c2048] : memref<16x2688xbf16, #tpu.memory_space<vmem>>, vector<16x128xbf16>
    tpu.vector_store %arg13[%c0_102, %c2048], %150 {strides = array<i32>} : memref<16x2688xbf16, #tpu.memory_space<vmem>>, vector<16x128xbf16>,
    %152 = vector.extract_strided_slice %49 {offsets = [34, 0, 0], sizes = [1, 16, 64], strides = [1, 1, 1]} : vector<42x16x64xbf16> to vector<1x16x64xbf16>
    %153 = vector.shape_cast %152 : vector<1x16x64xbf16> to vector<16x64xbf16>
    %154 = vector.extract_strided_slice %49 {offsets = [35, 0, 0], sizes = [1, 16, 64], strides = [1, 1, 1]} : vector<42x16x64xbf16> to vector<1x16x64xbf16>
    %155 = vector.shape_cast %154 : vector<1x16x64xbf16> to vector<16x64xbf16>
    %156 = tpu.concatenate %153, %155 in 1 : vector<16x64xbf16>, vector<16x64xbf16> -> vector<16x128xbf16>
    %c0_103 = arith.constant 0 : index
    %c2176 = arith.constant 2176 : index
    %157 = vector.load %arg13[%c0_103, %c2176] : memref<16x2688xbf16, #tpu.memory_space<vmem>>, vector<16x128xbf16>
    tpu.vector_store %arg13[%c0_103, %c2176], %156 {strides = array<i32>} : memref<16x2688xbf16, #tpu.memory_space<vmem>>, vector<16x128xbf16>,
    %158 = vector.extract_strided_slice %49 {offsets = [36, 0, 0], sizes = [1, 16, 64], strides = [1, 1, 1]} : vector<42x16x64xbf16> to vector<1x16x64xbf16>
    %159 = vector.shape_cast %158 : vector<1x16x64xbf16> to vector<16x64xbf16>
    %160 = vector.extract_strided_slice %49 {offsets = [37, 0, 0], sizes = [1, 16, 64], strides = [1, 1, 1]} : vector<42x16x64xbf16> to vector<1x16x64xbf16>
    %161 = vector.shape_cast %160 : vector<1x16x64xbf16> to vector<16x64xbf16>
    %162 = tpu.concatenate %159, %161 in 1 : vector<16x64xbf16>, vector<16x64xbf16> -> vector<16x128xbf16>
    %c0_104 = arith.constant 0 : index
    %c2304 = arith.constant 2304 : index
    %163 = vector.load %arg13[%c0_104, %c2304] : memref<16x2688xbf16, #tpu.memory_space<vmem>>, vector<16x128xbf16>
    tpu.vector_store %arg13[%c0_104, %c2304], %162 {strides = array<i32>} : memref<16x2688xbf16, #tpu.memory_space<vmem>>, vector<16x128xbf16>,
    %164 = vector.extract_strided_slice %49 {offsets = [38, 0, 0], sizes = [1, 16, 64], strides = [1, 1, 1]} : vector<42x16x64xbf16> to vector<1x16x64xbf16>
    %165 = vector.shape_cast %164 : vector<1x16x64xbf16> to vector<16x64xbf16>
    %166 = vector.extract_strided_slice %49 {offsets = [39, 0, 0], sizes = [1, 16, 64], strides = [1, 1, 1]} : vector<42x16x64xbf16> to vector<1x16x64xbf16>
    %167 = vector.shape_cast %166 : vector<1x16x64xbf16> to vector<16x64xbf16>
    %168 = tpu.concatenate %165, %167 in 1 : vector<16x64xbf16>, vector<16x64xbf16> -> vector<16x128xbf16>
    %c0_105 = arith.constant 0 : index
    %c2432 = arith.constant 2432 : index
    %169 = vector.load %arg13[%c0_105, %c2432] : memref<16x2688xbf16, #tpu.memory_space<vmem>>, vector<16x128xbf16>
    tpu.vector_store %arg13[%c0_105, %c2432], %168 {strides = array<i32>} : memref<16x2688xbf16, #tpu.memory_space<vmem>>, vector<16x128xbf16>,
    %170 = vector.extract_strided_slice %49 {offsets = [40, 0, 0], sizes = [1, 16, 64], strides = [1, 1, 1]} : vector<42x16x64xbf16> to vector<1x16x64xbf16>
    %171 = vector.shape_cast %170 : vector<1x16x64xbf16> to vector<16x64xbf16>
    %172 = vector.extract_strided_slice %49 {offsets = [41, 0, 0], sizes = [1, 16, 64], strides = [1, 1, 1]} : vector<42x16x64xbf16> to vector<1x16x64xbf16>
    %173 = vector.shape_cast %172 : vector<1x16x64xbf16> to vector<16x64xbf16>
    %174 = tpu.concatenate %171, %173 in 1 : vector<16x64xbf16>, vector<16x64xbf16> -> vector<16x128xbf16>
    %c0_106 = arith.constant 0 : index
    %c2560 = arith.constant 2560 : index
    %175 = vector.load %arg13[%c0_106, %c2560] : memref<16x2688xbf16, #tpu.memory_space<vmem>>, vector<16x128xbf16>
    tpu.vector_store %arg13[%c0_106, %c2560], %174 {strides = array<i32>} : memref<16x2688xbf16, #tpu.memory_space<vmem>>, vector<16x128xbf16>,
    %c0_107 = arith.constant 0 : index
    %c0_108 = arith.constant 0 : index
    %176 = vector.load %arg13[%c0_107, %c0_108] : memref<16x2688xbf16, #tpu.memory_space<vmem>>, vector<16x2688xbf16>
    %c0_109 = arith.constant 0 : index
    %c0_110 = arith.constant 0 : index
    %177 = vector.load %arg6[%c0_109, %c0_110] : memref<2688x128xbf16, #tpu.memory_space<vmem>>, vector<2688x128xbf16>
    %cst_111 = arith.constant dense<0.000000e+00> : vector<16x128xf32>
    %178 = tpu.matmul %176, %177, %cst_111 {dimension_numbers = #tpu.dot_dimension_numbers<[1], [0], [0], [1], [0, 0, 1, 1], [], []>} : vector<16x2688xbf16>, vector<2688x128xbf16>, vector<16x128xf32> -> vector<16x128xf32>
    %c0_112 = arith.constant 0 : index
    %c0_113 = arith.constant 0 : index
    %179 = vector.load %arg7[%c0_112, %c0_113] : memref<1x128xf32, #tpu.memory_space<vmem>>, vector<1x128xf32>
    %180 = vector.broadcast %179 : vector<1x128xf32> to vector<16x128xf32>
    %181 = arith.addf %178, %180 : vector<16x128xf32>
    %cst_114 = arith.constant 0.000000e+00 : f32
    %182 = vector.broadcast %cst_114 : f32 to vector<16x128xf32>
    %183 = arith.maximumf %181, %182 : vector<16x128xf32>
    %184 = arith.truncf %183 : vector<16x128xf32> to vector<16x128xbf16>
    %c0_115 = arith.constant 0 : index
    %c0_116 = arith.constant 0 : index
    %185 = vector.load %arg8[%c0_115, %c0_116] : memref<128x128xbf16, #tpu.memory_space<vmem>>, vector<128x128xbf16>
    %cst_117 = arith.constant dense<0.000000e+00> : vector<16x128xf32>
    %186 = tpu.matmul %184, %185, %cst_117 {dimension_numbers = #tpu.dot_dimension_numbers<[1], [0], [0], [1], [0, 0, 1, 1], [], []>} : vector<16x128xbf16>, vector<128x128xbf16>, vector<16x128xf32> -> vector<16x128xf32>
    %c0_118 = arith.constant 0 : index
    %c0_119 = arith.constant 0 : index
    %187 = vector.load %arg9[%c0_118, %c0_119] : memref<1x128xf32, #tpu.memory_space<vmem>>, vector<1x128xf32>
    %188 = vector.broadcast %187 : vector<1x128xf32> to vector<16x128xf32>
    %189 = arith.addf %186, %188 : vector<16x128xf32>
    %c0_120 = arith.constant 0 : index
    %c0_121 = arith.constant 0 : index
    %190 = vector.load %arg10[%c0_120, %c0_121] : memref<16x128xf32, #tpu.memory_space<vmem>>, vector<16x128xf32>
    tpu.vector_store %arg10[%c0_120, %c0_121], %189 {strides = array<i32>} : memref<16x128xf32, #tpu.memory_space<vmem>>, vector<16x128xf32>,
    return
  }
  func.func @transform_0(%arg0: i32) -> (i32, i32, i32) {
    %c0_i32 = arith.constant 0 : i32
    %c0_i32_0 = arith.constant 0 : i32
    %c0_i32_1 = arith.constant 0 : i32
    return %c0_i32, %arg0, %c0_i32_0 : i32, i32, i32
  }
  func.func @transform_1(%arg0: i32) -> (i32, i32) {
    %c0_i32 = arith.constant 0 : i32
    %c0_i32_0 = arith.constant 0 : i32
    %c0_i32_1 = arith.constant 0 : i32
    return %c0_i32, %c0_i32_0 : i32, i32
  }
  func.func @transform_2(%arg0: i32) -> (i32, i32) {
    %c0_i32 = arith.constant 0 : i32
    %c0_i32_0 = arith.constant 0 : i32
    %c0_i32_1 = arith.constant 0 : i32
    return %c0_i32, %c0_i32_0 : i32, i32
  }
  func.func @transform_3(%arg0: i32) -> (i32, i32) {
    %c0_i32 = arith.constant 0 : i32
    %c0_i32_0 = arith.constant 0 : i32
    %c0_i32_1 = arith.constant 0 : i32
    return %c0_i32, %c0_i32_0 : i32, i32
  }
  func.func @transform_4(%arg0: i32) -> (i32, i32) {
    %c0_i32 = arith.constant 0 : i32
    %c0_i32_0 = arith.constant 0 : i32
    %c0_i32_1 = arith.constant 0 : i32
    return %c0_i32, %c0_i32_0 : i32, i32
  }
  func.func @transform_5(%arg0: i32) -> (i32, i32) {
    %c0_i32 = arith.constant 0 : i32
    %c0_i32_0 = arith.constant 0 : i32
    %c0_i32_1 = arith.constant 0 : i32
    return %c0_i32, %c0_i32_0 : i32, i32
  }
  func.func @transform_6(%arg0: i32) -> (i32, i32) {
    %c0_i32 = arith.constant 0 : i32
    %c0_i32_0 = arith.constant 0 : i32
    %c0_i32_1 = arith.constant 0 : i32
    return %c0_i32, %c0_i32_0 : i32, i32
  }
  func.func @transform_7(%arg0: i32) -> (i32, i32) {
    %c0_i32 = arith.constant 0 : i32
    %c0_i32_0 = arith.constant 0 : i32
    %c0_i32_1 = arith.constant 0 : i32
    return %c0_i32, %c0_i32_0 : i32, i32
  }
  func.func @transform_8(%arg0: i32) -> (i32, i32) {
    %c0_i32 = arith.constant 0 : i32
    %c0_i32_0 = arith.constant 0 : i32
    %c0_i32_1 = arith.constant 0 : i32
    return %c0_i32, %c0_i32_0 : i32, i32
  }
  func.func @transform_9(%arg0: i32) -> (i32, i32) {
    %c0_i32 = arith.constant 0 : i32
    %c0_i32_0 = arith.constant 0 : i32
    return %arg0, %c0_i32 : i32, i32
  }
}

</mosaic_0001>

<llo_original>
// kernel: dqn_forward.1
$region0: #{dqn_forward.1}
  #allocation0 [shape = 'u32[]', space=smem, size = 0x4, offset = 0x4, fixed_abs, tag = 'smem constant byte address 0x4 - core index']
  #allocation1 [shape = 'u32[144,128]{1,0:T(1,128)}', space=vmem, size = 0x12000, scoped, tag = 'internal scratch']
  #allocation2 [shape = 'bf16[8,9,16,32]{3,2,1,0:T(8,128)(2,1)}', space=vmem, size = 0x48000, scoped, tag = 'scratch operand']
  #allocation3 [shape = 'bf16[6,7,16,288]{3,2,1,0:T(8,128)(2,1)}', space=vmem, size = 0x7e000, scoped, tag = 'scratch operand']
  #allocation4 [shape = 'bf16[16,2688]{1,0:T(8,128)(2,1)}', space=vmem, size = 0x15000, scoped, tag = 'scratch operand']
  %s0 = inlined_call_operand.vmem [shape: bf16[42,32,18], index: 0, kind: input, shape index: {}]
  %s1 = inlined_call_operand.vmem [shape: bf16[18,32], index: 1, kind: input, shape index: {}]
  %s2 = inlined_call_operand.vmem [shape: f32[1,32], index: 2, kind: input, shape index: {}]
  %s3 = inlined_call_operand.vmem [shape: bf16[288,64], index: 3, kind: input, shape index: {}]
  %s4 = inlined_call_operand.vmem [shape: f32[1,64], index: 4, kind: input, shape index: {}]
  %s5 = inlined_call_operand.vmem [shape: bf16[2688,128], index: 5, kind: input, shape index: {}]
  %s6 = inlined_call_operand.vmem [shape: f32[1,128], index: 6, kind: input, shape index: {}]
  %s7 = inlined_call_operand.vmem [shape: bf16[128,128], index: 7, kind: input, shape index: {}]
  %s8 = inlined_call_operand.vmem [shape: f32[1,128], index: 8, kind: input, shape index: {}]
  %s9 = inlined_call_operand.vmem [shape: f32[32,128], index: 9, kind: output, shape index: {}]
  %s10 = sld [smem:[#allocation0]]
  $region110: #{dqn_forward.1} parent=0
    _
  %s12 = ssub.s32 1, %s10
  %s13 = scalar_select 0, %s12, %s10
  $region1: #{dqn_forward.1} parent=0
    #allocation5 [shape = 'u8[344064]{0}', space=vmem, size = 0x54000, scoped, tag = 'input window, operand 0']
    loop: start=0, step=1, limit=4
    $region2: #{dqn_forward.1} parent=1 // loop_pre_header
      _
    $region3: #{dqn_forward.1} parent=1 // loop_header
      %s15 = sphi 0, %s19
      %p16 = scmp.ge.s32.totalorder %s15, 4
      %s25 = sphi 0, %s27
      %s28 = sphi 0, %s25
      %s29 = sphi 0, %s28
      %s45 = sphi 0, %s29
      %s49 = sphi 0, %s49
      %s51 = sphi 0, %s49
      %s52 = sphi 0, %s51
      %s66 = sphi 0, %s52
      %s70 = sphi 0, %s70
      %s72 = sphi 0, %s70
      %s73 = sphi 0, %s72
      %s87 = sphi 0, %s73
      %s91 = sphi 0, %s91
      %s93 = sphi 0, %s91
      %s94 = sphi 0, %s93
      %s108 = sphi 0, %s94
      %s112 = sphi 0, %s112
      %s114 = sphi 0, %s112
      %s115 = sphi 0, %s114
      %s129 = sphi 0, %s115
      %s133 = sphi 0, %s133
      %s135 = sphi 0, %s133
      %s136 = sphi 0, %s135
      %s150 = sphi 0, %s136
      %s154 = sphi 0, %s154
      %s156 = sphi 0, %s154
      %s157 = sphi 0, %s156
      %s171 = sphi 0, %s157
      %s175 = sphi 0, %s175
      %s177 = sphi 0, %s175
      %s178 = sphi 0, %s177
      %s192 = sphi 0, %s178
      %s196 = sphi 0, %s196
      %s198 = sphi 0, %s196
      %s199 = sphi 0, %s198
      %s213 = sphi 0, %s199
      %s219 = sphi 0, %s221
      %s222 = sphi 0, %s219
      %s223 = sphi 0, %s222
      %s239 = sphi 0, %s223
    $region4: #{dqn_forward.1} parent=1 // loop_header_branch
      %18 = sbr.rel (%p16) target = $region8
    $region5: #{dqn_forward.1} parent=1 // loop_body
      %s20 = ssub.s32 %s15, 1
      %s21 = ssub.s32 %s15, 2
      %s22 = sadd.s32 %s15, 1
      %s23 = ssub.s32 %s15, %s22
      %p24 = scmp.eq.s32.totalorder %s23, 0
      %s26 = sadd.s32 %s25, 1
      %s27 = scalar_select %p24, %s25, %s26
      %p30 = pneg %p24
      %p31 = scmp.eq.s32.totalorder %s15, 1
      %p32 = por %p30, %p31
      %p33 = scmp.ne.s32.totalorder %s25, %s28
      %p34 = scmp.eq.s32.totalorder %s15, 0
      %p35 = por %p33, %p34
      %p36 = scmp.ne.s32.totalorder %s25, %s28
      %p37 = scmp.eq.s32.totalorder %s20, 1
      %p38 = por %p36, %p37
      %p39 = scmp.ne.s32.totalorder %s28, %s29
      %p40 = scmp.eq.s32.totalorder %s20, 0
      %p41 = por %p39, %p40
      %p42 = scmp.ne.s32.totalorder %s28, %s29
      %p43 = scmp.eq.s32.totalorder %s21, 1
      %p44 = por %p42, %p43
      %p46 = scmp.ne.s32.totalorder %s29, %s45
      %p47 = scmp.eq.s32.totalorder %s21, 0
      %p48 = por %p46, %p47
      %s50 = sadd.s32 %s49, 1
      %p53 = scmp.eq.s32.totalorder %s15, 1
      %p54 = scmp.ne.s32.totalorder %s49, %s51
      %p55 = scmp.eq.s32.totalorder %s15, 0
      %p56 = por %p54, %p55
      %p57 = scmp.ne.s32.totalorder %s49, %s51
      %p58 = scmp.eq.s32.totalorder %s20, 1
      %p59 = por %p57, %p58
      %p60 = scmp.ne.s32.totalorder %s51, %s52
      %p61 = scmp.eq.s32.totalorder %s20, 0
      %p62 = por %p60, %p61
      %p63 = scmp.ne.s32.totalorder %s51, %s52
      %p64 = scmp.eq.s32.totalorder %s21, 1
      %p65 = por %p63, %p64
      %p67 = scmp.ne.s32.totalorder %s52, %s66
      %p68 = scmp.eq.s32.totalorder %s21, 0
      %p69 = por %p67, %p68
      %s71 = sadd.s32 %s70, 1
      %p74 = scmp.eq.s32.totalorder %s15, 1
      %p75 = scmp.ne.s32.totalorder %s70, %s72
      %p76 = scmp.eq.s32.totalorder %s15, 0
      %p77 = por %p75, %p76
      %p78 = scmp.ne.s32.totalorder %s70, %s72
      %p79 = scmp.eq.s32.totalorder %s20, 1
      %p80 = por %p78, %p79
      %p81 = scmp.ne.s32.totalorder %s72, %s73
      %p82 = scmp.eq.s32.totalorder %s20, 0
      %p83 = por %p81, %p82
      %p84 = scmp.ne.s32.totalorder %s72, %s73
      %p85 = scmp.eq.s32.totalorder %s21, 1
      %p86 = por %p84, %p85
      %p88 = scmp.ne.s32.totalorder %s73, %s87
      %p89 = scmp.eq.s32.totalorder %s21, 0
      %p90 = por %p88, %p89
      %s92 = sadd.s32 %s91, 1
      %p95 = scmp.eq.s32.totalorder %s15, 1
      %p96 = scmp.ne.s32.totalorder %s91, %s93
      %p97 = scmp.eq.s32.totalorder %s15, 0
      %p98 = por %p96, %p97
      %p99 = scmp.ne.s32.totalorder %s91, %s93
      %p100 = scmp.eq.s32.totalorder %s20, 1
      %p101 = por %p99, %p100
      %p102 = scmp.ne.s32.totalorder %s93, %s94
      %p103 = scmp.eq.s32.totalorder %s20, 0
      %p104 = por %p102, %p103
      %p105 = scmp.ne.s32.totalorder %s93, %s94
      %p106 = scmp.eq.s32.totalorder %s21, 1
      %p107 = por %p105, %p106
      %p109 = scmp.ne.s32.totalorder %s94, %s108
      %p110 = scmp.eq.s32.totalorder %s21, 0
      %p111 = por %p109, %p110
      %s113 = sadd.s32 %s112, 1
      %p116 = scmp.eq.s32.totalorder %s15, 1
      %p117 = scmp.ne.s32.totalorder %s112, %s114
      %p118 = scmp.eq.s32.totalorder %s15, 0
      %p119 = por %p117, %p118
      %p120 = scmp.ne.s32.totalorder %s112, %s114
      %p121 = scmp.eq.s32.totalorder %s20, 1
      %p122 = por %p120, %p121
      %p123 = scmp.ne.s32.totalorder %s114, %s115
      %p124 = scmp.eq.s32.totalorder %s20, 0
      %p125 = por %p123, %p124
      %p126 = scmp.ne.s32.totalorder %s114, %s115
      %p127 = scmp.eq.s32.totalorder %s21, 1
      %p128 = por %p126, %p127
      %p130 = scmp.ne.s32.totalorder %s115, %s129
      %p131 = scmp.eq.s32.totalorder %s21, 0
      %p132 = por %p130, %p131
      %s134 = sadd.s32 %s133, 1
      %p137 = scmp.eq.s32.totalorder %s15, 1
      %p138 = scmp.ne.s32.totalorder %s133, %s135
      %p139 = scmp.eq.s32.totalorder %s15, 0
      %p140 = por %p138, %p139
      %p141 = scmp.ne.s32.totalorder %s133, %s135
      %p142 = scmp.eq.s32.totalorder %s20, 1
      %p143 = por %p141, %p142
      %p144 = scmp.ne.s32.totalorder %s135, %s136
      %p145 = scmp.eq.s32.totalorder %s20, 0
      %p146 = por %p144, %p145
      %p147 = scmp.ne.s32.totalorder %s135, %s136
      %p148 = scmp.eq.s32.totalorder %s21, 1
      %p149 = por %p147, %p148
      %p151 = scmp.ne.s32.totalorder %s136, %s150
      %p152 = scmp.eq.s32.totalorder %s21, 0
      %p153 = por %p151, %p152
      %s155 = sadd.s32 %s154, 1
      %p158 = scmp.eq.s32.totalorder %s15, 1
      %p159 = scmp.ne.s32.totalorder %s154, %s156
      %p160 = scmp.eq.s32.totalorder %s15, 0
      %p161 = por %p159, %p160
      %p162 = scmp.ne.s32.totalorder %s154, %s156
      %p163 = scmp.eq.s32.totalorder %s20, 1
      %p164 = por %p162, %p163
      %p165 = scmp.ne.s32.totalorder %s156, %s157
      %p166 = scmp.eq.s32.totalorder %s20, 0
      %p167 = por %p165, %p166
      %p168 = scmp.ne.s32.totalorder %s156, %s157
      %p169 = scmp.eq.s32.totalorder %s21, 1
      %p170 = por %p168, %p169
      %p172 = scmp.ne.s32.totalorder %s157, %s171
      %p173 = scmp.eq.s32.totalorder %s21, 0
      %p174 = por %p172, %p173
      %s176 = sadd.s32 %s175, 1
      %p179 = scmp.eq.s32.totalorder %s15, 1
      %p180 = scmp.ne.s32.totalorder %s175, %s177
      %p181 = scmp.eq.s32.totalorder %s15, 0
      %p182 = por %p180, %p181
      %p183 = scmp.ne.s32.totalorder %s175, %s177
      %p184 = scmp.eq.s32.totalorder %s20, 1
      %p185 = por %p183, %p184
      %p186 = scmp.ne.s32.totalorder %s177, %s178
      %p187 = scmp.eq.s32.totalorder %s20, 0
      %p188 = por %p186, %p187
      %p189 = scmp.ne.s32.totalorder %s177, %s178
      %p190 = scmp.eq.s32.totalorder %s21, 1
      %p191 = por %p189, %p190
      %p193 = scmp.ne.s32.totalorder %s178, %s192
      %p194 = scmp.eq.s32.totalorder %s21, 0
      %p195 = por %p193, %p194
      %s197 = sadd.s32 %s196, 1
      %p200 = scmp.eq.s32.totalorder %s15, 1
      %p201 = scmp.ne.s32.totalorder %s196, %s198
      %p202 = scmp.eq.s32.totalorder %s15, 0
      %p203 = por %p201, %p202
      %p204 = scmp.ne.s32.totalorder %s196, %s198
      %p205 = scmp.eq.s32.totalorder %s20, 1
      %p206 = por %p204, %p205
      %p207 = scmp.ne.s32.totalorder %s198, %s199
      %p208 = scmp.eq.s32.totalorder %s20, 0
      %p209 = por %p207, %p208
      %p210 = scmp.ne.s32.totalorder %s198, %s199
      %p211 = scmp.eq.s32.totalorder %s21, 1
      %p212 = por %p210, %p211
      %p214 = scmp.ne.s32.totalorder %s199, %s213
      %p215 = scmp.eq.s32.totalorder %s21, 0
      %p216 = por %p214, %p215
      %s217 = ssub.s32 %s15, %s22
      %p218 = scmp.eq.s32.totalorder %s217, 0
      %s220 = sadd.s32 %s219, 1
      %s221 = scalar_select %p218, %s219, %s220
      %p224 = pneg %p218
      %p225 = scmp.eq.s32.totalorder %s15, 1
      %p226 = por %p224, %p225
      %p227 = scmp.ne.s32.totalorder %s219, %s222
      %p228 = scmp.eq.s32.totalorder %s15, 0
      %p229 = por %p227, %p228
      %p230 = scmp.ne.s32.totalorder %s219, %s222
      %p231 = scmp.eq.s32.totalorder %s20, 1
      %p232 = por %p230, %p231
      %p233 = scmp.ne.s32.totalorder %s222, %s223
      %p234 = scmp.eq.s32.totalorder %s20, 0
      %p235 = por %p233, %p234
      %p236 = scmp.ne.s32.totalorder %s222, %s223
      %p237 = scmp.eq.s32.totalorder %s21, 1
      %p238 = por %p236, %p237
      %p240 = scmp.ne.s32.totalorder %s223, %s239
      %p241 = scmp.eq.s32.totalorder %s21, 0
      %p242 = por %p240, %p241
      %p243 = scmp.le.s32.totalorder 1, %s15
      %p244 = scmp.lt.s32.totalorder %s15, 3
      %p245 = pnand %p243, %p244
      %p246 = pneg %p245
      // Predicated region
      $region9: #{dqn_forward.1} parent=5 // pred_check
        _
      $region10: #{dqn_forward.1} parent=5 // pred_check_branch
        %248 = sbr.rel (%p245) target = $region12
      $region11: #{dqn_forward.1} parent=5 // pred_region
        %s249 = ssub.s32 %s15, 1
        // Predicated region
        $region13: #{dqn_forward.1} parent=11 // pred_check
          %p250 = pneg %p62
        $region14: #{dqn_forward.1} parent=11 // pred_check_branch
          %252 = sbr.rel (%p250) target = $region16
        $region15: #{dqn_forward.1} parent=11 // pred_region
          _
        $region16: #{dqn_forward.1} parent=11 // pred_fallthru
          _
        // Predicated region
        $region17: #{dqn_forward.1} parent=11 // pred_check
          %p253 = pneg %p83
        $region18: #{dqn_forward.1} parent=11 // pred_check_branch
          %255 = sbr.rel (%p253) target = $region20
        $region19: #{dqn_forward.1} parent=11 // pred_region
          _
        $region20: #{dqn_forward.1} parent=11 // pred_fallthru
          _
        // Predicated region
        $region21: #{dqn_forward.1} parent=11 // pred_check
          %p256 = pneg %p104
        $region22: #{dqn_forward.1} parent=11 // pred_check_branch
          %258 = sbr.rel (%p256) target = $region24
        $region23: #{dqn_forward.1} parent=11 // pred_region
          _
        $region24: #{dqn_forward.1} parent=11 // pred_fallthru
          _
        // Predicated region
        $region25: #{dqn_forward.1} parent=11 // pred_check
          %p259 = pneg %p125
        $region26: #{dqn_forward.1} parent=11 // pred_check_branch
          %261 = sbr.rel (%p259) target = $region28
        $region27: #{dqn_forward.1} parent=11 // pred_region
          _
        $region28: #{dqn_forward.1} parent=11 // pred_fallthru
          _
        // Predicated region
        $region29: #{dqn_forward.1} parent=11 // pred_check
          %p262 = pneg %p146
        $region30: #{dqn_forward.1} parent=11 // pred_check_branch
          %264 = sbr.rel (%p262) target = $region32
        $region31: #{dqn_forward.1} parent=11 // pred_region
          _
        $region32: #{dqn_forward.1} parent=11 // pred_fallthru
          _
        // Predicated region
        $region33: #{dqn_forward.1} parent=11 // pred_check
          %p265 = pneg %p167
        $region34: #{dqn_forward.1} parent=11 // pred_check_branch
          %267 = sbr.rel (%p265) target = $region36
        $region35: #{dqn_forward.1} parent=11 // pred_region
          _
        $region36: #{dqn_forward.1} parent=11 // pred_fallthru
          _
        // Predicated region
        $region37: #{dqn_forward.1} parent=11 // pred_check
          %p268 = pneg %p188
        $region38: #{dqn_forward.1} parent=11 // pred_check_branch
          %270 = sbr.rel (%p268) target = $region40
        $region39: #{dqn_forward.1} parent=11 // pred_region
          _
        $region40: #{dqn_forward.1} parent=11 // pred_fallthru
          _
        // Predicated region
        $region41: #{dqn_forward.1} parent=11 // pred_check
          %p271 = pneg %p209
        $region42: #{dqn_forward.1} parent=11 // pred_check_branch
          %273 = sbr.rel (%p271) target = $region44
        $region43: #{dqn_forward.1} parent=11 // pred_region
          _
        $region44: #{dqn_forward.1} parent=11 // pred_fallthru
          _
      $region12: #{dqn_forward.1} parent=5 // pred_fallthru
        _
      %p274 = scmp.lt.s32.totalorder %s15, 2
      // Predicated region
      $region45: #{dqn_forward.1} parent=5 // pred_check
        %p275 = pneg %p274
      $region46: #{dqn_forward.1} parent=5 // pred_check_branch
        %277 = sbr.rel (%p275) target = $region48
      $region47: #{dqn_forward.1} parent=5 // pred_region
        // Predicated region
        $region49: #{dqn_forward.1} parent=47 // pred_check
          %p278 = pneg %p35
        $region50: #{dqn_forward.1} parent=47 // pred_check_branch
          %280 = sbr.rel (%p278) target = $region52
        $region51: #{dqn_forward.1} parent=47 // pred_region
          %s281 = sand.u32 %s25, 1
          %s282 = sand.u32 %s25, 1
          %s283 = smul.addr %s282, 336
          %s284 = scalar_lea.vmem [#allocation5], %s283
          %s285 = smul.u32 2, %s15
          %s286 = smul.addr %s285, 4
          %s287 = scalar_lea.vmem %s0, %s286
          // Predicated region
          $region53: #{dqn_forward.1} parent=51 // pred_check
            _
          $region54: #{dqn_forward.1} parent=51 // pred_check_branch
            %289 = sbr.rel (0) target = $region56
          $region55: #{dqn_forward.1} parent=51 // pred_region
            // Predicated region
            $region57: #{dqn_forward.1} parent=55 // pred_check
              _
            $region58: #{dqn_forward.1} parent=55 // pred_check_branch
              %291 = sbr.rel target = $region60
            $region59: #{dqn_forward.1} parent=55 // pred_region
              // Predicated region
              $region72: #{dqn_forward.1} parent=59 // pred_check
                _
              $region73: #{dqn_forward.1} parent=59 // pred_check_branch
                %473 = sbr.rel (0) target = $region75
              $region74: #{dqn_forward.1} parent=59 // pred_region
                loop: start=0, step=1, limit=1
                $region76: #{dqn_forward.1} parent=74 // loop_pre_header
                  _
                $region77: #{dqn_forward.1} parent=74 // loop_header
                  %s475 = sphi 0, %s479
                  %p476 = scmp.ge.s32.totalorder %s475, 1
                  %s480 = sphi %s287, %s287
                  %s481 = sphi %s284, %s284
                $region78: #{dqn_forward.1} parent=74 // loop_header_branch
                  %478 = sbr.rel (%p476) target = $region82
                $region79: #{dqn_forward.1} parent=74 // loop_body
                  _
                $region80: #{dqn_forward.1} parent=74 // loop_footer
                  %s479 = sadd.s32 1, %s475
                $region81: #{dqn_forward.1} parent=74 // loop_footer_branch
                  %474 = sbr.rel target = $region77
                $region82: #{dqn_forward.1} parent=74 // loop_exit
                  _
                %s483 = ssub.s32 16, 1
                loop: start=0, step=1, limit=1
                $region83: #{dqn_forward.1} parent=74 // loop_pre_header
                  _
                $region84: #{dqn_forward.1} parent=74 // loop_header
                  %s485 = sphi 0, %s489
                  %p486 = scmp.ge.s32.totalorder %s485, 1
                  %s490 = sphi %s287, %s287
                  %s491 = sphi %s284, %s284
                $region85: #{dqn_forward.1} parent=74 // loop_header_branch
                  %488 = sbr.rel (%p486) target = $region89
                $region86: #{dqn_forward.1} parent=74 // loop_body
                  %v492 = vld [vmem:[%s490] sm:%s483]
                  %493 = vst [vmem:[%s491] sm:%s483] %v492
                  %v494 = vld [vmem:[%s490 + $0x4] sm:%s483]
                  %495 = vst [vmem:[%s491 + $0x4] sm:%s483] %v494
                  %v496 = vld [vmem:[%s490 + $0x10] sm:%s483]
                  %497 = vst [vmem:[%s491 + $0x8] sm:%s483] %v496
                  %v498 = vld [vmem:[%s490 + $0x14] sm:%s483]
                  %499 = vst [vmem:[%s491 + $0xc] sm:%s483] %v498
                  %v500 = vld [vmem:[%s490 + $0x20] sm:%s483]
                  %501 = vst [vmem:[%s491 + $0x10] sm:%s483] %v500
                  %v502 = vld [vmem:[%s490 + $0x24] sm:%s483]
                  %503 = vst [vmem:[%s491 + $0x14] sm:%s483] %v502
                  %v504 = vld [vmem:[%s490 + $0x30] sm:%s483]
                  %505 = vst [vmem:[%s491 + $0x18] sm:%s483] %v504
                  %v506 = vld [vmem:[%s490 + $0x34] sm:%s483]
                  %507 = vst [vmem:[%s491 + $0x1c] sm:%s483] %v506
                  %v508 = vld [vmem:[%s490 + $0x40] sm:%s483]
                  %509 = vst [vmem:[%s491 + $0x20] sm:%s483] %v508
                  %v510 = vld [vmem:[%s490 + $0x44] sm:%s483]
                  %511 = vst [vmem:[%s491 + $0x24] sm:%s483] %v510
                  %v512 = vld [vmem:[%s490 + $0x50] sm:%s483]
                  %513 = vst [vmem:[%s491 + $0x28] sm:%s483] %v512
                  %v514 = vld [vmem:[%s490 + $0x54] sm:%s483]
                  %515 = vst [vmem:[%s491 + $0x2c] sm:%s483] %v514
                  %v516 = vld [vmem:[%s490 + $0x60] sm:%s483]
                  %517 = vst [vmem:[%s491 + $0x30] sm:%s483] %v516
                  %v518 = vld [vmem:[%s490 + $0x64] sm:%s483]
                  %519 = vst [vmem:[%s491 + $0x34] sm:%s483] %v518
                  %v520 = vld [vmem:[%s490 + $0x70] sm:%s483]
                  %521 = vst [vmem:[%s491 + $0x38] sm:%s483] %v520
                  %v522 = vld [vmem:[%s490 + $0x74] sm:%s483]
                  %523 = vst [vmem:[%s491 + $0x3c] sm:%s483] %v522
                  %v524 = vld [vmem:[%s490 + $0x80] sm:%s483]
                  %525 = vst [vmem:[%s491 + $0x40] sm:%s483] %v524
                  %v526 = vld [vmem:[%s490 + $0x84] sm:%s483]
                  %527 = vst [vmem:[%s491 + $0x44] sm:%s483] %v526
                  %v528 = vld [vmem:[%s490 + $0x90] sm:%s483]
                  %529 = vst [vmem:[%s491 + $0x48] sm:%s483] %v528
                  %v530 = vld [vmem:[%s490 + $0x94] sm:%s483]
                  %531 = vst [vmem:[%s491 + $0x4c] sm:%s483] %v530
                  %v532 = vld [vmem:[%s490 + $0xa0] sm:%s483]
                  %533 = vst [vmem:[%s491 + $0x50] sm:%s483] %v532
                  %v534 = vld [vmem:[%s490 + $0xa4] sm:%s483]
                  %535 = vst [vmem:[%s491 + $0x54] sm:%s483] %v534
                  %v536 = vld [vmem:[%s490 + $0xb0] sm:%s483]
                  %537 = vst [vmem:[%s491 + $0x58] sm:%s483] %v536
                  %v538 = vld [vmem:[%s490 + $0xb4] sm:%s483]
                  %539 = vst [vmem:[%s491 + $0x5c] sm:%s483] %v538
                  %v540 = vld [vmem:[%s490 + $0xc0] sm:%s483]
                  %541 = vst [vmem:[%s491 + $0x60] sm:%s483] %v540
                  %v542 = vld [vmem:[%s490 + $0xc4] sm:%s483]
                  %543 = vst [vmem:[%s491 + $0x64] sm:%s483] %v542
                  %v544 = vld [vmem:[%s490 + $0xd0] sm:%s483]
                  %545 = vst [vmem:[%s491 + $0x68] sm:%s483] %v544
                  %v546 = vld [vmem:[%s490 + $0xd4] sm:%s483]
                  %547 = vst [vmem:[%s491 + $0x6c] sm:%s483] %v546
                  %v548 = vld [vmem:[%s490 + $0xe0] sm:%s483]
                  %549 = vst [vmem:[%s491 + $0x70] sm:%s483] %v548
                  %v550 = vld [vmem:[%s490 + $0xe4] sm:%s483]
                  %551 = vst [vmem:[%s491 + $0x74] sm:%s483] %v550
                  %v552 = vld [vmem:[%s490 + $0xf0] sm:%s483]
                  %553 = vst [vmem:[%s491 + $0x78] sm:%s483] %v552
                  %v554 = vld [vmem:[%s490 + $0xf4] sm:%s483]
                  %555 = vst [vmem:[%s491 + $0x7c] sm:%s483] %v554
                  %v556 = vld [vmem:[%s490 + $0x100] sm:%s483]
                  %557 = vst [vmem:[%s491 + $0x80] sm:%s483] %v556
                  %v558 = vld [vmem:[%s490 + $0x104] sm:%s483]
                  %559 = vst [vmem:[%s491 + $0x84] sm:%s483] %v558
                  %v560 = vld [vmem:[%s490 + $0x110] sm:%s483]
                  %561 = vst [vmem:[%s491 + $0x88] sm:%s483] %v560
                  %v562 = vld [vmem:[%s490 + $0x114] sm:%s483]
                  %563 = vst [vmem:[%s491 + $0x8c] sm:%s483] %v562
                  %v564 = vld [vmem:[%s490 + $0x120] sm:%s483]
                  %565 = vst [vmem:[%s491 + $0x90] sm:%s483] %v564
                  %v566 = vld [vmem:[%s490 + $0x124] sm:%s483]
                  %567 = vst [vmem:[%s491 + $0x94] sm:%s483] %v566
                  %v568 = vld [vmem:[%s490 + $0x130] sm:%s483]
                  %569 = vst [vmem:[%s491 + $0x98] sm:%s483] %v568
                  %v570 = vld [vmem:[%s490 + $0x134] sm:%s483]
                  %571 = vst [vmem:[%s491 + $0x9c] sm:%s483] %v570
                  %v572 = vld [vmem:[%s490 + $0x140] sm:%s483]
                  %573 = vst [vmem:[%s491 + $0xa0] sm:%s483] %v572
                  %v574 = vld [vmem:[%s490 + $0x144] sm:%s483]
                  %575 = vst [vmem:[%s491 + $0xa4] sm:%s483] %v574
                  %v576 = vld [vmem:[%s490 + $0x150] sm:%s483]
                  %577 = vst [vmem:[%s491 + $0xa8] sm:%s483] %v576
                  %v578 = vld [vmem:[%s490 + $0x154] sm:%s483]
                  %579 = vst [vmem:[%s491 + $0xac] sm:%s483] %v578
                  %v580 = vld [vmem:[%s490 + $0x160] sm:%s483]
                  %581 = vst [vmem:[%s491 + $0xb0] sm:%s483] %v580
                  %v582 = vld [vmem:[%s490 + $0x164] sm:%s483]
                  %583 = vst [vmem:[%s491 + $0xb4] sm:%s483] %v582
                  %v584 = vld [vmem:[%s490 + $0x170] sm:%s483]
                  %585 = vst [vmem:[%s491 + $0xb8] sm:%s483] %v584
                  %v586 = vld [vmem:[%s490 + $0x174] sm:%s483]
                  %587 = vst [vmem:[%s491 + $0xbc] sm:%s483] %v586
                  %v588 = vld [vmem:[%s490 + $0x180] sm:%s483]
                  %589 = vst [vmem:[%s491 + $0xc0] sm:%s483] %v588
                  %v590 = vld [vmem:[%s490 + $0x184] sm:%s483]
                  %591 = vst [vmem:[%s491 + $0xc4] sm:%s483] %v590
                  %v592 = vld [vmem:[%s490 + $0x190] sm:%s483]
                  %593 = vst [vmem:[%s491 + $0xc8] sm:%s483] %v592
                  %v594 = vld [vmem:[%s490 + $0x194] sm:%s483]
                  %595 = vst [vmem:[%s491 + $0xcc] sm:%s483] %v594
                  %v596 = vld [vmem:[%s490 + $0x1a0] sm:%s483]
                  %597 = vst [vmem:[%s491 + $0xd0] sm:%s483] %v596
                  %v598 = vld [vmem:[%s490 + $0x1a4] sm:%s483]
                  %599 = vst [vmem:[%s491 + $0xd4] sm:%s483] %v598
                  %v600 = vld [vmem:[%s490 + $0x1b0] sm:%s483]
                  %601 = vst [vmem:[%s491 + $0xd8] sm:%s483] %v600
                  %v602 = vld [vmem:[%s490 + $0x1b4] sm:%s483]
                  %603 = vst [vmem:[%s491 + $0xdc] sm:%s483] %v602
                  %v604 = vld [vmem:[%s490 + $0x1c0] sm:%s483]
                  %605 = vst [vmem:[%s491 + $0xe0] sm:%s483] %v604
                  %v606 = vld [vmem:[%s490 + $0x1c4] sm:%s483]
                  %607 = vst [vmem:[%s491 + $0xe4] sm:%s483] %v606
                  %v608 = vld [vmem:[%s490 + $0x1d0] sm:%s483]
                  %609 = vst [vmem:[%s491 + $0xe8] sm:%s483] %v608
                  %v610 = vld [vmem:[%s490 + $0x1d4] sm:%s483]
                  %611 = vst [vmem:[%s491 + $0xec] sm:%s483] %v610
                  %v612 = vld [vmem:[%s490 + $0x1e0] sm:%s483]
                  %613 = vst [vmem:[%s491 + $0xf0] sm:%s483] %v612
                  %v614 = vld [vmem:[%s490 + $0x1e4] sm:%s483]
                  %615 = vst [vmem:[%s491 + $0xf4] sm:%s483] %v614
                  %v616 = vld [vmem:[%s490 + $0x1f0] sm:%s483]
                  %617 = vst [vmem:[%s491 + $0xf8] sm:%s483] %v616
                  %v618 = vld [vmem:[%s490 + $0x1f4] sm:%s483]
                  %619 = vst [vmem:[%s491 + $0xfc] sm:%s483] %v618
                  %v620 = vld [vmem:[%s490 + $0x200] sm:%s483]
                  %621 = vst [vmem:[%s491 + $0x100] sm:%s483] %v620
                  %v622 = vld [vmem:[%s490 + $0x204] sm:%s483]
                  %623 = vst [vmem:[%s491 + $0x104] sm:%s483] %v622
                  %v624 = vld [vmem:[%s490 + $0x210] sm:%s483]
                  %625 = vst [vmem:[%s491 + $0x108] sm:%s483] %v624
                  %v626 = vld [vmem:[%s490 + $0x214] sm:%s483]
                  %627 = vst [vmem:[%s491 + $0x10c] sm:%s483] %v626
                  %v628 = vld [vmem:[%s490 + $0x220] sm:%s483]
                  %629 = vst [vmem:[%s491 + $0x110] sm:%s483] %v628
                  %v630 = vld [vmem:[%s490 + $0x224] sm:%s483]
                  %631 = vst [vmem:[%s491 + $0x114] sm:%s483] %v630
                  %v632 = vld [vmem:[%s490 + $0x230] sm:%s483]
                  %633 = vst [vmem:[%s491 + $0x118] sm:%s483] %v632
                  %v634 = vld [vmem:[%s490 + $0x234] sm:%s483]
                  %635 = vst [vmem:[%s491 + $0x11c] sm:%s483] %v634
                  %v636 = vld [vmem:[%s490 + $0x240] sm:%s483]
                  %637 = vst [vmem:[%s491 + $0x120] sm:%s483] %v636
                  %v638 = vld [vmem:[%s490 + $0x244] sm:%s483]
                  %639 = vst [vmem:[%s491 + $0x124] sm:%s483] %v638
                  %v640 = vld [vmem:[%s490 + $0x250] sm:%s483]
                  %641 = vst [vmem:[%s491 + $0x128] sm:%s483] %v640
                  %v642 = vld [vmem:[%s490 + $0x254] sm:%s483]
                  %643 = vst [vmem:[%s491 + $0x12c] sm:%s483] %v642
                  %v644 = vld [vmem:[%s490 + $0x260] sm:%s483]
                  %645 = vst [vmem:[%s491 + $0x130] sm:%s483] %v644
                  %v646 = vld [vmem:[%s490 + $0x264] sm:%s483]
                  %647 = vst [vmem:[%s491 + $0x134] sm:%s483] %v646
                  %v648 = vld [vmem:[%s490 + $0x270] sm:%s483]
                  %649 = vst [vmem:[%s491 + $0x138] sm:%s483] %v648
                  %v650 = vld [vmem:[%s490 + $0x274] sm:%s483]
                  %651 = vst [vmem:[%s491 + $0x13c] sm:%s483] %v650
                  %v652 = vld [vmem:[%s490 + $0x280] sm:%s483]
                  %653 = vst [vmem:[%s491 + $0x140] sm:%s483] %v652
                  %v654 = vld [vmem:[%s490 + $0x284] sm:%s483]
                  %655 = vst [vmem:[%s491 + $0x144] sm:%s483] %v654
                  %v656 = vld [vmem:[%s490 + $0x290] sm:%s483]
                  %657 = vst [vmem:[%s491 + $0x148] sm:%s483] %v656
                  %v658 = vld [vmem:[%s490 + $0x294] sm:%s483]
                  %659 = vst [vmem:[%s491 + $0x14c] sm:%s483] %v658
                $region87: #{dqn_forward.1} parent=74 // loop_footer
                  %s489 = sadd.s32 1, %s485
                $region88: #{dqn_forward.1} parent=74 // loop_footer_branch
                  %484 = sbr.rel target = $region84
                $region89: #{dqn_forward.1} parent=74 // loop_exit
                  _
              $region75: #{dqn_forward.1} parent=59 // pred_fallthru
                _
            $region60: #{dqn_forward.1} parent=55 // pred_fallthru
              _
            // Predicated region
            $region61: #{dqn_forward.1} parent=55 // pred_check
              _
            $region62: #{dqn_forward.1} parent=55 // pred_check_branch
              %293 = sbr.rel (0) target = $region64
            $region63: #{dqn_forward.1} parent=55 // pred_region
              %s295 = ssub.s32 16, 1
              loop: start=0, step=1, limit=1
              $region65: #{dqn_forward.1} parent=63 // loop_pre_header
                _
              $region66: #{dqn_forward.1} parent=63 // loop_header
                %s297 = sphi 0, %s301
                %p298 = scmp.ge.s32.totalorder %s297, 1
                %s302 = sphi %s287, %s287
                %s303 = sphi %s284, %s284
              $region67: #{dqn_forward.1} parent=63 // loop_header_branch
                %300 = sbr.rel (%p298) target = $region71
              $region68: #{dqn_forward.1} parent=63 // loop_body
                %v304 = vld [vmem:[%s302] sm:%s295]
                %305 = vst [vmem:[%s303] sm:%s295] %v304
                %v306 = vld [vmem:[%s302 + $0x4] sm:%s295]
                %307 = vst [vmem:[%s303 + $0x4] sm:%s295] %v306
                %v308 = vld [vmem:[%s302 + $0x10] sm:%s295]
                %309 = vst [vmem:[%s303 + $0x8] sm:%s295] %v308
                %v310 = vld [vmem:[%s302 + $0x14] sm:%s295]
                %311 = vst [vmem:[%s303 + $0xc] sm:%s295] %v310
                %v312 = vld [vmem:[%s302 + $0x20] sm:%s295]
                %313 = vst [vmem:[%s303 + $0x10] sm:%s295] %v312
                %v314 = vld [vmem:[%s302 + $0x24] sm:%s295]
                %315 = vst [vmem:[%s303 + $0x14] sm:%s295] %v314
                %v316 = vld [vmem:[%s302 + $0x30] sm:%s295]
                %317 = vst [vmem:[%s303 + $0x18] sm:%s295] %v316
                %v318 = vld [vmem:[%s302 + $0x34] sm:%s295]
                %319 = vst [vmem:[%s303 + $0x1c] sm:%s295] %v318
                %v320 = vld [vmem:[%s302 + $0x40] sm:%s295]
                %321 = vst [vmem:[%s303 + $0x20] sm:%s295] %v320
                %v322 = vld [vmem:[%s302 + $0x44] sm:%s295]
                %323 = vst [vmem:[%s303 + $0x24] sm:%s295] %v322
                %v324 = vld [vmem:[%s302 + $0x50] sm:%s295]
                %325 = vst [vmem:[%s303 + $0x28] sm:%s295] %v324
                %v326 = vld [vmem:[%s302 + $0x54] sm:%s295]
                %327 = vst [vmem:[%s303 + $0x2c] sm:%s295] %v326
                %v328 = vld [vmem:[%s302 + $0x60] sm:%s295]
                %329 = vst [vmem:[%s303 + $0x30] sm:%s295] %v328
                %v330 = vld [vmem:[%s302 + $0x64] sm:%s295]
                %331 = vst [vmem:[%s303 + $0x34] sm:%s295] %v330
                %v332 = vld [vmem:[%s302 + $0x70] sm:%s295]
                %333 = vst [vmem:[%s303 + $0x38] sm:%s295] %v332
                %v334 = vld [vmem:[%s302 + $0x74] sm:%s295]
                %335 = vst [vmem:[%s303 + $0x3c] sm:%s295] %v334
                %v336 = vld [vmem:[%s302 + $0x80] sm:%s295]
                %337 = vst [vmem:[%s303 + $0x40] sm:%s295] %v336
                %v338 = vld [vmem:[%s302 + $0x84] sm:%s295]
                %339 = vst [vmem:[%s303 + $0x44] sm:%s295] %v338
                %v340 = vld [vmem:[%s302 + $0x90] sm:%s295]
                %341 = vst [vmem:[%s303 + $0x48] sm:%s295] %v340
                %v342 = vld [vmem:[%s302 + $0x94] sm:%s295]
                %343 = vst [vmem:[%s303 + $0x4c] sm:%s295] %v342
                %v344 = vld [vmem:[%s302 + $0xa0] sm:%s295]
                %345 = vst [vmem:[%s303 + $0x50] sm:%s295] %v344
                %v346 = vld [vmem:[%s302 + $0xa4] sm:%s295]
                %347 = vst [vmem:[%s303 + $0x54] sm:%s295] %v346
                %v348 = vld [vmem:[%s302 + $0xb0] sm:%s295]
                %349 = vst [vmem:[%s303 + $0x58] sm:%s295] %v348
                %v350 = vld [vmem:[%s302 + $0xb4] sm:%s295]
                %351 = vst [vmem:[%s303 + $0x5c] sm:%s295] %v350
                %v352 = vld [vmem:[%s302 + $0xc0] sm:%s295]
                %353 = vst [vmem:[%s303 + $0x60] sm:%s295] %v352
                %v354 = vld [vmem:[%s302 + $0xc4] sm:%s295]
                %355 = vst [vmem:[%s303 + $0x64] sm:%s295] %v354
                %v356 = vld [vmem:[%s302 + $0xd0] sm:%s295]
                %357 = vst [vmem:[%s303 + $0x68] sm:%s295] %v356
                %v358 = vld [vmem:[%s302 + $0xd4] sm:%s295]
                %359 = vst [vmem:[%s303 + $0x6c] sm:%s295] %v358
                %v360 = vld [vmem:[%s302 + $0xe0] sm:%s295]
                %361 = vst [vmem:[%s303 + $0x70] sm:%s295] %v360
                %v362 = vld [vmem:[%s302 + $0xe4] sm:%s295]
                %363 = vst [vmem:[%s303 + $0x74] sm:%s295] %v362
                %v364 = vld [vmem:[%s302 + $0xf0] sm:%s295]
                %365 = vst [vmem:[%s303 + $0x78] sm:%s295] %v364
                %v366 = vld [vmem:[%s302 + $0xf4] sm:%s295]
                %367 = vst [vmem:[%s303 + $0x7c] sm:%s295] %v366
                %v368 = vld [vmem:[%s302 + $0x100] sm:%s295]
                %369 = vst [vmem:[%s303 + $0x80] sm:%s295] %v368
                %v370 = vld [vmem:[%s302 + $0x104] sm:%s295]
                %371 = vst [vmem:[%s303 + $0x84] sm:%s295] %v370
                %v372 = vld [vmem:[%s302 + $0x110] sm:%s295]
                %373 = vst [vmem:[%s303 + $0x88] sm:%s295] %v372
                %v374 = vld [vmem:[%s302 + $0x114] sm:%s295]
                %375 = vst [vmem:[%s303 + $0x8c] sm:%s295] %v374
                %v376 = vld [vmem:[%s302 + $0x120] sm:%s295]
                %377 = vst [vmem:[%s303 + $0x90] sm:%s295] %v376
                %v378 = vld [vmem:[%s302 + $0x124] sm:%s295]
                %379 = vst [vmem:[%s303 + $0x94] sm:%s295] %v378
                %v380 = vld [vmem:[%s302 + $0x130] sm:%s295]
                %381 = vst [vmem:[%s303 + $0x98] sm:%s295] %v380
                %v382 = vld [vmem:[%s302 + $0x134] sm:%s295]
                %383 = vst [vmem:[%s303 + $0x9c] sm:%s295] %v382
                %v384 = vld [vmem:[%s302 + $0x140] sm:%s295]
                %385 = vst [vmem:[%s303 + $0xa0] sm:%s295] %v384
                %v386 = vld [vmem:[%s302 + $0x144] sm:%s295]
                %387 = vst [vmem:[%s303 + $0xa4] sm:%s295] %v386
                %v388 = vld [vmem:[%s302 + $0x150] sm:%s295]
                %389 = vst [vmem:[%s303 + $0xa8] sm:%s295] %v388
                %v390 = vld [vmem:[%s302 + $0x154] sm:%s295]
                %391 = vst [vmem:[%s303 + $0xac] sm:%s295] %v390
                %v392 = vld [vmem:[%s302 + $0x160] sm:%s295]
                %393 = vst [vmem:[%s303 + $0xb0] sm:%s295] %v392
                %v394 = vld [vmem:[%s302 + $0x164] sm:%s295]
                %395 = vst [vmem:[%s303 + $0xb4] sm:%s295] %v394
                %v396 = vld [vmem:[%s302 + $0x170] sm:%s295]
                %397 = vst [vmem:[%s303 + $0xb8] sm:%s295] %v396
                %v398 = vld [vmem:[%s302 + $0x174] sm:%s295]
                %399 = vst [vmem:[%s303 + $0xbc] sm:%s295] %v398
                %v400 = vld [vmem:[%s302 + $0x180] sm:%s295]
                %401 = vst [vmem:[%s303 + $0xc0] sm:%s295] %v400
                %v402 = vld [vmem:[%s302 + $0x184] sm:%s295]
                %403 = vst [vmem:[%s303 + $0xc4] sm:%s295] %v402
                %v404 = vld [vmem:[%s302 + $0x190] sm:%s295]
                %405 = vst [vmem:[%s303 + $0xc8] sm:%s295] %v404
                %v406 = vld [vmem:[%s302 + $0x194] sm:%s295]
                %407 = vst [vmem:[%s303 + $0xcc] sm:%s295] %v406
                %v408 = vld [vmem:[%s302 + $0x1a0] sm:%s295]
                %409 = vst [vmem:[%s303 + $0xd0] sm:%s295] %v408
                %v410 = vld [vmem:[%s302 + $0x1a4] sm:%s295]
                %411 = vst [vmem:[%s303 + $0xd4] sm:%s295] %v410
                %v412 = vld [vmem:[%s302 + $0x1b0] sm:%s295]
                %413 = vst [vmem:[%s303 + $0xd8] sm:%s295] %v412
                %v414 = vld [vmem:[%s302 + $0x1b4] sm:%s295]
                %415 = vst [vmem:[%s303 + $0xdc] sm:%s295] %v414
                %v416 = vld [vmem:[%s302 + $0x1c0] sm:%s295]
                %417 = vst [vmem:[%s303 + $0xe0] sm:%s295] %v416
                %v418 = vld [vmem:[%s302 + $0x1c4] sm:%s295]
                %419 = vst [vmem:[%s303 + $0xe4] sm:%s295] %v418
                %v420 = vld [vmem:[%s302 + $0x1d0] sm:%s295]
                %421 = vst [vmem:[%s303 + $0xe8] sm:%s295] %v420
                %v422 = vld [vmem:[%s302 + $0x1d4] sm:%s295]
                %423 = vst [vmem:[%s303 + $0xec] sm:%s295] %v422
                %v424 = vld [vmem:[%s302 + $0x1e0] sm:%s295]
                %425 = vst [vmem:[%s303 + $0xf0] sm:%s295] %v424
                %v426 = vld [vmem:[%s302 + $0x1e4] sm:%s295]
                %427 = vst [vmem:[%s303 + $0xf4] sm:%s295] %v426
                %v428 = vld [vmem:[%s302 + $0x1f0] sm:%s295]
                %429 = vst [vmem:[%s303 + $0xf8] sm:%s295] %v428
                %v430 = vld [vmem:[%s302 + $0x1f4] sm:%s295]
                %431 = vst [vmem:[%s303 + $0xfc] sm:%s295] %v430
                %v432 = vld [vmem:[%s302 + $0x200] sm:%s295]
                %433 = vst [vmem:[%s303 + $0x100] sm:%s295] %v432
                %v434 = vld [vmem:[%s302 + $0x204] sm:%s295]
                %435 = vst [vmem:[%s303 + $0x104] sm:%s295] %v434
                %v436 = vld [vmem:[%s302 + $0x210] sm:%s295]
                %437 = vst [vmem:[%s303 + $0x108] sm:%s295] %v436
                %v438 = vld [vmem:[%s302 + $0x214] sm:%s295]
                %439 = vst [vmem:[%s303 + $0x10c] sm:%s295] %v438
                %v440 = vld [vmem:[%s302 + $0x220] sm:%s295]
                %441 = vst [vmem:[%s303 + $0x110] sm:%s295] %v440
                %v442 = vld [vmem:[%s302 + $0x224] sm:%s295]
                %443 = vst [vmem:[%s303 + $0x114] sm:%s295] %v442
                %v444 = vld [vmem:[%s302 + $0x230] sm:%s295]
                %445 = vst [vmem:[%s303 + $0x118] sm:%s295] %v444
                %v446 = vld [vmem:[%s302 + $0x234] sm:%s295]
                %447 = vst [vmem:[%s303 + $0x11c] sm:%s295] %v446
                %v448 = vld [vmem:[%s302 + $0x240] sm:%s295]
                %449 = vst [vmem:[%s303 + $0x120] sm:%s295] %v448
                %v450 = vld [vmem:[%s302 + $0x244] sm:%s295]
                %451 = vst [vmem:[%s303 + $0x124] sm:%s295] %v450
                %v452 = vld [vmem:[%s302 + $0x250] sm:%s295]
                %453 = vst [vmem:[%s303 + $0x128] sm:%s295] %v452
                %v454 = vld [vmem:[%s302 + $0x254] sm:%s295]
                %455 = vst [vmem:[%s303 + $0x12c] sm:%s295] %v454
                %v456 = vld [vmem:[%s302 + $0x260] sm:%s295]
                %457 = vst [vmem:[%s303 + $0x130] sm:%s295] %v456
                %v458 = vld [vmem:[%s302 + $0x264] sm:%s295]
                %459 = vst [vmem:[%s303 + $0x134] sm:%s295] %v458
                %v460 = vld [vmem:[%s302 + $0x270] sm:%s295]
                %461 = vst [vmem:[%s303 + $0x138] sm:%s295] %v460
                %v462 = vld [vmem:[%s302 + $0x274] sm:%s295]
                %463 = vst [vmem:[%s303 + $0x13c] sm:%s295] %v462
                %v464 = vld [vmem:[%s302 + $0x280] sm:%s295]
                %465 = vst [vmem:[%s303 + $0x140] sm:%s295] %v464
                %v466 = vld [vmem:[%s302 + $0x284] sm:%s295]
                %467 = vst [vmem:[%s303 + $0x144] sm:%s295] %v466
                %v468 = vld [vmem:[%s302 + $0x290] sm:%s295]
                %469 = vst [vmem:[%s303 + $0x148] sm:%s295] %v468
                %v470 = vld [vmem:[%s302 + $0x294] sm:%s295]
                %471 = vst [vmem:[%s303 + $0x14c] sm:%s295] %v470
              $region69: #{dqn_forward.1} parent=63 // loop_footer
                %s301 = sadd.s32 1, %s297
              $region70: #{dqn_forward.1} parent=63 // loop_footer_branch
                %296 = sbr.rel target = $region66
              $region71: #{dqn_forward.1} parent=63 // loop_exit
                _
            $region64: #{dqn_forward.1} parent=55 // pred_fallthru
              _
          $region56: #{dqn_forward.1} parent=51 // pred_fallthru
            _
          %660 = vnop
        $region52: #{dqn_forward.1} parent=47 // pred_fallthru
          _
      $region48: #{dqn_forward.1} parent=5 // pred_fallthru
        _
      %p661 = scmp.le.s32.totalorder 1, %s15
      %p662 = scmp.lt.s32.totalorder %s15, 3
      %p663 = pnand %p661, %p662
      %p664 = pneg %p663
      // Predicated region
      $region90: #{dqn_forward.1} parent=5 // pred_check
        _
      $region91: #{dqn_forward.1} parent=5 // pred_check_branch
        %666 = sbr.rel (%p663) target = $region93
      $region92: #{dqn_forward.1} parent=5 // pred_region
        %s667 = ssub.s32 %s15, 1
        %s668 = sand.u32 %s28, 1
        %s669 = sand.u32 %s28, 1
        %s670 = smul.addr %s669, 336
        %s671 = scalar_lea.vmem [#allocation5], %s670
        // Predicated region
        $region94: #{dqn_forward.1} parent=92 // pred_check
          %p672 = pneg %p41
        $region95: #{dqn_forward.1} parent=92 // pred_check_branch
          %674 = sbr.rel (%p672) target = $region97
        $region96: #{dqn_forward.1} parent=92 // pred_region
          _
        $region97: #{dqn_forward.1} parent=92 // pred_fallthru
          _
        %s675 = sand.u32 %s28, 1
        %s676 = sand.u32 %s28, 1
        %s677 = smul.addr %s676, 336
        %s678 = scalar_lea.vmem [#allocation5], %s677
        %p679 = pneg %p41
        %p680 = pneg %p38
        %p681 = pneg %p62
        %p682 = pneg %p59
        %p683 = pneg %p83
        %p684 = pneg %p80
        %p685 = pneg %p104
        %p686 = pneg %p101
        %p687 = pneg %p125
        %p688 = pneg %p122
        %p689 = pneg %p146
        %p690 = pneg %p143
        %p691 = pneg %p167
        %p692 = pneg %p164
        %p693 = pneg %p188
        %p694 = pneg %p185
        %p695 = pneg %p209
        %p696 = pneg %p206
        %p697 = pneg %p235
        %p698 = pneg %p232
        %s699 = smul.u32 2, %s20
        %p700 = scmp.lt.s32.totalorder %s699, 3
        %s701 = scalar_select %p700, %s699, 3
        %s702 = smul.addr %s701, 8
        %s703 = scalar_lea.vmem %s9, %s702
        %s704 = smul.u32 2, %s20
        %s705 = smul.u32 2, %s20
        %p706 = scmp.lt.s32.totalorder %s705, 3
        %s707 = scalar_select %p706, %s705, 3
        %s708 = smul.addr %s707, 8
        %s709 = scalar_lea.vmem %s9, %s708
        %s710 = smul.u32 2, %s20
        %v712 = vld [vmem:[%s671] sm:$0xf]
        %v713 = vld [vmem:[%s671 + $0x4] sm:$0xf]
        %v714 = vld [vmem:[%s671 + $0x8] sm:$0xf]
        %v715 = vld [vmem:[%s671 + $0xc] sm:$0xf]
        %v716 = vld [vmem:[%s671 + $0x10] sm:$0xf]
        %v717 = vld [vmem:[%s671 + $0x14] sm:$0xf]
        %v718 = vld [vmem:[%s671 + $0x18] sm:$0xf]
        %v719 = vld [vmem:[%s671 + $0x1c] sm:$0xf]
        %v720 = vld [vmem:[%s671 + $0x20] sm:$0xf]
        %v721 = vld [vmem:[%s671 + $0x24] sm:$0xf]
        %v722 = vld [vmem:[%s671 + $0x28] sm:$0xf]
        %v723 = vld [vmem:[%s671 + $0x2c] sm:$0xf]
        %v724 = vld [vmem:[%s671 + $0x30] sm:$0xf]
        %v725 = vld [vmem:[%s671 + $0x34] sm:$0xf]
        %v726 = vld [vmem:[%s671 + $0x38] sm:$0xf]
        %v727 = vld [vmem:[%s671 + $0x3c] sm:$0xf]
        %v728 = vld [vmem:[%s671 + $0x40] sm:$0xf]
        %v729 = vld [vmem:[%s671 + $0x44] sm:$0xf]
        %v730 = vld [vmem:[%s671 + $0x48] sm:$0xf]
        %v731 = vld [vmem:[%s671 + $0x4c] sm:$0xf]
        %v732 = vld [vmem:[%s671 + $0x50] sm:$0xf]
        %v733 = vld [vmem:[%s671 + $0x54] sm:$0xf]
        %v734 = vld [vmem:[%s671 + $0x58] sm:$0xf]
        %v735 = vld [vmem:[%s671 + $0x5c] sm:$0xf]
        %v736 = vld [vmem:[%s671 + $0x60] sm:$0xf]
        %v737 = vld [vmem:[%s671 + $0x64] sm:$0xf]
        %v738 = vld [vmem:[%s671 + $0x68] sm:$0xf]
        %v739 = vld [vmem:[%s671 + $0x6c] sm:$0xf]
        %v740 = vld [vmem:[%s671 + $0x70] sm:$0xf]
        %v741 = vld [vmem:[%s671 + $0x74] sm:$0xf]
        %v742 = vld [vmem:[%s671 + $0x78] sm:$0xf]
        %v743 = vld [vmem:[%s671 + $0x7c] sm:$0xf]
        %v744 = vld [vmem:[%s671 + $0x80] sm:$0xf]
        %v745 = vld [vmem:[%s671 + $0x84] sm:$0xf]
        %v746 = vld [vmem:[%s671 + $0x88] sm:$0xf]
        %v747 = vld [vmem:[%s671 + $0x8c] sm:$0xf]
        %v748 = vld [vmem:[%s671 + $0x90] sm:$0xf]
        %v749 = vld [vmem:[%s671 + $0x94] sm:$0xf]
        %v750 = vld [vmem:[%s671 + $0x98] sm:$0xf]
        %v751 = vld [vmem:[%s671 + $0x9c] sm:$0xf]
        %v752 = vld [vmem:[%s671 + $0xa0] sm:$0xf]
        %v753 = vld [vmem:[%s671 + $0xa4] sm:$0xf]
        %v754 = vld [vmem:[%s671 + $0xa8] sm:$0xf]
        %v755 = vld [vmem:[%s671 + $0xac] sm:$0xf]
        %v756 = vld [vmem:[%s671 + $0xb0] sm:$0xf]
        %v757 = vld [vmem:[%s671 + $0xb4] sm:$0xf]
        %v758 = vld [vmem:[%s671 + $0xb8] sm:$0xf]
        %v759 = vld [vmem:[%s671 + $0xbc] sm:$0xf]
        %v760 = vld [vmem:[%s671 + $0xc0] sm:$0xf]
        %v761 = vld [vmem:[%s671 + $0xc4] sm:$0xf]
        %v762 = vld [vmem:[%s671 + $0xc8] sm:$0xf]
        %v763 = vld [vmem:[%s671 + $0xcc] sm:$0xf]
        %v764 = vld [vmem:[%s671 + $0xd0] sm:$0xf]
        %v765 = vld [vmem:[%s671 + $0xd4] sm:$0xf]
        %v766 = vld [vmem:[%s671 + $0xd8] sm:$0xf]
        %v767 = vld [vmem:[%s671 + $0xdc] sm:$0xf]
        %v768 = vld [vmem:[%s671 + $0xe0] sm:$0xf]
        %v769 = vld [vmem:[%s671 + $0xe4] sm:$0xf]
        %v770 = vld [vmem:[%s671 + $0xe8] sm:$0xf]
        %v771 = vld [vmem:[%s671 + $0xec] sm:$0xf]
        %v772 = vld [vmem:[%s671 + $0xf0] sm:$0xf]
        %v773 = vld [vmem:[%s671 + $0xf4] sm:$0xf]
        %v774 = vld [vmem:[%s671 + $0xf8] sm:$0xf]
        %v775 = vld [vmem:[%s671 + $0xfc] sm:$0xf]
        %v776 = vld [vmem:[%s671 + $0x100] sm:$0xf]
        %v777 = vld [vmem:[%s671 + $0x104] sm:$0xf]
        %v778 = vld [vmem:[%s671 + $0x108] sm:$0xf]
        %v779 = vld [vmem:[%s671 + $0x10c] sm:$0xf]
        %v780 = vld [vmem:[%s671 + $0x110] sm:$0xf]
        %v781 = vld [vmem:[%s671 + $0x114] sm:$0xf]
        %v782 = vld [vmem:[%s671 + $0x118] sm:$0xf]
        %v783 = vld [vmem:[%s671 + $0x11c] sm:$0xf]
        %v784 = vld [vmem:[%s671 + $0x120] sm:$0xf]
        %v785 = vld [vmem:[%s671 + $0x124] sm:$0xf]
        %v786 = vld [vmem:[%s671 + $0x128] sm:$0xf]
        %v787 = vld [vmem:[%s671 + $0x12c] sm:$0xf]
        %v788 = vld [vmem:[%s671 + $0x130] sm:$0xf]
        %v789 = vld [vmem:[%s671 + $0x134] sm:$0xf]
        %v790 = vld [vmem:[%s671 + $0x138] sm:$0xf]
        %v791 = vld [vmem:[%s671 + $0x13c] sm:$0xf]
        %v792 = vld [vmem:[%s671 + $0x140] sm:$0xf]
        %v793 = vld [vmem:[%s671 + $0x144] sm:$0xf]
        %v794 = vld [vmem:[%s671 + $0x148] sm:$0xf]
        %v795 = vld [vmem:[%s671 + $0x14c] sm:$0xf]
        %v796 = vld [vmem:[%s1] sm:$0xf]
        %v797 = vld [vmem:[%s1 + $0x4] sm:$0xf]
        %v798 = vld [vmem:[%s1 + $0x8] sm:$0x1]
        %v799 = vld [vmem:[%s2] sm:$0x1]
        %v801 = vlaneseq
        %v802 = vshrl.u32 %v801, 7
        %v803 = vsub.s32 0, %v802
        %v804 = vrot.slane %v799, %v803
        %v890 = vunpack.c.l.b16 %v712
        %v891 = vunpack.c.l.b16 %v713
        %v892 = vunpack.c.l.b16 %v714
        %v893 = vunpack.c.l.b16 %v715
        %v894 = vunpack.c.l.b16 %v716
        %v895 = vunpack.c.l.b16 %v717
        %v896 = vunpack.c.l.b16 %v718
        %v897 = vunpack.c.l.b16 %v719
        %v898 = vunpack.c.l.b16 %v720
        %v899 = vunpack.c.l.b16 %v721
        %v900 = vunpack.c.l.b16 %v722
        %v901 = vunpack.c.l.b16 %v723
        %v902 = vunpack.c.l.b16 %v724
        %v903 = vunpack.c.l.b16 %v725
        %v904 = vunpack.c.l.b16 %v726
        %v905 = vunpack.c.l.b16 %v727
        %v906 = vunpack.c.l.b16 %v728
        %v907 = vunpack.c.l.b16 %v729
        %v908 = vunpack.c.l.b16 %v730
        %v909 = vunpack.c.l.b16 %v731
        %v910 = vunpack.c.l.b16 %v732
        %v911 = vunpack.c.l.b16 %v733
        %v912 = vunpack.c.l.b16 %v734
        %v913 = vunpack.c.l.b16 %v735
        %v914 = vunpack.c.l.b16 %v736
        %v915 = vunpack.c.l.b16 %v737
        %v916 = vunpack.c.l.b16 %v738
        %v917 = vunpack.c.l.b16 %v739
        %v918 = vunpack.c.l.b16 %v740
        %v919 = vunpack.c.l.b16 %v741
        %v920 = vunpack.c.l.b16 %v742
        %v921 = vunpack.c.l.b16 %v743
        %v922 = vunpack.c.l.b16 %v744
        %v923 = vunpack.c.l.b16 %v745
        %v924 = vunpack.c.l.b16 %v746
        %v925 = vunpack.c.l.b16 %v747
        %v926 = vunpack.c.l.b16 %v748
        %v927 = vunpack.c.l.b16 %v749
        %v928 = vunpack.c.l.b16 %v750
        %v929 = vunpack.c.l.b16 %v751
        %v930 = vunpack.c.l.b16 %v752
        %v931 = vunpack.c.l.b16 %v753
        %v932 = vunpack.c.l.b16 %v754
        %v933 = vunpack.c.l.b16 %v755
        %v934 = vunpack.c.l.b16 %v756
        %v935 = vunpack.c.l.b16 %v757
        %v936 = vunpack.c.l.b16 %v758
        %v937 = vunpack.c.l.b16 %v759
        %v938 = vunpack.c.l.b16 %v760
        %v939 = vunpack.c.l.b16 %v761
        %v940 = vunpack.c.l.b16 %v762
        %v941 = vunpack.c.l.b16 %v763
        %v942 = vunpack.c.l.b16 %v764
        %v943 = vunpack.c.l.b16 %v765
        %v944 = vunpack.c.l.b16 %v766
        %v945 = vunpack.c.l.b16 %v767
        %v946 = vunpack.c.l.b16 %v768
        %v947 = vunpack.c.l.b16 %v769
        %v948 = vunpack.c.l.b16 %v770
        %v949 = vunpack.c.l.b16 %v771
        %v950 = vunpack.c.l.b16 %v772
        %v951 = vunpack.c.l.b16 %v773
        %v952 = vunpack.c.l.b16 %v774
        %v953 = vunpack.c.l.b16 %v775
        %v954 = vunpack.c.l.b16 %v776
        %v955 = vunpack.c.l.b16 %v777
        %v956 = vunpack.c.l.b16 %v778
        %v957 = vunpack.c.l.b16 %v779
        %v958 = vunpack.c.l.b16 %v780
        %v959 = vunpack.c.l.b16 %v781
        %v960 = vunpack.c.l.b16 %v782
        %v961 = vunpack.c.l.b16 %v783
        %v962 = vunpack.c.l.b16 %v784
        %v963 = vunpack.c.l.b16 %v785
        %v964 = vunpack.c.l.b16 %v786
        %v965 = vunpack.c.l.b16 %v787
        %v966 = vunpack.c.l.b16 %v788
        %v967 = vunpack.c.l.b16 %v789
        %v968 = vunpack.c.l.b16 %v790
        %v969 = vunpack.c.l.b16 %v791
        %v970 = vunpack.c.l.b16 %v792
        %v971 = vunpack.c.l.b16 %v793
        %v972 = vunpack.c.l.b16 %v794
        %v973 = vunpack.c.l.b16 %v795
        %v974 = vpack.c.b16 %v891, %v890
        %v975 = vpack.c.b16 %v893, %v892
        %v976 = vpack.c.b16 %v895, %v894
        %v977 = vpack.c.b16 %v897, %v896
        %v978 = vpack.c.b16 %v899, %v898
        %v979 = vpack.c.b16 %v901, %v900
        %v980 = vpack.c.b16 %v903, %v902
        %v981 = vpack.c.b16 %v905, %v904
        %v982 = vpack.c.b16 %v907, %v906
        %v983 = vpack.c.b16 %v909, %v908
        %v984 = vpack.c.b16 %v911, %v910
        %v985 = vpack.c.b16 %v913, %v912
        %v986 = vpack.c.b16 %v915, %v914
        %v987 = vpack.c.b16 %v917, %v916
        %v988 = vpack.c.b16 %v919, %v918
        %v989 = vpack.c.b16 %v921, %v920
        %v990 = vpack.c.b16 %v923, %v922
        %v991 = vpack.c.b16 %v925, %v924
        %v992 = vpack.c.b16 %v927, %v926
        %v993 = vpack.c.b16 %v929, %v928
        %v994 = vpack.c.b16 %v931, %v930
        %v995 = vpack.c.b16 %v933, %v932
        %v996 = vpack.c.b16 %v935, %v934
        %v997 = vpack.c.b16 %v937, %v936
        %v998 = vpack.c.b16 %v939, %v938
        %v999 = vpack.c.b16 %v941, %v940
        %v1000 = vpack.c.b16 %v943, %v942
        %v1001 = vpack.c.b16 %v945, %v944
        %v1002 = vpack.c.b16 %v947, %v946
        %v1003 = vpack.c.b16 %v949, %v948
        %v1004 = vpack.c.b16 %v951, %v950
        %v1005 = vpack.c.b16 %v953, %v952
        %v1006 = vpack.c.b16 %v955, %v954
        %v1007 = vpack.c.b16 %v957, %v956
        %v1008 = vpack.c.b16 %v959, %v958
        %v1009 = vpack.c.b16 %v961, %v960
        %v1010 = vpack.c.b16 %v963, %v962
        %v1011 = vpack.c.b16 %v965, %v964
        %v1012 = vpack.c.b16 %v967, %v966
        %v1013 = vpack.c.b16 %v969, %v968
        %v1014 = vpack.c.b16 %v971, %v970
        %v1015 = vpack.c.b16 %v973, %v972
        %v1019 = vunpack.c.l.b16 %v796
        %v1020 = vunpack.c.l.b16 %v797
        %v1021 = vunpack.c.l.b16 %v798
        %v1022 = vpack.c.b16 %v1020, %v1019
        %v1023 = vpack.c.b16 %v1021, %v1021
        %vm1025 = vcmask 146432
        %v1027 = vsel %vm1025, %v974, 0
        %v1030 = vsel %vm1025, %v975, 0
        %v1033 = vsel %vm1025, %v976, 0
        %v1036 = vsel %vm1025, %v977, 0
        %v1039 = vsel %vm1025, %v978, 0
        %v1042 = vsel %vm1025, %v979, 0
        %v1045 = vsel %vm1025, %v980, 0
        %v1048 = vsel %vm1025, %v981, 0
        %v1051 = vsel %vm1025, %v982, 0
        %v1054 = vsel %vm1025, %v983, 0
        %v1057 = vsel %vm1025, %v984, 0
        %v1060 = vsel %vm1025, %v985, 0
        %v1063 = vsel %vm1025, %v986, 0
        %v1066 = vsel %vm1025, %v987, 0
        %v1069 = vsel %vm1025, %v988, 0
        %v1072 = vsel %vm1025, %v989, 0
        %v1075 = vsel %vm1025, %v990, 0
        %v1078 = vsel %vm1025, %v991, 0
        %v1081 = vsel %vm1025, %v992, 0
        %v1084 = vsel %vm1025, %v993, 0
        %v1087 = vsel %vm1025, %v994, 0
        %v1090 = vsel %vm1025, %v995, 0
        %v1093 = vsel %vm1025, %v996, 0
        %v1096 = vsel %vm1025, %v997, 0
        %v1099 = vsel %vm1025, %v998, 0
        %v1102 = vsel %vm1025, %v999, 0
        %v1105 = vsel %vm1025, %v1000, 0
        %v1108 = vsel %vm1025, %v1001, 0
        %v1111 = vsel %vm1025, %v1002, 0
        %v1114 = vsel %vm1025, %v1003, 0
        %v1117 = vsel %vm1025, %v1004, 0
        %v1120 = vsel %vm1025, %v1005, 0
        %v1123 = vsel %vm1025, %v1006, 0
        %v1126 = vsel %vm1025, %v1007, 0
        %v1129 = vsel %vm1025, %v1008, 0
        %v1132 = vsel %vm1025, %v1009, 0
        %v1135 = vsel %vm1025, %v1010, 0
        %v1138 = vsel %vm1025, %v1011, 0
        %v1141 = vsel %vm1025, %v1012, 0
        %v1144 = vsel %vm1025, %v1013, 0
        %v1147 = vsel %vm1025, %v1014, 0
        %v1150 = vsel %vm1025, %v1015, 0
        %vm1152 = vcmask 1040384
        %v1154 = vsel %vm1152, %v1023, 0
        %1156 = vmatprep.subr.bf16.mxu0 0
        %1157 = vmatpush1.bf16.msra.mxu0 0
        %1158 = vmatprep.subr.bf16.mxu0 0
        %1159 = vmatpush1.bf16.msra.mxu0 0
        %1160 = vmatprep.subr.bf16.mxu0 0
        %1161 = vmatpush1.bf16.msra.mxu0 0
        %1162 = vmatprep.subr.bf16.mxu0 0
        %1163 = vmatpush1.bf16.msra.mxu0 0
        %1164 = vmatprep.subr.bf16.mxu0 0
        %1165 = vmatpush1.bf16.msra.mxu0 0
        %1166 = vmatprep.subr.bf16.mxu0 0
        %1167 = vmatpush1.bf16.msra.mxu0 0
        %1168 = vmatprep.subr.bf16.mxu0 0
        %1169 = vmatpush1.bf16.msra.mxu0 %v1154
        %1170 = vmatprep.subr.bf16.mxu0 0
        %1171 = vmatpush1.bf16.msra.mxu0 %v1022
        %1172 = vmatprep.subr.bf16.mxu0 0
        %1173 = vmatpush2.bf16.msra.mxu0 0
        %1174 = vmatprep.subr.bf16.mxu0 0
        %1175 = vmatpush2.bf16.msra.mxu0 0
        %1176 = vmatprep.subr.bf16.mxu0 0
        %1177 = vmatpush2.bf16.msra.mxu0 0
        %1178 = vmatprep.subr.bf16.mxu0 0
        %1179 = vmatpush2.bf16.msra.mxu0 0
        %1180 = vmatprep.subr.bf16.mxu0 0
        %1181 = vmatpush2.bf16.msra.mxu0 0
        %1182 = vmatprep.subr.bf16.mxu0 0
        %1183 = vmatpush2.bf16.msra.mxu0 0
        %1184 = vmatprep.subr.bf16.mxu0 0
        %1185 = vmatpush2.bf16.msra.mxu0 0
        %1186 = vmatprep.subr.bf16.mxu0 0
        %1187 = vmatpush2.bf16.msra.mxu0 0
        %1188 = vmatprep.mubr.bf16.mxu0 0
        %1189 = vmatmul.mubr.bf16.gmra.mxu0 %v1027
        %v1190 = vpop.f32.mrf.mxu0
        %v1191 = vadd.f32 %v804, %v1190
        %v1192 = vpop.f32.mrf.mxu0
        %v1193 = vpop.f32.mrf.mxu0
        %v1194 = vadd.f32 %v804, %v1193
        %v1195 = vpop.f32.mrf.mxu0
        %1196 = vmatprep.mubr.bf16.mxu0 0
        %1197 = vmatmul.mubr.bf16.gmra.mxu0 %v1030
        %v1198 = vpop.f32.mrf.mxu0
        %v1199 = vadd.f32 %v804, %v1198
        %v1200 = vpop.f32.mrf.mxu0
        %v1201 = vpop.f32.mrf.mxu0
        %v1202 = vadd.f32 %v804, %v1201
        %v1203 = vpop.f32.mrf.mxu0
        %1204 = vmatprep.mubr.bf16.mxu0 0
        %1205 = vmatmul.mubr.bf16.gmra.mxu0 %v1033
        %v1206 = vpop.f32.mrf.mxu0
        %v1207 = vadd.f32 %v804, %v1206
        %v1208 = vpop.f32.mrf.mxu0
        %v1209 = vpop.f32.mrf.mxu0
        %v1210 = vadd.f32 %v804, %v1209
        %v1211 = vpop.f32.mrf.mxu0
        %1212 = vmatprep.mubr.bf16.mxu0 0
        %1213 = vmatmul.mubr.bf16.gmra.mxu0 %v1036
        %v1214 = vpop.f32.mrf.mxu0
        %v1215 = vadd.f32 %v804, %v1214
        %v1216 = vpop.f32.mrf.mxu0
        %v1217 = vpop.f32.mrf.mxu0
        %v1218 = vadd.f32 %v804, %v1217
        %v1219 = vpop.f32.mrf.mxu0
        %1220 = vmatprep.mubr.bf16.mxu0 0
        %1221 = vmatmul.mubr.bf16.gmra.mxu0 %v1039
        %v1222 = vpop.f32.mrf.mxu0
        %v1223 = vadd.f32 %v804, %v1222
        %v1224 = vpop.f32.mrf.mxu0
        %v1225 = vpop.f32.mrf.mxu0
        %v1226 = vadd.f32 %v804, %v1225
        %v1227 = vpop.f32.mrf.mxu0
        %1228 = vmatprep.mubr.bf16.mxu0 0
        %1229 = vmatmul.mubr.bf16.gmra.mxu0 %v1042
        %v1230 = vpop.f32.mrf.mxu0
        %v1231 = vadd.f32 %v804, %v1230
        %v1232 = vpop.f32.mrf.mxu0
        %v1233 = vpop.f32.mrf.mxu0
        %v1234 = vadd.f32 %v804, %v1233
        %v1235 = vpop.f32.mrf.mxu0
        %1236 = vmatprep.mubr.bf16.mxu0 0
        %1237 = vmatmul.mubr.bf16.gmra.mxu0 %v1045
        %v1238 = vpop.f32.mrf.mxu0
        %v1239 = vadd.f32 %v804, %v1238
        %v1240 = vpop.f32.mrf.mxu0
        %v1241 = vpop.f32.mrf.mxu0
        %v1242 = vadd.f32 %v804, %v1241
        %v1243 = vpop.f32.mrf.mxu0
        %1244 = vmatprep.mubr.bf16.mxu0 0
        %1245 = vmatmul.mubr.bf16.gmra.mxu0 %v1048
        %v1246 = vpop.f32.mrf.mxu0
        %v1247 = vadd.f32 %v804, %v1246
        %v1248 = vpop.f32.mrf.mxu0
        %v1249 = vpop.f32.mrf.mxu0
        %v1250 = vadd.f32 %v804, %v1249
        %v1251 = vpop.f32.mrf.mxu0
        %1252 = vmatprep.mubr.bf16.mxu0 0
        %1253 = vmatmul.mubr.bf16.gmra.mxu0 %v1051
        %v1254 = vpop.f32.mrf.mxu0
        %v1255 = vadd.f32 %v804, %v1254
        %v1256 = vpop.f32.mrf.mxu0
        %v1257 = vpop.f32.mrf.mxu0
        %v1258 = vadd.f32 %v804, %v1257
        %v1259 = vpop.f32.mrf.mxu0
        %1260 = vmatprep.mubr.bf16.mxu0 0
        %1261 = vmatmul.mubr.bf16.gmra.mxu0 %v1054
        %v1262 = vpop.f32.mrf.mxu0
        %v1263 = vadd.f32 %v804, %v1262
        %v1264 = vpop.f32.mrf.mxu0
        %v1265 = vpop.f32.mrf.mxu0
        %v1266 = vadd.f32 %v804, %v1265
        %v1267 = vpop.f32.mrf.mxu0
        %1268 = vmatprep.mubr.bf16.mxu0 0
        %1269 = vmatmul.mubr.bf16.gmra.mxu0 %v1057
        %v1270 = vpop.f32.mrf.mxu0
        %v1271 = vadd.f32 %v804, %v1270
        %v1272 = vpop.f32.mrf.mxu0
        %v1273 = vpop.f32.mrf.mxu0
        %v1274 = vadd.f32 %v804, %v1273
        %v1275 = vpop.f32.mrf.mxu0
        %1276 = vmatprep.mubr.bf16.mxu0 0
        %1277 = vmatmul.mubr.bf16.gmra.mxu0 %v1060
        %v1278 = vpop.f32.mrf.mxu0
        %v1279 = vadd.f32 %v804, %v1278
        %v1280 = vpop.f32.mrf.mxu0
        %v1281 = vpop.f32.mrf.mxu0
        %v1282 = vadd.f32 %v804, %v1281
        %v1283 = vpop.f32.mrf.mxu0
        %1284 = vmatprep.mubr.bf16.mxu0 0
        %1285 = vmatmul.mubr.bf16.gmra.mxu0 %v1063
        %v1286 = vpop.f32.mrf.mxu0
        %v1287 = vadd.f32 %v804, %v1286
        %v1288 = vpop.f32.mrf.mxu0
        %v1289 = vpop.f32.mrf.mxu0
        %v1290 = vadd.f32 %v804, %v1289
        %v1291 = vpop.f32.mrf.mxu0
        %1292 = vmatprep.mubr.bf16.mxu0 0
        %1293 = vmatmul.mubr.bf16.gmra.mxu0 %v1066
        %v1294 = vpop.f32.mrf.mxu0
        %v1295 = vadd.f32 %v804, %v1294
        %v1296 = vpop.f32.mrf.mxu0
        %v1297 = vpop.f32.mrf.mxu0
        %v1298 = vadd.f32 %v804, %v1297
        %v1299 = vpop.f32.mrf.mxu0
        %1300 = vmatprep.mubr.bf16.mxu0 0
        %1301 = vmatmul.mubr.bf16.gmra.mxu0 %v1069
        %v1302 = vpop.f32.mrf.mxu0
        %v1303 = vadd.f32 %v804, %v1302
        %v1304 = vpop.f32.mrf.mxu0
        %v1305 = vpop.f32.mrf.mxu0
        %v1306 = vadd.f32 %v804, %v1305
        %v1307 = vpop.f32.mrf.mxu0
        %1308 = vmatprep.mubr.bf16.mxu0 0
        %1309 = vmatmul.mubr.bf16.gmra.mxu0 %v1072
        %v1310 = vpop.f32.mrf.mxu0
        %v1311 = vadd.f32 %v804, %v1310
        %v1312 = vpop.f32.mrf.mxu0
        %v1313 = vpop.f32.mrf.mxu0
        %v1314 = vadd.f32 %v804, %v1313
        %v1315 = vpop.f32.mrf.mxu0
        %1316 = vmatprep.mubr.bf16.mxu0 0
        %1317 = vmatmul.mubr.bf16.gmra.mxu0 %v1075
        %v1318 = vpop.f32.mrf.mxu0
        %v1319 = vadd.f32 %v804, %v1318
        %v1320 = vpop.f32.mrf.mxu0
        %v1321 = vpop.f32.mrf.mxu0
        %v1322 = vadd.f32 %v804, %v1321
        %v1323 = vpop.f32.mrf.mxu0
        %1324 = vmatprep.mubr.bf16.mxu0 0
        %1325 = vmatmul.mubr.bf16.gmra.mxu0 %v1078
        %v1326 = vpop.f32.mrf.mxu0
        %v1327 = vadd.f32 %v804, %v1326
        %v1328 = vpop.f32.mrf.mxu0
        %v1329 = vpop.f32.mrf.mxu0
        %v1330 = vadd.f32 %v804, %v1329
        %v1331 = vpop.f32.mrf.mxu0
        %1332 = vmatprep.mubr.bf16.mxu0 0
        %1333 = vmatmul.mubr.bf16.gmra.mxu0 %v1081
        %v1334 = vpop.f32.mrf.mxu0
        %v1335 = vadd.f32 %v804, %v1334
        %v1336 = vpop.f32.mrf.mxu0
        %v1337 = vpop.f32.mrf.mxu0
        %v1338 = vadd.f32 %v804, %v1337
        %v1339 = vpop.f32.mrf.mxu0
        %1340 = vmatprep.mubr.bf16.mxu0 0
        %1341 = vmatmul.mubr.bf16.gmra.mxu0 %v1084
        %v1342 = vpop.f32.mrf.mxu0
        %v1343 = vadd.f32 %v804, %v1342
        %v1344 = vpop.f32.mrf.mxu0
        %v1345 = vpop.f32.mrf.mxu0
        %v1346 = vadd.f32 %v804, %v1345
        %v1347 = vpop.f32.mrf.mxu0
        %1348 = vmatprep.mubr.bf16.mxu0 0
        %1349 = vmatmul.mubr.bf16.gmra.mxu0 %v1087
        %v1350 = vpop.f32.mrf.mxu0
        %v1351 = vadd.f32 %v804, %v1350
        %v1352 = vpop.f32.mrf.mxu0
        %v1353 = vpop.f32.mrf.mxu0
        %v1354 = vadd.f32 %v804, %v1353
        %v1355 = vpop.f32.mrf.mxu0
        %1356 = vmatprep.mubr.bf16.mxu0 0
        %1357 = vmatmul.mubr.bf16.gmra.mxu0 %v1090
        %v1358 = vpop.f32.mrf.mxu0
        %v1359 = vadd.f32 %v804, %v1358
        %v1360 = vpop.f32.mrf.mxu0
        %v1361 = vpop.f32.mrf.mxu0
        %v1362 = vadd.f32 %v804, %v1361
        %v1363 = vpop.f32.mrf.mxu0
        %1364 = vmatprep.mubr.bf16.mxu0 0
        %1365 = vmatmul.mubr.bf16.gmra.mxu0 %v1093
        %v1366 = vpop.f32.mrf.mxu0
        %v1367 = vadd.f32 %v804, %v1366
        %v1368 = vpop.f32.mrf.mxu0
        %v1369 = vpop.f32.mrf.mxu0
        %v1370 = vadd.f32 %v804, %v1369
        %v1371 = vpop.f32.mrf.mxu0
        %1372 = vmatprep.mubr.bf16.mxu0 0
        %1373 = vmatmul.mubr.bf16.gmra.mxu0 %v1096
        %v1374 = vpop.f32.mrf.mxu0
        %v1375 = vadd.f32 %v804, %v1374
        %v1376 = vpop.f32.mrf.mxu0
        %v1377 = vpop.f32.mrf.mxu0
        %v1378 = vadd.f32 %v804, %v1377
        %v1379 = vpop.f32.mrf.mxu0
        %1380 = vmatprep.mubr.bf16.mxu0 0
        %1381 = vmatmul.mubr.bf16.gmra.mxu0 %v1099
        %v1382 = vpop.f32.mrf.mxu0
        %v1383 = vadd.f32 %v804, %v1382
        %v1384 = vpop.f32.mrf.mxu0
        %v1385 = vpop.f32.mrf.mxu0
        %v1386 = vadd.f32 %v804, %v1385
        %v1387 = vpop.f32.mrf.mxu0
        %1388 = vmatprep.mubr.bf16.mxu0 0
        %1389 = vmatmul.mubr.bf16.gmra.mxu0 %v1102
        %v1390 = vpop.f32.mrf.mxu0
        %v1391 = vadd.f32 %v804, %v1390
        %v1392 = vpop.f32.mrf.mxu0
        %v1393 = vpop.f32.mrf.mxu0
        %v1394 = vadd.f32 %v804, %v1393
        %v1395 = vpop.f32.mrf.mxu0
        %1396 = vmatprep.mubr.bf16.mxu0 0
        %1397 = vmatmul.mubr.bf16.gmra.mxu0 %v1105
        %v1398 = vpop.f32.mrf.mxu0
        %v1399 = vadd.f32 %v804, %v1398
        %v1400 = vpop.f32.mrf.mxu0
        %v1401 = vpop.f32.mrf.mxu0
        %v1402 = vadd.f32 %v804, %v1401
        %v1403 = vpop.f32.mrf.mxu0
        %1404 = vmatprep.mubr.bf16.mxu0 0
        %1405 = vmatmul.mubr.bf16.gmra.mxu0 %v1108
        %v1406 = vpop.f32.mrf.mxu0
        %v1407 = vadd.f32 %v804, %v1406
        %v1408 = vpop.f32.mrf.mxu0
        %v1409 = vpop.f32.mrf.mxu0
        %v1410 = vadd.f32 %v804, %v1409
        %v1411 = vpop.f32.mrf.mxu0
        %1412 = vmatprep.mubr.bf16.mxu0 0
        %1413 = vmatmul.mubr.bf16.gmra.mxu0 %v1111
        %v1414 = vpop.f32.mrf.mxu0
        %v1415 = vadd.f32 %v804, %v1414
        %v1416 = vpop.f32.mrf.mxu0
        %v1417 = vpop.f32.mrf.mxu0
        %v1418 = vadd.f32 %v804, %v1417
        %v1419 = vpop.f32.mrf.mxu0
        %1420 = vmatprep.mubr.bf16.mxu0 0
        %1421 = vmatmul.mubr.bf16.gmra.mxu0 %v1114
        %v1422 = vpop.f32.mrf.mxu0
        %v1423 = vadd.f32 %v804, %v1422
        %v1424 = vpop.f32.mrf.mxu0
        %v1425 = vpop.f32.mrf.mxu0
        %v1426 = vadd.f32 %v804, %v1425
        %v1427 = vpop.f32.mrf.mxu0
        %1428 = vmatprep.mubr.bf16.mxu0 0
        %1429 = vmatmul.mubr.bf16.gmra.mxu0 %v1117
        %v1430 = vpop.f32.mrf.mxu0
        %v1431 = vadd.f32 %v804, %v1430
        %v1432 = vpop.f32.mrf.mxu0
        %v1433 = vpop.f32.mrf.mxu0
        %v1434 = vadd.f32 %v804, %v1433
        %v1435 = vpop.f32.mrf.mxu0
        %1436 = vmatprep.mubr.bf16.mxu0 0
        %1437 = vmatmul.mubr.bf16.gmra.mxu0 %v1120
        %v1438 = vpop.f32.mrf.mxu0
        %v1439 = vadd.f32 %v804, %v1438
        %v1440 = vpop.f32.mrf.mxu0
        %v1441 = vpop.f32.mrf.mxu0
        %v1442 = vadd.f32 %v804, %v1441
        %v1443 = vpop.f32.mrf.mxu0
        %1444 = vmatprep.mubr.bf16.mxu0 0
        %1445 = vmatmul.mubr.bf16.gmra.mxu0 %v1123
        %v1446 = vpop.f32.mrf.mxu0
        %v1447 = vadd.f32 %v804, %v1446
        %v1448 = vpop.f32.mrf.mxu0
        %v1449 = vpop.f32.mrf.mxu0
        %v1450 = vadd.f32 %v804, %v1449
        %v1451 = vpop.f32.mrf.mxu0
        %1452 = vmatprep.mubr.bf16.mxu0 0
        %1453 = vmatmul.mubr.bf16.gmra.mxu0 %v1126
        %v1454 = vpop.f32.mrf.mxu0
        %v1455 = vadd.f32 %v804, %v1454
        %v1456 = vpop.f32.mrf.mxu0
        %v1457 = vpop.f32.mrf.mxu0
        %v1458 = vadd.f32 %v804, %v1457
        %v1459 = vpop.f32.mrf.mxu0
        %1460 = vmatprep.mubr.bf16.mxu0 0
        %1461 = vmatmul.mubr.bf16.gmra.mxu0 %v1129
        %v1462 = vpop.f32.mrf.mxu0
        %v1463 = vadd.f32 %v804, %v1462
        %v1464 = vpop.f32.mrf.mxu0
        %v1465 = vpop.f32.mrf.mxu0
        %v1466 = vadd.f32 %v804, %v1465
        %v1467 = vpop.f32.mrf.mxu0
        %1468 = vmatprep.mubr.bf16.mxu0 0
        %1469 = vmatmul.mubr.bf16.gmra.mxu0 %v1132
        %v1470 = vpop.f32.mrf.mxu0
        %v1471 = vadd.f32 %v804, %v1470
        %v1472 = vpop.f32.mrf.mxu0
        %v1473 = vpop.f32.mrf.mxu0
        %v1474 = vadd.f32 %v804, %v1473
        %v1475 = vpop.f32.mrf.mxu0
        %1476 = vmatprep.mubr.bf16.mxu0 0
        %1477 = vmatmul.mubr.bf16.gmra.mxu0 %v1135
        %v1478 = vpop.f32.mrf.mxu0
        %v1479 = vadd.f32 %v804, %v1478
        %v1480 = vpop.f32.mrf.mxu0
        %v1481 = vpop.f32.mrf.mxu0
        %v1482 = vadd.f32 %v804, %v1481
        %v1483 = vpop.f32.mrf.mxu0
        %1484 = vmatprep.mubr.bf16.mxu0 0
        %1485 = vmatmul.mubr.bf16.gmra.mxu0 %v1138
        %v1486 = vpop.f32.mrf.mxu0
        %v1487 = vadd.f32 %v804, %v1486
        %v1488 = vpop.f32.mrf.mxu0
        %v1489 = vpop.f32.mrf.mxu0
        %v1490 = vadd.f32 %v804, %v1489
        %v1491 = vpop.f32.mrf.mxu0
        %1492 = vmatprep.mubr.bf16.mxu0 0
        %1493 = vmatmul.mubr.bf16.gmra.mxu0 %v1141
        %v1494 = vpop.f32.mrf.mxu0
        %v1495 = vadd.f32 %v804, %v1494
        %v1496 = vpop.f32.mrf.mxu0
        %v1497 = vpop.f32.mrf.mxu0
        %v1498 = vadd.f32 %v804, %v1497
        %v1499 = vpop.f32.mrf.mxu0
        %1500 = vmatprep.mubr.bf16.mxu0 0
        %1501 = vmatmul.mubr.bf16.gmra.mxu0 %v1144
        %v1502 = vpop.f32.mrf.mxu0
        %v1503 = vadd.f32 %v804, %v1502
        %v1504 = vpop.f32.mrf.mxu0
        %v1505 = vpop.f32.mrf.mxu0
        %v1506 = vadd.f32 %v804, %v1505
        %v1507 = vpop.f32.mrf.mxu0
        %1508 = vmatprep.mubr.bf16.mxu0 0
        %1509 = vmatmul.mubr.bf16.gmra.mxu0 %v1147
        %v1510 = vpop.f32.mrf.mxu0
        %v1511 = vadd.f32 %v804, %v1510
        %v1512 = vpop.f32.mrf.mxu0
        %v1513 = vpop.f32.mrf.mxu0
        %v1514 = vadd.f32 %v804, %v1513
        %v1515 = vpop.f32.mrf.mxu0
        %1516 = vmatprep.mubr.bf16.mxu0 0
        %1517 = vmatmul.mubr.bf16.gmra.mxu0 %v1150
        %v1518 = vpop.f32.mrf.mxu0
        %v1519 = vadd.f32 %v804, %v1518
        %v1520 = vpop.f32.mrf.mxu0
        %v1521 = vpop.f32.mrf.mxu0
        %v1522 = vadd.f32 %v804, %v1521
        %v1523 = vpop.f32.mrf.mxu0
        %1524 = vdwg.mxu0
        %v1525 = vmax.f32 %v1191, 0.0
        %v1526 = vmax.f32 %v1194, 0.0
        %v1527 = vmax.f32 %v1199, 0.0
        %v1528 = vmax.f32 %v1202, 0.0
        %v1529 = vmax.f32 %v1207, 0.0
        %v1530 = vmax.f32 %v1210, 0.0
        %v1531 = vmax.f32 %v1215, 0.0
        %v1532 = vmax.f32 %v1218, 0.0
        %v1533 = vmax.f32 %v1223, 0.0
        %v1534 = vmax.f32 %v1226, 0.0
        %v1535 = vmax.f32 %v1231, 0.0
        %v1536 = vmax.f32 %v1234, 0.0
        %v1537 = vmax.f32 %v1239, 0.0
        %v1538 = vmax.f32 %v1242, 0.0
        %v1539 = vmax.f32 %v1247, 0.0
        %v1540 = vmax.f32 %v1250, 0.0
        %v1541 = vmax.f32 %v1255, 0.0
        %v1542 = vmax.f32 %v1258, 0.0
        %v1543 = vmax.f32 %v1263, 0.0
        %v1544 = vmax.f32 %v1266, 0.0
        %v1545 = vmax.f32 %v1271, 0.0
        %v1546 = vmax.f32 %v1274, 0.0
        %v1547 = vmax.f32 %v1279, 0.0
        %v1548 = vmax.f32 %v1282, 0.0
        %v1549 = vmax.f32 %v1287, 0.0
        %v1550 = vmax.f32 %v1290, 0.0
        %v1551 = vmax.f32 %v1295, 0.0
        %v1552 = vmax.f32 %v1298, 0.0
        %v1553 = vmax.f32 %v1303, 0.0
        %v1554 = vmax.f32 %v1306, 0.0
        %v1555 = vmax.f32 %v1311, 0.0
        %v1556 = vmax.f32 %v1314, 0.0
        %v1557 = vmax.f32 %v1319, 0.0
        %v1558 = vmax.f32 %v1322, 0.0
        %v1559 = vmax.f32 %v1327, 0.0
        %v1560 = vmax.f32 %v1330, 0.0
        %v1561 = vmax.f32 %v1335, 0.0
        %v1562 = vmax.f32 %v1338, 0.0
        %v1563 = vmax.f32 %v1343, 0.0
        %v1564 = vmax.f32 %v1346, 0.0
        %v1565 = vmax.f32 %v1351, 0.0
        %v1566 = vmax.f32 %v1354, 0.0
        %v1567 = vmax.f32 %v1359, 0.0
        %v1568 = vmax.f32 %v1362, 0.0
        %v1569 = vmax.f32 %v1367, 0.0
        %v1570 = vmax.f32 %v1370, 0.0
        %v1571 = vmax.f32 %v1375, 0.0
        %v1572 = vmax.f32 %v1378, 0.0
        %v1573 = vmax.f32 %v1383, 0.0
        %v1574 = vmax.f32 %v1386, 0.0
        %v1575 = vmax.f32 %v1391, 0.0
        %v1576 = vmax.f32 %v1394, 0.0
        %v1577 = vmax.f32 %v1399, 0.0
        %v1578 = vmax.f32 %v1402, 0.0
        %v1579 = vmax.f32 %v1407, 0.0
        %v1580 = vmax.f32 %v1410, 0.0
        %v1581 = vmax.f32 %v1415, 0.0
        %v1582 = vmax.f32 %v1418, 0.0
        %v1583 = vmax.f32 %v1423, 0.0
        %v1584 = vmax.f32 %v1426, 0.0
        %v1585 = vmax.f32 %v1431, 0.0
        %v1586 = vmax.f32 %v1434, 0.0
        %v1587 = vmax.f32 %v1439, 0.0
        %v1588 = vmax.f32 %v1442, 0.0
        %v1589 = vmax.f32 %v1447, 0.0
        %v1590 = vmax.f32 %v1450, 0.0
        %v1591 = vmax.f32 %v1455, 0.0
        %v1592 = vmax.f32 %v1458, 0.0
        %v1593 = vmax.f32 %v1463, 0.0
        %v1594 = vmax.f32 %v1466, 0.0
        %v1595 = vmax.f32 %v1471, 0.0
        %v1596 = vmax.f32 %v1474, 0.0
        %v1597 = vmax.f32 %v1479, 0.0
        %v1598 = vmax.f32 %v1482, 0.0
        %v1599 = vmax.f32 %v1487, 0.0
        %v1600 = vmax.f32 %v1490, 0.0
        %v1601 = vmax.f32 %v1495, 0.0
        %v1602 = vmax.f32 %v1498, 0.0
        %v1603 = vmax.f32 %v1503, 0.0
        %v1604 = vmax.f32 %v1506, 0.0
        %v1605 = vmax.f32 %v1511, 0.0
        %v1606 = vmax.f32 %v1514, 0.0
        %v1607 = vmax.f32 %v1519, 0.0
        %v1608 = vmax.f32 %v1522, 0.0
        %v1609 = vpack.c.bf16 %v1526, %v1525
        %v1610 = vpack.c.bf16 %v1528, %v1527
        %v1611 = vpack.c.bf16 %v1530, %v1529
        %v1612 = vpack.c.bf16 %v1532, %v1531
        %v1613 = vpack.c.bf16 %v1534, %v1533
        %v1614 = vpack.c.bf16 %v1536, %v1535
        %v1615 = vpack.c.bf16 %v1538, %v1537
        %v1616 = vpack.c.bf16 %v1540, %v1539
        %v1617 = vpack.c.bf16 %v1542, %v1541
        %v1618 = vpack.c.bf16 %v1544, %v1543
        %v1619 = vpack.c.bf16 %v1546, %v1545
        %v1620 = vpack.c.bf16 %v1548, %v1547
        %v1621 = vpack.c.bf16 %v1550, %v1549
        %v1622 = vpack.c.bf16 %v1552, %v1551
        %v1623 = vpack.c.bf16 %v1554, %v1553
        %v1624 = vpack.c.bf16 %v1556, %v1555
        %v1625 = vpack.c.bf16 %v1558, %v1557
        %v1626 = vpack.c.bf16 %v1560, %v1559
        %v1627 = vpack.c.bf16 %v1562, %v1561
        %v1628 = vpack.c.bf16 %v1564, %v1563
        %v1629 = vpack.c.bf16 %v1566, %v1565
        %v1630 = vpack.c.bf16 %v1568, %v1567
        %v1631 = vpack.c.bf16 %v1570, %v1569
        %v1632 = vpack.c.bf16 %v1572, %v1571
        %v1633 = vpack.c.bf16 %v1574, %v1573
        %v1634 = vpack.c.bf16 %v1576, %v1575
        %v1635 = vpack.c.bf16 %v1578, %v1577
        %v1636 = vpack.c.bf16 %v1580, %v1579
        %v1637 = vpack.c.bf16 %v1582, %v1581
        %v1638 = vpack.c.bf16 %v1584, %v1583
        %v1639 = vpack.c.bf16 %v1586, %v1585
        %v1640 = vpack.c.bf16 %v1588, %v1587
        %v1641 = vpack.c.bf16 %v1590, %v1589
        %v1642 = vpack.c.bf16 %v1592, %v1591
        %v1643 = vpack.c.bf16 %v1594, %v1593
        %v1644 = vpack.c.bf16 %v1596, %v1595
        %v1645 = vpack.c.bf16 %v1598, %v1597
        %v1646 = vpack.c.bf16 %v1600, %v1599
        %v1647 = vpack.c.bf16 %v1602, %v1601
        %v1648 = vpack.c.bf16 %v1604, %v1603
        %v1649 = vpack.c.bf16 %v1606, %v1605
        %v1650 = vpack.c.bf16 %v1608, %v1607
        %v1694 = vunpack.c.l.b16 0
        %v1695 = vunpack.c.h.b16 0
        %v1696 = vunpack.c.l.b16 %v1609
        %v1697 = vunpack.c.h.b16 %v1609
        %v1698 = vunpack.c.l.b16 %v1610
        %v1699 = vunpack.c.h.b16 %v1610
        %v1700 = vunpack.c.l.b16 %v1611
        %v1701 = vunpack.c.h.b16 %v1611
        %v1702 = vunpack.c.l.b16 %v1612
        %v1703 = vunpack.c.h.b16 %v1612
        %v1704 = vunpack.c.l.b16 %v1613
        %v1705 = vunpack.c.h.b16 %v1613
        %v1706 = vunpack.c.l.b16 %v1614
        %v1707 = vunpack.c.h.b16 %v1614
        %v1708 = vunpack.c.l.b16 %v1615
        %v1709 = vunpack.c.h.b16 %v1615
        %v1710 = vunpack.c.l.b16 %v1616
        %v1711 = vunpack.c.h.b16 %v1616
        %v1712 = vunpack.c.l.b16 %v1617
        %v1713 = vunpack.c.h.b16 %v1617
        %v1714 = vunpack.c.l.b16 %v1618
        %v1715 = vunpack.c.h.b16 %v1618
        %v1716 = vunpack.c.l.b16 %v1619
        %v1717 = vunpack.c.h.b16 %v1619
        %v1718 = vunpack.c.l.b16 %v1620
        %v1719 = vunpack.c.h.b16 %v1620
        %v1720 = vunpack.c.l.b16 %v1621
        %v1721 = vunpack.c.h.b16 %v1621
        %v1722 = vunpack.c.l.b16 %v1622
        %v1723 = vunpack.c.h.b16 %v1622
        %v1724 = vunpack.c.l.b16 %v1623
        %v1725 = vunpack.c.h.b16 %v1623
        %v1726 = vunpack.c.l.b16 %v1624
        %v1727 = vunpack.c.h.b16 %v1624
        %v1728 = vunpack.c.l.b16 %v1625
        %v1729 = vunpack.c.h.b16 %v1625
        %v1730 = vunpack.c.l.b16 %v1626
        %v1731 = vunpack.c.h.b16 %v1626
        %v1732 = vunpack.c.l.b16 %v1627
        %v1733 = vunpack.c.h.b16 %v1627
        %v1734 = vunpack.c.l.b16 %v1628
        %v1735 = vunpack.c.h.b16 %v1628
        %v1736 = vunpack.c.l.b16 %v1629
        %v1737 = vunpack.c.h.b16 %v1629
        %v1738 = vunpack.c.l.b16 %v1630
        %v1739 = vunpack.c.h.b16 %v1630
        %v1740 = vunpack.c.l.b16 %v1631
        %v1741 = vunpack.c.h.b16 %v1631
        %v1742 = vunpack.c.l.b16 %v1632
        %v1743 = vunpack.c.h.b16 %v1632
        %v1744 = vunpack.c.l.b16 %v1633
        %v1745 = vunpack.c.h.b16 %v1633
        %v1746 = vunpack.c.l.b16 %v1634
        %v1747 = vunpack.c.h.b16 %v1634
        %v1748 = vunpack.c.l.b16 %v1635
        %v1749 = vunpack.c.h.b16 %v1635
        %v1750 = vunpack.c.l.b16 %v1636
        %v1751 = vunpack.c.h.b16 %v1636
        %v1752 = vunpack.c.l.b16 %v1637
        %v1753 = vunpack.c.h.b16 %v1637
        %v1754 = vunpack.c.l.b16 %v1638
        %v1755 = vunpack.c.h.b16 %v1638
        %v1756 = vunpack.c.l.b16 %v1639
        %v1757 = vunpack.c.h.b16 %v1639
        %v1758 = vunpack.c.l.b16 %v1640
        %v1759 = vunpack.c.h.b16 %v1640
        %v1760 = vunpack.c.l.b16 %v1641
        %v1761 = vunpack.c.h.b16 %v1641
        %v1762 = vunpack.c.l.b16 %v1642
        %v1763 = vunpack.c.h.b16 %v1642
        %v1764 = vunpack.c.l.b16 %v1643
        %v1765 = vunpack.c.h.b16 %v1643
        %v1766 = vunpack.c.l.b16 %v1644
        %v1767 = vunpack.c.h.b16 %v1644
        %v1768 = vunpack.c.l.b16 %v1645
        %v1769 = vunpack.c.h.b16 %v1645
        %v1770 = vunpack.c.l.b16 %v1646
        %v1771 = vunpack.c.h.b16 %v1646
        %v1772 = vunpack.c.l.b16 %v1647
        %v1773 = vunpack.c.h.b16 %v1647
        %v1774 = vunpack.c.l.b16 %v1648
        %v1775 = vunpack.c.h.b16 %v1648
        %v1776 = vunpack.c.l.b16 %v1649
        %v1777 = vunpack.c.h.b16 %v1649
        %v1778 = vunpack.c.l.b16 %v1650
        %v1779 = vunpack.c.h.b16 %v1650
        %v1780 = vpack.c.b16 %v1694, %v1694
        %v1781 = vpack.c.b16 %v1695, %v1695
        %v1782 = vpack.c.b16 %v1696, %v1696
        %v1783 = vpack.c.b16 %v1697, %v1697
        %v1784 = vpack.c.b16 %v1698, %v1698
        %v1785 = vpack.c.b16 %v1699, %v1699
        %v1786 = vpack.c.b16 %v1700, %v1700
        %v1787 = vpack.c.b16 %v1701, %v1701
        %v1788 = vpack.c.b16 %v1702, %v1702
        %v1789 = vpack.c.b16 %v1703, %v1703
        %v1790 = vpack.c.b16 %v1704, %v1704
        %v1791 = vpack.c.b16 %v1705, %v1705
        %v1792 = vpack.c.b16 %v1706, %v1706
        %v1793 = vpack.c.b16 %v1707, %v1707
        %v1794 = vpack.c.b16 %v1708, %v1708
        %v1795 = vpack.c.b16 %v1709, %v1709
        %v1796 = vpack.c.b16 %v1710, %v1710
        %v1797 = vpack.c.b16 %v1711, %v1711
        %v1798 = vpack.c.b16 %v1712, %v1712
        %v1799 = vpack.c.b16 %v1713, %v1713
        %v1800 = vpack.c.b16 %v1714, %v1714
        %v1801 = vpack.c.b16 %v1715, %v1715
        %v1802 = vpack.c.b16 %v1716, %v1716
        %v1803 = vpack.c.b16 %v1717, %v1717
        %v1804 = vpack.c.b16 %v1718, %v1718
        %v1805 = vpack.c.b16 %v1719, %v1719
        %v1806 = vpack.c.b16 %v1720, %v1720
        %v1807 = vpack.c.b16 %v1721, %v1721
        %v1808 = vpack.c.b16 %v1722, %v1722
        %v1809 = vpack.c.b16 %v1723, %v1723
        %v1810 = vpack.c.b16 %v1724, %v1724
        %v1811 = vpack.c.b16 %v1725, %v1725
        %v1812 = vpack.c.b16 %v1726, %v1726
        %v1813 = vpack.c.b16 %v1727, %v1727
        %v1814 = vpack.c.b16 %v1728, %v1728
        %v1815 = vpack.c.b16 %v1729, %v1729
        %v1816 = vpack.c.b16 %v1730, %v1730
        %v1817 = vpack.c.b16 %v1731, %v1731
        %v1818 = vpack.c.b16 %v1732, %v1732
        %v1819 = vpack.c.b16 %v1733, %v1733
        %v1820 = vpack.c.b16 %v1734, %v1734
        %v1821 = vpack.c.b16 %v1735, %v1735
        %v1822 = vpack.c.b16 %v1736, %v1736
        %v1823 = vpack.c.b16 %v1737, %v1737
        %v1824 = vpack.c.b16 %v1738, %v1738
        %v1825 = vpack.c.b16 %v1739, %v1739
        %v1826 = vpack.c.b16 %v1740, %v1740
        %v1827 = vpack.c.b16 %v1741, %v1741
        %v1828 = vpack.c.b16 %v1742, %v1742
        %v1829 = vpack.c.b16 %v1743, %v1743
        %v1830 = vpack.c.b16 %v1744, %v1744
        %v1831 = vpack.c.b16 %v1745, %v1745
        %v1832 = vpack.c.b16 %v1746, %v1746
        %v1833 = vpack.c.b16 %v1747, %v1747
        %v1834 = vpack.c.b16 %v1748, %v1748
        %v1835 = vpack.c.b16 %v1749, %v1749
        %v1836 = vpack.c.b16 %v1750, %v1750
        %v1837 = vpack.c.b16 %v1751, %v1751
        %v1838 = vpack.c.b16 %v1752, %v1752
        %v1839 = vpack.c.b16 %v1753, %v1753
        %v1840 = vpack.c.b16 %v1754, %v1754
        %v1841 = vpack.c.b16 %v1755, %v1755
        %v1842 = vpack.c.b16 %v1756, %v1756
        %v1843 = vpack.c.b16 %v1757, %v1757
        %v1844 = vpack.c.b16 %v1758, %v1758
        %v1845 = vpack.c.b16 %v1759, %v1759
        %v1846 = vpack.c.b16 %v1760, %v1760
        %v1847 = vpack.c.b16 %v1761, %v1761
        %v1848 = vpack.c.b16 %v1762, %v1762
        %v1849 = vpack.c.b16 %v1763, %v1763
        %v1850 = vpack.c.b16 %v1764, %v1764
        %v1851 = vpack.c.b16 %v1765, %v1765
        %v1852 = vpack.c.b16 %v1766, %v1766
        %v1853 = vpack.c.b16 %v1767, %v1767
        %v1854 = vpack.c.b16 %v1768, %v1768
        %v1855 = vpack.c.b16 %v1769, %v1769
        %v1856 = vpack.c.b16 %v1770, %v1770
        %v1857 = vpack.c.b16 %v1771, %v1771
        %v1858 = vpack.c.b16 %v1772, %v1772
        %v1859 = vpack.c.b16 %v1773, %v1773
        %v1860 = vpack.c.b16 %v1774, %v1774
        %v1861 = vpack.c.b16 %v1775, %v1775
        %v1862 = vpack.c.b16 %v1776, %v1776
        %v1863 = vpack.c.b16 %v1777, %v1777
        %v1864 = vpack.c.b16 %v1778, %v1778
        %v1865 = vpack.c.b16 %v1779, %v1779
        %vm1952 = vcmask 257024
        %1953 = vst.msk [vmem:[#allocation2] sm:$0xf] %vm1952, %v1780
        %1954 = vst.msk [vmem:[#allocation2 + $0x4] sm:$0xf] %vm1952, %v1781
        %1955 = vst.msk [vmem:[#allocation2 + $0x8] sm:$0xf] %vm1952, %v1780
        %1956 = vst.msk [vmem:[#allocation2 + $0xc] sm:$0xf] %vm1952, %v1781
        %1957 = vst.msk [vmem:[#allocation2 + $0x10] sm:$0xf] %vm1952, %v1780
        %1958 = vst.msk [vmem:[#allocation2 + $0x14] sm:$0xf] %vm1952, %v1781
        %1959 = vst.msk [vmem:[#allocation2 + $0x18] sm:$0xf] %vm1952, %v1780
        %1960 = vst.msk [vmem:[#allocation2 + $0x1c] sm:$0xf] %vm1952, %v1781
        %1961 = vst.msk [vmem:[#allocation2 + $0x20] sm:$0xf] %vm1952, %v1780
        %1962 = vst.msk [vmem:[#allocation2 + $0x24] sm:$0xf] %vm1952, %v1781
        %1963 = vst.msk [vmem:[#allocation2 + $0x28] sm:$0xf] %vm1952, %v1780
        %1964 = vst.msk [vmem:[#allocation2 + $0x2c] sm:$0xf] %vm1952, %v1781
        %1965 = vst.msk [vmem:[#allocation2 + $0x30] sm:$0xf] %vm1952, %v1780
        %1966 = vst.msk [vmem:[#allocation2 + $0x34] sm:$0xf] %vm1952, %v1781
        %1967 = vst.msk [vmem:[#allocation2 + $0x38] sm:$0xf] %vm1952, %v1780
        %1968 = vst.msk [vmem:[#allocation2 + $0x3c] sm:$0xf] %vm1952, %v1781
        %1969 = vst.msk [vmem:[#allocation2 + $0x40] sm:$0xf] %vm1952, %v1780
        %1970 = vst.msk [vmem:[#allocation2 + $0x44] sm:$0xf] %vm1952, %v1781
        %1971 = vst.msk [vmem:[#allocation2 + $0x48] sm:$0xf] %vm1952, %v1780
        %1972 = vst.msk [vmem:[#allocation2 + $0x4c] sm:$0xf] %vm1952, %v1781
        %1973 = vst.msk [vmem:[#allocation2 + $0x50] sm:$0xf] %vm1952, %v1782
        %1974 = vst.msk [vmem:[#allocation2 + $0x54] sm:$0xf] %vm1952, %v1783
        %1975 = vst.msk [vmem:[#allocation2 + $0x58] sm:$0xf] %vm1952, %v1784
        %1976 = vst.msk [vmem:[#allocation2 + $0x5c] sm:$0xf] %vm1952, %v1785
        %1977 = vst.msk [vmem:[#allocation2 + $0x60] sm:$0xf] %vm1952, %v1786
        %1978 = vst.msk [vmem:[#allocation2 + $0x64] sm:$0xf] %vm1952, %v1787
        %1979 = vst.msk [vmem:[#allocation2 + $0x68] sm:$0xf] %vm1952, %v1788
        %1980 = vst.msk [vmem:[#allocation2 + $0x6c] sm:$0xf] %vm1952, %v1789
        %1981 = vst.msk [vmem:[#allocation2 + $0x70] sm:$0xf] %vm1952, %v1790
        %1982 = vst.msk [vmem:[#allocation2 + $0x74] sm:$0xf] %vm1952, %v1791
        %1983 = vst.msk [vmem:[#allocation2 + $0x78] sm:$0xf] %vm1952, %v1792
        %1984 = vst.msk [vmem:[#allocation2 + $0x7c] sm:$0xf] %vm1952, %v1793
        %1985 = vst.msk [vmem:[#allocation2 + $0x80] sm:$0xf] %vm1952, %v1794
        %1986 = vst.msk [vmem:[#allocation2 + $0x84] sm:$0xf] %vm1952, %v1795
        %1987 = vst.msk [vmem:[#allocation2 + $0x88] sm:$0xf] %vm1952, %v1780
        %1988 = vst.msk [vmem:[#allocation2 + $0x8c] sm:$0xf] %vm1952, %v1781
        %1989 = vst.msk [vmem:[#allocation2 + $0x90] sm:$0xf] %vm1952, %v1780
        %1990 = vst.msk [vmem:[#allocation2 + $0x94] sm:$0xf] %vm1952, %v1781
        %1991 = vst.msk [vmem:[#allocation2 + $0x98] sm:$0xf] %vm1952, %v1796
        %1992 = vst.msk [vmem:[#allocation2 + $0x9c] sm:$0xf] %vm1952, %v1797
        %1993 = vst.msk [vmem:[#allocation2 + $0xa0] sm:$0xf] %vm1952, %v1798
        %1994 = vst.msk [vmem:[#allocation2 + $0xa4] sm:$0xf] %vm1952, %v1799
        %1995 = vst.msk [vmem:[#allocation2 + $0xa8] sm:$0xf] %vm1952, %v1800
        %1996 = vst.msk [vmem:[#allocation2 + $0xac] sm:$0xf] %vm1952, %v1801
        %1997 = vst.msk [vmem:[#allocation2 + $0xb0] sm:$0xf] %vm1952, %v1802
        %1998 = vst.msk [vmem:[#allocation2 + $0xb4] sm:$0xf] %vm1952, %v1803
        %1999 = vst.msk [vmem:[#allocation2 + $0xb8] sm:$0xf] %vm1952, %v1804
        %2000 = vst.msk [vmem:[#allocation2 + $0xbc] sm:$0xf] %vm1952, %v1805
        %2001 = vst.msk [vmem:[#allocation2 + $0xc0] sm:$0xf] %vm1952, %v1806
        %2002 = vst.msk [vmem:[#allocation2 + $0xc4] sm:$0xf] %vm1952, %v1807
        %2003 = vst.msk [vmem:[#allocation2 + $0xc8] sm:$0xf] %vm1952, %v1808
        %2004 = vst.msk [vmem:[#allocation2 + $0xcc] sm:$0xf] %vm1952, %v1809
        %2005 = vst.msk [vmem:[#allocation2 + $0xd0] sm:$0xf] %vm1952, %v1780
        %2006 = vst.msk [vmem:[#allocation2 + $0xd4] sm:$0xf] %vm1952, %v1781
        %2007 = vst.msk [vmem:[#allocation2 + $0xd8] sm:$0xf] %vm1952, %v1780
        %2008 = vst.msk [vmem:[#allocation2 + $0xdc] sm:$0xf] %vm1952, %v1781
        %2009 = vst.msk [vmem:[#allocation2 + $0xe0] sm:$0xf] %vm1952, %v1810
        %2010 = vst.msk [vmem:[#allocation2 + $0xe4] sm:$0xf] %vm1952, %v1811
        %2011 = vst.msk [vmem:[#allocation2 + $0xe8] sm:$0xf] %vm1952, %v1812
        %2012 = vst.msk [vmem:[#allocation2 + $0xec] sm:$0xf] %vm1952, %v1813
        %2013 = vst.msk [vmem:[#allocation2 + $0xf0] sm:$0xf] %vm1952, %v1814
        %2014 = vst.msk [vmem:[#allocation2 + $0xf4] sm:$0xf] %vm1952, %v1815
        %2015 = vst.msk [vmem:[#allocation2 + $0xf8] sm:$0xf] %vm1952, %v1816
        %2016 = vst.msk [vmem:[#allocation2 + $0xfc] sm:$0xf] %vm1952, %v1817
        %2017 = vst.msk [vmem:[#allocation2 + $0x100] sm:$0xf] %vm1952, %v1818
        %2018 = vst.msk [vmem:[#allocation2 + $0x104] sm:$0xf] %vm1952, %v1819
        %2019 = vst.msk [vmem:[#allocation2 + $0x108] sm:$0xf] %vm1952, %v1820
        %2020 = vst.msk [vmem:[#allocation2 + $0x10c] sm:$0xf] %vm1952, %v1821
        %2021 = vst.msk [vmem:[#allocation2 + $0x110] sm:$0xf] %vm1952, %v1822
        %2022 = vst.msk [vmem:[#allocation2 + $0x114] sm:$0xf] %vm1952, %v1823
        %2023 = vst.msk [vmem:[#allocation2 + $0x118] sm:$0xf] %vm1952, %v1780
        %2024 = vst.msk [vmem:[#allocation2 + $0x11c] sm:$0xf] %vm1952, %v1781
        %2025 = vst.msk [vmem:[#allocation2 + $0x120] sm:$0xf] %vm1952, %v1780
        %2026 = vst.msk [vmem:[#allocation2 + $0x124] sm:$0xf] %vm1952, %v1781
        %2027 = vst.msk [vmem:[#allocation2 + $0x128] sm:$0xf] %vm1952, %v1824
        %2028 = vst.msk [vmem:[#allocation2 + $0x12c] sm:$0xf] %vm1952, %v1825
        %2029 = vst.msk [vmem:[#allocation2 + $0x130] sm:$0xf] %vm1952, %v1826
        %2030 = vst.msk [vmem:[#allocation2 + $0x134] sm:$0xf] %vm1952, %v1827
        %2031 = vst.msk [vmem:[#allocation2 + $0x138] sm:$0xf] %vm1952, %v1828
        %2032 = vst.msk [vmem:[#allocation2 + $0x13c] sm:$0xf] %vm1952, %v1829
        %2033 = vst.msk [vmem:[#allocation2 + $0x140] sm:$0xf] %vm1952, %v1830
        %2034 = vst.msk [vmem:[#allocation2 + $0x144] sm:$0xf] %vm1952, %v1831
        %2035 = vst.msk [vmem:[#allocation2 + $0x148] sm:$0xf] %vm1952, %v1832
        %2036 = vst.msk [vmem:[#allocation2 + $0x14c] sm:$0xf] %vm1952, %v1833
        %2037 = vst.msk [vmem:[#allocation2 + $0x150] sm:$0xf] %vm1952, %v1834
        %2038 = vst.msk [vmem:[#allocation2 + $0x154] sm:$0xf] %vm1952, %v1835
        %2039 = vst.msk [vmem:[#allocation2 + $0x158] sm:$0xf] %vm1952, %v1836
        %2040 = vst.msk [vmem:[#allocation2 + $0x15c] sm:$0xf] %vm1952, %v1837
        %2041 = vst.msk [vmem:[#allocation2 + $0x160] sm:$0xf] %vm1952, %v1780
        %2042 = vst.msk [vmem:[#allocation2 + $0x164] sm:$0xf] %vm1952, %v1781
        %2043 = vst.msk [vmem:[#allocation2 + $0x168] sm:$0xf] %vm1952, %v1780
        %2044 = vst.msk [vmem:[#allocation2 + $0x16c] sm:$0xf] %vm1952, %v1781
        %2045 = vst.msk [vmem:[#allocation2 + $0x170] sm:$0xf] %vm1952, %v1838
        %2046 = vst.msk [vmem:[#allocation2 + $0x174] sm:$0xf] %vm1952, %v1839
        %2047 = vst.msk [vmem:[#allocation2 + $0x178] sm:$0xf] %vm1952, %v1840
        %2048 = vst.msk [vmem:[#allocation2 + $0x17c] sm:$0xf] %vm1952, %v1841
        %2049 = vst.msk [vmem:[#allocation2 + $0x180] sm:$0xf] %vm1952, %v1842
        %2050 = vst.msk [vmem:[#allocation2 + $0x184] sm:$0xf] %vm1952, %v1843
        %2051 = vst.msk [vmem:[#allocation2 + $0x188] sm:$0xf] %vm1952, %v1844
        %2052 = vst.msk [vmem:[#allocation2 + $0x18c] sm:$0xf] %vm1952, %v1845
        %2053 = vst.msk [vmem:[#allocation2 + $0x190] sm:$0xf] %vm1952, %v1846
        %2054 = vst.msk [vmem:[#allocation2 + $0x194] sm:$0xf] %vm1952, %v1847
        %2055 = vst.msk [vmem:[#allocation2 + $0x198] sm:$0xf] %vm1952, %v1848
        %2056 = vst.msk [vmem:[#allocation2 + $0x19c] sm:$0xf] %vm1952, %v1849
        %2057 = vst.msk [vmem:[#allocation2 + $0x1a0] sm:$0xf] %vm1952, %v1850
        %2058 = vst.msk [vmem:[#allocation2 + $0x1a4] sm:$0xf] %vm1952, %v1851
        %2059 = vst.msk [vmem:[#allocation2 + $0x1a8] sm:$0xf] %vm1952, %v1780
        %2060 = vst.msk [vmem:[#allocation2 + $0x1ac] sm:$0xf] %vm1952, %v1781
        %2061 = vst.msk [vmem:[#allocation2 + $0x1b0] sm:$0xf] %vm1952, %v1780
        %2062 = vst.msk [vmem:[#allocation2 + $0x1b4] sm:$0xf] %vm1952, %v1781
        %2063 = vst.msk [vmem:[#allocation2 + $0x1b8] sm:$0xf] %vm1952, %v1852
        %2064 = vst.msk [vmem:[#allocation2 + $0x1bc] sm:$0xf] %vm1952, %v1853
        %2065 = vst.msk [vmem:[#allocation2 + $0x1c0] sm:$0xf] %vm1952, %v1854
        %2066 = vst.msk [vmem:[#allocation2 + $0x1c4] sm:$0xf] %vm1952, %v1855
        %2067 = vst.msk [vmem:[#allocation2 + $0x1c8] sm:$0xf] %vm1952, %v1856
        %2068 = vst.msk [vmem:[#allocation2 + $0x1cc] sm:$0xf] %vm1952, %v1857
        %2069 = vst.msk [vmem:[#allocation2 + $0x1d0] sm:$0xf] %vm1952, %v1858
        %2070 = vst.msk [vmem:[#allocation2 + $0x1d4] sm:$0xf] %vm1952, %v1859
        %2071 = vst.msk [vmem:[#allocation2 + $0x1d8] sm:$0xf] %vm1952, %v1860
        %2072 = vst.msk [vmem:[#allocation2 + $0x1dc] sm:$0xf] %vm1952, %v1861
        %2073 = vst.msk [vmem:[#allocation2 + $0x1e0] sm:$0xf] %vm1952, %v1862
        %2074 = vst.msk [vmem:[#allocation2 + $0x1e4] sm:$0xf] %vm1952, %v1863
        %2075 = vst.msk [vmem:[#allocation2 + $0x1e8] sm:$0xf] %vm1952, %v1864
        %2076 = vst.msk [vmem:[#allocation2 + $0x1ec] sm:$0xf] %vm1952, %v1865
        %2077 = vst.msk [vmem:[#allocation2 + $0x1f0] sm:$0xf] %vm1952, %v1780
        %2078 = vst.msk [vmem:[#allocation2 + $0x1f4] sm:$0xf] %vm1952, %v1781
        %2079 = vst.msk [vmem:[#allocation2 + $0x1f8] sm:$0xf] %vm1952, %v1780
        %2080 = vst.msk [vmem:[#allocation2 + $0x1fc] sm:$0xf] %vm1952, %v1781
        %2081 = vst.msk [vmem:[#allocation2 + $0x200] sm:$0xf] %vm1952, %v1780
        %2082 = vst.msk [vmem:[#allocation2 + $0x204] sm:$0xf] %vm1952, %v1781
        %2083 = vst.msk [vmem:[#allocation2 + $0x208] sm:$0xf] %vm1952, %v1780
        %2084 = vst.msk [vmem:[#allocation2 + $0x20c] sm:$0xf] %vm1952, %v1781
        %2085 = vst.msk [vmem:[#allocation2 + $0x210] sm:$0xf] %vm1952, %v1780
        %2086 = vst.msk [vmem:[#allocation2 + $0x214] sm:$0xf] %vm1952, %v1781
        %2087 = vst.msk [vmem:[#allocation2 + $0x218] sm:$0xf] %vm1952, %v1780
        %2088 = vst.msk [vmem:[#allocation2 + $0x21c] sm:$0xf] %vm1952, %v1781
        %2089 = vst.msk [vmem:[#allocation2 + $0x220] sm:$0xf] %vm1952, %v1780
        %2090 = vst.msk [vmem:[#allocation2 + $0x224] sm:$0xf] %vm1952, %v1781
        %2091 = vst.msk [vmem:[#allocation2 + $0x228] sm:$0xf] %vm1952, %v1780
        %2092 = vst.msk [vmem:[#allocation2 + $0x22c] sm:$0xf] %vm1952, %v1781
        %2093 = vst.msk [vmem:[#allocation2 + $0x230] sm:$0xf] %vm1952, %v1780
        %2094 = vst.msk [vmem:[#allocation2 + $0x234] sm:$0xf] %vm1952, %v1781
        %2095 = vst.msk [vmem:[#allocation2 + $0x238] sm:$0xf] %vm1952, %v1780
        %2096 = vst.msk [vmem:[#allocation2 + $0x23c] sm:$0xf] %vm1952, %v1781
        %v2097 = vld [vmem:[#allocation2] sm:$0xf]
        %v2098 = vld [vmem:[#allocation2 + $0x4] sm:$0xf]
        %v2099 = vld [vmem:[#allocation2 + $0x8] sm:$0xf]
        %v2100 = vld [vmem:[#allocation2 + $0xc] sm:$0xf]
        %v2101 = vld [vmem:[#allocation2 + $0x10] sm:$0xf]
        %v2102 = vld [vmem:[#allocation2 + $0x14] sm:$0xf]
        %v2103 = vld [vmem:[#allocation2 + $0x18] sm:$0xf]
        %v2104 = vld [vmem:[#allocation2 + $0x1c] sm:$0xf]
        %v2105 = vld [vmem:[#allocation2 + $0x20] sm:$0xf]
        %v2106 = vld [vmem:[#allocation2 + $0x24] sm:$0xf]
        %v2107 = vld [vmem:[#allocation2 + $0x28] sm:$0xf]
        %v2108 = vld [vmem:[#allocation2 + $0x2c] sm:$0xf]
        %v2109 = vld [vmem:[#allocation2 + $0x30] sm:$0xf]
        %v2110 = vld [vmem:[#allocation2 + $0x34] sm:$0xf]
        %v2111 = vld [vmem:[#allocation2 + $0x48] sm:$0xf]
        %v2112 = vld [vmem:[#allocation2 + $0x4c] sm:$0xf]
        %v2113 = vld [vmem:[#allocation2 + $0x50] sm:$0xf]
        %v2114 = vld [vmem:[#allocation2 + $0x54] sm:$0xf]
        %v2115 = vld [vmem:[#allocation2 + $0x58] sm:$0xf]
        %v2116 = vld [vmem:[#allocation2 + $0x5c] sm:$0xf]
        %v2117 = vld [vmem:[#allocation2 + $0x60] sm:$0xf]
        %v2118 = vld [vmem:[#allocation2 + $0x64] sm:$0xf]
        %v2119 = vld [vmem:[#allocation2 + $0x68] sm:$0xf]
        %v2120 = vld [vmem:[#allocation2 + $0x6c] sm:$0xf]
        %v2121 = vld [vmem:[#allocation2 + $0x70] sm:$0xf]
        %v2122 = vld [vmem:[#allocation2 + $0x74] sm:$0xf]
        %v2123 = vld [vmem:[#allocation2 + $0x78] sm:$0xf]
        %v2124 = vld [vmem:[#allocation2 + $0x7c] sm:$0xf]
        %v2125 = vld [vmem:[#allocation2 + $0x90] sm:$0xf]
        %v2126 = vld [vmem:[#allocation2 + $0x94] sm:$0xf]
        %v2127 = vld [vmem:[#allocation2 + $0x98] sm:$0xf]
        %v2128 = vld [vmem:[#allocation2 + $0x9c] sm:$0xf]
        %v2129 = vld [vmem:[#allocation2 + $0xa0] sm:$0xf]
        %v2130 = vld [vmem:[#allocation2 + $0xa4] sm:$0xf]
        %v2131 = vld [vmem:[#allocation2 + $0xa8] sm:$0xf]
        %v2132 = vld [vmem:[#allocation2 + $0xac] sm:$0xf]
        %v2133 = vld [vmem:[#allocation2 + $0xb0] sm:$0xf]
        %v2134 = vld [vmem:[#allocation2 + $0xb4] sm:$0xf]
        %v2135 = vld [vmem:[#allocation2 + $0xb8] sm:$0xf]
        %v2136 = vld [vmem:[#allocation2 + $0xbc] sm:$0xf]
        %v2137 = vld [vmem:[#allocation2 + $0xc0] sm:$0xf]
        %v2138 = vld [vmem:[#allocation2 + $0xc4] sm:$0xf]
        %v2139 = vld [vmem:[#allocation2 + $0xd8] sm:$0xf]
        %v2140 = vld [vmem:[#allocation2 + $0xdc] sm:$0xf]
        %v2141 = vld [vmem:[#allocation2 + $0xe0] sm:$0xf]
        %v2142 = vld [vmem:[#allocation2 + $0xe4] sm:$0xf]
        %v2143 = vld [vmem:[#allocation2 + $0xe8] sm:$0xf]
        %v2144 = vld [vmem:[#allocation2 + $0xec] sm:$0xf]
        %v2145 = vld [vmem:[#allocation2 + $0xf0] sm:$0xf]
        %v2146 = vld [vmem:[#allocation2 + $0xf4] sm:$0xf]
        %v2147 = vld [vmem:[#allocation2 + $0xf8] sm:$0xf]
        %v2148 = vld [vmem:[#allocation2 + $0xfc] sm:$0xf]
        %v2149 = vld [vmem:[#allocation2 + $0x100] sm:$0xf]
        %v2150 = vld [vmem:[#allocation2 + $0x104] sm:$0xf]
        %v2151 = vld [vmem:[#allocation2 + $0x108] sm:$0xf]
        %v2152 = vld [vmem:[#allocation2 + $0x10c] sm:$0xf]
        %v2153 = vld [vmem:[#allocation2 + $0x120] sm:$0xf]
        %v2154 = vld [vmem:[#allocation2 + $0x124] sm:$0xf]
        %v2155 = vld [vmem:[#allocation2 + $0x128] sm:$0xf]
        %v2156 = vld [vmem:[#allocation2 + $0x12c] sm:$0xf]
        %v2157 = vld [vmem:[#allocation2 + $0x130] sm:$0xf]
        %v2158 = vld [vmem:[#allocation2 + $0x134] sm:$0xf]
        %v2159 = vld [vmem:[#allocation2 + $0x138] sm:$0xf]
        %v2160 = vld [vmem:[#allocation2 + $0x13c] sm:$0xf]
        %v2161 = vld [vmem:[#allocation2 + $0x140] sm:$0xf]
        %v2162 = vld [vmem:[#allocation2 + $0x144] sm:$0xf]
        %v2163 = vld [vmem:[#allocation2 + $0x148] sm:$0xf]
        %v2164 = vld [vmem:[#allocation2 + $0x14c] sm:$0xf]
        %v2165 = vld [vmem:[#allocation2 + $0x150] sm:$0xf]
        %v2166 = vld [vmem:[#allocation2 + $0x154] sm:$0xf]
        %v2167 = vld [vmem:[#allocation2 + $0x168] sm:$0xf]
        %v2168 = vld [vmem:[#allocation2 + $0x16c] sm:$0xf]
        %v2169 = vld [vmem:[#allocation2 + $0x170] sm:$0xf]
        %v2170 = vld [vmem:[#allocation2 + $0x174] sm:$0xf]
        %v2171 = vld [vmem:[#allocation2 + $0x178] sm:$0xf]
        %v2172 = vld [vmem:[#allocation2 + $0x17c] sm:$0xf]
        %v2173 = vld [vmem:[#allocation2 + $0x180] sm:$0xf]
        %v2174 = vld [vmem:[#allocation2 + $0x184] sm:$0xf]
        %v2175 = vld [vmem:[#allocation2 + $0x188] sm:$0xf]
        %v2176 = vld [vmem:[#allocation2 + $0x18c] sm:$0xf]
        %v2177 = vld [vmem:[#allocation2 + $0x190] sm:$0xf]
        %v2178 = vld [vmem:[#allocation2 + $0x194] sm:$0xf]
        %v2179 = vld [vmem:[#allocation2 + $0x198] sm:$0xf]
        %v2180 = vld [vmem:[#allocation2 + $0x19c] sm:$0xf]
        %2181 = vst.msk [vmem:[#allocation3] sm:$0xf] %vm1952, %v2097
        %2182 = vst.msk [vmem:[#allocation3 + $0xc] sm:$0xf] %vm1952, %v2098
        %2183 = vst.msk [vmem:[#allocation3 + $0x18] sm:$0xf] %vm1952, %v2099
        %2184 = vst.msk [vmem:[#allocation3 + $0x24] sm:$0xf] %vm1952, %v2100
        %2185 = vst.msk [vmem:[#allocation3 + $0x30] sm:$0xf] %vm1952, %v2101
        %2186 = vst.msk [vmem:[#allocation3 + $0x3c] sm:$0xf] %vm1952, %v2102
        %2187 = vst.msk [vmem:[#allocation3 + $0x48] sm:$0xf] %vm1952, %v2103
        %2188 = vst.msk [vmem:[#allocation3 + $0x54] sm:$0xf] %vm1952, %v2104
        %2189 = vst.msk [vmem:[#allocation3 + $0x60] sm:$0xf] %vm1952, %v2105
        %2190 = vst.msk [vmem:[#allocation3 + $0x6c] sm:$0xf] %vm1952, %v2106
        %2191 = vst.msk [vmem:[#allocation3 + $0x78] sm:$0xf] %vm1952, %v2107
        %2192 = vst.msk [vmem:[#allocation3 + $0x84] sm:$0xf] %vm1952, %v2108
        %2193 = vst.msk [vmem:[#allocation3 + $0x90] sm:$0xf] %vm1952, %v2109
        %2194 = vst.msk [vmem:[#allocation3 + $0x9c] sm:$0xf] %vm1952, %v2110
        %2195 = vst.msk [vmem:[#allocation3 + $0xa8] sm:$0xf] %vm1952, %v2111
        %2196 = vst.msk [vmem:[#allocation3 + $0xb4] sm:$0xf] %vm1952, %v2112
        %2197 = vst.msk [vmem:[#allocation3 + $0xc0] sm:$0xf] %vm1952, %v2113
        %2198 = vst.msk [vmem:[#allocation3 + $0xcc] sm:$0xf] %vm1952, %v2114
        %2199 = vst.msk [vmem:[#allocation3 + $0xd8] sm:$0xf] %vm1952, %v2115
        %2200 = vst.msk [vmem:[#allocation3 + $0xe4] sm:$0xf] %vm1952, %v2116
        %2201 = vst.msk [vmem:[#allocation3 + $0xf0] sm:$0xf] %vm1952, %v2117
        %2202 = vst.msk [vmem:[#allocation3 + $0xfc] sm:$0xf] %vm1952, %v2118
        %2203 = vst.msk [vmem:[#allocation3 + $0x108] sm:$0xf] %vm1952, %v2119
        %2204 = vst.msk [vmem:[#allocation3 + $0x114] sm:$0xf] %vm1952, %v2120
        %2205 = vst.msk [vmem:[#allocation3 + $0x120] sm:$0xf] %vm1952, %v2121
        %2206 = vst.msk [vmem:[#allocation3 + $0x12c] sm:$0xf] %vm1952, %v2122
        %2207 = vst.msk [vmem:[#allocation3 + $0x138] sm:$0xf] %vm1952, %v2123
        %2208 = vst.msk [vmem:[#allocation3 + $0x144] sm:$0xf] %vm1952, %v2124
        %2209 = vst.msk [vmem:[#allocation3 + $0x150] sm:$0xf] %vm1952, %v2125
        %2210 = vst.msk [vmem:[#allocation3 + $0x15c] sm:$0xf] %vm1952, %v2126
        %2211 = vst.msk [vmem:[#allocation3 + $0x168] sm:$0xf] %vm1952, %v2127
        %2212 = vst.msk [vmem:[#allocation3 + $0x174] sm:$0xf] %vm1952, %v2128
        %2213 = vst.msk [vmem:[#allocation3 + $0x180] sm:$0xf] %vm1952, %v2129
        %2214 = vst.msk [vmem:[#allocation3 + $0x18c] sm:$0xf] %vm1952, %v2130
        %2215 = vst.msk [vmem:[#allocation3 + $0x198] sm:$0xf] %vm1952, %v2131
        %2216 = vst.msk [vmem:[#allocation3 + $0x1a4] sm:$0xf] %vm1952, %v2132
        %2217 = vst.msk [vmem:[#allocation3 + $0x1b0] sm:$0xf] %vm1952, %v2133
        %2218 = vst.msk [vmem:[#allocation3 + $0x1bc] sm:$0xf] %vm1952, %v2134
        %2219 = vst.msk [vmem:[#allocation3 + $0x1c8] sm:$0xf] %vm1952, %v2135
        %2220 = vst.msk [vmem:[#allocation3 + $0x1d4] sm:$0xf] %vm1952, %v2136
        %2221 = vst.msk [vmem:[#allocation3 + $0x1e0] sm:$0xf] %vm1952, %v2137
        %2222 = vst.msk [vmem:[#allocation3 + $0x1ec] sm:$0xf] %vm1952, %v2138
        %2223 = vst.msk [vmem:[#allocation3 + $0x1f8] sm:$0xf] %vm1952, %v2139
        %2224 = vst.msk [vmem:[#allocation3 + $0x204] sm:$0xf] %vm1952, %v2140
        %2225 = vst.msk [vmem:[#allocation3 + $0x210] sm:$0xf] %vm1952, %v2141
        %2226 = vst.msk [vmem:[#allocation3 + $0x21c] sm:$0xf] %vm1952, %v2142
        %2227 = vst.msk [vmem:[#allocation3 + $0x228] sm:$0xf] %vm1952, %v2143
        %2228 = vst.msk [vmem:[#allocation3 + $0x234] sm:$0xf] %vm1952, %v2144
        %2229 = vst.msk [vmem:[#allocation3 + $0x240] sm:$0xf] %vm1952, %v2145
        %2230 = vst.msk [vmem:[#allocation3 + $0x24c] sm:$0xf] %vm1952, %v2146
        %2231 = vst.msk [vmem:[#allocation3 + $0x258] sm:$0xf] %vm1952, %v2147
        %2232 = vst.msk [vmem:[#allocation3 + $0x264] sm:$0xf] %vm1952, %v2148
        %2233 = vst.msk [vmem:[#allocation3 + $0x270] sm:$0xf] %vm1952, %v2149
        %2234 = vst.msk [vmem:[#allocation3 + $0x27c] sm:$0xf] %vm1952, %v2150
        %2235 = vst.msk [vmem:[#allocation3 + $0x288] sm:$0xf] %vm1952, %v2151
        %2236 = vst.msk [vmem:[#allocation3 + $0x294] sm:$0xf] %vm1952, %v2152
        %2237 = vst.msk [vmem:[#allocation3 + $0x2a0] sm:$0xf] %vm1952, %v2153
        %2238 = vst.msk [vmem:[#allocation3 + $0x2ac] sm:$0xf] %vm1952, %v2154
        %2239 = vst.msk [vmem:[#allocation3 + $0x2b8] sm:$0xf] %vm1952, %v2155
        %2240 = vst.msk [vmem:[#allocation3 + $0x2c4] sm:$0xf] %vm1952, %v2156
        %2241 = vst.msk [vmem:[#allocation3 + $0x2d0] sm:$0xf] %vm1952, %v2157
        %2242 = vst.msk [vmem:[#allocation3 + $0x2dc] sm:$0xf] %vm1952, %v2158
        %2243 = vst.msk [vmem:[#allocation3 + $0x2e8] sm:$0xf] %vm1952, %v2159
        %2244 = vst.msk [vmem:[#allocation3 + $0x2f4] sm:$0xf] %vm1952, %v2160
        %2245 = vst.msk [vmem:[#allocation3 + $0x300] sm:$0xf] %vm1952, %v2161
        %2246 = vst.msk [vmem:[#allocation3 + $0x30c] sm:$0xf] %vm1952, %v2162
        %2247 = vst.msk [vmem:[#allocation3 + $0x318] sm:$0xf] %vm1952, %v2163
        %2248 = vst.msk [vmem:[#allocation3 + $0x324] sm:$0xf] %vm1952, %v2164
        %2249 = vst.msk [vmem:[#allocation3 + $0x330] sm:$0xf] %vm1952, %v2165
        %2250 = vst.msk [vmem:[#allocation3 + $0x33c] sm:$0xf] %vm1952, %v2166
        %2251 = vst.msk [vmem:[#allocation3 + $0x348] sm:$0xf] %vm1952, %v2167
        %2252 = vst.msk [vmem:[#allocation3 + $0x354] sm:$0xf] %vm1952, %v2168
        %2253 = vst.msk [vmem:[#allocation3 + $0x360] sm:$0xf] %vm1952, %v2169
        %2254 = vst.msk [vmem:[#allocation3 + $0x36c] sm:$0xf] %vm1952, %v2170
        %2255 = vst.msk [vmem:[#allocation3 + $0x378] sm:$0xf] %vm1952, %v2171
        %2256 = vst.msk [vmem:[#allocation3 + $0x384] sm:$0xf] %vm1952, %v2172
        %2257 = vst.msk [vmem:[#allocation3 + $0x390] sm:$0xf] %vm1952, %v2173
        %2258 = vst.msk [vmem:[#allocation3 + $0x39c] sm:$0xf] %vm1952, %v2174
        %2259 = vst.msk [vmem:[#allocation3 + $0x3a8] sm:$0xf] %vm1952, %v2175
        %2260 = vst.msk [vmem:[#allocation3 + $0x3b4] sm:$0xf] %vm1952, %v2176
        %2261 = vst.msk [vmem:[#allocation3 + $0x3c0] sm:$0xf] %vm1952, %v2177
        %2262 = vst.msk [vmem:[#allocation3 + $0x3cc] sm:$0xf] %vm1952, %v2178
        %2263 = vst.msk [vmem:[#allocation3 + $0x3d8] sm:$0xf] %vm1952, %v2179
        %2264 = vst.msk [vmem:[#allocation3 + $0x3e4] sm:$0xf] %vm1952, %v2180
        %s2265 = scalar_lea.vmem [#allocation2], 8
        %v2266 = vld [vmem:[%s2265] sm:$0xf]
        %v2267 = vld [vmem:[%s2265 + $0x4] sm:$0xf]
        %v2268 = vld [vmem:[%s2265 + $0x8] sm:$0xf]
        %v2269 = vld [vmem:[%s2265 + $0xc] sm:$0xf]
        %v2270 = vld [vmem:[%s2265 + $0x10] sm:$0xf]
        %v2271 = vld [vmem:[%s2265 + $0x14] sm:$0xf]
        %v2272 = vld [vmem:[%s2265 + $0x18] sm:$0xf]
        %v2273 = vld [vmem:[%s2265 + $0x1c] sm:$0xf]
        %v2274 = vld [vmem:[%s2265 + $0x20] sm:$0xf]
        %v2275 = vld [vmem:[%s2265 + $0x24] sm:$0xf]
        %v2276 = vld [vmem:[%s2265 + $0x28] sm:$0xf]
        %v2277 = vld [vmem:[%s2265 + $0x2c] sm:$0xf]
        %v2278 = vld [vmem:[%s2265 + $0x30] sm:$0xf]
        %v2279 = vld [vmem:[%s2265 + $0x34] sm:$0xf]
        %v2280 = vld [vmem:[%s2265 + $0x48] sm:$0xf]
        %v2281 = vld [vmem:[%s2265 + $0x4c] sm:$0xf]
        %v2282 = vld [vmem:[%s2265 + $0x50] sm:$0xf]
        %v2283 = vld [vmem:[%s2265 + $0x54] sm:$0xf]
        %v2284 = vld [vmem:[%s2265 + $0x58] sm:$0xf]
        %v2285 = vld [vmem:[%s2265 + $0x5c] sm:$0xf]
        %v2286 = vld [vmem:[%s2265 + $0x60] sm:$0xf]
        %v2287 = vld [vmem:[%s2265 + $0x64] sm:$0xf]
        %v2288 = vld [vmem:[%s2265 + $0x68] sm:$0xf]
        %v2289 = vld [vmem:[%s2265 + $0x6c] sm:$0xf]
        %v2290 = vld [vmem:[%s2265 + $0x70] sm:$0xf]
        %v2291 = vld [vmem:[%s2265 + $0x74] sm:$0xf]
        %v2292 = vld [vmem:[%s2265 + $0x78] sm:$0xf]
        %v2293 = vld [vmem:[%s2265 + $0x7c] sm:$0xf]
        %v2294 = vld [vmem:[%s2265 + $0x90] sm:$0xf]
        %v2295 = vld [vmem:[%s2265 + $0x94] sm:$0xf]
        %v2296 = vld [vmem:[%s2265 + $0x98] sm:$0xf]
        %v2297 = vld [vmem:[%s2265 + $0x9c] sm:$0xf]
        %v2298 = vld [vmem:[%s2265 + $0xa0] sm:$0xf]
        %v2299 = vld [vmem:[%s2265 + $0xa4] sm:$0xf]
        %v2300 = vld [vmem:[%s2265 + $0xa8] sm:$0xf]
        %v2301 = vld [vmem:[%s2265 + $0xac] sm:$0xf]
        %v2302 = vld [vmem:[%s2265 + $0xb0] sm:$0xf]
        %v2303 = vld [vmem:[%s2265 + $0xb4] sm:$0xf]
        %v2304 = vld [vmem:[%s2265 + $0xb8] sm:$0xf]
        %v2305 = vld [vmem:[%s2265 + $0xbc] sm:$0xf]
        %v2306 = vld [vmem:[%s2265 + $0xc0] sm:$0xf]
        %v2307 = vld [vmem:[%s2265 + $0xc4] sm:$0xf]
        %v2308 = vld [vmem:[%s2265 + $0xd8] sm:$0xf]
        %v2309 = vld [vmem:[%s2265 + $0xdc] sm:$0xf]
        %v2310 = vld [vmem:[%s2265 + $0xe0] sm:$0xf]
        %v2311 = vld [vmem:[%s2265 + $0xe4] sm:$0xf]
        %v2312 = vld [vmem:[%s2265 + $0xe8] sm:$0xf]
        %v2313 = vld [vmem:[%s2265 + $0xec] sm:$0xf]
        %v2314 = vld [vmem:[%s2265 + $0xf0] sm:$0xf]
        %v2315 = vld [vmem:[%s2265 + $0xf4] sm:$0xf]
        %v2316 = vld [vmem:[%s2265 + $0xf8] sm:$0xf]
        %v2317 = vld [vmem:[%s2265 + $0xfc] sm:$0xf]
        %v2318 = vld [vmem:[%s2265 + $0x100] sm:$0xf]
        %v2319 = vld [vmem:[%s2265 + $0x104] sm:$0xf]
        %v2320 = vld [vmem:[%s2265 + $0x108] sm:$0xf]
        %v2321 = vld [vmem:[%s2265 + $0x10c] sm:$0xf]
        %v2322 = vld [vmem:[%s2265 + $0x120] sm:$0xf]
        %v2323 = vld [vmem:[%s2265 + $0x124] sm:$0xf]
        %v2324 = vld [vmem:[%s2265 + $0x128] sm:$0xf]
        %v2325 = vld [vmem:[%s2265 + $0x12c] sm:$0xf]
        %v2326 = vld [vmem:[%s2265 + $0x130] sm:$0xf]
        %v2327 = vld [vmem:[%s2265 + $0x134] sm:$0xf]
        %v2328 = vld [vmem:[%s2265 + $0x138] sm:$0xf]
        %v2329 = vld [vmem:[%s2265 + $0x13c] sm:$0xf]
        %v2330 = vld [vmem:[%s2265 + $0x140] sm:$0xf]
        %v2331 = vld [vmem:[%s2265 + $0x144] sm:$0xf]
        %v2332 = vld [vmem:[%s2265 + $0x148] sm:$0xf]
        %v2333 = vld [vmem:[%s2265 + $0x14c] sm:$0xf]
        %v2334 = vld [vmem:[%s2265 + $0x150] sm:$0xf]
        %v2335 = vld [vmem:[%s2265 + $0x154] sm:$0xf]
        %v2336 = vld [vmem:[%s2265 + $0x168] sm:$0xf]
        %v2337 = vld [vmem:[%s2265 + $0x16c] sm:$0xf]
        %v2338 = vld [vmem:[%s2265 + $0x170] sm:$0xf]
        %v2339 = vld [vmem:[%s2265 + $0x174] sm:$0xf]
        %v2340 = vld [vmem:[%s2265 + $0x178] sm:$0xf]
        %v2341 = vld [vmem:[%s2265 + $0x17c] sm:$0xf]
        %v2342 = vld [vmem:[%s2265 + $0x180] sm:$0xf]
        %v2343 = vld [vmem:[%s2265 + $0x184] sm:$0xf]
        %v2344 = vld [vmem:[%s2265 + $0x188] sm:$0xf]
        %v2345 = vld [vmem:[%s2265 + $0x18c] sm:$0xf]
        %v2346 = vld [vmem:[%s2265 + $0x190] sm:$0xf]
        %v2347 = vld [vmem:[%s2265 + $0x194] sm:$0xf]
        %v2348 = vld [vmem:[%s2265 + $0x198] sm:$0xf]
        %v2349 = vld [vmem:[%s2265 + $0x19c] sm:$0xf]
        %2434 = vrot.lane.b32.xlu0 %v2266, 32
        %v2435 = vpop.permute.xlu0 %2434
        %2436 = vrot.lane.b32.xlu0 %v2267, 32
        %v2437 = vpop.permute.xlu0 %2436
        %2438 = vrot.lane.b32.xlu0 %v2268, 32
        %v2439 = vpop.permute.xlu0 %2438
        %2440 = vrot.lane.b32.xlu0 %v2269, 32
        %v2441 = vpop.permute.xlu0 %2440
        %2442 = vrot.lane.b32.xlu0 %v2270, 32
        %v2443 = vpop.permute.xlu0 %2442
        %2444 = vrot.lane.b32.xlu0 %v2271, 32
        %v2445 = vpop.permute.xlu0 %2444
        %2446 = vrot.lane.b32.xlu0 %v2272, 32
        %v2447 = vpop.permute.xlu0 %2446
        %2448 = vrot.lane.b32.xlu0 %v2273, 32
        %v2449 = vpop.permute.xlu0 %2448
        %2450 = vrot.lane.b32.xlu0 %v2274, 32
        %v2451 = vpop.permute.xlu0 %2450
        %2452 = vrot.lane.b32.xlu0 %v2275, 32
        %v2453 = vpop.permute.xlu0 %2452
        %2454 = vrot.lane.b32.xlu0 %v2276, 32
        %v2455 = vpop.permute.xlu0 %2454
        %2456 = vrot.lane.b32.xlu0 %v2277, 32
        %v2457 = vpop.permute.xlu0 %2456
        %2458 = vrot.lane.b32.xlu0 %v2278, 32
        %v2459 = vpop.permute.xlu0 %2458
        %2460 = vrot.lane.b32.xlu0 %v2279, 32
        %v2461 = vpop.permute.xlu0 %2460
        %2462 = vrot.lane.b32.xlu0 %v2280, 32
        %v2463 = vpop.permute.xlu0 %2462
        %2464 = vrot.lane.b32.xlu0 %v2281, 32
        %v2465 = vpop.permute.xlu0 %2464
        %2466 = vrot.lane.b32.xlu0 %v2282, 32
        %v2467 = vpop.permute.xlu0 %2466
        %2468 = vrot.lane.b32.xlu0 %v2283, 32
        %v2469 = vpop.permute.xlu0 %2468
        %2470 = vrot.lane.b32.xlu0 %v2284, 32
        %v2471 = vpop.permute.xlu0 %2470
        %2472 = vrot.lane.b32.xlu0 %v2285, 32
        %v2473 = vpop.permute.xlu0 %2472
        %2474 = vrot.lane.b32.xlu0 %v2286, 32
        %v2475 = vpop.permute.xlu0 %2474
        %2476 = vrot.lane.b32.xlu0 %v2287, 32
        %v2477 = vpop.permute.xlu0 %2476
        %2478 = vrot.lane.b32.xlu0 %v2288, 32
        %v2479 = vpop.permute.xlu0 %2478
        %2480 = vrot.lane.b32.xlu0 %v2289, 32
        %v2481 = vpop.permute.xlu0 %2480
        %2482 = vrot.lane.b32.xlu0 %v2290, 32
        %v2483 = vpop.permute.xlu0 %2482
        %2484 = vrot.lane.b32.xlu0 %v2291, 32
        %v2485 = vpop.permute.xlu0 %2484
        %2486 = vrot.lane.b32.xlu0 %v2292, 32
        %v2487 = vpop.permute.xlu0 %2486
        %2488 = vrot.lane.b32.xlu0 %v2293, 32
        %v2489 = vpop.permute.xlu0 %2488
        %2490 = vrot.lane.b32.xlu0 %v2294, 32
        %v2491 = vpop.permute.xlu0 %2490
        %2492 = vrot.lane.b32.xlu0 %v2295, 32
        %v2493 = vpop.permute.xlu0 %2492
        %2494 = vrot.lane.b32.xlu0 %v2296, 32
        %v2495 = vpop.permute.xlu0 %2494
        %2496 = vrot.lane.b32.xlu0 %v2297, 32
        %v2497 = vpop.permute.xlu0 %2496
        %2498 = vrot.lane.b32.xlu0 %v2298, 32
        %v2499 = vpop.permute.xlu0 %2498
        %2500 = vrot.lane.b32.xlu0 %v2299, 32
        %v2501 = vpop.permute.xlu0 %2500
        %2502 = vrot.lane.b32.xlu0 %v2300, 32
        %v2503 = vpop.permute.xlu0 %2502
        %2504 = vrot.lane.b32.xlu0 %v2301, 32
        %v2505 = vpop.permute.xlu0 %2504
        %2506 = vrot.lane.b32.xlu0 %v2302, 32
        %v2507 = vpop.permute.xlu0 %2506
        %2508 = vrot.lane.b32.xlu0 %v2303, 32
        %v2509 = vpop.permute.xlu0 %2508
        %2510 = vrot.lane.b32.xlu0 %v2304, 32
        %v2511 = vpop.permute.xlu0 %2510
        %2512 = vrot.lane.b32.xlu0 %v2305, 32
        %v2513 = vpop.permute.xlu0 %2512
        %2514 = vrot.lane.b32.xlu0 %v2306, 32
        %v2515 = vpop.permute.xlu0 %2514
        %2516 = vrot.lane.b32.xlu0 %v2307, 32
        %v2517 = vpop.permute.xlu0 %2516
        %2518 = vrot.lane.b32.xlu0 %v2308, 32
        %v2519 = vpop.permute.xlu0 %2518
        %2520 = vrot.lane.b32.xlu0 %v2309, 32
        %v2521 = vpop.permute.xlu0 %2520
        %2522 = vrot.lane.b32.xlu0 %v2310, 32
        %v2523 = vpop.permute.xlu0 %2522
        %2524 = vrot.lane.b32.xlu0 %v2311, 32
        %v2525 = vpop.permute.xlu0 %2524
        %2526 = vrot.lane.b32.xlu0 %v2312, 32
        %v2527 = vpop.permute.xlu0 %2526
        %2528 = vrot.lane.b32.xlu0 %v2313, 32
        %v2529 = vpop.permute.xlu0 %2528
        %2530 = vrot.lane.b32.xlu0 %v2314, 32
        %v2531 = vpop.permute.xlu0 %2530
        %2532 = vrot.lane.b32.xlu0 %v2315, 32
        %v2533 = vpop.permute.xlu0 %2532
        %2534 = vrot.lane.b32.xlu0 %v2316, 32
        %v2535 = vpop.permute.xlu0 %2534
        %2536 = vrot.lane.b32.xlu0 %v2317, 32
        %v2537 = vpop.permute.xlu0 %2536
        %2538 = vrot.lane.b32.xlu0 %v2318, 32
        %v2539 = vpop.permute.xlu0 %2538
        %2540 = vrot.lane.b32.xlu0 %v2319, 32
        %v2541 = vpop.permute.xlu0 %2540
        %2542 = vrot.lane.b32.xlu0 %v2320, 32
        %v2543 = vpop.permute.xlu0 %2542
        %2544 = vrot.lane.b32.xlu0 %v2321, 32
        %v2545 = vpop.permute.xlu0 %2544
        %2546 = vrot.lane.b32.xlu0 %v2322, 32
        %v2547 = vpop.permute.xlu0 %2546
        %2548 = vrot.lane.b32.xlu0 %v2323, 32
        %v2549 = vpop.permute.xlu0 %2548
        %2550 = vrot.lane.b32.xlu0 %v2324, 32
        %v2551 = vpop.permute.xlu0 %2550
        %2552 = vrot.lane.b32.xlu0 %v2325, 32
        %v2553 = vpop.permute.xlu0 %2552
        %2554 = vrot.lane.b32.xlu0 %v2326, 32
        %v2555 = vpop.permute.xlu0 %2554
        %2556 = vrot.lane.b32.xlu0 %v2327, 32
        %v2557 = vpop.permute.xlu0 %2556
        %2558 = vrot.lane.b32.xlu0 %v2328, 32
        %v2559 = vpop.permute.xlu0 %2558
        %2560 = vrot.lane.b32.xlu0 %v2329, 32
        %v2561 = vpop.permute.xlu0 %2560
        %2562 = vrot.lane.b32.xlu0 %v2330, 32
        %v2563 = vpop.permute.xlu0 %2562
        %2564 = vrot.lane.b32.xlu0 %v2331, 32
        %v2565 = vpop.permute.xlu0 %2564
        %2566 = vrot.lane.b32.xlu0 %v2332, 32
        %v2567 = vpop.permute.xlu0 %2566
        %2568 = vrot.lane.b32.xlu0 %v2333, 32
        %v2569 = vpop.permute.xlu0 %2568
        %2570 = vrot.lane.b32.xlu0 %v2334, 32
        %v2571 = vpop.permute.xlu0 %2570
        %2572 = vrot.lane.b32.xlu0 %v2335, 32
        %v2573 = vpop.permute.xlu0 %2572
        %2574 = vrot.lane.b32.xlu0 %v2336, 32
        %v2575 = vpop.permute.xlu0 %2574
        %2576 = vrot.lane.b32.xlu0 %v2337, 32
        %v2577 = vpop.permute.xlu0 %2576
        %2578 = vrot.lane.b32.xlu0 %v2338, 32
        %v2579 = vpop.permute.xlu0 %2578
        %2580 = vrot.lane.b32.xlu0 %v2339, 32
        %v2581 = vpop.permute.xlu0 %2580
        %2582 = vrot.lane.b32.xlu0 %v2340, 32
        %v2583 = vpop.permute.xlu0 %2582
        %2584 = vrot.lane.b32.xlu0 %v2341, 32
        %v2585 = vpop.permute.xlu0 %2584
        %2586 = vrot.lane.b32.xlu0 %v2342, 32
        %v2587 = vpop.permute.xlu0 %2586
        %2588 = vrot.lane.b32.xlu0 %v2343, 32
        %v2589 = vpop.permute.xlu0 %2588
        %2590 = vrot.lane.b32.xlu0 %v2344, 32
        %v2591 = vpop.permute.xlu0 %2590
        %2592 = vrot.lane.b32.xlu0 %v2345, 32
        %v2593 = vpop.permute.xlu0 %2592
        %2594 = vrot.lane.b32.xlu0 %v2346, 32
        %v2595 = vpop.permute.xlu0 %2594
        %2596 = vrot.lane.b32.xlu0 %v2347, 32
        %v2597 = vpop.permute.xlu0 %2596
        %2598 = vrot.lane.b32.xlu0 %v2348, 32
        %v2599 = vpop.permute.xlu0 %2598
        %2600 = vrot.lane.b32.xlu0 %v2349, 32
        %v2601 = vpop.permute.xlu0 %2600
        %vm2686 = vcmask 519424
        %2687 = vst.msk [vmem:[#allocation3] sm:$0xf] %vm2686, %v2435
        %2688 = vst.msk [vmem:[#allocation3 + $0xc] sm:$0xf] %vm2686, %v2437
        %2689 = vst.msk [vmem:[#allocation3 + $0x18] sm:$0xf] %vm2686, %v2439
        %2690 = vst.msk [vmem:[#allocation3 + $0x24] sm:$0xf] %vm2686, %v2441
        %2691 = vst.msk [vmem:[#allocation3 + $0x30] sm:$0xf] %vm2686, %v2443
        %2692 = vst.msk [vmem:[#allocation3 + $0x3c] sm:$0xf] %vm2686, %v2445
        %2693 = vst.msk [vmem:[#allocation3 + $0x48] sm:$0xf] %vm2686, %v2447
        %2694 = vst.msk [vmem:[#allocation3 + $0x54] sm:$0xf] %vm2686, %v2449
        %2695 = vst.msk [vmem:[#allocation3 + $0x60] sm:$0xf] %vm2686, %v2451
        %2696 = vst.msk [vmem:[#allocation3 + $0x6c] sm:$0xf] %vm2686, %v2453
        %2697 = vst.msk [vmem:[#allocation3 + $0x78] sm:$0xf] %vm2686, %v2455
        %2698 = vst.msk [vmem:[#allocation3 + $0x84] sm:$0xf] %vm2686, %v2457
        %2699 = vst.msk [vmem:[#allocation3 + $0x90] sm:$0xf] %vm2686, %v2459
        %2700 = vst.msk [vmem:[#allocation3 + $0x9c] sm:$0xf] %vm2686, %v2461
        %2701 = vst.msk [vmem:[#allocation3 + $0xa8] sm:$0xf] %vm2686, %v2463
        %2702 = vst.msk [vmem:[#allocation3 + $0xb4] sm:$0xf] %vm2686, %v2465
        %2703 = vst.msk [vmem:[#allocation3 + $0xc0] sm:$0xf] %vm2686, %v2467
        %2704 = vst.msk [vmem:[#allocation3 + $0xcc] sm:$0xf] %vm2686, %v2469
        %2705 = vst.msk [vmem:[#allocation3 + $0xd8] sm:$0xf] %vm2686, %v2471
        %2706 = vst.msk [vmem:[#allocation3 + $0xe4] sm:$0xf] %vm2686, %v2473
        %2707 = vst.msk [vmem:[#allocation3 + $0xf0] sm:$0xf] %vm2686, %v2475
        %2708 = vst.msk [vmem:[#allocation3 + $0xfc] sm:$0xf] %vm2686, %v2477
        %2709 = vst.msk [vmem:[#allocation3 + $0x108] sm:$0xf] %vm2686, %v2479
        %2710 = vst.msk [vmem:[#allocation3 + $0x114] sm:$0xf] %vm2686, %v2481
        %2711 = vst.msk [vmem:[#allocation3 + $0x120] sm:$0xf] %vm2686, %v2483
        %2712 = vst.msk [vmem:[#allocation3 + $0x12c] sm:$0xf] %vm2686, %v2485
        %2713 = vst.msk [vmem:[#allocation3 + $0x138] sm:$0xf] %vm2686, %v2487
        %2714 = vst.msk [vmem:[#allocation3 + $0x144] sm:$0xf] %vm2686, %v2489
        %2715 = vst.msk [vmem:[#allocation3 + $0x150] sm:$0xf] %vm2686, %v2491
        %2716 = vst.msk [vmem:[#allocation3 + $0x15c] sm:$0xf] %vm2686, %v2493
        %2717 = vst.msk [vmem:[#allocation3 + $0x168] sm:$0xf] %vm2686, %v2495
        %2718 = vst.msk [vmem:[#allocation3 + $0x174] sm:$0xf] %vm2686, %v2497
        %2719 = vst.msk [vmem:[#allocation3 + $0x180] sm:$0xf] %vm2686, %v2499
        %2720 = vst.msk [vmem:[#allocation3 + $0x18c] sm:$0xf] %vm2686, %v2501
        %2721 = vst.msk [vmem:[#allocation3 + $0x198] sm:$0xf] %vm2686, %v2503
        %2722 = vst.msk [vmem:[#allocation3 + $0x1a4] sm:$0xf] %vm2686, %v2505
        %2723 = vst.msk [vmem:[#allocation3 + $0x1b0] sm:$0xf] %vm2686, %v2507
        %2724 = vst.msk [vmem:[#allocation3 + $0x1bc] sm:$0xf] %vm2686, %v2509
        %2725 = vst.msk [vmem:[#allocation3 + $0x1c8] sm:$0xf] %vm2686, %v2511
        %2726 = vst.msk [vmem:[#allocation3 + $0x1d4] sm:$0xf] %vm2686, %v2513
        %2727 = vst.msk [vmem:[#allocation3 + $0x1e0] sm:$0xf] %vm2686, %v2515
        %2728 = vst.msk [vmem:[#allocation3 + $0x1ec] sm:$0xf] %vm2686, %v2517
        %2729 = vst.msk [vmem:[#allocation3 + $0x1f8] sm:$0xf] %vm2686, %v2519
        %2730 = vst.msk [vmem:[#allocation3 + $0x204] sm:$0xf] %vm2686, %v2521
        %2731 = vst.msk [vmem:[#allocation3 + $0x210] sm:$0xf] %vm2686, %v2523
        %2732 = vst.msk [vmem:[#allocation3 + $0x21c] sm:$0xf] %vm2686, %v2525
        %2733 = vst.msk [vmem:[#allocation3 + $0x228] sm:$0xf] %vm2686, %v2527
        %2734 = vst.msk [vmem:[#allocation3 + $0x234] sm:$0xf] %vm2686, %v2529
        %2735 = vst.msk [vmem:[#allocation3 + $0x240] sm:$0xf] %vm2686, %v2531
        %2736 = vst.msk [vmem:[#allocation3 + $0x24c] sm:$0xf] %vm2686, %v2533
        %2737 = vst.msk [vmem:[#allocation3 + $0x258] sm:$0xf] %vm2686, %v2535
        %2738 = vst.msk [vmem:[#allocation3 + $0x264] sm:$0xf] %vm2686, %v2537
        %2739 = vst.msk [vmem:[#allocation3 + $0x270] sm:$0xf] %vm2686, %v2539
        %2740 = vst.msk [vmem:[#allocation3 + $0x27c] sm:$0xf] %vm2686, %v2541
        %2741 = vst.msk [vmem:[#allocation3 + $0x288] sm:$0xf] %vm2686, %v2543
        %2742 = vst.msk [vmem:[#allocation3 + $0x294] sm:$0xf] %vm2686, %v2545
        %2743 = vst.msk [vmem:[#allocation3 + $0x2a0] sm:$0xf] %vm2686, %v2547
        %2744 = vst.msk [vmem:[#allocation3 + $0x2ac] sm:$0xf] %vm2686, %v2549
        %2745 = vst.msk [vmem:[#allocation3 + $0x2b8] sm:$0xf] %vm2686, %v2551
        %2746 = vst.msk [vmem:[#allocation3 + $0x2c4] sm:$0xf] %vm2686, %v2553
        %2747 = vst.msk [vmem:[#allocation3 + $0x2d0] sm:$0xf] %vm2686, %v2555
        %2748 = vst.msk [vmem:[#allocation3 + $0x2dc] sm:$0xf] %vm2686, %v2557
        %2749 = vst.msk [vmem:[#allocation3 + $0x2e8] sm:$0xf] %vm2686, %v2559
        %2750 = vst.msk [vmem:[#allocation3 + $0x2f4] sm:$0xf] %vm2686, %v2561
        %2751 = vst.msk [vmem:[#allocation3 + $0x300] sm:$0xf] %vm2686, %v2563
        %2752 = vst.msk [vmem:[#allocation3 + $0x30c] sm:$0xf] %vm2686, %v2565
        %2753 = vst.msk [vmem:[#allocation3 + $0x318] sm:$0xf] %vm2686, %v2567
        %2754 = vst.msk [vmem:[#allocation3 + $0x324] sm:$0xf] %vm2686, %v2569
        %2755 = vst.msk [vmem:[#allocation3 + $0x330] sm:$0xf] %vm2686, %v2571
        %2756 = vst.msk [vmem:[#allocation3 + $0x33c] sm:$0xf] %vm2686, %v2573
        %2757 = vst.msk [vmem:[#allocation3 + $0x348] sm:$0xf] %vm2686, %v2575
        %2758 = vst.msk [vmem:[#allocation3 + $0x354] sm:$0xf] %vm2686, %v2577
        %2759 = vst.msk [vmem:[#allocation3 + $0x360] sm:$0xf] %vm2686, %v2579
        %2760 = vst.msk [vmem:[#allocation3 + $0x36c] sm:$0xf] %vm2686, %v2581
        %2761 = vst.msk [vmem:[#allocation3 + $0x378] sm:$0xf] %vm2686, %v2583
        %2762 = vst.msk [vmem:[#allocation3 + $0x384] sm:$0xf] %vm2686, %v2585
        %2763 = vst.msk [vmem:[#allocation3 + $0x390] sm:$0xf] %vm2686, %v2587
        %2764 = vst.msk [vmem:[#allocation3 + $0x39c] sm:$0xf] %vm2686, %v2589
        %2765 = vst.msk [vmem:[#allocation3 + $0x3a8] sm:$0xf] %vm2686, %v2591
        %2766 = vst.msk [vmem:[#allocation3 + $0x3b4] sm:$0xf] %vm2686, %v2593
        %2767 = vst.msk [vmem:[#allocation3 + $0x3c0] sm:$0xf] %vm2686, %v2595
        %2768 = vst.msk [vmem:[#allocation3 + $0x3cc] sm:$0xf] %vm2686, %v2597
        %2769 = vst.msk [vmem:[#allocation3 + $0x3d8] sm:$0xf] %vm2686, %v2599
        %2770 = vst.msk [vmem:[#allocation3 + $0x3e4] sm:$0xf] %vm2686, %v2601
        %s2771 = scalar_lea.vmem [#allocation2], 16
        %v2772 = vld [vmem:[%s2771] sm:$0xf]
        %v2773 = vld [vmem:[%s2771 + $0x4] sm:$0xf]
        %v2774 = vld [vmem:[%s2771 + $0x8] sm:$0xf]
        %v2775 = vld [vmem:[%s2771 + $0xc] sm:$0xf]
        %v2776 = vld [vmem:[%s2771 + $0x10] sm:$0xf]
        %v2777 = vld [vmem:[%s2771 + $0x14] sm:$0xf]
        %v2778 = vld [vmem:[%s2771 + $0x18] sm:$0xf]
        %v2779 = vld [vmem:[%s2771 + $0x1c] sm:$0xf]
        %v2780 = vld [vmem:[%s2771 + $0x20] sm:$0xf]
        %v2781 = vld [vmem:[%s2771 + $0x24] sm:$0xf]
        %v2782 = vld [vmem:[%s2771 + $0x28] sm:$0xf]
        %v2783 = vld [vmem:[%s2771 + $0x2c] sm:$0xf]
        %v2784 = vld [vmem:[%s2771 + $0x30] sm:$0xf]
        %v2785 = vld [vmem:[%s2771 + $0x34] sm:$0xf]
        %v2786 = vld [vmem:[%s2771 + $0x48] sm:$0xf]
        %v2787 = vld [vmem:[%s2771 + $0x4c] sm:$0xf]
        %v2788 = vld [vmem:[%s2771 + $0x50] sm:$0xf]
        %v2789 = vld [vmem:[%s2771 + $0x54] sm:$0xf]
        %v2790 = vld [vmem:[%s2771 + $0x58] sm:$0xf]
        %v2791 = vld [vmem:[%s2771 + $0x5c] sm:$0xf]
        %v2792 = vld [vmem:[%s2771 + $0x60] sm:$0xf]
        %v2793 = vld [vmem:[%s2771 + $0x64] sm:$0xf]
        %v2794 = vld [vmem:[%s2771 + $0x68] sm:$0xf]
        %v2795 = vld [vmem:[%s2771 + $0x6c] sm:$0xf]
        %v2796 = vld [vmem:[%s2771 + $0x70] sm:$0xf]
        %v2797 = vld [vmem:[%s2771 + $0x74] sm:$0xf]
        %v2798 = vld [vmem:[%s2771 + $0x78] sm:$0xf]
        %v2799 = vld [vmem:[%s2771 + $0x7c] sm:$0xf]
        %v2800 = vld [vmem:[%s2771 + $0x90] sm:$0xf]
        %v2801 = vld [vmem:[%s2771 + $0x94] sm:$0xf]
        %v2802 = vld [vmem:[%s2771 + $0x98] sm:$0xf]
        %v2803 = vld [vmem:[%s2771 + $0x9c] sm:$0xf]
        %v2804 = vld [vmem:[%s2771 + $0xa0] sm:$0xf]
        %v2805 = vld [vmem:[%s2771 + $0xa4] sm:$0xf]
        %v2806 = vld [vmem:[%s2771 + $0xa8] sm:$0xf]
        %v2807 = vld [vmem:[%s2771 + $0xac] sm:$0xf]
        %v2808 = vld [vmem:[%s2771 + $0xb0] sm:$0xf]
        %v2809 = vld [vmem:[%s2771 + $0xb4] sm:$0xf]
        %v2810 = vld [vmem:[%s2771 + $0xb8] sm:$0xf]
        %v2811 = vld [vmem:[%s2771 + $0xbc] sm:$0xf]
        %v2812 = vld [vmem:[%s2771 + $0xc0] sm:$0xf]
        %v2813 = vld [vmem:[%s2771 + $0xc4] sm:$0xf]
        %v2814 = vld [vmem:[%s2771 + $0xd8] sm:$0xf]
        %v2815 = vld [vmem:[%s2771 + $0xdc] sm:$0xf]
        %v2816 = vld [vmem:[%s2771 + $0xe0] sm:$0xf]
        %v2817 = vld [vmem:[%s2771 + $0xe4] sm:$0xf]
        %v2818 = vld [vmem:[%s2771 + $0xe8] sm:$0xf]
        %v2819 = vld [vmem:[%s2771 + $0xec] sm:$0xf]
        %v2820 = vld [vmem:[%s2771 + $0xf0] sm:$0xf]
        %v2821 = vld [vmem:[%s2771 + $0xf4] sm:$0xf]
        %v2822 = vld [vmem:[%s2771 + $0xf8] sm:$0xf]
        %v2823 = vld [vmem:[%s2771 + $0xfc] sm:$0xf]
        %v2824 = vld [vmem:[%s2771 + $0x100] sm:$0xf]
        %v2825 = vld [vmem:[%s2771 + $0x104] sm:$0xf]
        %v2826 = vld [vmem:[%s2771 + $0x108] sm:$0xf]
        %v2827 = vld [vmem:[%s2771 + $0x10c] sm:$0xf]
        %v2828 = vld [vmem:[%s2771 + $0x120] sm:$0xf]
        %v2829 = vld [vmem:[%s2771 + $0x124] sm:$0xf]
        %v2830 = vld [vmem:[%s2771 + $0x128] sm:$0xf]
        %v2831 = vld [vmem:[%s2771 + $0x12c] sm:$0xf]
        %v2832 = vld [vmem:[%s2771 + $0x130] sm:$0xf]
        %v2833 = vld [vmem:[%s2771 + $0x134] sm:$0xf]
        %v2834 = vld [vmem:[%s2771 + $0x138] sm:$0xf]
        %v2835 = vld [vmem:[%s2771 + $0x13c] sm:$0xf]
        %v2836 = vld [vmem:[%s2771 + $0x140] sm:$0xf]
        %v2837 = vld [vmem:[%s2771 + $0x144] sm:$0xf]
        %v2838 = vld [vmem:[%s2771 + $0x148] sm:$0xf]
        %v2839 = vld [vmem:[%s2771 + $0x14c] sm:$0xf]
        %v2840 = vld [vmem:[%s2771 + $0x150] sm:$0xf]
        %v2841 = vld [vmem:[%s2771 + $0x154] sm:$0xf]
        %v2842 = vld [vmem:[%s2771 + $0x168] sm:$0xf]
        %v2843 = vld [vmem:[%s2771 + $0x16c] sm:$0xf]
        %v2844 = vld [vmem:[%s2771 + $0x170] sm:$0xf]
        %v2845 = vld [vmem:[%s2771 + $0x174] sm:$0xf]
        %v2846 = vld [vmem:[%s2771 + $0x178] sm:$0xf]
        %v2847 = vld [vmem:[%s2771 + $0x17c] sm:$0xf]
        %v2848 = vld [vmem:[%s2771 + $0x180] sm:$0xf]
        %v2849 = vld [vmem:[%s2771 + $0x184] sm:$0xf]
        %v2850 = vld [vmem:[%s2771 + $0x188] sm:$0xf]
        %v2851 = vld [vmem:[%s2771 + $0x18c] sm:$0xf]
        %v2852 = vld [vmem:[%s2771 + $0x190] sm:$0xf]
        %v2853 = vld [vmem:[%s2771 + $0x194] sm:$0xf]
        %v2854 = vld [vmem:[%s2771 + $0x198] sm:$0xf]
        %v2855 = vld [vmem:[%s2771 + $0x19c] sm:$0xf]
        %2940 = vrot.lane.b32.xlu0 %v2772, 64
        %v2941 = vpop.permute.xlu0 %2940
        %2942 = vrot.lane.b32.xlu0 %v2773, 64
        %v2943 = vpop.permute.xlu0 %2942
        %2944 = vrot.lane.b32.xlu0 %v2774, 64
        %v2945 = vpop.permute.xlu0 %2944
        %2946 = vrot.lane.b32.xlu0 %v2775, 64
        %v2947 = vpop.permute.xlu0 %2946
        %2948 = vrot.lane.b32.xlu0 %v2776, 64
        %v2949 = vpop.permute.xlu0 %2948
        %2950 = vrot.lane.b32.xlu0 %v2777, 64
        %v2951 = vpop.permute.xlu0 %2950
        %2952 = vrot.lane.b32.xlu0 %v2778, 64
        %v2953 = vpop.permute.xlu0 %2952
        %2954 = vrot.lane.b32.xlu0 %v2779, 64
        %v2955 = vpop.permute.xlu0 %2954
        %2956 = vrot.lane.b32.xlu0 %v2780, 64
        %v2957 = vpop.permute.xlu0 %2956
        %2958 = vrot.lane.b32.xlu0 %v2781, 64
        %v2959 = vpop.permute.xlu0 %2958
        %2960 = vrot.lane.b32.xlu0 %v2782, 64
        %v2961 = vpop.permute.xlu0 %2960
        %2962 = vrot.lane.b32.xlu0 %v2783, 64
        %v2963 = vpop.permute.xlu0 %2962
        %2964 = vrot.lane.b32.xlu0 %v2784, 64
        %v2965 = vpop.permute.xlu0 %2964
        %2966 = vrot.lane.b32.xlu0 %v2785, 64
        %v2967 = vpop.permute.xlu0 %2966
        %2968 = vrot.lane.b32.xlu0 %v2786, 64
        %v2969 = vpop.permute.xlu0 %2968
        %2970 = vrot.lane.b32.xlu0 %v2787, 64
        %v2971 = vpop.permute.xlu0 %2970
        %2972 = vrot.lane.b32.xlu0 %v2788, 64
        %v2973 = vpop.permute.xlu0 %2972
        %2974 = vrot.lane.b32.xlu0 %v2789, 64
        %v2975 = vpop.permute.xlu0 %2974
        %2976 = vrot.lane.b32.xlu0 %v2790, 64
        %v2977 = vpop.permute.xlu0 %2976
        %2978 = vrot.lane.b32.xlu0 %v2791, 64
        %v2979 = vpop.permute.xlu0 %2978
        %2980 = vrot.lane.b32.xlu0 %v2792, 64
        %v2981 = vpop.permute.xlu0 %2980
        %2982 = vrot.lane.b32.xlu0 %v2793, 64
        %v2983 = vpop.permute.xlu0 %2982
        %2984 = vrot.lane.b32.xlu0 %v2794, 64
        %v2985 = vpop.permute.xlu0 %2984
        %2986 = vrot.lane.b32.xlu0 %v2795, 64
        %v2987 = vpop.permute.xlu0 %2986
        %2988 = vrot.lane.b32.xlu0 %v2796, 64
        %v2989 = vpop.permute.xlu0 %2988
        %2990 = vrot.lane.b32.xlu0 %v2797, 64
        %v2991 = vpop.permute.xlu0 %2990
        %2992 = vrot.lane.b32.xlu0 %v2798, 64
        %v2993 = vpop.permute.xlu0 %2992
        %2994 = vrot.lane.b32.xlu0 %v2799, 64
        %v2995 = vpop.permute.xlu0 %2994
        %2996 = vrot.lane.b32.xlu0 %v2800, 64
        %v2997 = vpop.permute.xlu0 %2996
        %2998 = vrot.lane.b32.xlu0 %v2801, 64
        %v2999 = vpop.permute.xlu0 %2998
        %3000 = vrot.lane.b32.xlu0 %v2802, 64
        %v3001 = vpop.permute.xlu0 %3000
        %3002 = vrot.lane.b32.xlu0 %v2803, 64
        %v3003 = vpop.permute.xlu0 %3002
        %3004 = vrot.lane.b32.xlu0 %v2804, 64
        %v3005 = vpop.permute.xlu0 %3004
        %3006 = vrot.lane.b32.xlu0 %v2805, 64
        %v3007 = vpop.permute.xlu0 %3006
        %3008 = vrot.lane.b32.xlu0 %v2806, 64
        %v3009 = vpop.permute.xlu0 %3008
        %3010 = vrot.lane.b32.xlu0 %v2807, 64
        %v3011 = vpop.permute.xlu0 %3010
        %3012 = vrot.lane.b32.xlu0 %v2808, 64
        %v3013 = vpop.permute.xlu0 %3012
        %3014 = vrot.lane.b32.xlu0 %v2809, 64
        %v3015 = vpop.permute.xlu0 %3014
        %3016 = vrot.lane.b32.xlu0 %v2810, 64
        %v3017 = vpop.permute.xlu0 %3016
        %3018 = vrot.lane.b32.xlu0 %v2811, 64
        %v3019 = vpop.permute.xlu0 %3018
        %3020 = vrot.lane.b32.xlu0 %v2812, 64
        %v3021 = vpop.permute.xlu0 %3020
        %3022 = vrot.lane.b32.xlu0 %v2813, 64
        %v3023 = vpop.permute.xlu0 %3022
        %3024 = vrot.lane.b32.xlu0 %v2814, 64
        %v3025 = vpop.permute.xlu0 %3024
        %3026 = vrot.lane.b32.xlu0 %v2815, 64
        %v3027 = vpop.permute.xlu0 %3026
        %3028 = vrot.lane.b32.xlu0 %v2816, 64
        %v3029 = vpop.permute.xlu0 %3028
        %3030 = vrot.lane.b32.xlu0 %v2817, 64
        %v3031 = vpop.permute.xlu0 %3030
        %3032 = vrot.lane.b32.xlu0 %v2818, 64
        %v3033 = vpop.permute.xlu0 %3032
        %3034 = vrot.lane.b32.xlu0 %v2819, 64
        %v3035 = vpop.permute.xlu0 %3034
        %3036 = vrot.lane.b32.xlu0 %v2820, 64
        %v3037 = vpop.permute.xlu0 %3036
        %3038 = vrot.lane.b32.xlu0 %v2821, 64
        %v3039 = vpop.permute.xlu0 %3038
        %3040 = vrot.lane.b32.xlu0 %v2822, 64
        %v3041 = vpop.permute.xlu0 %3040
        %3042 = vrot.lane.b32.xlu0 %v2823, 64
        %v3043 = vpop.permute.xlu0 %3042
        %3044 = vrot.lane.b32.xlu0 %v2824, 64
        %v3045 = vpop.permute.xlu0 %3044
        %3046 = vrot.lane.b32.xlu0 %v2825, 64
        %v3047 = vpop.permute.xlu0 %3046
        %3048 = vrot.lane.b32.xlu0 %v2826, 64
        %v3049 = vpop.permute.xlu0 %3048
        %3050 = vrot.lane.b32.xlu0 %v2827, 64
        %v3051 = vpop.permute.xlu0 %3050
        %3052 = vrot.lane.b32.xlu0 %v2828, 64
        %v3053 = vpop.permute.xlu0 %3052
        %3054 = vrot.lane.b32.xlu0 %v2829, 64
        %v3055 = vpop.permute.xlu0 %3054
        %3056 = vrot.lane.b32.xlu0 %v2830, 64
        %v3057 = vpop.permute.xlu0 %3056
        %3058 = vrot.lane.b32.xlu0 %v2831, 64
        %v3059 = vpop.permute.xlu0 %3058
        %3060 = vrot.lane.b32.xlu0 %v2832, 64
        %v3061 = vpop.permute.xlu0 %3060
        %3062 = vrot.lane.b32.xlu0 %v2833, 64
        %v3063 = vpop.permute.xlu0 %3062
        %3064 = vrot.lane.b32.xlu0 %v2834, 64
        %v3065 = vpop.permute.xlu0 %3064
        %3066 = vrot.lane.b32.xlu0 %v2835, 64
        %v3067 = vpop.permute.xlu0 %3066
        %3068 = vrot.lane.b32.xlu0 %v2836, 64
        %v3069 = vpop.permute.xlu0 %3068
        %3070 = vrot.lane.b32.xlu0 %v2837, 64
        %v3071 = vpop.permute.xlu0 %3070
        %3072 = vrot.lane.b32.xlu0 %v2838, 64
        %v3073 = vpop.permute.xlu0 %3072
        %3074 = vrot.lane.b32.xlu0 %v2839, 64
        %v3075 = vpop.permute.xlu0 %3074
        %3076 = vrot.lane.b32.xlu0 %v2840, 64
        %v3077 = vpop.permute.xlu0 %3076
        %3078 = vrot.lane.b32.xlu0 %v2841, 64
        %v3079 = vpop.permute.xlu0 %3078
        %3080 = vrot.lane.b32.xlu0 %v2842, 64
        %v3081 = vpop.permute.xlu0 %3080
        %3082 = vrot.lane.b32.xlu0 %v2843, 64
        %v3083 = vpop.permute.xlu0 %3082
        %3084 = vrot.lane.b32.xlu0 %v2844, 64
        %v3085 = vpop.permute.xlu0 %3084
        %3086 = vrot.lane.b32.xlu0 %v2845, 64
        %v3087 = vpop.permute.xlu0 %3086
        %3088 = vrot.lane.b32.xlu0 %v2846, 64
        %v3089 = vpop.permute.xlu0 %3088
        %3090 = vrot.lane.b32.xlu0 %v2847, 64
        %v3091 = vpop.permute.xlu0 %3090
        %3092 = vrot.lane.b32.xlu0 %v2848, 64
        %v3093 = vpop.permute.xlu0 %3092
        %3094 = vrot.lane.b32.xlu0 %v2849, 64
        %v3095 = vpop.permute.xlu0 %3094
        %3096 = vrot.lane.b32.xlu0 %v2850, 64
        %v3097 = vpop.permute.xlu0 %3096
        %3098 = vrot.lane.b32.xlu0 %v2851, 64
        %v3099 = vpop.permute.xlu0 %3098
        %3100 = vrot.lane.b32.xlu0 %v2852, 64
        %v3101 = vpop.permute.xlu0 %3100
        %3102 = vrot.lane.b32.xlu0 %v2853, 64
        %v3103 = vpop.permute.xlu0 %3102
        %3104 = vrot.lane.b32.xlu0 %v2854, 64
        %v3105 = vpop.permute.xlu0 %3104
        %3106 = vrot.lane.b32.xlu0 %v2855, 64
        %v3107 = vpop.permute.xlu0 %3106
        %vm3192 = vcmask 781824
        %3193 = vst.msk [vmem:[#allocation3] sm:$0xf] %vm3192, %v2941
        %3194 = vst.msk [vmem:[#allocation3 + $0xc] sm:$0xf] %vm3192, %v2943
        %3195 = vst.msk [vmem:[#allocation3 + $0x18] sm:$0xf] %vm3192, %v2945
        %3196 = vst.msk [vmem:[#allocation3 + $0x24] sm:$0xf] %vm3192, %v2947
        %3197 = vst.msk [vmem:[#allocation3 + $0x30] sm:$0xf] %vm3192, %v2949
        %3198 = vst.msk [vmem:[#allocation3 + $0x3c] sm:$0xf] %vm3192, %v2951
        %3199 = vst.msk [vmem:[#allocation3 + $0x48] sm:$0xf] %vm3192, %v2953
        %3200 = vst.msk [vmem:[#allocation3 + $0x54] sm:$0xf] %vm3192, %v2955
        %3201 = vst.msk [vmem:[#allocation3 + $0x60] sm:$0xf] %vm3192, %v2957
        %3202 = vst.msk [vmem:[#allocation3 + $0x6c] sm:$0xf] %vm3192, %v2959
        %3203 = vst.msk [vmem:[#allocation3 + $0x78] sm:$0xf] %vm3192, %v2961
        %3204 = vst.msk [vmem:[#allocation3 + $0x84] sm:$0xf] %vm3192, %v2963
        %3205 = vst.msk [vmem:[#allocation3 + $0x90] sm:$0xf] %vm3192, %v2965
        %3206 = vst.msk [vmem:[#allocation3 + $0x9c] sm:$0xf] %vm3192, %v2967
        %3207 = vst.msk [vmem:[#allocation3 + $0xa8] sm:$0xf] %vm3192, %v2969
        %3208 = vst.msk [vmem:[#allocation3 + $0xb4] sm:$0xf] %vm3192, %v2971
        %3209 = vst.msk [vmem:[#allocation3 + $0xc0] sm:$0xf] %vm3192, %v2973
        %3210 = vst.msk [vmem:[#allocation3 + $0xcc] sm:$0xf] %vm3192, %v2975
        %3211 = vst.msk [vmem:[#allocation3 + $0xd8] sm:$0xf] %vm3192, %v2977
        %3212 = vst.msk [vmem:[#allocation3 + $0xe4] sm:$0xf] %vm3192, %v2979
        %3213 = vst.msk [vmem:[#allocation3 + $0xf0] sm:$0xf] %vm3192, %v2981
        %3214 = vst.msk [vmem:[#allocation3 + $0xfc] sm:$0xf] %vm3192, %v2983
        %3215 = vst.msk [vmem:[#allocation3 + $0x108] sm:$0xf] %vm3192, %v2985
        %3216 = vst.msk [vmem:[#allocation3 + $0x114] sm:$0xf] %vm3192, %v2987
        %3217 = vst.msk [vmem:[#allocation3 + $0x120] sm:$0xf] %vm3192, %v2989
        %3218 = vst.msk [vmem:[#allocation3 + $0x12c] sm:$0xf] %vm3192, %v2991
        %3219 = vst.msk [vmem:[#allocation3 + $0x138] sm:$0xf] %vm3192, %v2993
        %3220 = vst.msk [vmem:[#allocation3 + $0x144] sm:$0xf] %vm3192, %v2995
        %3221 = vst.msk [vmem:[#allocation3 + $0x150] sm:$0xf] %vm3192, %v2997
        %3222 = vst.msk [vmem:[#allocation3 + $0x15c] sm:$0xf] %vm3192, %v2999
        %3223 = vst.msk [vmem:[#allocation3 + $0x168] sm:$0xf] %vm3192, %v3001
        %3224 = vst.msk [vmem:[#allocation3 + $0x174] sm:$0xf] %vm3192, %v3003
        %3225 = vst.msk [vmem:[#allocation3 + $0x180] sm:$0xf] %vm3192, %v3005
        %3226 = vst.msk [vmem:[#allocation3 + $0x18c] sm:$0xf] %vm3192, %v3007
        %3227 = vst.msk [vmem:[#allocation3 + $0x198] sm:$0xf] %vm3192, %v3009
        %3228 = vst.msk [vmem:[#allocation3 + $0x1a4] sm:$0xf] %vm3192, %v3011
        %3229 = vst.msk [vmem:[#allocation3 + $0x1b0] sm:$0xf] %vm3192, %v3013
        %3230 = vst.msk [vmem:[#allocation3 + $0x1bc] sm:$0xf] %vm3192, %v3015
        %3231 = vst.msk [vmem:[#allocation3 + $0x1c8] sm:$0xf] %vm3192, %v3017
        %3232 = vst.msk [vmem:[#allocation3 + $0x1d4] sm:$0xf] %vm3192, %v3019
        %3233 = vst.msk [vmem:[#allocation3 + $0x1e0] sm:$0xf] %vm3192, %v3021
        %3234 = vst.msk [vmem:[#allocation3 + $0x1ec] sm:$0xf] %vm3192, %v3023
        %3235 = vst.msk [vmem:[#allocation3 + $0x1f8] sm:$0xf] %vm3192, %v3025
        %3236 = vst.msk [vmem:[#allocation3 + $0x204] sm:$0xf] %vm3192, %v3027
        %3237 = vst.msk [vmem:[#allocation3 + $0x210] sm:$0xf] %vm3192, %v3029
        %3238 = vst.msk [vmem:[#allocation3 + $0x21c] sm:$0xf] %vm3192, %v3031
        %3239 = vst.msk [vmem:[#allocation3 + $0x228] sm:$0xf] %vm3192, %v3033
        %3240 = vst.msk [vmem:[#allocation3 + $0x234] sm:$0xf] %vm3192, %v3035
        %3241 = vst.msk [vmem:[#allocation3 + $0x240] sm:$0xf] %vm3192, %v3037
        %3242 = vst.msk [vmem:[#allocation3 + $0x24c] sm:$0xf] %vm3192, %v3039
        %3243 = vst.msk [vmem:[#allocation3 + $0x258] sm:$0xf] %vm3192, %v3041
        %3244 = vst.msk [vmem:[#allocation3 + $0x264] sm:$0xf] %vm3192, %v3043
        %3245 = vst.msk [vmem:[#allocation3 + $0x270] sm:$0xf] %vm3192, %v3045
        %3246 = vst.msk [vmem:[#allocation3 + $0x27c] sm:$0xf] %vm3192, %v3047
        %3247 = vst.msk [vmem:[#allocation3 + $0x288] sm:$0xf] %vm3192, %v3049
        %3248 = vst.msk [vmem:[#allocation3 + $0x294] sm:$0xf] %vm3192, %v3051
        %3249 = vst.msk [vmem:[#allocation3 + $0x2a0] sm:$0xf] %vm3192, %v3053
        %3250 = vst.msk [vmem:[#allocation3 + $0x2ac] sm:$0xf] %vm3192, %v3055
        %3251 = vst.msk [vmem:[#allocation3 + $0x2b8] sm:$0xf] %vm3192, %v3057
        %3252 = vst.msk [vmem:[#allocation3 + $0x2c4] sm:$0xf] %vm3192, %v3059
        %3253 = vst.msk [vmem:[#allocation3 + $0x2d0] sm:$0xf] %vm3192, %v3061
        %3254 = vst.msk [vmem:[#allocation3 + $0x2dc] sm:$0xf] %vm3192, %v3063
        %3255 = vst.msk [vmem:[#allocation3 + $0x2e8] sm:$0xf] %vm3192, %v3065
        %3256 = vst.msk [vmem:[#allocation3 + $0x2f4] sm:$0xf] %vm3192, %v3067
        %3257 = vst.msk [vmem:[#allocation3 + $0x300] sm:$0xf] %vm3192, %v3069
        %3258 = vst.msk [vmem:[#allocation3 + $0x30c] sm:$0xf] %vm3192, %v3071
        %3259 = vst.msk [vmem:[#allocation3 + $0x318] sm:$0xf] %vm3192, %v3073
        %3260 = vst.msk [vmem:[#allocation3 + $0x324] sm:$0xf] %vm3192, %v3075
        %3261 = vst.msk [vmem:[#allocation3 + $0x330] sm:$0xf] %vm3192, %v3077
        %3262 = vst.msk [vmem:[#allocation3 + $0x33c] sm:$0xf] %vm3192, %v3079
        %3263 = vst.msk [vmem:[#allocation3 + $0x348] sm:$0xf] %vm3192, %v3081
        %3264 = vst.msk [vmem:[#allocation3 + $0x354] sm:$0xf] %vm3192, %v3083
        %3265 = vst.msk [vmem:[#allocation3 + $0x360] sm:$0xf] %vm3192, %v3085
        %3266 = vst.msk [vmem:[#allocation3 + $0x36c] sm:$0xf] %vm3192, %v3087
        %3267 = vst.msk [vmem:[#allocation3 + $0x378] sm:$0xf] %vm3192, %v3089
        %3268 = vst.msk [vmem:[#allocation3 + $0x384] sm:$0xf] %vm3192, %v3091
        %3269 = vst.msk [vmem:[#allocation3 + $0x390] sm:$0xf] %vm3192, %v3093
        %3270 = vst.msk [vmem:[#allocation3 + $0x39c] sm:$0xf] %vm3192, %v3095
        %3271 = vst.msk [vmem:[#allocation3 + $0x3a8] sm:$0xf] %vm3192, %v3097
        %3272 = vst.msk [vmem:[#allocation3 + $0x3b4] sm:$0xf] %vm3192, %v3099
        %3273 = vst.msk [vmem:[#allocation3 + $0x3c0] sm:$0xf] %vm3192, %v3101
        %3274 = vst.msk [vmem:[#allocation3 + $0x3cc] sm:$0xf] %vm3192, %v3103
        %3275 = vst.msk [vmem:[#allocation3 + $0x3d8] sm:$0xf] %vm3192, %v3105
        %3276 = vst.msk [vmem:[#allocation3 + $0x3e4] sm:$0xf] %vm3192, %v3107
        %s3277 = scalar_lea.vmem [#allocation2], 72
        %v3278 = vld [vmem:[%s3277] sm:$0xf]
        %v3279 = vld [vmem:[%s3277 + $0x4] sm:$0xf]
        %v3280 = vld [vmem:[%s3277 + $0x8] sm:$0xf]
        %v3281 = vld [vmem:[%s3277 + $0xc] sm:$0xf]
        %v3282 = vld [vmem:[%s3277 + $0x10] sm:$0xf]
        %v3283 = vld [vmem:[%s3277 + $0x14] sm:$0xf]
        %v3284 = vld [vmem:[%s3277 + $0x18] sm:$0xf]
        %v3285 = vld [vmem:[%s3277 + $0x1c] sm:$0xf]
        %v3286 = vld [vmem:[%s3277 + $0x20] sm:$0xf]
        %v3287 = vld [vmem:[%s3277 + $0x24] sm:$0xf]
        %v3288 = vld [vmem:[%s3277 + $0x28] sm:$0xf]
        %v3289 = vld [vmem:[%s3277 + $0x2c] sm:$0xf]
        %v3290 = vld [vmem:[%s3277 + $0x30] sm:$0xf]
        %v3291 = vld [vmem:[%s3277 + $0x34] sm:$0xf]
        %v3292 = vld [vmem:[%s3277 + $0x48] sm:$0xf]
        %v3293 = vld [vmem:[%s3277 + $0x4c] sm:$0xf]
        %v3294 = vld [vmem:[%s3277 + $0x50] sm:$0xf]
        %v3295 = vld [vmem:[%s3277 + $0x54] sm:$0xf]
        %v3296 = vld [vmem:[%s3277 + $0x58] sm:$0xf]
        %v3297 = vld [vmem:[%s3277 + $0x5c] sm:$0xf]
        %v3298 = vld [vmem:[%s3277 + $0x60] sm:$0xf]
        %v3299 = vld [vmem:[%s3277 + $0x64] sm:$0xf]
        %v3300 = vld [vmem:[%s3277 + $0x68] sm:$0xf]
        %v3301 = vld [vmem:[%s3277 + $0x6c] sm:$0xf]
        %v3302 = vld [vmem:[%s3277 + $0x70] sm:$0xf]
        %v3303 = vld [vmem:[%s3277 + $0x74] sm:$0xf]
        %v3304 = vld [vmem:[%s3277 + $0x78] sm:$0xf]
        %v3305 = vld [vmem:[%s3277 + $0x7c] sm:$0xf]
        %v3306 = vld [vmem:[%s3277 + $0x90] sm:$0xf]
        %v3307 = vld [vmem:[%s3277 + $0x94] sm:$0xf]
        %v3308 = vld [vmem:[%s3277 + $0x98] sm:$0xf]
        %v3309 = vld [vmem:[%s3277 + $0x9c] sm:$0xf]
        %v3310 = vld [vmem:[%s3277 + $0xa0] sm:$0xf]
        %v3311 = vld [vmem:[%s3277 + $0xa4] sm:$0xf]
        %v3312 = vld [vmem:[%s3277 + $0xa8] sm:$0xf]
        %v3313 = vld [vmem:[%s3277 + $0xac] sm:$0xf]
        %v3314 = vld [vmem:[%s3277 + $0xb0] sm:$0xf]
        %v3315 = vld [vmem:[%s3277 + $0xb4] sm:$0xf]
        %v3316 = vld [vmem:[%s3277 + $0xb8] sm:$0xf]
        %v3317 = vld [vmem:[%s3277 + $0xbc] sm:$0xf]
        %v3318 = vld [vmem:[%s3277 + $0xc0] sm:$0xf]
        %v3319 = vld [vmem:[%s3277 + $0xc4] sm:$0xf]
        %v3320 = vld [vmem:[%s3277 + $0xd8] sm:$0xf]
        %v3321 = vld [vmem:[%s3277 + $0xdc] sm:$0xf]
        %v3322 = vld [vmem:[%s3277 + $0xe0] sm:$0xf]
        %v3323 = vld [vmem:[%s3277 + $0xe4] sm:$0xf]
        %v3324 = vld [vmem:[%s3277 + $0xe8] sm:$0xf]
        %v3325 = vld [vmem:[%s3277 + $0xec] sm:$0xf]
        %v3326 = vld [vmem:[%s3277 + $0xf0] sm:$0xf]
        %v3327 = vld [vmem:[%s3277 + $0xf4] sm:$0xf]
        %v3328 = vld [vmem:[%s3277 + $0xf8] sm:$0xf]
        %v3329 = vld [vmem:[%s3277 + $0xfc] sm:$0xf]
        %v3330 = vld [vmem:[%s3277 + $0x100] sm:$0xf]
        %v3331 = vld [vmem:[%s3277 + $0x104] sm:$0xf]
        %v3332 = vld [vmem:[%s3277 + $0x108] sm:$0xf]
        %v3333 = vld [vmem:[%s3277 + $0x10c] sm:$0xf]
        %v3334 = vld [vmem:[%s3277 + $0x120] sm:$0xf]
        %v3335 = vld [vmem:[%s3277 + $0x124] sm:$0xf]
        %v3336 = vld [vmem:[%s3277 + $0x128] sm:$0xf]
        %v3337 = vld [vmem:[%s3277 + $0x12c] sm:$0xf]
        %v3338 = vld [vmem:[%s3277 + $0x130] sm:$0xf]
        %v3339 = vld [vmem:[%s3277 + $0x134] sm:$0xf]
        %v3340 = vld [vmem:[%s3277 + $0x138] sm:$0xf]
        %v3341 = vld [vmem:[%s3277 + $0x13c] sm:$0xf]
        %v3342 = vld [vmem:[%s3277 + $0x140] sm:$0xf]
        %v3343 = vld [vmem:[%s3277 + $0x144] sm:$0xf]
        %v3344 = vld [vmem:[%s3277 + $0x148] sm:$0xf]
        %v3345 = vld [vmem:[%s3277 + $0x14c] sm:$0xf]
        %v3346 = vld [vmem:[%s3277 + $0x150] sm:$0xf]
        %v3347 = vld [vmem:[%s3277 + $0x154] sm:$0xf]
        %v3348 = vld [vmem:[%s3277 + $0x168] sm:$0xf]
        %v3349 = vld [vmem:[%s3277 + $0x16c] sm:$0xf]
        %v3350 = vld [vmem:[%s3277 + $0x170] sm:$0xf]
        %v3351 = vld [vmem:[%s3277 + $0x174] sm:$0xf]
        %v3352 = vld [vmem:[%s3277 + $0x178] sm:$0xf]
        %v3353 = vld [vmem:[%s3277 + $0x17c] sm:$0xf]
        %v3354 = vld [vmem:[%s3277 + $0x180] sm:$0xf]
        %v3355 = vld [vmem:[%s3277 + $0x184] sm:$0xf]
        %v3356 = vld [vmem:[%s3277 + $0x188] sm:$0xf]
        %v3357 = vld [vmem:[%s3277 + $0x18c] sm:$0xf]
        %v3358 = vld [vmem:[%s3277 + $0x190] sm:$0xf]
        %v3359 = vld [vmem:[%s3277 + $0x194] sm:$0xf]
        %v3360 = vld [vmem:[%s3277 + $0x198] sm:$0xf]
        %v3361 = vld [vmem:[%s3277 + $0x19c] sm:$0xf]
        %3446 = vrot.lane.b32.xlu0 %v3278, 96
        %v3447 = vpop.permute.xlu0 %3446
        %3448 = vrot.lane.b32.xlu0 %v3279, 96
        %v3449 = vpop.permute.xlu0 %3448
        %3450 = vrot.lane.b32.xlu0 %v3280, 96
        %v3451 = vpop.permute.xlu0 %3450
        %3452 = vrot.lane.b32.xlu0 %v3281, 96
        %v3453 = vpop.permute.xlu0 %3452
        %3454 = vrot.lane.b32.xlu0 %v3282, 96
        %v3455 = vpop.permute.xlu0 %3454
        %3456 = vrot.lane.b32.xlu0 %v3283, 96
        %v3457 = vpop.permute.xlu0 %3456
        %3458 = vrot.lane.b32.xlu0 %v3284, 96
        %v3459 = vpop.permute.xlu0 %3458
        %3460 = vrot.lane.b32.xlu0 %v3285, 96
        %v3461 = vpop.permute.xlu0 %3460
        %3462 = vrot.lane.b32.xlu0 %v3286, 96
        %v3463 = vpop.permute.xlu0 %3462
        %3464 = vrot.lane.b32.xlu0 %v3287, 96
        %v3465 = vpop.permute.xlu0 %3464
        %3466 = vrot.lane.b32.xlu0 %v3288, 96
        %v3467 = vpop.permute.xlu0 %3466
        %3468 = vrot.lane.b32.xlu0 %v3289, 96
        %v3469 = vpop.permute.xlu0 %3468
        %3470 = vrot.lane.b32.xlu0 %v3290, 96
        %v3471 = vpop.permute.xlu0 %3470
        %3472 = vrot.lane.b32.xlu0 %v3291, 96
        %v3473 = vpop.permute.xlu0 %3472
        %3474 = vrot.lane.b32.xlu0 %v3292, 96
        %v3475 = vpop.permute.xlu0 %3474
        %3476 = vrot.lane.b32.xlu0 %v3293, 96
        %v3477 = vpop.permute.xlu0 %3476
        %3478 = vrot.lane.b32.xlu0 %v3294, 96
        %v3479 = vpop.permute.xlu0 %3478
        %3480 = vrot.lane.b32.xlu0 %v3295, 96
        %v3481 = vpop.permute.xlu0 %3480
        %3482 = vrot.lane.b32.xlu0 %v3296, 96
        %v3483 = vpop.permute.xlu0 %3482
        %3484 = vrot.lane.b32.xlu0 %v3297, 96
        %v3485 = vpop.permute.xlu0 %3484
        %3486 = vrot.lane.b32.xlu0 %v3298, 96
        %v3487 = vpop.permute.xlu0 %3486
        %3488 = vrot.lane.b32.xlu0 %v3299, 96
        %v3489 = vpop.permute.xlu0 %3488
        %3490 = vrot.lane.b32.xlu0 %v3300, 96
        %v3491 = vpop.permute.xlu0 %3490
        %3492 = vrot.lane.b32.xlu0 %v3301, 96
        %v3493 = vpop.permute.xlu0 %3492
        %3494 = vrot.lane.b32.xlu0 %v3302, 96
        %v3495 = vpop.permute.xlu0 %3494
        %3496 = vrot.lane.b32.xlu0 %v3303, 96
        %v3497 = vpop.permute.xlu0 %3496
        %3498 = vrot.lane.b32.xlu0 %v3304, 96
        %v3499 = vpop.permute.xlu0 %3498
        %3500 = vrot.lane.b32.xlu0 %v3305, 96
        %v3501 = vpop.permute.xlu0 %3500
        %3502 = vrot.lane.b32.xlu0 %v3306, 96
        %v3503 = vpop.permute.xlu0 %3502
        %3504 = vrot.lane.b32.xlu0 %v3307, 96
        %v3505 = vpop.permute.xlu0 %3504
        %3506 = vrot.lane.b32.xlu0 %v3308, 96
        %v3507 = vpop.permute.xlu0 %3506
        %3508 = vrot.lane.b32.xlu0 %v3309, 96
        %v3509 = vpop.permute.xlu0 %3508
        %3510 = vrot.lane.b32.xlu0 %v3310, 96
        %v3511 = vpop.permute.xlu0 %3510
        %3512 = vrot.lane.b32.xlu0 %v3311, 96
        %v3513 = vpop.permute.xlu0 %3512
        %3514 = vrot.lane.b32.xlu0 %v3312, 96
        %v3515 = vpop.permute.xlu0 %3514
        %3516 = vrot.lane.b32.xlu0 %v3313, 96
        %v3517 = vpop.permute.xlu0 %3516
        %3518 = vrot.lane.b32.xlu0 %v3314, 96
        %v3519 = vpop.permute.xlu0 %3518
        %3520 = vrot.lane.b32.xlu0 %v3315, 96
        %v3521 = vpop.permute.xlu0 %3520
        %3522 = vrot.lane.b32.xlu0 %v3316, 96
        %v3523 = vpop.permute.xlu0 %3522
        %3524 = vrot.lane.b32.xlu0 %v3317, 96
        %v3525 = vpop.permute.xlu0 %3524
        %3526 = vrot.lane.b32.xlu0 %v3318, 96
        %v3527 = vpop.permute.xlu0 %3526
        %3528 = vrot.lane.b32.xlu0 %v3319, 96
        %v3529 = vpop.permute.xlu0 %3528
        %3530 = vrot.lane.b32.xlu0 %v3320, 96
        %v3531 = vpop.permute.xlu0 %3530
        %3532 = vrot.lane.b32.xlu0 %v3321, 96
        %v3533 = vpop.permute.xlu0 %3532
        %3534 = vrot.lane.b32.xlu0 %v3322, 96
        %v3535 = vpop.permute.xlu0 %3534
        %3536 = vrot.lane.b32.xlu0 %v3323, 96
        %v3537 = vpop.permute.xlu0 %3536
        %3538 = vrot.lane.b32.xlu0 %v3324, 96
        %v3539 = vpop.permute.xlu0 %3538
        %3540 = vrot.lane.b32.xlu0 %v3325, 96
        %v3541 = vpop.permute.xlu0 %3540
        %3542 = vrot.lane.b32.xlu0 %v3326, 96
        %v3543 = vpop.permute.xlu0 %3542
        %3544 = vrot.lane.b32.xlu0 %v3327, 96
        %v3545 = vpop.permute.xlu0 %3544
        %3546 = vrot.lane.b32.xlu0 %v3328, 96
        %v3547 = vpop.permute.xlu0 %3546
        %3548 = vrot.lane.b32.xlu0 %v3329, 96
        %v3549 = vpop.permute.xlu0 %3548
        %3550 = vrot.lane.b32.xlu0 %v3330, 96
        %v3551 = vpop.permute.xlu0 %3550
        %3552 = vrot.lane.b32.xlu0 %v3331, 96
        %v3553 = vpop.permute.xlu0 %3552
        %3554 = vrot.lane.b32.xlu0 %v3332, 96
        %v3555 = vpop.permute.xlu0 %3554
        %3556 = vrot.lane.b32.xlu0 %v3333, 96
        %v3557 = vpop.permute.xlu0 %3556
        %3558 = vrot.lane.b32.xlu0 %v3334, 96
        %v3559 = vpop.permute.xlu0 %3558
        %3560 = vrot.lane.b32.xlu0 %v3335, 96
        %v3561 = vpop.permute.xlu0 %3560
        %3562 = vrot.lane.b32.xlu0 %v3336, 96
        %v3563 = vpop.permute.xlu0 %3562
        %3564 = vrot.lane.b32.xlu0 %v3337, 96
        %v3565 = vpop.permute.xlu0 %3564
        %3566 = vrot.lane.b32.xlu0 %v3338, 96
        %v3567 = vpop.permute.xlu0 %3566
        %3568 = vrot.lane.b32.xlu0 %v3339, 96
        %v3569 = vpop.permute.xlu0 %3568
        %3570 = vrot.lane.b32.xlu0 %v3340, 96
        %v3571 = vpop.permute.xlu0 %3570
        %3572 = vrot.lane.b32.xlu0 %v3341, 96
        %v3573 = vpop.permute.xlu0 %3572
        %3574 = vrot.lane.b32.xlu0 %v3342, 96
        %v3575 = vpop.permute.xlu0 %3574
        %3576 = vrot.lane.b32.xlu0 %v3343, 96
        %v3577 = vpop.permute.xlu0 %3576
        %3578 = vrot.lane.b32.xlu0 %v3344, 96
        %v3579 = vpop.permute.xlu0 %3578
        %3580 = vrot.lane.b32.xlu0 %v3345, 96
        %v3581 = vpop.permute.xlu0 %3580
        %3582 = vrot.lane.b32.xlu0 %v3346, 96
        %v3583 = vpop.permute.xlu0 %3582
        %3584 = vrot.lane.b32.xlu0 %v3347, 96
        %v3585 = vpop.permute.xlu0 %3584
        %3586 = vrot.lane.b32.xlu0 %v3348, 96
        %v3587 = vpop.permute.xlu0 %3586
        %3588 = vrot.lane.b32.xlu0 %v3349, 96
        %v3589 = vpop.permute.xlu0 %3588
        %3590 = vrot.lane.b32.xlu0 %v3350, 96
        %v3591 = vpop.permute.xlu0 %3590
        %3592 = vrot.lane.b32.xlu0 %v3351, 96
        %v3593 = vpop.permute.xlu0 %3592
        %3594 = vrot.lane.b32.xlu0 %v3352, 96
        %v3595 = vpop.permute.xlu0 %3594
        %3596 = vrot.lane.b32.xlu0 %v3353, 96
        %v3597 = vpop.permute.xlu0 %3596
        %3598 = vrot.lane.b32.xlu0 %v3354, 96
        %v3599 = vpop.permute.xlu0 %3598
        %3600 = vrot.lane.b32.xlu0 %v3355, 96
        %v3601 = vpop.permute.xlu0 %3600
        %3602 = vrot.lane.b32.xlu0 %v3356, 96
        %v3603 = vpop.permute.xlu0 %3602
        %3604 = vrot.lane.b32.xlu0 %v3357, 96
        %v3605 = vpop.permute.xlu0 %3604
        %3606 = vrot.lane.b32.xlu0 %v3358, 96
        %v3607 = vpop.permute.xlu0 %3606
        %3608 = vrot.lane.b32.xlu0 %v3359, 96
        %v3609 = vpop.permute.xlu0 %3608
        %3610 = vrot.lane.b32.xlu0 %v3360, 96
        %v3611 = vpop.permute.xlu0 %3610
        %3612 = vrot.lane.b32.xlu0 %v3361, 96
        %v3613 = vpop.permute.xlu0 %3612
        %vm3698 = vcmask 1044224
        %3699 = vst.msk [vmem:[#allocation3] sm:$0xf] %vm3698, %v3447
        %3700 = vst.msk [vmem:[#allocation3 + $0xc] sm:$0xf] %vm3698, %v3449
        %3701 = vst.msk [vmem:[#allocation3 + $0x18] sm:$0xf] %vm3698, %v3451
        %3702 = vst.msk [vmem:[#allocation3 + $0x24] sm:$0xf] %vm3698, %v3453
        %3703 = vst.msk [vmem:[#allocation3 + $0x30] sm:$0xf] %vm3698, %v3455
        %3704 = vst.msk [vmem:[#allocation3 + $0x3c] sm:$0xf] %vm3698, %v3457
        %3705 = vst.msk [vmem:[#allocation3 + $0x48] sm:$0xf] %vm3698, %v3459
        %3706 = vst.msk [vmem:[#allocation3 + $0x54] sm:$0xf] %vm3698, %v3461
        %3707 = vst.msk [vmem:[#allocation3 + $0x60] sm:$0xf] %vm3698, %v3463
        %3708 = vst.msk [vmem:[#allocation3 + $0x6c] sm:$0xf] %vm3698, %v3465
        %3709 = vst.msk [vmem:[#allocation3 + $0x78] sm:$0xf] %vm3698, %v3467
        %3710 = vst.msk [vmem:[#allocation3 + $0x84] sm:$0xf] %vm3698, %v3469
        %3711 = vst.msk [vmem:[#allocation3 + $0x90] sm:$0xf] %vm3698, %v3471
        %3712 = vst.msk [vmem:[#allocation3 + $0x9c] sm:$0xf] %vm3698, %v3473
        %3713 = vst.msk [vmem:[#allocation3 + $0xa8] sm:$0xf] %vm3698, %v3475
        %3714 = vst.msk [vmem:[#allocation3 + $0xb4] sm:$0xf] %vm3698, %v3477
        %3715 = vst.msk [vmem:[#allocation3 + $0xc0] sm:$0xf] %vm3698, %v3479
        %3716 = vst.msk [vmem:[#allocation3 + $0xcc] sm:$0xf] %vm3698, %v3481
        %3717 = vst.msk [vmem:[#allocation3 + $0xd8] sm:$0xf] %vm3698, %v3483
        %3718 = vst.msk [vmem:[#allocation3 + $0xe4] sm:$0xf] %vm3698, %v3485
        %3719 = vst.msk [vmem:[#allocation3 + $0xf0] sm:$0xf] %vm3698, %v3487
        %3720 = vst.msk [vmem:[#allocation3 + $0xfc] sm:$0xf] %vm3698, %v3489
        %3721 = vst.msk [vmem:[#allocation3 + $0x108] sm:$0xf] %vm3698, %v3491
        %3722 = vst.msk [vmem:[#allocation3 + $0x114] sm:$0xf] %vm3698, %v3493
        %3723 = vst.msk [vmem:[#allocation3 + $0x120] sm:$0xf] %vm3698, %v3495
        %3724 = vst.msk [vmem:[#allocation3 + $0x12c] sm:$0xf] %vm3698, %v3497
        %3725 = vst.msk [vmem:[#allocation3 + $0x138] sm:$0xf] %vm3698, %v3499
        %3726 = vst.msk [vmem:[#allocation3 + $0x144] sm:$0xf] %vm3698, %v3501
        %3727 = vst.msk [vmem:[#allocation3 + $0x150] sm:$0xf] %vm3698, %v3503
        %3728 = vst.msk [vmem:[#allocation3 + $0x15c] sm:$0xf] %vm3698, %v3505
        %3729 = vst.msk [vmem:[#allocation3 + $0x168] sm:$0xf] %vm3698, %v3507
        %3730 = vst.msk [vmem:[#allocation3 + $0x174] sm:$0xf] %vm3698, %v3509
        %3731 = vst.msk [vmem:[#allocation3 + $0x180] sm:$0xf] %vm3698, %v3511
        %3732 = vst.msk [vmem:[#allocation3 + $0x18c] sm:$0xf] %vm3698, %v3513
        %3733 = vst.msk [vmem:[#allocation3 + $0x198] sm:$0xf] %vm3698, %v3515
        %3734 = vst.msk [vmem:[#allocation3 + $0x1a4] sm:$0xf] %vm3698, %v3517
        %3735 = vst.msk [vmem:[#allocation3 + $0x1b0] sm:$0xf] %vm3698, %v3519
        %3736 = vst.msk [vmem:[#allocation3 + $0x1bc] sm:$0xf] %vm3698, %v3521
        %3737 = vst.msk [vmem:[#allocation3 + $0x1c8] sm:$0xf] %vm3698, %v3523
        %3738 = vst.msk [vmem:[#allocation3 + $0x1d4] sm:$0xf] %vm3698, %v3525
        %3739 = vst.msk [vmem:[#allocation3 + $0x1e0] sm:$0xf] %vm3698, %v3527
        %3740 = vst.msk [vmem:[#allocation3 + $0x1ec] sm:$0xf] %vm3698, %v3529
        %3741 = vst.msk [vmem:[#allocation3 + $0x1f8] sm:$0xf] %vm3698, %v3531
        %3742 = vst.msk [vmem:[#allocation3 + $0x204] sm:$0xf] %vm3698, %v3533
        %3743 = vst.msk [vmem:[#allocation3 + $0x210] sm:$0xf] %vm3698, %v3535
        %3744 = vst.msk [vmem:[#allocation3 + $0x21c] sm:$0xf] %vm3698, %v3537
        %3745 = vst.msk [vmem:[#allocation3 + $0x228] sm:$0xf] %vm3698, %v3539
        %3746 = vst.msk [vmem:[#allocation3 + $0x234] sm:$0xf] %vm3698, %v3541
        %3747 = vst.msk [vmem:[#allocation3 + $0x240] sm:$0xf] %vm3698, %v3543
        %3748 = vst.msk [vmem:[#allocation3 + $0x24c] sm:$0xf] %vm3698, %v3545
        %3749 = vst.msk [vmem:[#allocation3 + $0x258] sm:$0xf] %vm3698, %v3547
        %3750 = vst.msk [vmem:[#allocation3 + $0x264] sm:$0xf] %vm3698, %v3549
        %3751 = vst.msk [vmem:[#allocation3 + $0x270] sm:$0xf] %vm3698, %v3551
        %3752 = vst.msk [vmem:[#allocation3 + $0x27c] sm:$0xf] %vm3698, %v3553
        %3753 = vst.msk [vmem:[#allocation3 + $0x288] sm:$0xf] %vm3698, %v3555
        %3754 = vst.msk [vmem:[#allocation3 + $0x294] sm:$0xf] %vm3698, %v3557
        %3755 = vst.msk [vmem:[#allocation3 + $0x2a0] sm:$0xf] %vm3698, %v3559
        %3756 = vst.msk [vmem:[#allocation3 + $0x2ac] sm:$0xf] %vm3698, %v3561
        %3757 = vst.msk [vmem:[#allocation3 + $0x2b8] sm:$0xf] %vm3698, %v3563
        %3758 = vst.msk [vmem:[#allocation3 + $0x2c4] sm:$0xf] %vm3698, %v3565
        %3759 = vst.msk [vmem:[#allocation3 + $0x2d0] sm:$0xf] %vm3698, %v3567
        %3760 = vst.msk [vmem:[#allocation3 + $0x2dc] sm:$0xf] %vm3698, %v3569
        %3761 = vst.msk [vmem:[#allocation3 + $0x2e8] sm:$0xf] %vm3698, %v3571
        %3762 = vst.msk [vmem:[#allocation3 + $0x2f4] sm:$0xf] %vm3698, %v3573
        %3763 = vst.msk [vmem:[#allocation3 + $0x300] sm:$0xf] %vm3698, %v3575
        %3764 = vst.msk [vmem:[#allocation3 + $0x30c] sm:$0xf] %vm3698, %v3577
        %3765 = vst.msk [vmem:[#allocation3 + $0x318] sm:$0xf] %vm3698, %v3579
        %3766 = vst.msk [vmem:[#allocation3 + $0x324] sm:$0xf] %vm3698, %v3581
        %3767 = vst.msk [vmem:[#allocation3 + $0x330] sm:$0xf] %vm3698, %v3583
        %3768 = vst.msk [vmem:[#allocation3 + $0x33c] sm:$0xf] %vm3698, %v3585
        %3769 = vst.msk [vmem:[#allocation3 + $0x348] sm:$0xf] %vm3698, %v3587
        %3770 = vst.msk [vmem:[#allocation3 + $0x354] sm:$0xf] %vm3698, %v3589
        %3771 = vst.msk [vmem:[#allocation3 + $0x360] sm:$0xf] %vm3698, %v3591
        %3772 = vst.msk [vmem:[#allocation3 + $0x36c] sm:$0xf] %vm3698, %v3593
        %3773 = vst.msk [vmem:[#allocation3 + $0x378] sm:$0xf] %vm3698, %v3595
        %3774 = vst.msk [vmem:[#allocation3 + $0x384] sm:$0xf] %vm3698, %v3597
        %3775 = vst.msk [vmem:[#allocation3 + $0x390] sm:$0xf] %vm3698, %v3599
        %3776 = vst.msk [vmem:[#allocation3 + $0x39c] sm:$0xf] %vm3698, %v3601
        %3777 = vst.msk [vmem:[#allocation3 + $0x3a8] sm:$0xf] %vm3698, %v3603
        %3778 = vst.msk [vmem:[#allocation3 + $0x3b4] sm:$0xf] %vm3698, %v3605
        %3779 = vst.msk [vmem:[#allocation3 + $0x3c0] sm:$0xf] %vm3698, %v3607
        %3780 = vst.msk [vmem:[#allocation3 + $0x3cc] sm:$0xf] %vm3698, %v3609
        %3781 = vst.msk [vmem:[#allocation3 + $0x3d8] sm:$0xf] %vm3698, %v3611
        %3782 = vst.msk [vmem:[#allocation3 + $0x3e4] sm:$0xf] %vm3698, %v3613
        %s3783 = scalar_lea.vmem [#allocation2], 80
        %v3784 = vld [vmem:[%s3783] sm:$0xf]
        %v3785 = vld [vmem:[%s3783 + $0x4] sm:$0xf]
        %v3786 = vld [vmem:[%s3783 + $0x8] sm:$0xf]
        %v3787 = vld [vmem:[%s3783 + $0xc] sm:$0xf]
        %v3788 = vld [vmem:[%s3783 + $0x10] sm:$0xf]
        %v3789 = vld [vmem:[%s3783 + $0x14] sm:$0xf]
        %v3790 = vld [vmem:[%s3783 + $0x18] sm:$0xf]
        %v3791 = vld [vmem:[%s3783 + $0x1c] sm:$0xf]
        %v3792 = vld [vmem:[%s3783 + $0x20] sm:$0xf]
        %v3793 = vld [vmem:[%s3783 + $0x24] sm:$0xf]
        %v3794 = vld [vmem:[%s3783 + $0x28] sm:$0xf]
        %v3795 = vld [vmem:[%s3783 + $0x2c] sm:$0xf]
        %v3796 = vld [vmem:[%s3783 + $0x30] sm:$0xf]
        %v3797 = vld [vmem:[%s3783 + $0x34] sm:$0xf]
        %v3798 = vld [vmem:[%s3783 + $0x48] sm:$0xf]
        %v3799 = vld [vmem:[%s3783 + $0x4c] sm:$0xf]
        %v3800 = vld [vmem:[%s3783 + $0x50] sm:$0xf]
        %v3801 = vld [vmem:[%s3783 + $0x54] sm:$0xf]
        %v3802 = vld [vmem:[%s3783 + $0x58] sm:$0xf]
        %v3803 = vld [vmem:[%s3783 + $0x5c] sm:$0xf]
        %v3804 = vld [vmem:[%s3783 + $0x60] sm:$0xf]
        %v3805 = vld [vmem:[%s3783 + $0x64] sm:$0xf]
        %v3806 = vld [vmem:[%s3783 + $0x68] sm:$0xf]
        %v3807 = vld [vmem:[%s3783 + $0x6c] sm:$0xf]
        %v3808 = vld [vmem:[%s3783 + $0x70] sm:$0xf]
        %v3809 = vld [vmem:[%s3783 + $0x74] sm:$0xf]
        %v3810 = vld [vmem:[%s3783 + $0x78] sm:$0xf]
        %v3811 = vld [vmem:[%s3783 + $0x7c] sm:$0xf]
        %v3812 = vld [vmem:[%s3783 + $0x90] sm:$0xf]
        %v3813 = vld [vmem:[%s3783 + $0x94] sm:$0xf]
        %v3814 = vld [vmem:[%s3783 + $0x98] sm:$0xf]
        %v3815 = vld [vmem:[%s3783 + $0x9c] sm:$0xf]
        %v3816 = vld [vmem:[%s3783 + $0xa0] sm:$0xf]
        %v3817 = vld [vmem:[%s3783 + $0xa4] sm:$0xf]
        %v3818 = vld [vmem:[%s3783 + $0xa8] sm:$0xf]
        %v3819 = vld [vmem:[%s3783 + $0xac] sm:$0xf]
        %v3820 = vld [vmem:[%s3783 + $0xb0] sm:$0xf]
        %v3821 = vld [vmem:[%s3783 + $0xb4] sm:$0xf]
        %v3822 = vld [vmem:[%s3783 + $0xb8] sm:$0xf]
        %v3823 = vld [vmem:[%s3783 + $0xbc] sm:$0xf]
        %v3824 = vld [vmem:[%s3783 + $0xc0] sm:$0xf]
        %v3825 = vld [vmem:[%s3783 + $0xc4] sm:$0xf]
        %v3826 = vld [vmem:[%s3783 + $0xd8] sm:$0xf]
        %v3827 = vld [vmem:[%s3783 + $0xdc] sm:$0xf]
        %v3828 = vld [vmem:[%s3783 + $0xe0] sm:$0xf]
        %v3829 = vld [vmem:[%s3783 + $0xe4] sm:$0xf]
        %v3830 = vld [vmem:[%s3783 + $0xe8] sm:$0xf]
        %v3831 = vld [vmem:[%s3783 + $0xec] sm:$0xf]
        %v3832 = vld [vmem:[%s3783 + $0xf0] sm:$0xf]
        %v3833 = vld [vmem:[%s3783 + $0xf4] sm:$0xf]
        %v3834 = vld [vmem:[%s3783 + $0xf8] sm:$0xf]
        %v3835 = vld [vmem:[%s3783 + $0xfc] sm:$0xf]
        %v3836 = vld [vmem:[%s3783 + $0x100] sm:$0xf]
        %v3837 = vld [vmem:[%s3783 + $0x104] sm:$0xf]
        %v3838 = vld [vmem:[%s3783 + $0x108] sm:$0xf]
        %v3839 = vld [vmem:[%s3783 + $0x10c] sm:$0xf]
        %v3840 = vld [vmem:[%s3783 + $0x120] sm:$0xf]
        %v3841 = vld [vmem:[%s3783 + $0x124] sm:$0xf]
        %v3842 = vld [vmem:[%s3783 + $0x128] sm:$0xf]
        %v3843 = vld [vmem:[%s3783 + $0x12c] sm:$0xf]
        %v3844 = vld [vmem:[%s3783 + $0x130] sm:$0xf]
        %v3845 = vld [vmem:[%s3783 + $0x134] sm:$0xf]
        %v3846 = vld [vmem:[%s3783 + $0x138] sm:$0xf]
        %v3847 = vld [vmem:[%s3783 + $0x13c] sm:$0xf]
        %v3848 = vld [vmem:[%s3783 + $0x140] sm:$0xf]
        %v3849 = vld [vmem:[%s3783 + $0x144] sm:$0xf]
        %v3850 = vld [vmem:[%s3783 + $0x148] sm:$0xf]
        %v3851 = vld [vmem:[%s3783 + $0x14c] sm:$0xf]
        %v3852 = vld [vmem:[%s3783 + $0x150] sm:$0xf]
        %v3853 = vld [vmem:[%s3783 + $0x154] sm:$0xf]
        %v3854 = vld [vmem:[%s3783 + $0x168] sm:$0xf]
        %v3855 = vld [vmem:[%s3783 + $0x16c] sm:$0xf]
        %v3856 = vld [vmem:[%s3783 + $0x170] sm:$0xf]
        %v3857 = vld [vmem:[%s3783 + $0x174] sm:$0xf]
        %v3858 = vld [vmem:[%s3783 + $0x178] sm:$0xf]
        %v3859 = vld [vmem:[%s3783 + $0x17c] sm:$0xf]
        %v3860 = vld [vmem:[%s3783 + $0x180] sm:$0xf]
        %v3861 = vld [vmem:[%s3783 + $0x184] sm:$0xf]
        %v3862 = vld [vmem:[%s3783 + $0x188] sm:$0xf]
        %v3863 = vld [vmem:[%s3783 + $0x18c] sm:$0xf]
        %v3864 = vld [vmem:[%s3783 + $0x190] sm:$0xf]
        %v3865 = vld [vmem:[%s3783 + $0x194] sm:$0xf]
        %v3866 = vld [vmem:[%s3783 + $0x198] sm:$0xf]
        %v3867 = vld [vmem:[%s3783 + $0x19c] sm:$0xf]
        %3868 = vst.msk [vmem:[#allocation3 + $0x4] sm:$0xf] %vm1952, %v3784
        %3869 = vst.msk [vmem:[#allocation3 + $0x10] sm:$0xf] %vm1952, %v3785
        %3870 = vst.msk [vmem:[#allocation3 + $0x1c] sm:$0xf] %vm1952, %v3786
        %3871 = vst.msk [vmem:[#allocation3 + $0x28] sm:$0xf] %vm1952, %v3787
        %3872 = vst.msk [vmem:[#allocation3 + $0x34] sm:$0xf] %vm1952, %v3788
        %3873 = vst.msk [vmem:[#allocation3 + $0x40] sm:$0xf] %vm1952, %v3789
        %3874 = vst.msk [vmem:[#allocation3 + $0x4c] sm:$0xf] %vm1952, %v3790
        %3875 = vst.msk [vmem:[#allocation3 + $0x58] sm:$0xf] %vm1952, %v3791
        %3876 = vst.msk [vmem:[#allocation3 + $0x64] sm:$0xf] %vm1952, %v3792
        %3877 = vst.msk [vmem:[#allocation3 + $0x70] sm:$0xf] %vm1952, %v3793
        %3878 = vst.msk [vmem:[#allocation3 + $0x7c] sm:$0xf] %vm1952, %v3794
        %3879 = vst.msk [vmem:[#allocation3 + $0x88] sm:$0xf] %vm1952, %v3795
        %3880 = vst.msk [vmem:[#allocation3 + $0x94] sm:$0xf] %vm1952, %v3796
        %3881 = vst.msk [vmem:[#allocation3 + $0xa0] sm:$0xf] %vm1952, %v3797
        %3882 = vst.msk [vmem:[#allocation3 + $0xac] sm:$0xf] %vm1952, %v3798
        %3883 = vst.msk [vmem:[#allocation3 + $0xb8] sm:$0xf] %vm1952, %v3799
        %3884 = vst.msk [vmem:[#allocation3 + $0xc4] sm:$0xf] %vm1952, %v3800
        %3885 = vst.msk [vmem:[#allocation3 + $0xd0] sm:$0xf] %vm1952, %v3801
        %3886 = vst.msk [vmem:[#allocation3 + $0xdc] sm:$0xf] %vm1952, %v3802
        %3887 = vst.msk [vmem:[#allocation3 + $0xe8] sm:$0xf] %vm1952, %v3803
        %3888 = vst.msk [vmem:[#allocation3 + $0xf4] sm:$0xf] %vm1952, %v3804
        %3889 = vst.msk [vmem:[#allocation3 + $0x100] sm:$0xf] %vm1952, %v3805
        %3890 = vst.msk [vmem:[#allocation3 + $0x10c] sm:$0xf] %vm1952, %v3806
        %3891 = vst.msk [vmem:[#allocation3 + $0x118] sm:$0xf] %vm1952, %v3807
        %3892 = vst.msk [vmem:[#allocation3 + $0x124] sm:$0xf] %vm1952, %v3808
        %3893 = vst.msk [vmem:[#allocation3 + $0x130] sm:$0xf] %vm1952, %v3809
        %3894 = vst.msk [vmem:[#allocation3 + $0x13c] sm:$0xf] %vm1952, %v3810
        %3895 = vst.msk [vmem:[#allocation3 + $0x148] sm:$0xf] %vm1952, %v3811
        %3896 = vst.msk [vmem:[#allocation3 + $0x154] sm:$0xf] %vm1952, %v3812
        %3897 = vst.msk [vmem:[#allocation3 + $0x160] sm:$0xf] %vm1952, %v3813
        %3898 = vst.msk [vmem:[#allocation3 + $0x16c] sm:$0xf] %vm1952, %v3814
        %3899 = vst.msk [vmem:[#allocation3 + $0x178] sm:$0xf] %vm1952, %v3815
        %3900 = vst.msk [vmem:[#allocation3 + $0x184] sm:$0xf] %vm1952, %v3816
        %3901 = vst.msk [vmem:[#allocation3 + $0x190] sm:$0xf] %vm1952, %v3817
        %3902 = vst.msk [vmem:[#allocation3 + $0x19c] sm:$0xf] %vm1952, %v3818
        %3903 = vst.msk [vmem:[#allocation3 + $0x1a8] sm:$0xf] %vm1952, %v3819
        %3904 = vst.msk [vmem:[#allocation3 + $0x1b4] sm:$0xf] %vm1952, %v3820
        %3905 = vst.msk [vmem:[#allocation3 + $0x1c0] sm:$0xf] %vm1952, %v3821
        %3906 = vst.msk [vmem:[#allocation3 + $0x1cc] sm:$0xf] %vm1952, %v3822
        %3907 = vst.msk [vmem:[#allocation3 + $0x1d8] sm:$0xf] %vm1952, %v3823
        %3908 = vst.msk [vmem:[#allocation3 + $0x1e4] sm:$0xf] %vm1952, %v3824
        %3909 = vst.msk [vmem:[#allocation3 + $0x1f0] sm:$0xf] %vm1952, %v3825
        %3910 = vst.msk [vmem:[#allocation3 + $0x1fc] sm:$0xf] %vm1952, %v3826
        %3911 = vst.msk [vmem:[#allocation3 + $0x208] sm:$0xf] %vm1952, %v3827
        %3912 = vst.msk [vmem:[#allocation3 + $0x214] sm:$0xf] %vm1952, %v3828
        %3913 = vst.msk [vmem:[#allocation3 + $0x220] sm:$0xf] %vm1952, %v3829
        %3914 = vst.msk [vmem:[#allocation3 + $0x22c] sm:$0xf] %vm1952, %v3830
        %3915 = vst.msk [vmem:[#allocation3 + $0x238] sm:$0xf] %vm1952, %v3831
        %3916 = vst.msk [vmem:[#allocation3 + $0x244] sm:$0xf] %vm1952, %v3832
        %3917 = vst.msk [vmem:[#allocation3 + $0x250] sm:$0xf] %vm1952, %v3833
        %3918 = vst.msk [vmem:[#allocation3 + $0x25c] sm:$0xf] %vm1952, %v3834
        %3919 = vst.msk [vmem:[#allocation3 + $0x268] sm:$0xf] %vm1952, %v3835
        %3920 = vst.msk [vmem:[#allocation3 + $0x274] sm:$0xf] %vm1952, %v3836
        %3921 = vst.msk [vmem:[#allocation3 + $0x280] sm:$0xf] %vm1952, %v3837
        %3922 = vst.msk [vmem:[#allocation3 + $0x28c] sm:$0xf] %vm1952, %v3838
        %3923 = vst.msk [vmem:[#allocation3 + $0x298] sm:$0xf] %vm1952, %v3839
        %3924 = vst.msk [vmem:[#allocation3 + $0x2a4] sm:$0xf] %vm1952, %v3840
        %3925 = vst.msk [vmem:[#allocation3 + $0x2b0] sm:$0xf] %vm1952, %v3841
        %3926 = vst.msk [vmem:[#allocation3 + $0x2bc] sm:$0xf] %vm1952, %v3842
        %3927 = vst.msk [vmem:[#allocation3 + $0x2c8] sm:$0xf] %vm1952, %v3843
        %3928 = vst.msk [vmem:[#allocation3 + $0x2d4] sm:$0xf] %vm1952, %v3844
        %3929 = vst.msk [vmem:[#allocation3 + $0x2e0] sm:$0xf] %vm1952, %v3845
        %3930 = vst.msk [vmem:[#allocation3 + $0x2ec] sm:$0xf] %vm1952, %v3846
        %3931 = vst.msk [vmem:[#allocation3 + $0x2f8] sm:$0xf] %vm1952, %v3847
        %3932 = vst.msk [vmem:[#allocation3 + $0x304] sm:$0xf] %vm1952, %v3848
        %3933 = vst.msk [vmem:[#allocation3 + $0x310] sm:$0xf] %vm1952, %v3849
        %3934 = vst.msk [vmem:[#allocation3 + $0x31c] sm:$0xf] %vm1952, %v3850
        %3935 = vst.msk [vmem:[#allocation3 + $0x328] sm:$0xf] %vm1952, %v3851
        %3936 = vst.msk [vmem:[#allocation3 + $0x334] sm:$0xf] %vm1952, %v3852
        %3937 = vst.msk [vmem:[#allocation3 + $0x340] sm:$0xf] %vm1952, %v3853
        %3938 = vst.msk [vmem:[#allocation3 + $0x34c] sm:$0xf] %vm1952, %v3854
        %3939 = vst.msk [vmem:[#allocation3 + $0x358] sm:$0xf] %vm1952, %v3855
        %3940 = vst.msk [vmem:[#allocation3 + $0x364] sm:$0xf] %vm1952, %v3856
        %3941 = vst.msk [vmem:[#allocation3 + $0x370] sm:$0xf] %vm1952, %v3857
        %3942 = vst.msk [vmem:[#allocation3 + $0x37c] sm:$0xf] %vm1952, %v3858
        %3943 = vst.msk [vmem:[#allocation3 + $0x388] sm:$0xf] %vm1952, %v3859
        %3944 = vst.msk [vmem:[#allocation3 + $0x394] sm:$0xf] %vm1952, %v3860
        %3945 = vst.msk [vmem:[#allocation3 + $0x3a0] sm:$0xf] %vm1952, %v3861
        %3946 = vst.msk [vmem:[#allocation3 + $0x3ac] sm:$0xf] %vm1952, %v3862
        %3947 = vst.msk [vmem:[#allocation3 + $0x3b8] sm:$0xf] %vm1952, %v3863
        %3948 = vst.msk [vmem:[#allocation3 + $0x3c4] sm:$0xf] %vm1952, %v3864
        %3949 = vst.msk [vmem:[#allocation3 + $0x3d0] sm:$0xf] %vm1952, %v3865
        %3950 = vst.msk [vmem:[#allocation3 + $0x3dc] sm:$0xf] %vm1952, %v3866
        %3951 = vst.msk [vmem:[#allocation3 + $0x3e8] sm:$0xf] %vm1952, %v3867
        %s3952 = scalar_lea.vmem [#allocation2], 88
        %v3953 = vld [vmem:[%s3952] sm:$0xf]
        %v3954 = vld [vmem:[%s3952 + $0x4] sm:$0xf]
        %v3955 = vld [vmem:[%s3952 + $0x8] sm:$0xf]
        %v3956 = vld [vmem:[%s3952 + $0xc] sm:$0xf]
        %v3957 = vld [vmem:[%s3952 + $0x10] sm:$0xf]
        %v3958 = vld [vmem:[%s3952 + $0x14] sm:$0xf]
        %v3959 = vld [vmem:[%s3952 + $0x18] sm:$0xf]
        %v3960 = vld [vmem:[%s3952 + $0x1c] sm:$0xf]
        %v3961 = vld [vmem:[%s3952 + $0x20] sm:$0xf]
        %v3962 = vld [vmem:[%s3952 + $0x24] sm:$0xf]
        %v3963 = vld [vmem:[%s3952 + $0x28] sm:$0xf]
        %v3964 = vld [vmem:[%s3952 + $0x2c] sm:$0xf]
        %v3965 = vld [vmem:[%s3952 + $0x30] sm:$0xf]
        %v3966 = vld [vmem:[%s3952 + $0x34] sm:$0xf]
        %v3967 = vld [vmem:[%s3952 + $0x48] sm:$0xf]
        %v3968 = vld [vmem:[%s3952 + $0x4c] sm:$0xf]
        %v3969 = vld [vmem:[%s3952 + $0x50] sm:$0xf]
        %v3970 = vld [vmem:[%s3952 + $0x54] sm:$0xf]
        %v3971 = vld [vmem:[%s3952 + $0x58] sm:$0xf]
        %v3972 = vld [vmem:[%s3952 + $0x5c] sm:$0xf]
        %v3973 = vld [vmem:[%s3952 + $0x60] sm:$0xf]
        %v3974 = vld [vmem:[%s3952 + $0x64] sm:$0xf]
        %v3975 = vld [vmem:[%s3952 + $0x68] sm:$0xf]
        %v3976 = vld [vmem:[%s3952 + $0x6c] sm:$0xf]
        %v3977 = vld [vmem:[%s3952 + $0x70] sm:$0xf]
        %v3978 = vld [vmem:[%s3952 + $0x74] sm:$0xf]
        %v3979 = vld [vmem:[%s3952 + $0x78] sm:$0xf]
        %v3980 = vld [vmem:[%s3952 + $0x7c] sm:$0xf]
        %v3981 = vld [vmem:[%s3952 + $0x90] sm:$0xf]
        %v3982 = vld [vmem:[%s3952 + $0x94] sm:$0xf]
        %v3983 = vld [vmem:[%s3952 + $0x98] sm:$0xf]
        %v3984 = vld [vmem:[%s3952 + $0x9c] sm:$0xf]
        %v3985 = vld [vmem:[%s3952 + $0xa0] sm:$0xf]
        %v3986 = vld [vmem:[%s3952 + $0xa4] sm:$0xf]
        %v3987 = vld [vmem:[%s3952 + $0xa8] sm:$0xf]
        %v3988 = vld [vmem:[%s3952 + $0xac] sm:$0xf]
        %v3989 = vld [vmem:[%s3952 + $0xb0] sm:$0xf]
        %v3990 = vld [vmem:[%s3952 + $0xb4] sm:$0xf]
        %v3991 = vld [vmem:[%s3952 + $0xb8] sm:$0xf]
        %v3992 = vld [vmem:[%s3952 + $0xbc] sm:$0xf]
        %v3993 = vld [vmem:[%s3952 + $0xc0] sm:$0xf]
        %v3994 = vld [vmem:[%s3952 + $0xc4] sm:$0xf]
        %v3995 = vld [vmem:[%s3952 + $0xd8] sm:$0xf]
        %v3996 = vld [vmem:[%s3952 + $0xdc] sm:$0xf]
        %v3997 = vld [vmem:[%s3952 + $0xe0] sm:$0xf]
        %v3998 = vld [vmem:[%s3952 + $0xe4] sm:$0xf]
        %v3999 = vld [vmem:[%s3952 + $0xe8] sm:$0xf]
        %v4000 = vld [vmem:[%s3952 + $0xec] sm:$0xf]
        %v4001 = vld [vmem:[%s3952 + $0xf0] sm:$0xf]
        %v4002 = vld [vmem:[%s3952 + $0xf4] sm:$0xf]
        %v4003 = vld [vmem:[%s3952 + $0xf8] sm:$0xf]
        %v4004 = vld [vmem:[%s3952 + $0xfc] sm:$0xf]
        %v4005 = vld [vmem:[%s3952 + $0x100] sm:$0xf]
        %v4006 = vld [vmem:[%s3952 + $0x104] sm:$0xf]
        %v4007 = vld [vmem:[%s3952 + $0x108] sm:$0xf]
        %v4008 = vld [vmem:[%s3952 + $0x10c] sm:$0xf]
        %v4009 = vld [vmem:[%s3952 + $0x120] sm:$0xf]
        %v4010 = vld [vmem:[%s3952 + $0x124] sm:$0xf]
        %v4011 = vld [vmem:[%s3952 + $0x128] sm:$0xf]
        %v4012 = vld [vmem:[%s3952 + $0x12c] sm:$0xf]
        %v4013 = vld [vmem:[%s3952 + $0x130] sm:$0xf]
        %v4014 = vld [vmem:[%s3952 + $0x134] sm:$0xf]
        %v4015 = vld [vmem:[%s3952 + $0x138] sm:$0xf]
        %v4016 = vld [vmem:[%s3952 + $0x13c] sm:$0xf]
        %v4017 = vld [vmem:[%s3952 + $0x140] sm:$0xf]
        %v4018 = vld [vmem:[%s3952 + $0x144] sm:$0xf]
        %v4019 = vld [vmem:[%s3952 + $0x148] sm:$0xf]
        %v4020 = vld [vmem:[%s3952 + $0x14c] sm:$0xf]
        %v4021 = vld [vmem:[%s3952 + $0x150] sm:$0xf]
        %v4022 = vld [vmem:[%s3952 + $0x154] sm:$0xf]
        %v4023 = vld [vmem:[%s3952 + $0x168] sm:$0xf]
        %v4024 = vld [vmem:[%s3952 + $0x16c] sm:$0xf]
        %v4025 = vld [vmem:[%s3952 + $0x170] sm:$0xf]
        %v4026 = vld [vmem:[%s3952 + $0x174] sm:$0xf]
        %v4027 = vld [vmem:[%s3952 + $0x178] sm:$0xf]
        %v4028 = vld [vmem:[%s3952 + $0x17c] sm:$0xf]
        %v4029 = vld [vmem:[%s3952 + $0x180] sm:$0xf]
        %v4030 = vld [vmem:[%s3952 + $0x184] sm:$0xf]
        %v4031 = vld [vmem:[%s3952 + $0x188] sm:$0xf]
        %v4032 = vld [vmem:[%s3952 + $0x18c] sm:$0xf]
        %v4033 = vld [vmem:[%s3952 + $0x190] sm:$0xf]
        %v4034 = vld [vmem:[%s3952 + $0x194] sm:$0xf]
        %v4035 = vld [vmem:[%s3952 + $0x198] sm:$0xf]
        %v4036 = vld [vmem:[%s3952 + $0x19c] sm:$0xf]
        %4121 = vrot.lane.b32.xlu0 %v3953, 32
        %v4122 = vpop.permute.xlu0 %4121
        %4123 = vrot.lane.b32.xlu0 %v3954, 32
        %v4124 = vpop.permute.xlu0 %4123
        %4125 = vrot.lane.b32.xlu0 %v3955, 32
        %v4126 = vpop.permute.xlu0 %4125
        %4127 = vrot.lane.b32.xlu0 %v3956, 32
        %v4128 = vpop.permute.xlu0 %4127
        %4129 = vrot.lane.b32.xlu0 %v3957, 32
        %v4130 = vpop.permute.xlu0 %4129
        %4131 = vrot.lane.b32.xlu0 %v3958, 32
        %v4132 = vpop.permute.xlu0 %4131
        %4133 = vrot.lane.b32.xlu0 %v3959, 32
        %v4134 = vpop.permute.xlu0 %4133
        %4135 = vrot.lane.b32.xlu0 %v3960, 32
        %v4136 = vpop.permute.xlu0 %4135
        %4137 = vrot.lane.b32.xlu0 %v3961, 32
        %v4138 = vpop.permute.xlu0 %4137
        %4139 = vrot.lane.b32.xlu0 %v3962, 32
        %v4140 = vpop.permute.xlu0 %4139
        %4141 = vrot.lane.b32.xlu0 %v3963, 32
        %v4142 = vpop.permute.xlu0 %4141
        %4143 = vrot.lane.b32.xlu0 %v3964, 32
        %v4144 = vpop.permute.xlu0 %4143
        %4145 = vrot.lane.b32.xlu0 %v3965, 32
        %v4146 = vpop.permute.xlu0 %4145
        %4147 = vrot.lane.b32.xlu0 %v3966, 32
        %v4148 = vpop.permute.xlu0 %4147
        %4149 = vrot.lane.b32.xlu0 %v3967, 32
        %v4150 = vpop.permute.xlu0 %4149
        %4151 = vrot.lane.b32.xlu0 %v3968, 32
        %v4152 = vpop.permute.xlu0 %4151
        %4153 = vrot.lane.b32.xlu0 %v3969, 32
        %v4154 = vpop.permute.xlu0 %4153
        %4155 = vrot.lane.b32.xlu0 %v3970, 32
        %v4156 = vpop.permute.xlu0 %4155
        %4157 = vrot.lane.b32.xlu0 %v3971, 32
        %v4158 = vpop.permute.xlu0 %4157
        %4159 = vrot.lane.b32.xlu0 %v3972, 32
        %v4160 = vpop.permute.xlu0 %4159
        %4161 = vrot.lane.b32.xlu0 %v3973, 32
        %v4162 = vpop.permute.xlu0 %4161
        %4163 = vrot.lane.b32.xlu0 %v3974, 32
        %v4164 = vpop.permute.xlu0 %4163
        %4165 = vrot.lane.b32.xlu0 %v3975, 32
        %v4166 = vpop.permute.xlu0 %4165
        %4167 = vrot.lane.b32.xlu0 %v3976, 32
        %v4168 = vpop.permute.xlu0 %4167
        %4169 = vrot.lane.b32.xlu0 %v3977, 32
        %v4170 = vpop.permute.xlu0 %4169
        %4171 = vrot.lane.b32.xlu0 %v3978, 32
        %v4172 = vpop.permute.xlu0 %4171
        %4173 = vrot.lane.b32.xlu0 %v3979, 32
        %v4174 = vpop.permute.xlu0 %4173
        %4175 = vrot.lane.b32.xlu0 %v3980, 32
        %v4176 = vpop.permute.xlu0 %4175
        %4177 = vrot.lane.b32.xlu0 %v3981, 32
        %v4178 = vpop.permute.xlu0 %4177
        %4179 = vrot.lane.b32.xlu0 %v3982, 32
        %v4180 = vpop.permute.xlu0 %4179
        %4181 = vrot.lane.b32.xlu0 %v3983, 32
        %v4182 = vpop.permute.xlu0 %4181
        %4183 = vrot.lane.b32.xlu0 %v3984, 32
        %v4184 = vpop.permute.xlu0 %4183
        %4185 = vrot.lane.b32.xlu0 %v3985, 32
        %v4186 = vpop.permute.xlu0 %4185
        %4187 = vrot.lane.b32.xlu0 %v3986, 32
        %v4188 = vpop.permute.xlu0 %4187
        %4189 = vrot.lane.b32.xlu0 %v3987, 32
        %v4190 = vpop.permute.xlu0 %4189
        %4191 = vrot.lane.b32.xlu0 %v3988, 32
        %v4192 = vpop.permute.xlu0 %4191
        %4193 = vrot.lane.b32.xlu0 %v3989, 32
        %v4194 = vpop.permute.xlu0 %4193
        %4195 = vrot.lane.b32.xlu0 %v3990, 32
        %v4196 = vpop.permute.xlu0 %4195
        %4197 = vrot.lane.b32.xlu0 %v3991, 32
        %v4198 = vpop.permute.xlu0 %4197
        %4199 = vrot.lane.b32.xlu0 %v3992, 32
        %v4200 = vpop.permute.xlu0 %4199
        %4201 = vrot.lane.b32.xlu0 %v3993, 32
        %v4202 = vpop.permute.xlu0 %4201
        %4203 = vrot.lane.b32.xlu0 %v3994, 32
        %v4204 = vpop.permute.xlu0 %4203
        %4205 = vrot.lane.b32.xlu0 %v3995, 32
        %v4206 = vpop.permute.xlu0 %4205
        %4207 = vrot.lane.b32.xlu0 %v3996, 32
        %v4208 = vpop.permute.xlu0 %4207
        %4209 = vrot.lane.b32.xlu0 %v3997, 32
        %v4210 = vpop.permute.xlu0 %4209
        %4211 = vrot.lane.b32.xlu0 %v3998, 32
        %v4212 = vpop.permute.xlu0 %4211
        %4213 = vrot.lane.b32.xlu0 %v3999, 32
        %v4214 = vpop.permute.xlu0 %4213
        %4215 = vrot.lane.b32.xlu0 %v4000, 32
        %v4216 = vpop.permute.xlu0 %4215
        %4217 = vrot.lane.b32.xlu0 %v4001, 32
        %v4218 = vpop.permute.xlu0 %4217
        %4219 = vrot.lane.b32.xlu0 %v4002, 32
        %v4220 = vpop.permute.xlu0 %4219
        %4221 = vrot.lane.b32.xlu0 %v4003, 32
        %v4222 = vpop.permute.xlu0 %4221
        %4223 = vrot.lane.b32.xlu0 %v4004, 32
        %v4224 = vpop.permute.xlu0 %4223
        %4225 = vrot.lane.b32.xlu0 %v4005, 32
        %v4226 = vpop.permute.xlu0 %4225
        %4227 = vrot.lane.b32.xlu0 %v4006, 32
        %v4228 = vpop.permute.xlu0 %4227
        %4229 = vrot.lane.b32.xlu0 %v4007, 32
        %v4230 = vpop.permute.xlu0 %4229
        %4231 = vrot.lane.b32.xlu0 %v4008, 32
        %v4232 = vpop.permute.xlu0 %4231
        %4233 = vrot.lane.b32.xlu0 %v4009, 32
        %v4234 = vpop.permute.xlu0 %4233
        %4235 = vrot.lane.b32.xlu0 %v4010, 32
        %v4236 = vpop.permute.xlu0 %4235
        %4237 = vrot.lane.b32.xlu0 %v4011, 32
        %v4238 = vpop.permute.xlu0 %4237
        %4239 = vrot.lane.b32.xlu0 %v4012, 32
        %v4240 = vpop.permute.xlu0 %4239
        %4241 = vrot.lane.b32.xlu0 %v4013, 32
        %v4242 = vpop.permute.xlu0 %4241
        %4243 = vrot.lane.b32.xlu0 %v4014, 32
        %v4244 = vpop.permute.xlu0 %4243
        %4245 = vrot.lane.b32.xlu0 %v4015, 32
        %v4246 = vpop.permute.xlu0 %4245
        %4247 = vrot.lane.b32.xlu0 %v4016, 32
        %v4248 = vpop.permute.xlu0 %4247
        %4249 = vrot.lane.b32.xlu0 %v4017, 32
        %v4250 = vpop.permute.xlu0 %4249
        %4251 = vrot.lane.b32.xlu0 %v4018, 32
        %v4252 = vpop.permute.xlu0 %4251
        %4253 = vrot.lane.b32.xlu0 %v4019, 32
        %v4254 = vpop.permute.xlu0 %4253
        %4255 = vrot.lane.b32.xlu0 %v4020, 32
        %v4256 = vpop.permute.xlu0 %4255
        %4257 = vrot.lane.b32.xlu0 %v4021, 32
        %v4258 = vpop.permute.xlu0 %4257
        %4259 = vrot.lane.b32.xlu0 %v4022, 32
        %v4260 = vpop.permute.xlu0 %4259
        %4261 = vrot.lane.b32.xlu0 %v4023, 32
        %v4262 = vpop.permute.xlu0 %4261
        %4263 = vrot.lane.b32.xlu0 %v4024, 32
        %v4264 = vpop.permute.xlu0 %4263
        %4265 = vrot.lane.b32.xlu0 %v4025, 32
        %v4266 = vpop.permute.xlu0 %4265
        %4267 = vrot.lane.b32.xlu0 %v4026, 32
        %v4268 = vpop.permute.xlu0 %4267
        %4269 = vrot.lane.b32.xlu0 %v4027, 32
        %v4270 = vpop.permute.xlu0 %4269
        %4271 = vrot.lane.b32.xlu0 %v4028, 32
        %v4272 = vpop.permute.xlu0 %4271
        %4273 = vrot.lane.b32.xlu0 %v4029, 32
        %v4274 = vpop.permute.xlu0 %4273
        %4275 = vrot.lane.b32.xlu0 %v4030, 32
        %v4276 = vpop.permute.xlu0 %4275
        %4277 = vrot.lane.b32.xlu0 %v4031, 32
        %v4278 = vpop.permute.xlu0 %4277
        %4279 = vrot.lane.b32.xlu0 %v4032, 32
        %v4280 = vpop.permute.xlu0 %4279
        %4281 = vrot.lane.b32.xlu0 %v4033, 32
        %v4282 = vpop.permute.xlu0 %4281
        %4283 = vrot.lane.b32.xlu0 %v4034, 32
        %v4284 = vpop.permute.xlu0 %4283
        %4285 = vrot.lane.b32.xlu0 %v4035, 32
        %v4286 = vpop.permute.xlu0 %4285
        %4287 = vrot.lane.b32.xlu0 %v4036, 32
        %v4288 = vpop.permute.xlu0 %4287
        %4373 = vst.msk [vmem:[#allocation3 + $0x4] sm:$0xf] %vm2686, %v4122
        %4374 = vst.msk [vmem:[#allocation3 + $0x10] sm:$0xf] %vm2686, %v4124
        %4375 = vst.msk [vmem:[#allocation3 + $0x1c] sm:$0xf] %vm2686, %v4126
        %4376 = vst.msk [vmem:[#allocation3 + $0x28] sm:$0xf] %vm2686, %v4128
        %4377 = vst.msk [vmem:[#allocation3 + $0x34] sm:$0xf] %vm2686, %v4130
        %4378 = vst.msk [vmem:[#allocation3 + $0x40] sm:$0xf] %vm2686, %v4132
        %4379 = vst.msk [vmem:[#allocation3 + $0x4c] sm:$0xf] %vm2686, %v4134
        %4380 = vst.msk [vmem:[#allocation3 + $0x58] sm:$0xf] %vm2686, %v4136
        %4381 = vst.msk [vmem:[#allocation3 + $0x64] sm:$0xf] %vm2686, %v4138
        %4382 = vst.msk [vmem:[#allocation3 + $0x70] sm:$0xf] %vm2686, %v4140
        %4383 = vst.msk [vmem:[#allocation3 + $0x7c] sm:$0xf] %vm2686, %v4142
        %4384 = vst.msk [vmem:[#allocation3 + $0x88] sm:$0xf] %vm2686, %v4144
        %4385 = vst.msk [vmem:[#allocation3 + $0x94] sm:$0xf] %vm2686, %v4146
        %4386 = vst.msk [vmem:[#allocation3 + $0xa0] sm:$0xf] %vm2686, %v4148
        %4387 = vst.msk [vmem:[#allocation3 + $0xac] sm:$0xf] %vm2686, %v4150
        %4388 = vst.msk [vmem:[#allocation3 + $0xb8] sm:$0xf] %vm2686, %v4152
        %4389 = vst.msk [vmem:[#allocation3 + $0xc4] sm:$0xf] %vm2686, %v4154
        %4390 = vst.msk [vmem:[#allocation3 + $0xd0] sm:$0xf] %vm2686, %v4156
        %4391 = vst.msk [vmem:[#allocation3 + $0xdc] sm:$0xf] %vm2686, %v4158
        %4392 = vst.msk [vmem:[#allocation3 + $0xe8] sm:$0xf] %vm2686, %v4160
        %4393 = vst.msk [vmem:[#allocation3 + $0xf4] sm:$0xf] %vm2686, %v4162
        %4394 = vst.msk [vmem:[#allocation3 + $0x100] sm:$0xf] %vm2686, %v4164
        %4395 = vst.msk [vmem:[#allocation3 + $0x10c] sm:$0xf] %vm2686, %v4166
        %4396 = vst.msk [vmem:[#allocation3 + $0x118] sm:$0xf] %vm2686, %v4168
        %4397 = vst.msk [vmem:[#allocation3 + $0x124] sm:$0xf] %vm2686, %v4170
        %4398 = vst.msk [vmem:[#allocation3 + $0x130] sm:$0xf] %vm2686, %v4172
        %4399 = vst.msk [vmem:[#allocation3 + $0x13c] sm:$0xf] %vm2686, %v4174
        %4400 = vst.msk [vmem:[#allocation3 + $0x148] sm:$0xf] %vm2686, %v4176
        %4401 = vst.msk [vmem:[#allocation3 + $0x154] sm:$0xf] %vm2686, %v4178
        %4402 = vst.msk [vmem:[#allocation3 + $0x160] sm:$0xf] %vm2686, %v4180
        %4403 = vst.msk [vmem:[#allocation3 + $0x16c] sm:$0xf] %vm2686, %v4182
        %4404 = vst.msk [vmem:[#allocation3 + $0x178] sm:$0xf] %vm2686, %v4184
        %4405 = vst.msk [vmem:[#allocation3 + $0x184] sm:$0xf] %vm2686, %v4186
        %4406 = vst.msk [vmem:[#allocation3 + $0x190] sm:$0xf] %vm2686, %v4188
        %4407 = vst.msk [vmem:[#allocation3 + $0x19c] sm:$0xf] %vm2686, %v4190
        %4408 = vst.msk [vmem:[#allocation3 + $0x1a8] sm:$0xf] %vm2686, %v4192
        %4409 = vst.msk [vmem:[#allocation3 + $0x1b4] sm:$0xf] %vm2686, %v4194
        %4410 = vst.msk [vmem:[#allocation3 + $0x1c0] sm:$0xf] %vm2686, %v4196
        %4411 = vst.msk [vmem:[#allocation3 + $0x1cc] sm:$0xf] %vm2686, %v4198
        %4412 = vst.msk [vmem:[#allocation3 + $0x1d8] sm:$0xf] %vm2686, %v4200
        %4413 = vst.msk [vmem:[#allocation3 + $0x1e4] sm:$0xf] %vm2686, %v4202
        %4414 = vst.msk [vmem:[#allocation3 + $0x1f0] sm:$0xf] %vm2686, %v4204
        %4415 = vst.msk [vmem:[#allocation3 + $0x1fc] sm:$0xf] %vm2686, %v4206
        %4416 = vst.msk [vmem:[#allocation3 + $0x208] sm:$0xf] %vm2686, %v4208
        %4417 = vst.msk [vmem:[#allocation3 + $0x214] sm:$0xf] %vm2686, %v4210
        %4418 = vst.msk [vmem:[#allocation3 + $0x220] sm:$0xf] %vm2686, %v4212
        %4419 = vst.msk [vmem:[#allocation3 + $0x22c] sm:$0xf] %vm2686, %v4214
        %4420 = vst.msk [vmem:[#allocation3 + $0x238] sm:$0xf] %vm2686, %v4216
        %4421 = vst.msk [vmem:[#allocation3 + $0x244] sm:$0xf] %vm2686, %v4218
        %4422 = vst.msk [vmem:[#allocation3 + $0x250] sm:$0xf] %vm2686, %v4220
        %4423 = vst.msk [vmem:[#allocation3 + $0x25c] sm:$0xf] %vm2686, %v4222
        %4424 = vst.msk [vmem:[#allocation3 + $0x268] sm:$0xf] %vm2686, %v4224
        %4425 = vst.msk [vmem:[#allocation3 + $0x274] sm:$0xf] %vm2686, %v4226
        %4426 = vst.msk [vmem:[#allocation3 + $0x280] sm:$0xf] %vm2686, %v4228
        %4427 = vst.msk [vmem:[#allocation3 + $0x28c] sm:$0xf] %vm2686, %v4230
        %4428 = vst.msk [vmem:[#allocation3 + $0x298] sm:$0xf] %vm2686, %v4232
        %4429 = vst.msk [vmem:[#allocation3 + $0x2a4] sm:$0xf] %vm2686, %v4234
        %4430 = vst.msk [vmem:[#allocation3 + $0x2b0] sm:$0xf] %vm2686, %v4236
        %4431 = vst.msk [vmem:[#allocation3 + $0x2bc] sm:$0xf] %vm2686, %v4238
        %4432 = vst.msk [vmem:[#allocation3 + $0x2c8] sm:$0xf] %vm2686, %v4240
        %4433 = vst.msk [vmem:[#allocation3 + $0x2d4] sm:$0xf] %vm2686, %v4242
        %4434 = vst.msk [vmem:[#allocation3 + $0x2e0] sm:$0xf] %vm2686, %v4244
        %4435 = vst.msk [vmem:[#allocation3 + $0x2ec] sm:$0xf] %vm2686, %v4246
        %4436 = vst.msk [vmem:[#allocation3 + $0x2f8] sm:$0xf] %vm2686, %v4248
        %4437 = vst.msk [vmem:[#allocation3 + $0x304] sm:$0xf] %vm2686, %v4250
        %4438 = vst.msk [vmem:[#allocation3 + $0x310] sm:$0xf] %vm2686, %v4252
        %4439 = vst.msk [vmem:[#allocation3 + $0x31c] sm:$0xf] %vm2686, %v4254
        %4440 = vst.msk [vmem:[#allocation3 + $0x328] sm:$0xf] %vm2686, %v4256
        %4441 = vst.msk [vmem:[#allocation3 + $0x334] sm:$0xf] %vm2686, %v4258
        %4442 = vst.msk [vmem:[#allocation3 + $0x340] sm:$0xf] %vm2686, %v4260
        %4443 = vst.msk [vmem:[#allocation3 + $0x34c] sm:$0xf] %vm2686, %v4262
        %4444 = vst.msk [vmem:[#allocation3 + $0x358] sm:$0xf] %vm2686, %v4264
        %4445 = vst.msk [vmem:[#allocation3 + $0x364] sm:$0xf] %vm2686, %v4266
        %4446 = vst.msk [vmem:[#allocation3 + $0x370] sm:$0xf] %vm2686, %v4268
        %4447 = vst.msk [vmem:[#allocation3 + $0x37c] sm:$0xf] %vm2686, %v4270
        %4448 = vst.msk [vmem:[#allocation3 + $0x388] sm:$0xf] %vm2686, %v4272
        %4449 = vst.msk [vmem:[#allocation3 + $0x394] sm:$0xf] %vm2686, %v4274
        %4450 = vst.msk [vmem:[#allocation3 + $0x3a0] sm:$0xf] %vm2686, %v4276
        %4451 = vst.msk [vmem:[#allocation3 + $0x3ac] sm:$0xf] %vm2686, %v4278
        %4452 = vst.msk [vmem:[#allocation3 + $0x3b8] sm:$0xf] %vm2686, %v4280
        %4453 = vst.msk [vmem:[#allocation3 + $0x3c4] sm:$0xf] %vm2686, %v4282
        %4454 = vst.msk [vmem:[#allocation3 + $0x3d0] sm:$0xf] %vm2686, %v4284
        %4455 = vst.msk [vmem:[#allocation3 + $0x3dc] sm:$0xf] %vm2686, %v4286
        %4456 = vst.msk [vmem:[#allocation3 + $0x3e8] sm:$0xf] %vm2686, %v4288
        %s4457 = scalar_lea.vmem [#allocation2], 144
        %v4458 = vld [vmem:[%s4457] sm:$0xf]
        %v4459 = vld [vmem:[%s4457 + $0x4] sm:$0xf]
        %v4460 = vld [vmem:[%s4457 + $0x8] sm:$0xf]
        %v4461 = vld [vmem:[%s4457 + $0xc] sm:$0xf]
        %v4462 = vld [vmem:[%s4457 + $0x10] sm:$0xf]
        %v4463 = vld [vmem:[%s4457 + $0x14] sm:$0xf]
        %v4464 = vld [vmem:[%s4457 + $0x18] sm:$0xf]
        %v4465 = vld [vmem:[%s4457 + $0x1c] sm:$0xf]
        %v4466 = vld [vmem:[%s4457 + $0x20] sm:$0xf]
        %v4467 = vld [vmem:[%s4457 + $0x24] sm:$0xf]
        %v4468 = vld [vmem:[%s4457 + $0x28] sm:$0xf]
        %v4469 = vld [vmem:[%s4457 + $0x2c] sm:$0xf]
        %v4470 = vld [vmem:[%s4457 + $0x30] sm:$0xf]
        %v4471 = vld [vmem:[%s4457 + $0x34] sm:$0xf]
        %v4472 = vld [vmem:[%s4457 + $0x48] sm:$0xf]
        %v4473 = vld [vmem:[%s4457 + $0x4c] sm:$0xf]
        %v4474 = vld [vmem:[%s4457 + $0x50] sm:$0xf]
        %v4475 = vld [vmem:[%s4457 + $0x54] sm:$0xf]
        %v4476 = vld [vmem:[%s4457 + $0x58] sm:$0xf]
        %v4477 = vld [vmem:[%s4457 + $0x5c] sm:$0xf]
        %v4478 = vld [vmem:[%s4457 + $0x60] sm:$0xf]
        %v4479 = vld [vmem:[%s4457 + $0x64] sm:$0xf]
        %v4480 = vld [vmem:[%s4457 + $0x68] sm:$0xf]
        %v4481 = vld [vmem:[%s4457 + $0x6c] sm:$0xf]
        %v4482 = vld [vmem:[%s4457 + $0x70] sm:$0xf]
        %v4483 = vld [vmem:[%s4457 + $0x74] sm:$0xf]
        %v4484 = vld [vmem:[%s4457 + $0x78] sm:$0xf]
        %v4485 = vld [vmem:[%s4457 + $0x7c] sm:$0xf]
        %v4486 = vld [vmem:[%s4457 + $0x90] sm:$0xf]
        %v4487 = vld [vmem:[%s4457 + $0x94] sm:$0xf]
        %v4488 = vld [vmem:[%s4457 + $0x98] sm:$0xf]
        %v4489 = vld [vmem:[%s4457 + $0x9c] sm:$0xf]
        %v4490 = vld [vmem:[%s4457 + $0xa0] sm:$0xf]
        %v4491 = vld [vmem:[%s4457 + $0xa4] sm:$0xf]
        %v4492 = vld [vmem:[%s4457 + $0xa8] sm:$0xf]
        %v4493 = vld [vmem:[%s4457 + $0xac] sm:$0xf]
        %v4494 = vld [vmem:[%s4457 + $0xb0] sm:$0xf]
        %v4495 = vld [vmem:[%s4457 + $0xb4] sm:$0xf]
        %v4496 = vld [vmem:[%s4457 + $0xb8] sm:$0xf]
        %v4497 = vld [vmem:[%s4457 + $0xbc] sm:$0xf]
        %v4498 = vld [vmem:[%s4457 + $0xc0] sm:$0xf]
        %v4499 = vld [vmem:[%s4457 + $0xc4] sm:$0xf]
        %v4500 = vld [vmem:[%s4457 + $0xd8] sm:$0xf]
        %v4501 = vld [vmem:[%s4457 + $0xdc] sm:$0xf]
        %v4502 = vld [vmem:[%s4457 + $0xe0] sm:$0xf]
        %v4503 = vld [vmem:[%s4457 + $0xe4] sm:$0xf]
        %v4504 = vld [vmem:[%s4457 + $0xe8] sm:$0xf]
        %v4505 = vld [vmem:[%s4457 + $0xec] sm:$0xf]
        %v4506 = vld [vmem:[%s4457 + $0xf0] sm:$0xf]
        %v4507 = vld [vmem:[%s4457 + $0xf4] sm:$0xf]
        %v4508 = vld [vmem:[%s4457 + $0xf8] sm:$0xf]
        %v4509 = vld [vmem:[%s4457 + $0xfc] sm:$0xf]
        %v4510 = vld [vmem:[%s4457 + $0x100] sm:$0xf]
        %v4511 = vld [vmem:[%s4457 + $0x104] sm:$0xf]
        %v4512 = vld [vmem:[%s4457 + $0x108] sm:$0xf]
        %v4513 = vld [vmem:[%s4457 + $0x10c] sm:$0xf]
        %v4514 = vld [vmem:[%s4457 + $0x120] sm:$0xf]
        %v4515 = vld [vmem:[%s4457 + $0x124] sm:$0xf]
        %v4516 = vld [vmem:[%s4457 + $0x128] sm:$0xf]
        %v4517 = vld [vmem:[%s4457 + $0x12c] sm:$0xf]
        %v4518 = vld [vmem:[%s4457 + $0x130] sm:$0xf]
        %v4519 = vld [vmem:[%s4457 + $0x134] sm:$0xf]
        %v4520 = vld [vmem:[%s4457 + $0x138] sm:$0xf]
        %v4521 = vld [vmem:[%s4457 + $0x13c] sm:$0xf]
        %v4522 = vld [vmem:[%s4457 + $0x140] sm:$0xf]
        %v4523 = vld [vmem:[%s4457 + $0x144] sm:$0xf]
        %v4524 = vld [vmem:[%s4457 + $0x148] sm:$0xf]
        %v4525 = vld [vmem:[%s4457 + $0x14c] sm:$0xf]
        %v4526 = vld [vmem:[%s4457 + $0x150] sm:$0xf]
        %v4527 = vld [vmem:[%s4457 + $0x154] sm:$0xf]
        %v4528 = vld [vmem:[%s4457 + $0x168] sm:$0xf]
        %v4529 = vld [vmem:[%s4457 + $0x16c] sm:$0xf]
        %v4530 = vld [vmem:[%s4457 + $0x170] sm:$0xf]
        %v4531 = vld [vmem:[%s4457 + $0x174] sm:$0xf]
        %v4532 = vld [vmem:[%s4457 + $0x178] sm:$0xf]
        %v4533 = vld [vmem:[%s4457 + $0x17c] sm:$0xf]
        %v4534 = vld [vmem:[%s4457 + $0x180] sm:$0xf]
        %v4535 = vld [vmem:[%s4457 + $0x184] sm:$0xf]
        %v4536 = vld [vmem:[%s4457 + $0x188] sm:$0xf]
        %v4537 = vld [vmem:[%s4457 + $0x18c] sm:$0xf]
        %v4538 = vld [vmem:[%s4457 + $0x190] sm:$0xf]
        %v4539 = vld [vmem:[%s4457 + $0x194] sm:$0xf]
        %v4540 = vld [vmem:[%s4457 + $0x198] sm:$0xf]
        %v4541 = vld [vmem:[%s4457 + $0x19c] sm:$0xf]
        %4626 = vrot.lane.b32.xlu0 %v4458, 64
        %v4627 = vpop.permute.xlu0 %4626
        %4628 = vrot.lane.b32.xlu0 %v4459, 64
        %v4629 = vpop.permute.xlu0 %4628
        %4630 = vrot.lane.b32.xlu0 %v4460, 64
        %v4631 = vpop.permute.xlu0 %4630
        %4632 = vrot.lane.b32.xlu0 %v4461, 64
        %v4633 = vpop.permute.xlu0 %4632
        %4634 = vrot.lane.b32.xlu0 %v4462, 64
        %v4635 = vpop.permute.xlu0 %4634
        %4636 = vrot.lane.b32.xlu0 %v4463, 64
        %v4637 = vpop.permute.xlu0 %4636
        %4638 = vrot.lane.b32.xlu0 %v4464, 64
        %v4639 = vpop.permute.xlu0 %4638
        %4640 = vrot.lane.b32.xlu0 %v4465, 64
        %v4641 = vpop.permute.xlu0 %4640
        %4642 = vrot.lane.b32.xlu0 %v4466, 64
        %v4643 = vpop.permute.xlu0 %4642
        %4644 = vrot.lane.b32.xlu0 %v4467, 64
        %v4645 = vpop.permute.xlu0 %4644
        %4646 = vrot.lane.b32.xlu0 %v4468, 64
        %v4647 = vpop.permute.xlu0 %4646
        %4648 = vrot.lane.b32.xlu0 %v4469, 64
        %v4649 = vpop.permute.xlu0 %4648
        %4650 = vrot.lane.b32.xlu0 %v4470, 64
        %v4651 = vpop.permute.xlu0 %4650
        %4652 = vrot.lane.b32.xlu0 %v4471, 64
        %v4653 = vpop.permute.xlu0 %4652
        %4654 = vrot.lane.b32.xlu0 %v4472, 64
        %v4655 = vpop.permute.xlu0 %4654
        %4656 = vrot.lane.b32.xlu0 %v4473, 64
        %v4657 = vpop.permute.xlu0 %4656
        %4658 = vrot.lane.b32.xlu0 %v4474, 64
        %v4659 = vpop.permute.xlu0 %4658
        %4660 = vrot.lane.b32.xlu0 %v4475, 64
        %v4661 = vpop.permute.xlu0 %4660
        %4662 = vrot.lane.b32.xlu0 %v4476, 64
        %v4663 = vpop.permute.xlu0 %4662
        %4664 = vrot.lane.b32.xlu0 %v4477, 64
        %v4665 = vpop.permute.xlu0 %4664
        %4666 = vrot.lane.b32.xlu0 %v4478, 64
        %v4667 = vpop.permute.xlu0 %4666
        %4668 = vrot.lane.b32.xlu0 %v4479, 64
        %v4669 = vpop.permute.xlu0 %4668
        %4670 = vrot.lane.b32.xlu0 %v4480, 64
        %v4671 = vpop.permute.xlu0 %4670
        %4672 = vrot.lane.b32.xlu0 %v4481, 64
        %v4673 = vpop.permute.xlu0 %4672
        %4674 = vrot.lane.b32.xlu0 %v4482, 64
        %v4675 = vpop.permute.xlu0 %4674
        %4676 = vrot.lane.b32.xlu0 %v4483, 64
        %v4677 = vpop.permute.xlu0 %4676
        %4678 = vrot.lane.b32.xlu0 %v4484, 64
        %v4679 = vpop.permute.xlu0 %4678
        %4680 = vrot.lane.b32.xlu0 %v4485, 64
        %v4681 = vpop.permute.xlu0 %4680
        %4682 = vrot.lane.b32.xlu0 %v4486, 64
        %v4683 = vpop.permute.xlu0 %4682
        %4684 = vrot.lane.b32.xlu0 %v4487, 64
        %v4685 = vpop.permute.xlu0 %4684
        %4686 = vrot.lane.b32.xlu0 %v4488, 64
        %v4687 = vpop.permute.xlu0 %4686
        %4688 = vrot.lane.b32.xlu0 %v4489, 64
        %v4689 = vpop.permute.xlu0 %4688
        %4690 = vrot.lane.b32.xlu0 %v4490, 64
        %v4691 = vpop.permute.xlu0 %4690
        %4692 = vrot.lane.b32.xlu0 %v4491, 64
        %v4693 = vpop.permute.xlu0 %4692
        %4694 = vrot.lane.b32.xlu0 %v4492, 64
        %v4695 = vpop.permute.xlu0 %4694
        %4696 = vrot.lane.b32.xlu0 %v4493, 64
        %v4697 = vpop.permute.xlu0 %4696
        %4698 = vrot.lane.b32.xlu0 %v4494, 64
        %v4699 = vpop.permute.xlu0 %4698
        %4700 = vrot.lane.b32.xlu0 %v4495, 64
        %v4701 = vpop.permute.xlu0 %4700
        %4702 = vrot.lane.b32.xlu0 %v4496, 64
        %v4703 = vpop.permute.xlu0 %4702
        %4704 = vrot.lane.b32.xlu0 %v4497, 64
        %v4705 = vpop.permute.xlu0 %4704
        %4706 = vrot.lane.b32.xlu0 %v4498, 64
        %v4707 = vpop.permute.xlu0 %4706
        %4708 = vrot.lane.b32.xlu0 %v4499, 64
        %v4709 = vpop.permute.xlu0 %4708
        %4710 = vrot.lane.b32.xlu0 %v4500, 64
        %v4711 = vpop.permute.xlu0 %4710
        %4712 = vrot.lane.b32.xlu0 %v4501, 64
        %v4713 = vpop.permute.xlu0 %4712
        %4714 = vrot.lane.b32.xlu0 %v4502, 64
        %v4715 = vpop.permute.xlu0 %4714
        %4716 = vrot.lane.b32.xlu0 %v4503, 64
        %v4717 = vpop.permute.xlu0 %4716
        %4718 = vrot.lane.b32.xlu0 %v4504, 64
        %v4719 = vpop.permute.xlu0 %4718
        %4720 = vrot.lane.b32.xlu0 %v4505, 64
        %v4721 = vpop.permute.xlu0 %4720
        %4722 = vrot.lane.b32.xlu0 %v4506, 64
        %v4723 = vpop.permute.xlu0 %4722
        %4724 = vrot.lane.b32.xlu0 %v4507, 64
        %v4725 = vpop.permute.xlu0 %4724
        %4726 = vrot.lane.b32.xlu0 %v4508, 64
        %v4727 = vpop.permute.xlu0 %4726
        %4728 = vrot.lane.b32.xlu0 %v4509, 64
        %v4729 = vpop.permute.xlu0 %4728
        %4730 = vrot.lane.b32.xlu0 %v4510, 64
        %v4731 = vpop.permute.xlu0 %4730
        %4732 = vrot.lane.b32.xlu0 %v4511, 64
        %v4733 = vpop.permute.xlu0 %4732
        %4734 = vrot.lane.b32.xlu0 %v4512, 64
        %v4735 = vpop.permute.xlu0 %4734
        %4736 = vrot.lane.b32.xlu0 %v4513, 64
        %v4737 = vpop.permute.xlu0 %4736
        %4738 = vrot.lane.b32.xlu0 %v4514, 64
        %v4739 = vpop.permute.xlu0 %4738
        %4740 = vrot.lane.b32.xlu0 %v4515, 64
        %v4741 = vpop.permute.xlu0 %4740
        %4742 = vrot.lane.b32.xlu0 %v4516, 64
        %v4743 = vpop.permute.xlu0 %4742
        %4744 = vrot.lane.b32.xlu0 %v4517, 64
        %v4745 = vpop.permute.xlu0 %4744
        %4746 = vrot.lane.b32.xlu0 %v4518, 64
        %v4747 = vpop.permute.xlu0 %4746
        %4748 = vrot.lane.b32.xlu0 %v4519, 64
        %v4749 = vpop.permute.xlu0 %4748
        %4750 = vrot.lane.b32.xlu0 %v4520, 64
        %v4751 = vpop.permute.xlu0 %4750
        %4752 = vrot.lane.b32.xlu0 %v4521, 64
        %v4753 = vpop.permute.xlu0 %4752
        %4754 = vrot.lane.b32.xlu0 %v4522, 64
        %v4755 = vpop.permute.xlu0 %4754
        %4756 = vrot.lane.b32.xlu0 %v4523, 64
        %v4757 = vpop.permute.xlu0 %4756
        %4758 = vrot.lane.b32.xlu0 %v4524, 64
        %v4759 = vpop.permute.xlu0 %4758
        %4760 = vrot.lane.b32.xlu0 %v4525, 64
        %v4761 = vpop.permute.xlu0 %4760
        %4762 = vrot.lane.b32.xlu0 %v4526, 64
        %v4763 = vpop.permute.xlu0 %4762
        %4764 = vrot.lane.b32.xlu0 %v4527, 64
        %v4765 = vpop.permute.xlu0 %4764
        %4766 = vrot.lane.b32.xlu0 %v4528, 64
        %v4767 = vpop.permute.xlu0 %4766
        %4768 = vrot.lane.b32.xlu0 %v4529, 64
        %v4769 = vpop.permute.xlu0 %4768
        %4770 = vrot.lane.b32.xlu0 %v4530, 64
        %v4771 = vpop.permute.xlu0 %4770
        %4772 = vrot.lane.b32.xlu0 %v4531, 64
        %v4773 = vpop.permute.xlu0 %4772
        %4774 = vrot.lane.b32.xlu0 %v4532, 64
        %v4775 = vpop.permute.xlu0 %4774
        %4776 = vrot.lane.b32.xlu0 %v4533, 64
        %v4777 = vpop.permute.xlu0 %4776
        %4778 = vrot.lane.b32.xlu0 %v4534, 64
        %v4779 = vpop.permute.xlu0 %4778
        %4780 = vrot.lane.b32.xlu0 %v4535, 64
        %v4781 = vpop.permute.xlu0 %4780
        %4782 = vrot.lane.b32.xlu0 %v4536, 64
        %v4783 = vpop.permute.xlu0 %4782
        %4784 = vrot.lane.b32.xlu0 %v4537, 64
        %v4785 = vpop.permute.xlu0 %4784
        %4786 = vrot.lane.b32.xlu0 %v4538, 64
        %v4787 = vpop.permute.xlu0 %4786
        %4788 = vrot.lane.b32.xlu0 %v4539, 64
        %v4789 = vpop.permute.xlu0 %4788
        %4790 = vrot.lane.b32.xlu0 %v4540, 64
        %v4791 = vpop.permute.xlu0 %4790
        %4792 = vrot.lane.b32.xlu0 %v4541, 64
        %v4793 = vpop.permute.xlu0 %4792
        %4878 = vst.msk [vmem:[#allocation3 + $0x4] sm:$0xf] %vm3192, %v4627
        %4879 = vst.msk [vmem:[#allocation3 + $0x10] sm:$0xf] %vm3192, %v4629
        %4880 = vst.msk [vmem:[#allocation3 + $0x1c] sm:$0xf] %vm3192, %v4631
        %4881 = vst.msk [vmem:[#allocation3 + $0x28] sm:$0xf] %vm3192, %v4633
        %4882 = vst.msk [vmem:[#allocation3 + $0x34] sm:$0xf] %vm3192, %v4635
        %4883 = vst.msk [vmem:[#allocation3 + $0x40] sm:$0xf] %vm3192, %v4637
        %4884 = vst.msk [vmem:[#allocation3 + $0x4c] sm:$0xf] %vm3192, %v4639
        %4885 = vst.msk [vmem:[#allocation3 + $0x58] sm:$0xf] %vm3192, %v4641
        %4886 = vst.msk [vmem:[#allocation3 + $0x64] sm:$0xf] %vm3192, %v4643
        %4887 = vst.msk [vmem:[#allocation3 + $0x70] sm:$0xf] %vm3192, %v4645
        %4888 = vst.msk [vmem:[#allocation3 + $0x7c] sm:$0xf] %vm3192, %v4647
        %4889 = vst.msk [vmem:[#allocation3 + $0x88] sm:$0xf] %vm3192, %v4649
        %4890 = vst.msk [vmem:[#allocation3 + $0x94] sm:$0xf] %vm3192, %v4651
        %4891 = vst.msk [vmem:[#allocation3 + $0xa0] sm:$0xf] %vm3192, %v4653
        %4892 = vst.msk [vmem:[#allocation3 + $0xac] sm:$0xf] %vm3192, %v4655
        %4893 = vst.msk [vmem:[#allocation3 + $0xb8] sm:$0xf] %vm3192, %v4657
        %4894 = vst.msk [vmem:[#allocation3 + $0xc4] sm:$0xf] %vm3192, %v4659
        %4895 = vst.msk [vmem:[#allocation3 + $0xd0] sm:$0xf] %vm3192, %v4661
        %4896 = vst.msk [vmem:[#allocation3 + $0xdc] sm:$0xf] %vm3192, %v4663
        %4897 = vst.msk [vmem:[#allocation3 + $0xe8] sm:$0xf] %vm3192, %v4665
        %4898 = vst.msk [vmem:[#allocation3 + $0xf4] sm:$0xf] %vm3192, %v4667
        %4899 = vst.msk [vmem:[#allocation3 + $0x100] sm:$0xf] %vm3192, %v4669
        %4900 = vst.msk [vmem:[#allocation3 + $0x10c] sm:$0xf] %vm3192, %v4671
        %4901 = vst.msk [vmem:[#allocation3 + $0x118] sm:$0xf] %vm3192, %v4673
        %4902 = vst.msk [vmem:[#allocation3 + $0x124] sm:$0xf] %vm3192, %v4675
        %4903 = vst.msk [vmem:[#allocation3 + $0x130] sm:$0xf] %vm3192, %v4677
        %4904 = vst.msk [vmem:[#allocation3 + $0x13c] sm:$0xf] %vm3192, %v4679
        %4905 = vst.msk [vmem:[#allocation3 + $0x148] sm:$0xf] %vm3192, %v4681
        %4906 = vst.msk [vmem:[#allocation3 + $0x154] sm:$0xf] %vm3192, %v4683
        %4907 = vst.msk [vmem:[#allocation3 + $0x160] sm:$0xf] %vm3192, %v4685
        %4908 = vst.msk [vmem:[#allocation3 + $0x16c] sm:$0xf] %vm3192, %v4687
        %4909 = vst.msk [vmem:[#allocation3 + $0x178] sm:$0xf] %vm3192, %v4689
        %4910 = vst.msk [vmem:[#allocation3 + $0x184] sm:$0xf] %vm3192, %v4691
        %4911 = vst.msk [vmem:[#allocation3 + $0x190] sm:$0xf] %vm3192, %v4693
        %4912 = vst.msk [vmem:[#allocation3 + $0x19c] sm:$0xf] %vm3192, %v4695
        %4913 = vst.msk [vmem:[#allocation3 + $0x1a8] sm:$0xf] %vm3192, %v4697
        %4914 = vst.msk [vmem:[#allocation3 + $0x1b4] sm:$0xf] %vm3192, %v4699
        %4915 = vst.msk [vmem:[#allocation3 + $0x1c0] sm:$0xf] %vm3192, %v4701
        %4916 = vst.msk [vmem:[#allocation3 + $0x1cc] sm:$0xf] %vm3192, %v4703
        %4917 = vst.msk [vmem:[#allocation3 + $0x1d8] sm:$0xf] %vm3192, %v4705
        %4918 = vst.msk [vmem:[#allocation3 + $0x1e4] sm:$0xf] %vm3192, %v4707
        %4919 = vst.msk [vmem:[#allocation3 + $0x1f0] sm:$0xf] %vm3192, %v4709
        %4920 = vst.msk [vmem:[#allocation3 + $0x1fc] sm:$0xf] %vm3192, %v4711
        %4921 = vst.msk [vmem:[#allocation3 + $0x208] sm:$0xf] %vm3192, %v4713
        %4922 = vst.msk [vmem:[#allocation3 + $0x214] sm:$0xf] %vm3192, %v4715
        %4923 = vst.msk [vmem:[#allocation3 + $0x220] sm:$0xf] %vm3192, %v4717
        %4924 = vst.msk [vmem:[#allocation3 + $0x22c] sm:$0xf] %vm3192, %v4719
        %4925 = vst.msk [vmem:[#allocation3 + $0x238] sm:$0xf] %vm3192, %v4721
        %4926 = vst.msk [vmem:[#allocation3 + $0x244] sm:$0xf] %vm3192, %v4723
        %4927 = vst.msk [vmem:[#allocation3 + $0x250] sm:$0xf] %vm3192, %v4725
        %4928 = vst.msk [vmem:[#allocation3 + $0x25c] sm:$0xf] %vm3192, %v4727
        %4929 = vst.msk [vmem:[#allocation3 + $0x268] sm:$0xf] %vm3192, %v4729
        %4930 = vst.msk [vmem:[#allocation3 + $0x274] sm:$0xf] %vm3192, %v4731
        %4931 = vst.msk [vmem:[#allocation3 + $0x280] sm:$0xf] %vm3192, %v4733
        %4932 = vst.msk [vmem:[#allocation3 + $0x28c] sm:$0xf] %vm3192, %v4735
        %4933 = vst.msk [vmem:[#allocation3 + $0x298] sm:$0xf] %vm3192, %v4737
        %4934 = vst.msk [vmem:[#allocation3 + $0x2a4] sm:$0xf] %vm3192, %v4739
        %4935 = vst.msk [vmem:[#allocation3 + $0x2b0] sm:$0xf] %vm3192, %v4741
        %4936 = vst.msk [vmem:[#allocation3 + $0x2bc] sm:$0xf] %vm3192, %v4743
        %4937 = vst.msk [vmem:[#allocation3 + $0x2c8] sm:$0xf] %vm3192, %v4745
        %4938 = vst.msk [vmem:[#allocation3 + $0x2d4] sm:$0xf] %vm3192, %v4747
        %4939 = vst.msk [vmem:[#allocation3 + $0x2e0] sm:$0xf] %vm3192, %v4749
        %4940 = vst.msk [vmem:[#allocation3 + $0x2ec] sm:$0xf] %vm3192, %v4751
        %4941 = vst.msk [vmem:[#allocation3 + $0x2f8] sm:$0xf] %vm3192, %v4753
        %4942 = vst.msk [vmem:[#allocation3 + $0x304] sm:$0xf] %vm3192, %v4755
        %4943 = vst.msk [vmem:[#allocation3 + $0x310] sm:$0xf] %vm3192, %v4757
        %4944 = vst.msk [vmem:[#allocation3 + $0x31c] sm:$0xf] %vm3192, %v4759
        %4945 = vst.msk [vmem:[#allocation3 + $0x328] sm:$0xf] %vm3192, %v4761
        %4946 = vst.msk [vmem:[#allocation3 + $0x334] sm:$0xf] %vm3192, %v4763
        %4947 = vst.msk [vmem:[#allocation3 + $0x340] sm:$0xf] %vm3192, %v4765
        %4948 = vst.msk [vmem:[#allocation3 + $0x34c] sm:$0xf] %vm3192, %v4767
        %4949 = vst.msk [vmem:[#allocation3 + $0x358] sm:$0xf] %vm3192, %v4769
        %4950 = vst.msk [vmem:[#allocation3 + $0x364] sm:$0xf] %vm3192, %v4771
        %4951 = vst.msk [vmem:[#allocation3 + $0x370] sm:$0xf] %vm3192, %v4773
        %4952 = vst.msk [vmem:[#allocation3 + $0x37c] sm:$0xf] %vm3192, %v4775
        %4953 = vst.msk [vmem:[#allocation3 + $0x388] sm:$0xf] %vm3192, %v4777
        %4954 = vst.msk [vmem:[#allocation3 + $0x394] sm:$0xf] %vm3192, %v4779
        %4955 = vst.msk [vmem:[#allocation3 + $0x3a0] sm:$0xf] %vm3192, %v4781
        %4956 = vst.msk [vmem:[#allocation3 + $0x3ac] sm:$0xf] %vm3192, %v4783
        %4957 = vst.msk [vmem:[#allocation3 + $0x3b8] sm:$0xf] %vm3192, %v4785
        %4958 = vst.msk [vmem:[#allocation3 + $0x3c4] sm:$0xf] %vm3192, %v4787
        %4959 = vst.msk [vmem:[#allocation3 + $0x3d0] sm:$0xf] %vm3192, %v4789
        %4960 = vst.msk [vmem:[#allocation3 + $0x3dc] sm:$0xf] %vm3192, %v4791
        %4961 = vst.msk [vmem:[#allocation3 + $0x3e8] sm:$0xf] %vm3192, %v4793
        %s4962 = scalar_lea.vmem [#allocation2], 152
        %v4963 = vld [vmem:[%s4962] sm:$0xf]
        %v4964 = vld [vmem:[%s4962 + $0x4] sm:$0xf]
        %v4965 = vld [vmem:[%s4962 + $0x8] sm:$0xf]
        %v4966 = vld [vmem:[%s4962 + $0xc] sm:$0xf]
        %v4967 = vld [vmem:[%s4962 + $0x10] sm:$0xf]
        %v4968 = vld [vmem:[%s4962 + $0x14] sm:$0xf]
        %v4969 = vld [vmem:[%s4962 + $0x18] sm:$0xf]
        %v4970 = vld [vmem:[%s4962 + $0x1c] sm:$0xf]
        %v4971 = vld [vmem:[%s4962 + $0x20] sm:$0xf]
        %v4972 = vld [vmem:[%s4962 + $0x24] sm:$0xf]
        %v4973 = vld [vmem:[%s4962 + $0x28] sm:$0xf]
        %v4974 = vld [vmem:[%s4962 + $0x2c] sm:$0xf]
        %v4975 = vld [vmem:[%s4962 + $0x30] sm:$0xf]
        %v4976 = vld [vmem:[%s4962 + $0x34] sm:$0xf]
        %v4977 = vld [vmem:[%s4962 + $0x48] sm:$0xf]
        %v4978 = vld [vmem:[%s4962 + $0x4c] sm:$0xf]
        %v4979 = vld [vmem:[%s4962 + $0x50] sm:$0xf]
        %v4980 = vld [vmem:[%s4962 + $0x54] sm:$0xf]
        %v4981 = vld [vmem:[%s4962 + $0x58] sm:$0xf]
        %v4982 = vld [vmem:[%s4962 + $0x5c] sm:$0xf]
        %v4983 = vld [vmem:[%s4962 + $0x60] sm:$0xf]
        %v4984 = vld [vmem:[%s4962 + $0x64] sm:$0xf]
        %v4985 = vld [vmem:[%s4962 + $0x68] sm:$0xf]
        %v4986 = vld [vmem:[%s4962 + $0x6c] sm:$0xf]
        %v4987 = vld [vmem:[%s4962 + $0x70] sm:$0xf]
        %v4988 = vld [vmem:[%s4962 + $0x74] sm:$0xf]
        %v4989 = vld [vmem:[%s4962 + $0x78] sm:$0xf]
        %v4990 = vld [vmem:[%s4962 + $0x7c] sm:$0xf]
        %v4991 = vld [vmem:[%s4962 + $0x90] sm:$0xf]
        %v4992 = vld [vmem:[%s4962 + $0x94] sm:$0xf]
        %v4993 = vld [vmem:[%s4962 + $0x98] sm:$0xf]
        %v4994 = vld [vmem:[%s4962 + $0x9c] sm:$0xf]
        %v4995 = vld [vmem:[%s4962 + $0xa0] sm:$0xf]
        %v4996 = vld [vmem:[%s4962 + $0xa4] sm:$0xf]
        %v4997 = vld [vmem:[%s4962 + $0xa8] sm:$0xf]
        %v4998 = vld [vmem:[%s4962 + $0xac] sm:$0xf]
        %v4999 = vld [vmem:[%s4962 + $0xb0] sm:$0xf]
        %v5000 = vld [vmem:[%s4962 + $0xb4] sm:$0xf]
        %v5001 = vld [vmem:[%s4962 + $0xb8] sm:$0xf]
        %v5002 = vld [vmem:[%s4962 + $0xbc] sm:$0xf]
        %v5003 = vld [vmem:[%s4962 + $0xc0] sm:$0xf]
        %v5004 = vld [vmem:[%s4962 + $0xc4] sm:$0xf]
        %v5005 = vld [vmem:[%s4962 + $0xd8] sm:$0xf]
        %v5006 = vld [vmem:[%s4962 + $0xdc] sm:$0xf]
        %v5007 = vld [vmem:[%s4962 + $0xe0] sm:$0xf]
        %v5008 = vld [vmem:[%s4962 + $0xe4] sm:$0xf]
        %v5009 = vld [vmem:[%s4962 + $0xe8] sm:$0xf]
        %v5010 = vld [vmem:[%s4962 + $0xec] sm:$0xf]
        %v5011 = vld [vmem:[%s4962 + $0xf0] sm:$0xf]
        %v5012 = vld [vmem:[%s4962 + $0xf4] sm:$0xf]
        %v5013 = vld [vmem:[%s4962 + $0xf8] sm:$0xf]
        %v5014 = vld [vmem:[%s4962 + $0xfc] sm:$0xf]
        %v5015 = vld [vmem:[%s4962 + $0x100] sm:$0xf]
        %v5016 = vld [vmem:[%s4962 + $0x104] sm:$0xf]
        %v5017 = vld [vmem:[%s4962 + $0x108] sm:$0xf]
        %v5018 = vld [vmem:[%s4962 + $0x10c] sm:$0xf]
        %v5019 = vld [vmem:[%s4962 + $0x120] sm:$0xf]
        %v5020 = vld [vmem:[%s4962 + $0x124] sm:$0xf]
        %v5021 = vld [vmem:[%s4962 + $0x128] sm:$0xf]
        %v5022 = vld [vmem:[%s4962 + $0x12c] sm:$0xf]
        %v5023 = vld [vmem:[%s4962 + $0x130] sm:$0xf]
        %v5024 = vld [vmem:[%s4962 + $0x134] sm:$0xf]
        %v5025 = vld [vmem:[%s4962 + $0x138] sm:$0xf]
        %v5026 = vld [vmem:[%s4962 + $0x13c] sm:$0xf]
        %v5027 = vld [vmem:[%s4962 + $0x140] sm:$0xf]
        %v5028 = vld [vmem:[%s4962 + $0x144] sm:$0xf]
        %v5029 = vld [vmem:[%s4962 + $0x148] sm:$0xf]
        %v5030 = vld [vmem:[%s4962 + $0x14c] sm:$0xf]
        %v5031 = vld [vmem:[%s4962 + $0x150] sm:$0xf]
        %v5032 = vld [vmem:[%s4962 + $0x154] sm:$0xf]
        %v5033 = vld [vmem:[%s4962 + $0x168] sm:$0xf]
        %v5034 = vld [vmem:[%s4962 + $0x16c] sm:$0xf]
        %v5035 = vld [vmem:[%s4962 + $0x170] sm:$0xf]
        %v5036 = vld [vmem:[%s4962 + $0x174] sm:$0xf]
        %v5037 = vld [vmem:[%s4962 + $0x178] sm:$0xf]
        %v5038 = vld [vmem:[%s4962 + $0x17c] sm:$0xf]
        %v5039 = vld [vmem:[%s4962 + $0x180] sm:$0xf]
        %v5040 = vld [vmem:[%s4962 + $0x184] sm:$0xf]
        %v5041 = vld [vmem:[%s4962 + $0x188] sm:$0xf]
        %v5042 = vld [vmem:[%s4962 + $0x18c] sm:$0xf]
        %v5043 = vld [vmem:[%s4962 + $0x190] sm:$0xf]
        %v5044 = vld [vmem:[%s4962 + $0x194] sm:$0xf]
        %v5045 = vld [vmem:[%s4962 + $0x198] sm:$0xf]
        %v5046 = vld [vmem:[%s4962 + $0x19c] sm:$0xf]
        %5131 = vrot.lane.b32.xlu0 %v4963, 96
        %v5132 = vpop.permute.xlu0 %5131
        %5133 = vrot.lane.b32.xlu0 %v4964, 96
        %v5134 = vpop.permute.xlu0 %5133
        %5135 = vrot.lane.b32.xlu0 %v4965, 96
        %v5136 = vpop.permute.xlu0 %5135
        %5137 = vrot.lane.b32.xlu0 %v4966, 96
        %v5138 = vpop.permute.xlu0 %5137
        %5139 = vrot.lane.b32.xlu0 %v4967, 96
        %v5140 = vpop.permute.xlu0 %5139
        %5141 = vrot.lane.b32.xlu0 %v4968, 96
        %v5142 = vpop.permute.xlu0 %5141
        %5143 = vrot.lane.b32.xlu0 %v4969, 96
        %v5144 = vpop.permute.xlu0 %5143
        %5145 = vrot.lane.b32.xlu0 %v4970, 96
        %v5146 = vpop.permute.xlu0 %5145
        %5147 = vrot.lane.b32.xlu0 %v4971, 96
        %v5148 = vpop.permute.xlu0 %5147
        %5149 = vrot.lane.b32.xlu0 %v4972, 96
        %v5150 = vpop.permute.xlu0 %5149
        %5151 = vrot.lane.b32.xlu0 %v4973, 96
        %v5152 = vpop.permute.xlu0 %5151
        %5153 = vrot.lane.b32.xlu0 %v4974, 96
        %v5154 = vpop.permute.xlu0 %5153
        %5155 = vrot.lane.b32.xlu0 %v4975, 96
        %v5156 = vpop.permute.xlu0 %5155
        %5157 = vrot.lane.b32.xlu0 %v4976, 96
        %v5158 = vpop.permute.xlu0 %5157
        %5159 = vrot.lane.b32.xlu0 %v4977, 96
        %v5160 = vpop.permute.xlu0 %5159
        %5161 = vrot.lane.b32.xlu0 %v4978, 96
        %v5162 = vpop.permute.xlu0 %5161
        %5163 = vrot.lane.b32.xlu0 %v4979, 96
        %v5164 = vpop.permute.xlu0 %5163
        %5165 = vrot.lane.b32.xlu0 %v4980, 96
        %v5166 = vpop.permute.xlu0 %5165
        %5167 = vrot.lane.b32.xlu0 %v4981, 96
        %v5168 = vpop.permute.xlu0 %5167
        %5169 = vrot.lane.b32.xlu0 %v4982, 96
        %v5170 = vpop.permute.xlu0 %5169
        %5171 = vrot.lane.b32.xlu0 %v4983, 96
        %v5172 = vpop.permute.xlu0 %5171
        %5173 = vrot.lane.b32.xlu0 %v4984, 96
        %v5174 = vpop.permute.xlu0 %5173
        %5175 = vrot.lane.b32.xlu0 %v4985, 96
        %v5176 = vpop.permute.xlu0 %5175
        %5177 = vrot.lane.b32.xlu0 %v4986, 96
        %v5178 = vpop.permute.xlu0 %5177
        %5179 = vrot.lane.b32.xlu0 %v4987, 96
        %v5180 = vpop.permute.xlu0 %5179
        %5181 = vrot.lane.b32.xlu0 %v4988, 96
        %v5182 = vpop.permute.xlu0 %5181
        %5183 = vrot.lane.b32.xlu0 %v4989, 96
        %v5184 = vpop.permute.xlu0 %5183
        %5185 = vrot.lane.b32.xlu0 %v4990, 96
        %v5186 = vpop.permute.xlu0 %5185
        %5187 = vrot.lane.b32.xlu0 %v4991, 96
        %v5188 = vpop.permute.xlu0 %5187
        %5189 = vrot.lane.b32.xlu0 %v4992, 96
        %v5190 = vpop.permute.xlu0 %5189
        %5191 = vrot.lane.b32.xlu0 %v4993, 96
        %v5192 = vpop.permute.xlu0 %5191
        %5193 = vrot.lane.b32.xlu0 %v4994, 96
        %v5194 = vpop.permute.xlu0 %5193
        %5195 = vrot.lane.b32.xlu0 %v4995, 96
        %v5196 = vpop.permute.xlu0 %5195
        %5197 = vrot.lane.b32.xlu0 %v4996, 96
        %v5198 = vpop.permute.xlu0 %5197
        %5199 = vrot.lane.b32.xlu0 %v4997, 96
        %v5200 = vpop.permute.xlu0 %5199
        %5201 = vrot.lane.b32.xlu0 %v4998, 96
        %v5202 = vpop.permute.xlu0 %5201
        %5203 = vrot.lane.b32.xlu0 %v4999, 96
        %v5204 = vpop.permute.xlu0 %5203
        %5205 = vrot.lane.b32.xlu0 %v5000, 96
        %v5206 = vpop.permute.xlu0 %5205
        %5207 = vrot.lane.b32.xlu0 %v5001, 96
        %v5208 = vpop.permute.xlu0 %5207
        %5209 = vrot.lane.b32.xlu0 %v5002, 96
        %v5210 = vpop.permute.xlu0 %5209
        %5211 = vrot.lane.b32.xlu0 %v5003, 96
        %v5212 = vpop.permute.xlu0 %5211
        %5213 = vrot.lane.b32.xlu0 %v5004, 96
        %v5214 = vpop.permute.xlu0 %5213
        %5215 = vrot.lane.b32.xlu0 %v5005, 96
        %v5216 = vpop.permute.xlu0 %5215
        %5217 = vrot.lane.b32.xlu0 %v5006, 96
        %v5218 = vpop.permute.xlu0 %5217
        %5219 = vrot.lane.b32.xlu0 %v5007, 96
        %v5220 = vpop.permute.xlu0 %5219
        %5221 = vrot.lane.b32.xlu0 %v5008, 96
        %v5222 = vpop.permute.xlu0 %5221
        %5223 = vrot.lane.b32.xlu0 %v5009, 96
        %v5224 = vpop.permute.xlu0 %5223
        %5225 = vrot.lane.b32.xlu0 %v5010, 96
        %v5226 = vpop.permute.xlu0 %5225
        %5227 = vrot.lane.b32.xlu0 %v5011, 96
        %v5228 = vpop.permute.xlu0 %5227
        %5229 = vrot.lane.b32.xlu0 %v5012, 96
        %v5230 = vpop.permute.xlu0 %5229
        %5231 = vrot.lane.b32.xlu0 %v5013, 96
        %v5232 = vpop.permute.xlu0 %5231
        %5233 = vrot.lane.b32.xlu0 %v5014, 96
        %v5234 = vpop.permute.xlu0 %5233
        %5235 = vrot.lane.b32.xlu0 %v5015, 96
        %v5236 = vpop.permute.xlu0 %5235
        %5237 = vrot.lane.b32.xlu0 %v5016, 96
        %v5238 = vpop.permute.xlu0 %5237
        %5239 = vrot.lane.b32.xlu0 %v5017, 96
        %v5240 = vpop.permute.xlu0 %5239
        %5241 = vrot.lane.b32.xlu0 %v5018, 96
        %v5242 = vpop.permute.xlu0 %5241
        %5243 = vrot.lane.b32.xlu0 %v5019, 96
        %v5244 = vpop.permute.xlu0 %5243
        %5245 = vrot.lane.b32.xlu0 %v5020, 96
        %v5246 = vpop.permute.xlu0 %5245
        %5247 = vrot.lane.b32.xlu0 %v5021, 96
        %v5248 = vpop.permute.xlu0 %5247
        %5249 = vrot.lane.b32.xlu0 %v5022, 96
        %v5250 = vpop.permute.xlu0 %5249
        %5251 = vrot.lane.b32.xlu0 %v5023, 96
        %v5252 = vpop.permute.xlu0 %5251
        %5253 = vrot.lane.b32.xlu0 %v5024, 96
        %v5254 = vpop.permute.xlu0 %5253
        %5255 = vrot.lane.b32.xlu0 %v5025, 96
        %v5256 = vpop.permute.xlu0 %5255
        %5257 = vrot.lane.b32.xlu0 %v5026, 96
        %v5258 = vpop.permute.xlu0 %5257
        %5259 = vrot.lane.b32.xlu0 %v5027, 96
        %v5260 = vpop.permute.xlu0 %5259
        %5261 = vrot.lane.b32.xlu0 %v5028, 96
        %v5262 = vpop.permute.xlu0 %5261
        %5263 = vrot.lane.b32.xlu0 %v5029, 96
        %v5264 = vpop.permute.xlu0 %5263
        %5265 = vrot.lane.b32.xlu0 %v5030, 96
        %v5266 = vpop.permute.xlu0 %5265
        %5267 = vrot.lane.b32.xlu0 %v5031, 96
        %v5268 = vpop.permute.xlu0 %5267
        %5269 = vrot.lane.b32.xlu0 %v5032, 96
        %v5270 = vpop.permute.xlu0 %5269
        %5271 = vrot.lane.b32.xlu0 %v5033, 96
        %v5272 = vpop.permute.xlu0 %5271
        %5273 = vrot.lane.b32.xlu0 %v5034, 96
        %v5274 = vpop.permute.xlu0 %5273
        %5275 = vrot.lane.b32.xlu0 %v5035, 96
        %v5276 = vpop.permute.xlu0 %5275
        %5277 = vrot.lane.b32.xlu0 %v5036, 96
        %v5278 = vpop.permute.xlu0 %5277
        %5279 = vrot.lane.b32.xlu0 %v5037, 96
        %v5280 = vpop.permute.xlu0 %5279
        %5281 = vrot.lane.b32.xlu0 %v5038, 96
        %v5282 = vpop.permute.xlu0 %5281
        %5283 = vrot.lane.b32.xlu0 %v5039, 96
        %v5284 = vpop.permute.xlu0 %5283
        %5285 = vrot.lane.b32.xlu0 %v5040, 96
        %v5286 = vpop.permute.xlu0 %5285
        %5287 = vrot.lane.b32.xlu0 %v5041, 96
        %v5288 = vpop.permute.xlu0 %5287
        %5289 = vrot.lane.b32.xlu0 %v5042, 96
        %v5290 = vpop.permute.xlu0 %5289
        %5291 = vrot.lane.b32.xlu0 %v5043, 96
        %v5292 = vpop.permute.xlu0 %5291
        %5293 = vrot.lane.b32.xlu0 %v5044, 96
        %v5294 = vpop.permute.xlu0 %5293
        %5295 = vrot.lane.b32.xlu0 %v5045, 96
        %v5296 = vpop.permute.xlu0 %5295
        %5297 = vrot.lane.b32.xlu0 %v5046, 96
        %v5298 = vpop.permute.xlu0 %5297
        %5383 = vst.msk [vmem:[#allocation3 + $0x4] sm:$0xf] %vm3698, %v5132
        %5384 = vst.msk [vmem:[#allocation3 + $0x10] sm:$0xf] %vm3698, %v5134
        %5385 = vst.msk [vmem:[#allocation3 + $0x1c] sm:$0xf] %vm3698, %v5136
        %5386 = vst.msk [vmem:[#allocation3 + $0x28] sm:$0xf] %vm3698, %v5138
        %5387 = vst.msk [vmem:[#allocation3 + $0x34] sm:$0xf] %vm3698, %v5140
        %5388 = vst.msk [vmem:[#allocation3 + $0x40] sm:$0xf] %vm3698, %v5142
        %5389 = vst.msk [vmem:[#allocation3 + $0x4c] sm:$0xf] %vm3698, %v5144
        %5390 = vst.msk [vmem:[#allocation3 + $0x58] sm:$0xf] %vm3698, %v5146
        %5391 = vst.msk [vmem:[#allocation3 + $0x64] sm:$0xf] %vm3698, %v5148
        %5392 = vst.msk [vmem:[#allocation3 + $0x70] sm:$0xf] %vm3698, %v5150
        %5393 = vst.msk [vmem:[#allocation3 + $0x7c] sm:$0xf] %vm3698, %v5152
        %5394 = vst.msk [vmem:[#allocation3 + $0x88] sm:$0xf] %vm3698, %v5154
        %5395 = vst.msk [vmem:[#allocation3 + $0x94] sm:$0xf] %vm3698, %v5156
        %5396 = vst.msk [vmem:[#allocation3 + $0xa0] sm:$0xf] %vm3698, %v5158
        %5397 = vst.msk [vmem:[#allocation3 + $0xac] sm:$0xf] %vm3698, %v5160
        %5398 = vst.msk [vmem:[#allocation3 + $0xb8] sm:$0xf] %vm3698, %v5162
        %5399 = vst.msk [vmem:[#allocation3 + $0xc4] sm:$0xf] %vm3698, %v5164
        %5400 = vst.msk [vmem:[#allocation3 + $0xd0] sm:$0xf] %vm3698, %v5166
        %5401 = vst.msk [vmem:[#allocation3 + $0xdc] sm:$0xf] %vm3698, %v5168
        %5402 = vst.msk [vmem:[#allocation3 + $0xe8] sm:$0xf] %vm3698, %v5170
        %5403 = vst.msk [vmem:[#allocation3 + $0xf4] sm:$0xf] %vm3698, %v5172
        %5404 = vst.msk [vmem:[#allocation3 + $0x100] sm:$0xf] %vm3698, %v5174
        %5405 = vst.msk [vmem:[#allocation3 + $0x10c] sm:$0xf] %vm3698, %v5176
        %5406 = vst.msk [vmem:[#allocation3 + $0x118] sm:$0xf] %vm3698, %v5178
        %5407 = vst.msk [vmem:[#allocation3 + $0x124] sm:$0xf] %vm3698, %v5180
        %5408 = vst.msk [vmem:[#allocation3 + $0x130] sm:$0xf] %vm3698, %v5182
        %5409 = vst.msk [vmem:[#allocation3 + $0x13c] sm:$0xf] %vm3698, %v5184
        %5410 = vst.msk [vmem:[#allocation3 + $0x148] sm:$0xf] %vm3698, %v5186
        %5411 = vst.msk [vmem:[#allocation3 + $0x154] sm:$0xf] %vm3698, %v5188
        %5412 = vst.msk [vmem:[#allocation3 + $0x160] sm:$0xf] %vm3698, %v5190
        %5413 = vst.msk [vmem:[#allocation3 + $0x16c] sm:$0xf] %vm3698, %v5192
        %5414 = vst.msk [vmem:[#allocation3 + $0x178] sm:$0xf] %vm3698, %v5194
        %5415 = vst.msk [vmem:[#allocation3 + $0x184] sm:$0xf] %vm3698, %v5196
        %5416 = vst.msk [vmem:[#allocation3 + $0x190] sm:$0xf] %vm3698, %v5198
        %5417 = vst.msk [vmem:[#allocation3 + $0x19c] sm:$0xf] %vm3698, %v5200
        %5418 = vst.msk [vmem:[#allocation3 + $0x1a8] sm:$0xf] %vm3698, %v5202
        %5419 = vst.msk [vmem:[#allocation3 + $0x1b4] sm:$0xf] %vm3698, %v5204
        %5420 = vst.msk [vmem:[#allocation3 + $0x1c0] sm:$0xf] %vm3698, %v5206
        %5421 = vst.msk [vmem:[#allocation3 + $0x1cc] sm:$0xf] %vm3698, %v5208
        %5422 = vst.msk [vmem:[#allocation3 + $0x1d8] sm:$0xf] %vm3698, %v5210
        %5423 = vst.msk [vmem:[#allocation3 + $0x1e4] sm:$0xf] %vm3698, %v5212
        %5424 = vst.msk [vmem:[#allocation3 + $0x1f0] sm:$0xf] %vm3698, %v5214
        %5425 = vst.msk [vmem:[#allocation3 + $0x1fc] sm:$0xf] %vm3698, %v5216
        %5426 = vst.msk [vmem:[#allocation3 + $0x208] sm:$0xf] %vm3698, %v5218
        %5427 = vst.msk [vmem:[#allocation3 + $0x214] sm:$0xf] %vm3698, %v5220
        %5428 = vst.msk [vmem:[#allocation3 + $0x220] sm:$0xf] %vm3698, %v5222
        %5429 = vst.msk [vmem:[#allocation3 + $0x22c] sm:$0xf] %vm3698, %v5224
        %5430 = vst.msk [vmem:[#allocation3 + $0x238] sm:$0xf] %vm3698, %v5226
        %5431 = vst.msk [vmem:[#allocation3 + $0x244] sm:$0xf] %vm3698, %v5228
        %5432 = vst.msk [vmem:[#allocation3 + $0x250] sm:$0xf] %vm3698, %v5230
        %5433 = vst.msk [vmem:[#allocation3 + $0x25c] sm:$0xf] %vm3698, %v5232
        %5434 = vst.msk [vmem:[#allocation3 + $0x268] sm:$0xf] %vm3698, %v5234
        %5435 = vst.msk [vmem:[#allocation3 + $0x274] sm:$0xf] %vm3698, %v5236
        %5436 = vst.msk [vmem:[#allocation3 + $0x280] sm:$0xf] %vm3698, %v5238
        %5437 = vst.msk [vmem:[#allocation3 + $0x28c] sm:$0xf] %vm3698, %v5240
        %5438 = vst.msk [vmem:[#allocation3 + $0x298] sm:$0xf] %vm3698, %v5242
        %5439 = vst.msk [vmem:[#allocation3 + $0x2a4] sm:$0xf] %vm3698, %v5244
        %5440 = vst.msk [vmem:[#allocation3 + $0x2b0] sm:$0xf] %vm3698, %v5246
        %5441 = vst.msk [vmem:[#allocation3 + $0x2bc] sm:$0xf] %vm3698, %v5248
        %5442 = vst.msk [vmem:[#allocation3 + $0x2c8] sm:$0xf] %vm3698, %v5250
        %5443 = vst.msk [vmem:[#allocation3 + $0x2d4] sm:$0xf] %vm3698, %v5252
        %5444 = vst.msk [vmem:[#allocation3 + $0x2e0] sm:$0xf] %vm3698, %v5254
        %5445 = vst.msk [vmem:[#allocation3 + $0x2ec] sm:$0xf] %vm3698, %v5256
        %5446 = vst.msk [vmem:[#allocation3 + $0x2f8] sm:$0xf] %vm3698, %v5258
        %5447 = vst.msk [vmem:[#allocation3 + $0x304] sm:$0xf] %vm3698, %v5260
        %5448 = vst.msk [vmem:[#allocation3 + $0x310] sm:$0xf] %vm3698, %v5262
        %5449 = vst.msk [vmem:[#allocation3 + $0x31c] sm:$0xf] %vm3698, %v5264
        %5450 = vst.msk [vmem:[#allocation3 + $0x328] sm:$0xf] %vm3698, %v5266
        %5451 = vst.msk [vmem:[#allocation3 + $0x334] sm:$0xf] %vm3698, %v5268
        %5452 = vst.msk [vmem:[#allocation3 + $0x340] sm:$0xf] %vm3698, %v5270
        %5453 = vst.msk [vmem:[#allocation3 + $0x34c] sm:$0xf] %vm3698, %v5272
        %5454 = vst.msk [vmem:[#allocation3 + $0x358] sm:$0xf] %vm3698, %v5274
        %5455 = vst.msk [vmem:[#allocation3 + $0x364] sm:$0xf] %vm3698, %v5276
        %5456 = vst.msk [vmem:[#allocation3 + $0x370] sm:$0xf] %vm3698, %v5278
        %5457 = vst.msk [vmem:[#allocation3 + $0x37c] sm:$0xf] %vm3698, %v5280
        %5458 = vst.msk [vmem:[#allocation3 + $0x388] sm:$0xf] %vm3698, %v5282
        %5459 = vst.msk [vmem:[#allocation3 + $0x394] sm:$0xf] %vm3698, %v5284
        %5460 = vst.msk [vmem:[#allocation3 + $0x3a0] sm:$0xf] %vm3698, %v5286
        %5461 = vst.msk [vmem:[#allocation3 + $0x3ac] sm:$0xf] %vm3698, %v5288
        %5462 = vst.msk [vmem:[#allocation3 + $0x3b8] sm:$0xf] %vm3698, %v5290
        %5463 = vst.msk [vmem:[#allocation3 + $0x3c4] sm:$0xf] %vm3698, %v5292
        %5464 = vst.msk [vmem:[#allocation3 + $0x3d0] sm:$0xf] %vm3698, %v5294
        %5465 = vst.msk [vmem:[#allocation3 + $0x3dc] sm:$0xf] %vm3698, %v5296
        %5466 = vst.msk [vmem:[#allocation3 + $0x3e8] sm:$0xf] %vm3698, %v5298
        %s5467 = scalar_lea.vmem [#allocation2], 160
        %v5468 = vld [vmem:[%s5467] sm:$0xf]
        %v5469 = vld [vmem:[%s5467 + $0x4] sm:$0xf]
        %v5470 = vld [vmem:[%s5467 + $0x8] sm:$0xf]
        %v5471 = vld [vmem:[%s5467 + $0xc] sm:$0xf]
        %v5472 = vld [vmem:[%s5467 + $0x10] sm:$0xf]
        %v5473 = vld [vmem:[%s5467 + $0x14] sm:$0xf]
        %v5474 = vld [vmem:[%s5467 + $0x18] sm:$0xf]
        %v5475 = vld [vmem:[%s5467 + $0x1c] sm:$0xf]
        %v5476 = vld [vmem:[%s5467 + $0x20] sm:$0xf]
        %v5477 = vld [vmem:[%s5467 + $0x24] sm:$0xf]
        %v5478 = vld [vmem:[%s5467 + $0x28] sm:$0xf]
        %v5479 = vld [vmem:[%s5467 + $0x2c] sm:$0xf]
        %v5480 = vld [vmem:[%s5467 + $0x30] sm:$0xf]
        %v5481 = vld [vmem:[%s5467 + $0x34] sm:$0xf]
        %v5482 = vld [vmem:[%s5467 + $0x48] sm:$0xf]
        %v5483 = vld [vmem:[%s5467 + $0x4c] sm:$0xf]
        %v5484 = vld [vmem:[%s5467 + $0x50] sm:$0xf]
        %v5485 = vld [vmem:[%s5467 + $0x54] sm:$0xf]
        %v5486 = vld [vmem:[%s5467 + $0x58] sm:$0xf]
        %v5487 = vld [vmem:[%s5467 + $0x5c] sm:$0xf]
        %v5488 = vld [vmem:[%s5467 + $0x60] sm:$0xf]
        %v5489 = vld [vmem:[%s5467 + $0x64] sm:$0xf]
        %v5490 = vld [vmem:[%s5467 + $0x68] sm:$0xf]
        %v5491 = vld [vmem:[%s5467 + $0x6c] sm:$0xf]
        %v5492 = vld [vmem:[%s5467 + $0x70] sm:$0xf]
        %v5493 = vld [vmem:[%s5467 + $0x74] sm:$0xf]
        %v5494 = vld [vmem:[%s5467 + $0x78] sm:$0xf]
        %v5495 = vld [vmem:[%s5467 + $0x7c] sm:$0xf]
        %v5496 = vld [vmem:[%s5467 + $0x90] sm:$0xf]
        %v5497 = vld [vmem:[%s5467 + $0x94] sm:$0xf]
        %v5498 = vld [vmem:[%s5467 + $0x98] sm:$0xf]
        %v5499 = vld [vmem:[%s5467 + $0x9c] sm:$0xf]
        %v5500 = vld [vmem:[%s5467 + $0xa0] sm:$0xf]
        %v5501 = vld [vmem:[%s5467 + $0xa4] sm:$0xf]
        %v5502 = vld [vmem:[%s5467 + $0xa8] sm:$0xf]
        %v5503 = vld [vmem:[%s5467 + $0xac] sm:$0xf]
        %v5504 = vld [vmem:[%s5467 + $0xb0] sm:$0xf]
        %v5505 = vld [vmem:[%s5467 + $0xb4] sm:$0xf]
        %v5506 = vld [vmem:[%s5467 + $0xb8] sm:$0xf]
        %v5507 = vld [vmem:[%s5467 + $0xbc] sm:$0xf]
        %v5508 = vld [vmem:[%s5467 + $0xc0] sm:$0xf]
        %v5509 = vld [vmem:[%s5467 + $0xc4] sm:$0xf]
        %v5510 = vld [vmem:[%s5467 + $0xd8] sm:$0xf]
        %v5511 = vld [vmem:[%s5467 + $0xdc] sm:$0xf]
        %v5512 = vld [vmem:[%s5467 + $0xe0] sm:$0xf]
        %v5513 = vld [vmem:[%s5467 + $0xe4] sm:$0xf]
        %v5514 = vld [vmem:[%s5467 + $0xe8] sm:$0xf]
        %v5515 = vld [vmem:[%s5467 + $0xec] sm:$0xf]
        %v5516 = vld [vmem:[%s5467 + $0xf0] sm:$0xf]
        %v5517 = vld [vmem:[%s5467 + $0xf4] sm:$0xf]
        %v5518 = vld [vmem:[%s5467 + $0xf8] sm:$0xf]
        %v5519 = vld [vmem:[%s5467 + $0xfc] sm:$0xf]
        %v5520 = vld [vmem:[%s5467 + $0x100] sm:$0xf]
        %v5521 = vld [vmem:[%s5467 + $0x104] sm:$0xf]
        %v5522 = vld [vmem:[%s5467 + $0x108] sm:$0xf]
        %v5523 = vld [vmem:[%s5467 + $0x10c] sm:$0xf]
        %v5524 = vld [vmem:[%s5467 + $0x120] sm:$0xf]
        %v5525 = vld [vmem:[%s5467 + $0x124] sm:$0xf]
        %v5526 = vld [vmem:[%s5467 + $0x128] sm:$0xf]
        %v5527 = vld [vmem:[%s5467 + $0x12c] sm:$0xf]
        %v5528 = vld [vmem:[%s5467 + $0x130] sm:$0xf]
        %v5529 = vld [vmem:[%s5467 + $0x134] sm:$0xf]
        %v5530 = vld [vmem:[%s5467 + $0x138] sm:$0xf]
        %v5531 = vld [vmem:[%s5467 + $0x13c] sm:$0xf]
        %v5532 = vld [vmem:[%s5467 + $0x140] sm:$0xf]
        %v5533 = vld [vmem:[%s5467 + $0x144] sm:$0xf]
        %v5534 = vld [vmem:[%s5467 + $0x148] sm:$0xf]
        %v5535 = vld [vmem:[%s5467 + $0x14c] sm:$0xf]
        %v5536 = vld [vmem:[%s5467 + $0x150] sm:$0xf]
        %v5537 = vld [vmem:[%s5467 + $0x154] sm:$0xf]
        %v5538 = vld [vmem:[%s5467 + $0x168] sm:$0xf]
        %v5539 = vld [vmem:[%s5467 + $0x16c] sm:$0xf]
        %v5540 = vld [vmem:[%s5467 + $0x170] sm:$0xf]
        %v5541 = vld [vmem:[%s5467 + $0x174] sm:$0xf]
        %v5542 = vld [vmem:[%s5467 + $0x178] sm:$0xf]
        %v5543 = vld [vmem:[%s5467 + $0x17c] sm:$0xf]
        %v5544 = vld [vmem:[%s5467 + $0x180] sm:$0xf]
        %v5545 = vld [vmem:[%s5467 + $0x184] sm:$0xf]
        %v5546 = vld [vmem:[%s5467 + $0x188] sm:$0xf]
        %v5547 = vld [vmem:[%s5467 + $0x18c] sm:$0xf]
        %v5548 = vld [vmem:[%s5467 + $0x190] sm:$0xf]
        %v5549 = vld [vmem:[%s5467 + $0x194] sm:$0xf]
        %v5550 = vld [vmem:[%s5467 + $0x198] sm:$0xf]
        %v5551 = vld [vmem:[%s5467 + $0x19c] sm:$0xf]
        %5552 = vst.msk [vmem:[#allocation3 + $0x8] sm:$0xf] %vm1952, %v5468
        %5553 = vst.msk [vmem:[#allocation3 + $0x14] sm:$0xf] %vm1952, %v5469
        %5554 = vst.msk [vmem:[#allocation3 + $0x20] sm:$0xf] %vm1952, %v5470
        %5555 = vst.msk [vmem:[#allocation3 + $0x2c] sm:$0xf] %vm1952, %v5471
        %5556 = vst.msk [vmem:[#allocation3 + $0x38] sm:$0xf] %vm1952, %v5472
        %5557 = vst.msk [vmem:[#allocation3 + $0x44] sm:$0xf] %vm1952, %v5473
        %5558 = vst.msk [vmem:[#allocation3 + $0x50] sm:$0xf] %vm1952, %v5474
        %5559 = vst.msk [vmem:[#allocation3 + $0x5c] sm:$0xf] %vm1952, %v5475
        %5560 = vst.msk [vmem:[#allocation3 + $0x68] sm:$0xf] %vm1952, %v5476
        %5561 = vst.msk [vmem:[#allocation3 + $0x74] sm:$0xf] %vm1952, %v5477
        %5562 = vst.msk [vmem:[#allocation3 + $0x80] sm:$0xf] %vm1952, %v5478
        %5563 = vst.msk [vmem:[#allocation3 + $0x8c] sm:$0xf] %vm1952, %v5479
        %5564 = vst.msk [vmem:[#allocation3 + $0x98] sm:$0xf] %vm1952, %v5480
        %5565 = vst.msk [vmem:[#allocation3 + $0xa4] sm:$0xf] %vm1952, %v5481
        %5566 = vst.msk [vmem:[#allocation3 + $0xb0] sm:$0xf] %vm1952, %v5482
        %5567 = vst.msk [vmem:[#allocation3 + $0xbc] sm:$0xf] %vm1952, %v5483
        %5568 = vst.msk [vmem:[#allocation3 + $0xc8] sm:$0xf] %vm1952, %v5484
        %5569 = vst.msk [vmem:[#allocation3 + $0xd4] sm:$0xf] %vm1952, %v5485
        %5570 = vst.msk [vmem:[#allocation3 + $0xe0] sm:$0xf] %vm1952, %v5486
        %5571 = vst.msk [vmem:[#allocation3 + $0xec] sm:$0xf] %vm1952, %v5487
        %5572 = vst.msk [vmem:[#allocation3 + $0xf8] sm:$0xf] %vm1952, %v5488
        %5573 = vst.msk [vmem:[#allocation3 + $0x104] sm:$0xf] %vm1952, %v5489
        %5574 = vst.msk [vmem:[#allocation3 + $0x110] sm:$0xf] %vm1952, %v5490
        %5575 = vst.msk [vmem:[#allocation3 + $0x11c] sm:$0xf] %vm1952, %v5491
        %5576 = vst.msk [vmem:[#allocation3 + $0x128] sm:$0xf] %vm1952, %v5492
        %5577 = vst.msk [vmem:[#allocation3 + $0x134] sm:$0xf] %vm1952, %v5493
        %5578 = vst.msk [vmem:[#allocation3 + $0x140] sm:$0xf] %vm1952, %v5494
        %5579 = vst.msk [vmem:[#allocation3 + $0x14c] sm:$0xf] %vm1952, %v5495
        %5580 = vst.msk [vmem:[#allocation3 + $0x158] sm:$0xf] %vm1952, %v5496
        %5581 = vst.msk [vmem:[#allocation3 + $0x164] sm:$0xf] %vm1952, %v5497
        %5582 = vst.msk [vmem:[#allocation3 + $0x170] sm:$0xf] %vm1952, %v5498
        %5583 = vst.msk [vmem:[#allocation3 + $0x17c] sm:$0xf] %vm1952, %v5499
        %5584 = vst.msk [vmem:[#allocation3 + $0x188] sm:$0xf] %vm1952, %v5500
        %5585 = vst.msk [vmem:[#allocation3 + $0x194] sm:$0xf] %vm1952, %v5501
        %5586 = vst.msk [vmem:[#allocation3 + $0x1a0] sm:$0xf] %vm1952, %v5502
        %5587 = vst.msk [vmem:[#allocation3 + $0x1ac] sm:$0xf] %vm1952, %v5503
        %5588 = vst.msk [vmem:[#allocation3 + $0x1b8] sm:$0xf] %vm1952, %v5504
        %5589 = vst.msk [vmem:[#allocation3 + $0x1c4] sm:$0xf] %vm1952, %v5505
        %5590 = vst.msk [vmem:[#allocation3 + $0x1d0] sm:$0xf] %vm1952, %v5506
        %5591 = vst.msk [vmem:[#allocation3 + $0x1dc] sm:$0xf] %vm1952, %v5507
        %5592 = vst.msk [vmem:[#allocation3 + $0x1e8] sm:$0xf] %vm1952, %v5508
        %5593 = vst.msk [vmem:[#allocation3 + $0x1f4] sm:$0xf] %vm1952, %v5509
        %5594 = vst.msk [vmem:[#allocation3 + $0x200] sm:$0xf] %vm1952, %v5510
        %5595 = vst.msk [vmem:[#allocation3 + $0x20c] sm:$0xf] %vm1952, %v5511
        %5596 = vst.msk [vmem:[#allocation3 + $0x218] sm:$0xf] %vm1952, %v5512
        %5597 = vst.msk [vmem:[#allocation3 + $0x224] sm:$0xf] %vm1952, %v5513
        %5598 = vst.msk [vmem:[#allocation3 + $0x230] sm:$0xf] %vm1952, %v5514
        %5599 = vst.msk [vmem:[#allocation3 + $0x23c] sm:$0xf] %vm1952, %v5515
        %5600 = vst.msk [vmem:[#allocation3 + $0x248] sm:$0xf] %vm1952, %v5516
        %5601 = vst.msk [vmem:[#allocation3 + $0x254] sm:$0xf] %vm1952, %v5517
        %5602 = vst.msk [vmem:[#allocation3 + $0x260] sm:$0xf] %vm1952, %v5518
        %5603 = vst.msk [vmem:[#allocation3 + $0x26c] sm:$0xf] %vm1952, %v5519
        %5604 = vst.msk [vmem:[#allocation3 + $0x278] sm:$0xf] %vm1952, %v5520
        %5605 = vst.msk [vmem:[#allocation3 + $0x284] sm:$0xf] %vm1952, %v5521
        %5606 = vst.msk [vmem:[#allocation3 + $0x290] sm:$0xf] %vm1952, %v5522
        %5607 = vst.msk [vmem:[#allocation3 + $0x29c] sm:$0xf] %vm1952, %v5523
        %5608 = vst.msk [vmem:[#allocation3 + $0x2a8] sm:$0xf] %vm1952, %v5524
        %5609 = vst.msk [vmem:[#allocation3 + $0x2b4] sm:$0xf] %vm1952, %v5525
        %5610 = vst.msk [vmem:[#allocation3 + $0x2c0] sm:$0xf] %vm1952, %v5526
        %5611 = vst.msk [vmem:[#allocation3 + $0x2cc] sm:$0xf] %vm1952, %v5527
        %5612 = vst.msk [vmem:[#allocation3 + $0x2d8] sm:$0xf] %vm1952, %v5528
        %5613 = vst.msk [vmem:[#allocation3 + $0x2e4] sm:$0xf] %vm1952, %v5529
        %5614 = vst.msk [vmem:[#allocation3 + $0x2f0] sm:$0xf] %vm1952, %v5530
        %5615 = vst.msk [vmem:[#allocation3 + $0x2fc] sm:$0xf] %vm1952, %v5531
        %5616 = vst.msk [vmem:[#allocation3 + $0x308] sm:$0xf] %vm1952, %v5532
        %5617 = vst.msk [vmem:[#allocation3 + $0x314] sm:$0xf] %vm1952, %v5533
        %5618 = vst.msk [vmem:[#allocation3 + $0x320] sm:$0xf] %vm1952, %v5534
        %5619 = vst.msk [vmem:[#allocation3 + $0x32c] sm:$0xf] %vm1952, %v5535
        %5620 = vst.msk [vmem:[#allocation3 + $0x338] sm:$0xf] %vm1952, %v5536
        %5621 = vst.msk [vmem:[#allocation3 + $0x344] sm:$0xf] %vm1952, %v5537
        %5622 = vst.msk [vmem:[#allocation3 + $0x350] sm:$0xf] %vm1952, %v5538
        %5623 = vst.msk [vmem:[#allocation3 + $0x35c] sm:$0xf] %vm1952, %v5539
        %5624 = vst.msk [vmem:[#allocation3 + $0x368] sm:$0xf] %vm1952, %v5540
        %5625 = vst.msk [vmem:[#allocation3 + $0x374] sm:$0xf] %vm1952, %v5541
        %5626 = vst.msk [vmem:[#allocation3 + $0x380] sm:$0xf] %vm1952, %v5542
        %5627 = vst.msk [vmem:[#allocation3 + $0x38c] sm:$0xf] %vm1952, %v5543
        %5628 = vst.msk [vmem:[#allocation3 + $0x398] sm:$0xf] %vm1952, %v5544
        %5629 = vst.msk [vmem:[#allocation3 + $0x3a4] sm:$0xf] %vm1952, %v5545
        %5630 = vst.msk [vmem:[#allocation3 + $0x3b0] sm:$0xf] %vm1952, %v5546
        %5631 = vst.msk [vmem:[#allocation3 + $0x3bc] sm:$0xf] %vm1952, %v5547
        %5632 = vst.msk [vmem:[#allocation3 + $0x3c8] sm:$0xf] %vm1952, %v5548
        %5633 = vst.msk [vmem:[#allocation3 + $0x3d4] sm:$0xf] %vm1952, %v5549
        %5634 = vst.msk [vmem:[#allocation3 + $0x3e0] sm:$0xf] %vm1952, %v5550
        %5635 = vst.msk [vmem:[#allocation3 + $0x3ec] sm:$0xf] %vm1952, %v5551
        %v5636 = vld [vmem:[#allocation3] sm:$0xff]
        %v5637 = vld [vmem:[#allocation3 + $0x8] sm:$0xf]
        %v5638 = vld [vmem:[#allocation3 + $0xc] sm:$0xff]
        %v5639 = vld [vmem:[#allocation3 + $0x14] sm:$0xf]
        %v5640 = vld [vmem:[#allocation3 + $0x18] sm:$0xff]
        %v5641 = vld [vmem:[#allocation3 + $0x20] sm:$0xf]
        %v5642 = vld [vmem:[#allocation3 + $0x24] sm:$0xff]
        %v5643 = vld [vmem:[#allocation3 + $0x2c] sm:$0xf]
        %v5644 = vld [vmem:[#allocation3 + $0x30] sm:$0xff]
        %v5645 = vld [vmem:[#allocation3 + $0x38] sm:$0xf]
        %v5646 = vld [vmem:[#allocation3 + $0x3c] sm:$0xff]
        %v5647 = vld [vmem:[#allocation3 + $0x44] sm:$0xf]
        %v5648 = vld [vmem:[#allocation3 + $0x48] sm:$0xff]
        %v5649 = vld [vmem:[#allocation3 + $0x50] sm:$0xf]
        %v5650 = vld [vmem:[#allocation3 + $0x54] sm:$0xff]
        %v5651 = vld [vmem:[#allocation3 + $0x5c] sm:$0xf]
        %v5652 = vld [vmem:[#allocation3 + $0x60] sm:$0xff]
        %v5653 = vld [vmem:[#allocation3 + $0x68] sm:$0xf]
        %v5654 = vld [vmem:[#allocation3 + $0x6c] sm:$0xff]
        %v5655 = vld [vmem:[#allocation3 + $0x74] sm:$0xf]
        %v5656 = vld [vmem:[#allocation3 + $0x78] sm:$0xff]
        %v5657 = vld [vmem:[#allocation3 + $0x80] sm:$0xf]
        %v5658 = vld [vmem:[#allocation3 + $0x84] sm:$0xff]
        %v5659 = vld [vmem:[#allocation3 + $0x8c] sm:$0xf]
        %v5660 = vld [vmem:[#allocation3 + $0x90] sm:$0xff]
        %v5661 = vld [vmem:[#allocation3 + $0x98] sm:$0xf]
        %v5662 = vld [vmem:[#allocation3 + $0x9c] sm:$0xff]
        %v5663 = vld [vmem:[#allocation3 + $0xa4] sm:$0xf]
        %v5664 = vld [vmem:[#allocation3 + $0xa8] sm:$0xff]
        %v5665 = vld [vmem:[#allocation3 + $0xb0] sm:$0xf]
        %v5666 = vld [vmem:[#allocation3 + $0xb4] sm:$0xff]
        %v5667 = vld [vmem:[#allocation3 + $0xbc] sm:$0xf]
        %v5668 = vld [vmem:[#allocation3 + $0xc0] sm:$0xff]
        %v5669 = vld [vmem:[#allocation3 + $0xc8] sm:$0xf]
        %v5670 = vld [vmem:[#allocation3 + $0xcc] sm:$0xff]
        %v5671 = vld [vmem:[#allocation3 + $0xd4] sm:$0xf]
        %v5672 = vld [vmem:[#allocation3 + $0xd8] sm:$0xff]
        %v5673 = vld [vmem:[#allocation3 + $0xe0] sm:$0xf]
        %v5674 = vld [vmem:[#allocation3 + $0xe4] sm:$0xff]
        %v5675 = vld [vmem:[#allocation3 + $0xec] sm:$0xf]
        %v5676 = vld [vmem:[#allocation3 + $0xf0] sm:$0xff]
        %v5677 = vld [vmem:[#allocation3 + $0xf8] sm:$0xf]
        %v5678 = vld [vmem:[#allocation3 + $0xfc] sm:$0xff]
        %v5679 = vld [vmem:[#allocation3 + $0x104] sm:$0xf]
        %v5680 = vld [vmem:[#allocation3 + $0x108] sm:$0xff]
        %v5681 = vld [vmem:[#allocation3 + $0x110] sm:$0xf]
        %v5682 = vld [vmem:[#allocation3 + $0x114] sm:$0xff]
        %v5683 = vld [vmem:[#allocation3 + $0x11c] sm:$0xf]
        %v5684 = vld [vmem:[#allocation3 + $0x120] sm:$0xff]
        %v5685 = vld [vmem:[#allocation3 + $0x128] sm:$0xf]
        %v5686 = vld [vmem:[#allocation3 + $0x12c] sm:$0xff]
        %v5687 = vld [vmem:[#allocation3 + $0x134] sm:$0xf]
        %v5688 = vld [vmem:[#allocation3 + $0x138] sm:$0xff]
        %v5689 = vld [vmem:[#allocation3 + $0x140] sm:$0xf]
        %v5690 = vld [vmem:[#allocation3 + $0x144] sm:$0xff]
        %v5691 = vld [vmem:[#allocation3 + $0x14c] sm:$0xf]
        %v5692 = vld [vmem:[#allocation3 + $0x150] sm:$0xff]
        %v5693 = vld [vmem:[#allocation3 + $0x158] sm:$0xf]
        %v5694 = vld [vmem:[#allocation3 + $0x15c] sm:$0xff]
        %v5695 = vld [vmem:[#allocation3 + $0x164] sm:$0xf]
        %v5696 = vld [vmem:[#allocation3 + $0x168] sm:$0xff]
        %v5697 = vld [vmem:[#allocation3 + $0x170] sm:$0xf]
        %v5698 = vld [vmem:[#allocation3 + $0x174] sm:$0xff]
        %v5699 = vld [vmem:[#allocation3 + $0x17c] sm:$0xf]
        %v5700 = vld [vmem:[#allocation3 + $0x180] sm:$0xff]
        %v5701 = vld [vmem:[#allocation3 + $0x188] sm:$0xf]
        %v5702 = vld [vmem:[#allocation3 + $0x18c] sm:$0xff]
        %v5703 = vld [vmem:[#allocation3 + $0x194] sm:$0xf]
        %v5704 = vld [vmem:[#allocation3 + $0x198] sm:$0xff]
        %v5705 = vld [vmem:[#allocation3 + $0x1a0] sm:$0xf]
        %v5706 = vld [vmem:[#allocation3 + $0x1a4] sm:$0xff]
        %v5707 = vld [vmem:[#allocation3 + $0x1ac] sm:$0xf]
        %v5708 = vld [vmem:[#allocation3 + $0x1b0] sm:$0xff]
        %v5709 = vld [vmem:[#allocation3 + $0x1b8] sm:$0xf]
        %v5710 = vld [vmem:[#allocation3 + $0x1bc] sm:$0xff]
        %v5711 = vld [vmem:[#allocation3 + $0x1c4] sm:$0xf]
        %v5712 = vld [vmem:[#allocation3 + $0x1c8] sm:$0xff]
        %v5713 = vld [vmem:[#allocation3 + $0x1d0] sm:$0xf]
        %v5714 = vld [vmem:[#allocation3 + $0x1d4] sm:$0xff]
        %v5715 = vld [vmem:[#allocation3 + $0x1dc] sm:$0xf]
        %v5716 = vld [vmem:[#allocation3 + $0x1e0] sm:$0xff]
        %v5717 = vld [vmem:[#allocation3 + $0x1e8] sm:$0xf]
        %v5718 = vld [vmem:[#allocation3 + $0x1ec] sm:$0xff]
        %v5719 = vld [vmem:[#allocation3 + $0x1f4] sm:$0xf]
        %v5720 = vld [vmem:[#allocation3 + $0x1f8] sm:$0xff]
        %v5721 = vld [vmem:[#allocation3 + $0x200] sm:$0xf]
        %v5722 = vld [vmem:[#allocation3 + $0x204] sm:$0xff]
        %v5723 = vld [vmem:[#allocation3 + $0x20c] sm:$0xf]
        %v5724 = vld [vmem:[#allocation3 + $0x210] sm:$0xff]
        %v5725 = vld [vmem:[#allocation3 + $0x218] sm:$0xf]
        %v5726 = vld [vmem:[#allocation3 + $0x21c] sm:$0xff]
        %v5727 = vld [vmem:[#allocation3 + $0x224] sm:$0xf]
        %v5728 = vld [vmem:[#allocation3 + $0x228] sm:$0xff]
        %v5729 = vld [vmem:[#allocation3 + $0x230] sm:$0xf]
        %v5730 = vld [vmem:[#allocation3 + $0x234] sm:$0xff]
        %v5731 = vld [vmem:[#allocation3 + $0x23c] sm:$0xf]
        %v5732 = vld [vmem:[#allocation3 + $0x240] sm:$0xff]
        %v5733 = vld [vmem:[#allocation3 + $0x248] sm:$0xf]
        %v5734 = vld [vmem:[#allocation3 + $0x24c] sm:$0xff]
        %v5735 = vld [vmem:[#allocation3 + $0x254] sm:$0xf]
        %v5736 = vld [vmem:[#allocation3 + $0x258] sm:$0xff]
        %v5737 = vld [vmem:[#allocation3 + $0x260] sm:$0xf]
        %v5738 = vld [vmem:[#allocation3 + $0x264] sm:$0xff]
        %v5739 = vld [vmem:[#allocation3 + $0x26c] sm:$0xf]
        %v5740 = vld [vmem:[#allocation3 + $0x270] sm:$0xff]
        %v5741 = vld [vmem:[#allocation3 + $0x278] sm:$0xf]
        %v5742 = vld [vmem:[#allocation3 + $0x27c] sm:$0xff]
        %v5743 = vld [vmem:[#allocation3 + $0x284] sm:$0xf]
        %v5744 = vld [vmem:[#allocation3 + $0x288] sm:$0xff]
        %v5745 = vld [vmem:[#allocation3 + $0x290] sm:$0xf]
        %v5746 = vld [vmem:[#allocation3 + $0x294] sm:$0xff]
        %v5747 = vld [vmem:[#allocation3 + $0x29c] sm:$0xf]
        %v5748 = vld [vmem:[#allocation3 + $0x2a0] sm:$0xff]
        %v5749 = vld [vmem:[#allocation3 + $0x2a8] sm:$0xf]
        %v5750 = vld [vmem:[#allocation3 + $0x2ac] sm:$0xff]
        %v5751 = vld [vmem:[#allocation3 + $0x2b4] sm:$0xf]
        %v5752 = vld [vmem:[#allocation3 + $0x2b8] sm:$0xff]
        %v5753 = vld [vmem:[#allocation3 + $0x2c0] sm:$0xf]
        %v5754 = vld [vmem:[#allocation3 + $0x2c4] sm:$0xff]
        %v5755 = vld [vmem:[#allocation3 + $0x2cc] sm:$0xf]
        %v5756 = vld [vmem:[#allocation3 + $0x2d0] sm:$0xff]
        %v5757 = vld [vmem:[#allocation3 + $0x2d8] sm:$0xf]
        %v5758 = vld [vmem:[#allocation3 + $0x2dc] sm:$0xff]
        %v5759 = vld [vmem:[#allocation3 + $0x2e4] sm:$0xf]
        %v5760 = vld [vmem:[#allocation3 + $0x2e8] sm:$0xff]
        %v5761 = vld [vmem:[#allocation3 + $0x2f0] sm:$0xf]
        %v5762 = vld [vmem:[#allocation3 + $0x2f4] sm:$0xff]
        %v5763 = vld [vmem:[#allocation3 + $0x2fc] sm:$0xf]
        %v5764 = vld [vmem:[#allocation3 + $0x300] sm:$0xff]
        %v5765 = vld [vmem:[#allocation3 + $0x308] sm:$0xf]
        %v5766 = vld [vmem:[#allocation3 + $0x30c] sm:$0xff]
        %v5767 = vld [vmem:[#allocation3 + $0x314] sm:$0xf]
        %v5768 = vld [vmem:[#allocation3 + $0x318] sm:$0xff]
        %v5769 = vld [vmem:[#allocation3 + $0x320] sm:$0xf]
        %v5770 = vld [vmem:[#allocation3 + $0x324] sm:$0xff]
        %v5771 = vld [vmem:[#allocation3 + $0x32c] sm:$0xf]
        %v5772 = vld [vmem:[#allocation3 + $0x330] sm:$0xff]
        %v5773 = vld [vmem:[#allocation3 + $0x338] sm:$0xf]
        %v5774 = vld [vmem:[#allocation3 + $0x33c] sm:$0xff]
        %v5775 = vld [vmem:[#allocation3 + $0x344] sm:$0xf]
        %v5776 = vld [vmem:[#allocation3 + $0x348] sm:$0xff]
        %v5777 = vld [vmem:[#allocation3 + $0x350] sm:$0xf]
        %v5778 = vld [vmem:[#allocation3 + $0x354] sm:$0xff]
        %v5779 = vld [vmem:[#allocation3 + $0x35c] sm:$0xf]
        %v5780 = vld [vmem:[#allocation3 + $0x360] sm:$0xff]
        %v5781 = vld [vmem:[#allocation3 + $0x368] sm:$0xf]
        %v5782 = vld [vmem:[#allocation3 + $0x36c] sm:$0xff]
        %v5783 = vld [vmem:[#allocation3 + $0x374] sm:$0xf]
        %v5784 = vld [vmem:[#allocation3 + $0x378] sm:$0xff]
        %v5785 = vld [vmem:[#allocation3 + $0x380] sm:$0xf]
        %v5786 = vld [vmem:[#allocation3 + $0x384] sm:$0xff]
        %v5787 = vld [vmem:[#allocation3 + $0x38c] sm:$0xf]
        %v5788 = vld [vmem:[#allocation3 + $0x390] sm:$0xff]
        %v5789 = vld [vmem:[#allocation3 + $0x398] sm:$0xf]
        %v5790 = vld [vmem:[#allocation3 + $0x39c] sm:$0xff]
        %v5791 = vld [vmem:[#allocation3 + $0x3a4] sm:$0xf]
        %v5792 = vld [vmem:[#allocation3 + $0x3a8] sm:$0xff]
        %v5793 = vld [vmem:[#allocation3 + $0x3b0] sm:$0xf]
        %v5794 = vld [vmem:[#allocation3 + $0x3b4] sm:$0xff]
        %v5795 = vld [vmem:[#allocation3 + $0x3bc] sm:$0xf]
        %v5796 = vld [vmem:[#allocation3 + $0x3c0] sm:$0xff]
        %v5797 = vld [vmem:[#allocation3 + $0x3c8] sm:$0xf]
        %v5798 = vld [vmem:[#allocation3 + $0x3cc] sm:$0xff]
        %v5799 = vld [vmem:[#allocation3 + $0x3d4] sm:$0xf]
        %v5800 = vld [vmem:[#allocation3 + $0x3d8] sm:$0xff]
        %v5801 = vld [vmem:[#allocation3 + $0x3e0] sm:$0xf]
        %v5802 = vld [vmem:[#allocation3 + $0x3e4] sm:$0xff]
        %v5803 = vld [vmem:[#allocation3 + $0x3ec] sm:$0xf]
        %v5804 = vld [vmem:[%s3] sm:$0xf]
        %v5805 = vld [vmem:[%s3 + $0x4] sm:$0xf]
        %v5806 = vld [vmem:[%s3 + $0x8] sm:$0xf]
        %v5807 = vld [vmem:[%s3 + $0xc] sm:$0xf]
        %v5808 = vld [vmem:[%s3 + $0x10] sm:$0xf]
        %v5809 = vld [vmem:[%s3 + $0x14] sm:$0xf]
        %v5810 = vld [vmem:[%s3 + $0x18] sm:$0xf]
        %v5811 = vld [vmem:[%s3 + $0x1c] sm:$0xf]
        %v5812 = vld [vmem:[%s3 + $0x20] sm:$0xf]
        %v5813 = vld [vmem:[%s3 + $0x24] sm:$0xf]
        %v5814 = vld [vmem:[%s3 + $0x28] sm:$0xf]
        %v5815 = vld [vmem:[%s3 + $0x2c] sm:$0xf]
        %v5816 = vld [vmem:[%s3 + $0x30] sm:$0xf]
        %v5817 = vld [vmem:[%s3 + $0x34] sm:$0xf]
        %v5818 = vld [vmem:[%s3 + $0x38] sm:$0xf]
        %v5819 = vld [vmem:[%s3 + $0x3c] sm:$0xf]
        %v5820 = vld [vmem:[%s3 + $0x40] sm:$0xf]
        %v5821 = vld [vmem:[%s3 + $0x44] sm:$0xf]
        %v5822 = vld [vmem:[%s3 + $0x48] sm:$0xf]
        %v5823 = vld [vmem:[%s3 + $0x4c] sm:$0xf]
        %v5824 = vld [vmem:[%s3 + $0x50] sm:$0xf]
        %v5825 = vld [vmem:[%s3 + $0x54] sm:$0xf]
        %v5826 = vld [vmem:[%s3 + $0x58] sm:$0xf]
        %v5827 = vld [vmem:[%s3 + $0x5c] sm:$0xf]
        %v5828 = vld [vmem:[%s3 + $0x60] sm:$0xf]
        %v5829 = vld [vmem:[%s3 + $0x64] sm:$0xf]
        %v5830 = vld [vmem:[%s3 + $0x68] sm:$0xf]
        %v5831 = vld [vmem:[%s3 + $0x6c] sm:$0xf]
        %v5832 = vld [vmem:[%s3 + $0x70] sm:$0xf]
        %v5833 = vld [vmem:[%s3 + $0x74] sm:$0xf]
        %v5834 = vld [vmem:[%s3 + $0x78] sm:$0xf]
        %v5835 = vld [vmem:[%s3 + $0x7c] sm:$0xf]
        %v5836 = vld [vmem:[%s3 + $0x80] sm:$0xf]
        %v5837 = vld [vmem:[%s3 + $0x84] sm:$0xf]
        %v5838 = vld [vmem:[%s3 + $0x88] sm:$0xf]
        %v5839 = vld [vmem:[%s3 + $0x8c] sm:$0xf]
        %v5840 = vld [vmem:[%s4] sm:$0x1]
        %v5842 = vlaneseq
        %v5843 = vshrl.u32 %v5842, 7
        %v5844 = vsub.s32 0, %v5843
        %v5845 = vrot.slane %v5840, %v5844
        %v6015 = vunpack.c.l.b16 %v5636
        %v6016 = vunpack.c.h.b16 %v5636
        %v6017 = vunpack.c.l.b16 %v5637
        %v6018 = vunpack.c.l.b16 %v5638
        %v6019 = vunpack.c.h.b16 %v5638
        %v6020 = vunpack.c.l.b16 %v5639
        %v6021 = vunpack.c.l.b16 %v5640
        %v6022 = vunpack.c.h.b16 %v5640
        %v6023 = vunpack.c.l.b16 %v5641
        %v6024 = vunpack.c.l.b16 %v5642
        %v6025 = vunpack.c.h.b16 %v5642
        %v6026 = vunpack.c.l.b16 %v5643
        %v6027 = vunpack.c.l.b16 %v5644
        %v6028 = vunpack.c.h.b16 %v5644
        %v6029 = vunpack.c.l.b16 %v5645
        %v6030 = vunpack.c.l.b16 %v5646
        %v6031 = vunpack.c.h.b16 %v5646
        %v6032 = vunpack.c.l.b16 %v5647
        %v6033 = vunpack.c.l.b16 %v5648
        %v6034 = vunpack.c.h.b16 %v5648
        %v6035 = vunpack.c.l.b16 %v5649
        %v6036 = vunpack.c.l.b16 %v5650
        %v6037 = vunpack.c.h.b16 %v5650
        %v6038 = vunpack.c.l.b16 %v5651
        %v6039 = vunpack.c.l.b16 %v5652
        %v6040 = vunpack.c.h.b16 %v5652
        %v6041 = vunpack.c.l.b16 %v5653
        %v6042 = vunpack.c.l.b16 %v5654
        %v6043 = vunpack.c.h.b16 %v5654
        %v6044 = vunpack.c.l.b16 %v5655
        %v6045 = vunpack.c.l.b16 %v5656
        %v6046 = vunpack.c.h.b16 %v5656
        %v6047 = vunpack.c.l.b16 %v5657
        %v6048 = vunpack.c.l.b16 %v5658
        %v6049 = vunpack.c.h.b16 %v5658
        %v6050 = vunpack.c.l.b16 %v5659
        %v6051 = vunpack.c.l.b16 %v5660
        %v6052 = vunpack.c.h.b16 %v5660
        %v6053 = vunpack.c.l.b16 %v5661
        %v6054 = vunpack.c.l.b16 %v5662
        %v6055 = vunpack.c.h.b16 %v5662
        %v6056 = vunpack.c.l.b16 %v5663
        %v6057 = vunpack.c.l.b16 %v5664
        %v6058 = vunpack.c.h.b16 %v5664
        %v6059 = vunpack.c.l.b16 %v5665
        %v6060 = vunpack.c.l.b16 %v5666
        %v6061 = vunpack.c.h.b16 %v5666
        %v6062 = vunpack.c.l.b16 %v5667
        %v6063 = vunpack.c.l.b16 %v5668
        %v6064 = vunpack.c.h.b16 %v5668
        %v6065 = vunpack.c.l.b16 %v5669
        %v6066 = vunpack.c.l.b16 %v5670
        %v6067 = vunpack.c.h.b16 %v5670
        %v6068 = vunpack.c.l.b16 %v5671
        %v6069 = vunpack.c.l.b16 %v5672
        %v6070 = vunpack.c.h.b16 %v5672
        %v6071 = vunpack.c.l.b16 %v5673
        %v6072 = vunpack.c.l.b16 %v5674
        %v6073 = vunpack.c.h.b16 %v5674
        %v6074 = vunpack.c.l.b16 %v5675
        %v6075 = vunpack.c.l.b16 %v5676
        %v6076 = vunpack.c.h.b16 %v5676
        %v6077 = vunpack.c.l.b16 %v5677
        %v6078 = vunpack.c.l.b16 %v5678
        %v6079 = vunpack.c.h.b16 %v5678
        %v6080 = vunpack.c.l.b16 %v5679
        %v6081 = vunpack.c.l.b16 %v5680
        %v6082 = vunpack.c.h.b16 %v5680
        %v6083 = vunpack.c.l.b16 %v5681
        %v6084 = vunpack.c.l.b16 %v5682
        %v6085 = vunpack.c.h.b16 %v5682
        %v6086 = vunpack.c.l.b16 %v5683
        %v6087 = vunpack.c.l.b16 %v5684
        %v6088 = vunpack.c.h.b16 %v5684
        %v6089 = vunpack.c.l.b16 %v5685
        %v6090 = vunpack.c.l.b16 %v5686
        %v6091 = vunpack.c.h.b16 %v5686
        %v6092 = vunpack.c.l.b16 %v5687
        %v6093 = vunpack.c.l.b16 %v5688
        %v6094 = vunpack.c.h.b16 %v5688
        %v6095 = vunpack.c.l.b16 %v5689
        %v6096 = vunpack.c.l.b16 %v5690
        %v6097 = vunpack.c.h.b16 %v5690
        %v6098 = vunpack.c.l.b16 %v5691
        %v6099 = vunpack.c.l.b16 %v5692
        %v6100 = vunpack.c.h.b16 %v5692
        %v6101 = vunpack.c.l.b16 %v5693
        %v6102 = vunpack.c.l.b16 %v5694
        %v6103 = vunpack.c.h.b16 %v5694
        %v6104 = vunpack.c.l.b16 %v5695
        %v6105 = vunpack.c.l.b16 %v5696
        %v6106 = vunpack.c.h.b16 %v5696
        %v6107 = vunpack.c.l.b16 %v5697
        %v6108 = vunpack.c.l.b16 %v5698
        %v6109 = vunpack.c.h.b16 %v5698
        %v6110 = vunpack.c.l.b16 %v5699
        %v6111 = vunpack.c.l.b16 %v5700
        %v6112 = vunpack.c.h.b16 %v5700
        %v6113 = vunpack.c.l.b16 %v5701
        %v6114 = vunpack.c.l.b16 %v5702
        %v6115 = vunpack.c.h.b16 %v5702
        %v6116 = vunpack.c.l.b16 %v5703
        %v6117 = vunpack.c.l.b16 %v5704
        %v6118 = vunpack.c.h.b16 %v5704
        %v6119 = vunpack.c.l.b16 %v5705
        %v6120 = vunpack.c.l.b16 %v5706
        %v6121 = vunpack.c.h.b16 %v5706
        %v6122 = vunpack.c.l.b16 %v5707
        %v6123 = vunpack.c.l.b16 %v5708
        %v6124 = vunpack.c.h.b16 %v5708
        %v6125 = vunpack.c.l.b16 %v5709
        %v6126 = vunpack.c.l.b16 %v5710
        %v6127 = vunpack.c.h.b16 %v5710
        %v6128 = vunpack.c.l.b16 %v5711
        %v6129 = vunpack.c.l.b16 %v5712
        %v6130 = vunpack.c.h.b16 %v5712
        %v6131 = vunpack.c.l.b16 %v5713
        %v6132 = vunpack.c.l.b16 %v5714
        %v6133 = vunpack.c.h.b16 %v5714
        %v6134 = vunpack.c.l.b16 %v5715
        %v6135 = vunpack.c.l.b16 %v5716
        %v6136 = vunpack.c.h.b16 %v5716
        %v6137 = vunpack.c.l.b16 %v5717
        %v6138 = vunpack.c.l.b16 %v5718
        %v6139 = vunpack.c.h.b16 %v5718
        %v6140 = vunpack.c.l.b16 %v5719
        %v6141 = vunpack.c.l.b16 %v5720
        %v6142 = vunpack.c.h.b16 %v5720
        %v6143 = vunpack.c.l.b16 %v5721
        %v6144 = vunpack.c.l.b16 %v5722
        %v6145 = vunpack.c.h.b16 %v5722
        %v6146 = vunpack.c.l.b16 %v5723
        %v6147 = vunpack.c.l.b16 %v5724
        %v6148 = vunpack.c.h.b16 %v5724
        %v6149 = vunpack.c.l.b16 %v5725
        %v6150 = vunpack.c.l.b16 %v5726
        %v6151 = vunpack.c.h.b16 %v5726
        %v6152 = vunpack.c.l.b16 %v5727
        %v6153 = vunpack.c.l.b16 %v5728
        %v6154 = vunpack.c.h.b16 %v5728
        %v6155 = vunpack.c.l.b16 %v5729
        %v6156 = vunpack.c.l.b16 %v5730
        %v6157 = vunpack.c.h.b16 %v5730
        %v6158 = vunpack.c.l.b16 %v5731
        %v6159 = vunpack.c.l.b16 %v5732
        %v6160 = vunpack.c.h.b16 %v5732
        %v6161 = vunpack.c.l.b16 %v5733
        %v6162 = vunpack.c.l.b16 %v5734
        %v6163 = vunpack.c.h.b16 %v5734
        %v6164 = vunpack.c.l.b16 %v5735
        %v6165 = vunpack.c.l.b16 %v5736
        %v6166 = vunpack.c.h.b16 %v5736
        %v6167 = vunpack.c.l.b16 %v5737
        %v6168 = vunpack.c.l.b16 %v5738
        %v6169 = vunpack.c.h.b16 %v5738
        %v6170 = vunpack.c.l.b16 %v5739
        %v6171 = vunpack.c.l.b16 %v5740
        %v6172 = vunpack.c.h.b16 %v5740
        %v6173 = vunpack.c.l.b16 %v5741
        %v6174 = vunpack.c.l.b16 %v5742
        %v6175 = vunpack.c.h.b16 %v5742
        %v6176 = vunpack.c.l.b16 %v5743
        %v6177 = vunpack.c.l.b16 %v5744
        %v6178 = vunpack.c.h.b16 %v5744
        %v6179 = vunpack.c.l.b16 %v5745
        %v6180 = vunpack.c.l.b16 %v5746
        %v6181 = vunpack.c.h.b16 %v5746
        %v6182 = vunpack.c.l.b16 %v5747
        %v6183 = vunpack.c.l.b16 %v5748
        %v6184 = vunpack.c.h.b16 %v5748
        %v6185 = vunpack.c.l.b16 %v5749
        %v6186 = vunpack.c.l.b16 %v5750
        %v6187 = vunpack.c.h.b16 %v5750
        %v6188 = vunpack.c.l.b16 %v5751
        %v6189 = vunpack.c.l.b16 %v5752
        %v6190 = vunpack.c.h.b16 %v5752
        %v6191 = vunpack.c.l.b16 %v5753
        %v6192 = vunpack.c.l.b16 %v5754
        %v6193 = vunpack.c.h.b16 %v5754
        %v6194 = vunpack.c.l.b16 %v5755
        %v6195 = vunpack.c.l.b16 %v5756
        %v6196 = vunpack.c.h.b16 %v5756
        %v6197 = vunpack.c.l.b16 %v5757
        %v6198 = vunpack.c.l.b16 %v5758
        %v6199 = vunpack.c.h.b16 %v5758
        %v6200 = vunpack.c.l.b16 %v5759
        %v6201 = vunpack.c.l.b16 %v5760
        %v6202 = vunpack.c.h.b16 %v5760
        %v6203 = vunpack.c.l.b16 %v5761
        %v6204 = vunpack.c.l.b16 %v5762
        %v6205 = vunpack.c.h.b16 %v5762
        %v6206 = vunpack.c.l.b16 %v5763
        %v6207 = vunpack.c.l.b16 %v5764
        %v6208 = vunpack.c.h.b16 %v5764
        %v6209 = vunpack.c.l.b16 %v5765
        %v6210 = vunpack.c.l.b16 %v5766
        %v6211 = vunpack.c.h.b16 %v5766
        %v6212 = vunpack.c.l.b16 %v5767
        %v6213 = vunpack.c.l.b16 %v5768
        %v6214 = vunpack.c.h.b16 %v5768
        %v6215 = vunpack.c.l.b16 %v5769
        %v6216 = vunpack.c.l.b16 %v5770
        %v6217 = vunpack.c.h.b16 %v5770
        %v6218 = vunpack.c.l.b16 %v5771
        %v6219 = vunpack.c.l.b16 %v5772
        %v6220 = vunpack.c.h.b16 %v5772
        %v6221 = vunpack.c.l.b16 %v5773
        %v6222 = vunpack.c.l.b16 %v5774
        %v6223 = vunpack.c.h.b16 %v5774
        %v6224 = vunpack.c.l.b16 %v5775
        %v6225 = vunpack.c.l.b16 %v5776
        %v6226 = vunpack.c.h.b16 %v5776
        %v6227 = vunpack.c.l.b16 %v5777
        %v6228 = vunpack.c.l.b16 %v5778
        %v6229 = vunpack.c.h.b16 %v5778
        %v6230 = vunpack.c.l.b16 %v5779
        %v6231 = vunpack.c.l.b16 %v5780
        %v6232 = vunpack.c.h.b16 %v5780
        %v6233 = vunpack.c.l.b16 %v5781
        %v6234 = vunpack.c.l.b16 %v5782
        %v6235 = vunpack.c.h.b16 %v5782
        %v6236 = vunpack.c.l.b16 %v5783
        %v6237 = vunpack.c.l.b16 %v5784
        %v6238 = vunpack.c.h.b16 %v5784
        %v6239 = vunpack.c.l.b16 %v5785
        %v6240 = vunpack.c.l.b16 %v5786
        %v6241 = vunpack.c.h.b16 %v5786
        %v6242 = vunpack.c.l.b16 %v5787
        %v6243 = vunpack.c.l.b16 %v5788
        %v6244 = vunpack.c.h.b16 %v5788
        %v6245 = vunpack.c.l.b16 %v5789
        %v6246 = vunpack.c.l.b16 %v5790
        %v6247 = vunpack.c.h.b16 %v5790
        %v6248 = vunpack.c.l.b16 %v5791
        %v6249 = vunpack.c.l.b16 %v5792
        %v6250 = vunpack.c.h.b16 %v5792
        %v6251 = vunpack.c.l.b16 %v5793
        %v6252 = vunpack.c.l.b16 %v5794
        %v6253 = vunpack.c.h.b16 %v5794
        %v6254 = vunpack.c.l.b16 %v5795
        %v6255 = vunpack.c.l.b16 %v5796
        %v6256 = vunpack.c.h.b16 %v5796
        %v6257 = vunpack.c.l.b16 %v5797
        %v6258 = vunpack.c.l.b16 %v5798
        %v6259 = vunpack.c.h.b16 %v5798
        %v6260 = vunpack.c.l.b16 %v5799
        %v6261 = vunpack.c.l.b16 %v5800
        %v6262 = vunpack.c.h.b16 %v5800
        %v6263 = vunpack.c.l.b16 %v5801
        %v6264 = vunpack.c.l.b16 %v5802
        %v6265 = vunpack.c.h.b16 %v5802
        %v6266 = vunpack.c.l.b16 %v5803
        %v6267 = vpack.c.b16 %v6018, %v6015
        %v6268 = vpack.c.b16 %v6019, %v6016
        %v6269 = vpack.c.b16 %v6020, %v6017
        %v6270 = vpack.c.b16 %v6024, %v6021
        %v6271 = vpack.c.b16 %v6025, %v6022
        %v6272 = vpack.c.b16 %v6026, %v6023
        %v6273 = vpack.c.b16 %v6030, %v6027
        %v6274 = vpack.c.b16 %v6031, %v6028
        %v6275 = vpack.c.b16 %v6032, %v6029
        %v6276 = vpack.c.b16 %v6036, %v6033
        %v6277 = vpack.c.b16 %v6037, %v6034
        %v6278 = vpack.c.b16 %v6038, %v6035
        %v6279 = vpack.c.b16 %v6042, %v6039
        %v6280 = vpack.c.b16 %v6043, %v6040
        %v6281 = vpack.c.b16 %v6044, %v6041
        %v6282 = vpack.c.b16 %v6048, %v6045
        %v6283 = vpack.c.b16 %v6049, %v6046
        %v6284 = vpack.c.b16 %v6050, %v6047
        %v6285 = vpack.c.b16 %v6054, %v6051
        %v6286 = vpack.c.b16 %v6055, %v6052
        %v6287 = vpack.c.b16 %v6056, %v6053
        %v6288 = vpack.c.b16 %v6060, %v6057
        %v6289 = vpack.c.b16 %v6061, %v6058
        %v6290 = vpack.c.b16 %v6062, %v6059
        %v6291 = vpack.c.b16 %v6066, %v6063
        %v6292 = vpack.c.b16 %v6067, %v6064
        %v6293 = vpack.c.b16 %v6068, %v6065
        %v6294 = vpack.c.b16 %v6072, %v6069
        %v6295 = vpack.c.b16 %v6073, %v6070
        %v6296 = vpack.c.b16 %v6074, %v6071
        %v6297 = vpack.c.b16 %v6078, %v6075
        %v6298 = vpack.c.b16 %v6079, %v6076
        %v6299 = vpack.c.b16 %v6080, %v6077
        %v6300 = vpack.c.b16 %v6084, %v6081
        %v6301 = vpack.c.b16 %v6085, %v6082
        %v6302 = vpack.c.b16 %v6086, %v6083
        %v6303 = vpack.c.b16 %v6090, %v6087
        %v6304 = vpack.c.b16 %v6091, %v6088
        %v6305 = vpack.c.b16 %v6092, %v6089
        %v6306 = vpack.c.b16 %v6096, %v6093
        %v6307 = vpack.c.b16 %v6097, %v6094
        %v6308 = vpack.c.b16 %v6098, %v6095
        %v6309 = vpack.c.b16 %v6102, %v6099
        %v6310 = vpack.c.b16 %v6103, %v6100
        %v6311 = vpack.c.b16 %v6104, %v6101
        %v6312 = vpack.c.b16 %v6108, %v6105
        %v6313 = vpack.c.b16 %v6109, %v6106
        %v6314 = vpack.c.b16 %v6110, %v6107
        %v6315 = vpack.c.b16 %v6114, %v6111
        %v6316 = vpack.c.b16 %v6115, %v6112
        %v6317 = vpack.c.b16 %v6116, %v6113
        %v6318 = vpack.c.b16 %v6120, %v6117
        %v6319 = vpack.c.b16 %v6121, %v6118
        %v6320 = vpack.c.b16 %v6122, %v6119
        %v6321 = vpack.c.b16 %v6126, %v6123
        %v6322 = vpack.c.b16 %v6127, %v6124
        %v6323 = vpack.c.b16 %v6128, %v6125
        %v6324 = vpack.c.b16 %v6132, %v6129
        %v6325 = vpack.c.b16 %v6133, %v6130
        %v6326 = vpack.c.b16 %v6134, %v6131
        %v6327 = vpack.c.b16 %v6138, %v6135
        %v6328 = vpack.c.b16 %v6139, %v6136
        %v6329 = vpack.c.b16 %v6140, %v6137
        %v6330 = vpack.c.b16 %v6144, %v6141
        %v6331 = vpack.c.b16 %v6145, %v6142
        %v6332 = vpack.c.b16 %v6146, %v6143
        %v6333 = vpack.c.b16 %v6150, %v6147
        %v6334 = vpack.c.b16 %v6151, %v6148
        %v6335 = vpack.c.b16 %v6152, %v6149
        %v6336 = vpack.c.b16 %v6156, %v6153
        %v6337 = vpack.c.b16 %v6157, %v6154
        %v6338 = vpack.c.b16 %v6158, %v6155
        %v6339 = vpack.c.b16 %v6162, %v6159
        %v6340 = vpack.c.b16 %v6163, %v6160
        %v6341 = vpack.c.b16 %v6164, %v6161
        %v6342 = vpack.c.b16 %v6168, %v6165
        %v6343 = vpack.c.b16 %v6169, %v6166
        %v6344 = vpack.c.b16 %v6170, %v6167
        %v6345 = vpack.c.b16 %v6174, %v6171
        %v6346 = vpack.c.b16 %v6175, %v6172
        %v6347 = vpack.c.b16 %v6176, %v6173
        %v6348 = vpack.c.b16 %v6180, %v6177
        %v6349 = vpack.c.b16 %v6181, %v6178
        %v6350 = vpack.c.b16 %v6182, %v6179
        %v6351 = vpack.c.b16 %v6186, %v6183
        %v6352 = vpack.c.b16 %v6187, %v6184
        %v6353 = vpack.c.b16 %v6188, %v6185
        %v6354 = vpack.c.b16 %v6192, %v6189
        %v6355 = vpack.c.b16 %v6193, %v6190
        %v6356 = vpack.c.b16 %v6194, %v6191
        %v6357 = vpack.c.b16 %v6198, %v6195
        %v6358 = vpack.c.b16 %v6199, %v6196
        %v6359 = vpack.c.b16 %v6200, %v6197
        %v6360 = vpack.c.b16 %v6204, %v6201
        %v6361 = vpack.c.b16 %v6205, %v6202
        %v6362 = vpack.c.b16 %v6206, %v6203
        %v6363 = vpack.c.b16 %v6210, %v6207
        %v6364 = vpack.c.b16 %v6211, %v6208
        %v6365 = vpack.c.b16 %v6212, %v6209
        %v6366 = vpack.c.b16 %v6216, %v6213
        %v6367 = vpack.c.b16 %v6217, %v6214
        %v6368 = vpack.c.b16 %v6218, %v6215
        %v6369 = vpack.c.b16 %v6222, %v6219
        %v6370 = vpack.c.b16 %v6223, %v6220
        %v6371 = vpack.c.b16 %v6224, %v6221
        %v6372 = vpack.c.b16 %v6228, %v6225
        %v6373 = vpack.c.b16 %v6229, %v6226
        %v6374 = vpack.c.b16 %v6230, %v6227
        %v6375 = vpack.c.b16 %v6234, %v6231
        %v6376 = vpack.c.b16 %v6235, %v6232
        %v6377 = vpack.c.b16 %v6236, %v6233
        %v6378 = vpack.c.b16 %v6240, %v6237
        %v6379 = vpack.c.b16 %v6241, %v6238
        %v6380 = vpack.c.b16 %v6242, %v6239
        %v6381 = vpack.c.b16 %v6246, %v6243
        %v6382 = vpack.c.b16 %v6247, %v6244
        %v6383 = vpack.c.b16 %v6248, %v6245
        %v6384 = vpack.c.b16 %v6252, %v6249
        %v6385 = vpack.c.b16 %v6253, %v6250
        %v6386 = vpack.c.b16 %v6254, %v6251
        %v6387 = vpack.c.b16 %v6258, %v6255
        %v6388 = vpack.c.b16 %v6259, %v6256
        %v6389 = vpack.c.b16 %v6260, %v6257
        %v6390 = vpack.c.b16 %v6264, %v6261
        %v6391 = vpack.c.b16 %v6265, %v6262
        %v6392 = vpack.c.b16 %v6266, %v6263
        %v6513 = vunpack.c.l.b16 %v5804
        %v6514 = vunpack.c.l.b16 %v5805
        %v6515 = vunpack.c.l.b16 %v5806
        %v6516 = vunpack.c.l.b16 %v5807
        %v6517 = vunpack.c.l.b16 %v5808
        %v6518 = vunpack.c.l.b16 %v5809
        %v6519 = vunpack.c.l.b16 %v5810
        %v6520 = vunpack.c.l.b16 %v5811
        %v6521 = vunpack.c.l.b16 %v5812
        %v6522 = vunpack.c.l.b16 %v5813
        %v6523 = vunpack.c.l.b16 %v5814
        %v6524 = vunpack.c.l.b16 %v5815
        %v6525 = vunpack.c.l.b16 %v5816
        %v6526 = vunpack.c.l.b16 %v5817
        %v6527 = vunpack.c.l.b16 %v5818
        %v6528 = vunpack.c.l.b16 %v5819
        %v6529 = vunpack.c.l.b16 %v5820
        %v6530 = vunpack.c.l.b16 %v5821
        %v6531 = vunpack.c.l.b16 %v5822
        %v6532 = vunpack.c.l.b16 %v5823
        %v6533 = vunpack.c.l.b16 %v5824
        %v6534 = vunpack.c.l.b16 %v5825
        %v6535 = vunpack.c.l.b16 %v5826
        %v6536 = vunpack.c.l.b16 %v5827
        %v6537 = vunpack.c.l.b16 %v5828
        %v6538 = vunpack.c.l.b16 %v5829
        %v6539 = vunpack.c.l.b16 %v5830
        %v6540 = vunpack.c.l.b16 %v5831
        %v6541 = vunpack.c.l.b16 %v5832
        %v6542 = vunpack.c.l.b16 %v5833
        %v6543 = vunpack.c.l.b16 %v5834
        %v6544 = vunpack.c.l.b16 %v5835
        %v6545 = vunpack.c.l.b16 %v5836
        %v6546 = vunpack.c.l.b16 %v5837
        %v6547 = vunpack.c.l.b16 %v5838
        %v6548 = vunpack.c.l.b16 %v5839
        %v6549 = vpack.c.b16 %v6514, %v6513
        %v6550 = vpack.c.b16 %v6516, %v6515
        %v6551 = vpack.c.b16 %v6518, %v6517
        %v6552 = vpack.c.b16 %v6520, %v6519
        %v6553 = vpack.c.b16 %v6522, %v6521
        %v6554 = vpack.c.b16 %v6524, %v6523
        %v6555 = vpack.c.b16 %v6526, %v6525
        %v6556 = vpack.c.b16 %v6528, %v6527
        %v6557 = vpack.c.b16 %v6530, %v6529
        %v6558 = vpack.c.b16 %v6532, %v6531
        %v6559 = vpack.c.b16 %v6534, %v6533
        %v6560 = vpack.c.b16 %v6536, %v6535
        %v6561 = vpack.c.b16 %v6538, %v6537
        %v6562 = vpack.c.b16 %v6540, %v6539
        %v6563 = vpack.c.b16 %v6542, %v6541
        %v6564 = vpack.c.b16 %v6544, %v6543
        %v6565 = vpack.c.b16 %v6546, %v6545
        %v6566 = vpack.c.b16 %v6548, %v6547
        %vm6585 = vcmask 261120
        %v6587 = vsel %vm6585, %v6269, 0
        %v6590 = vsel %vm6585, %v6272, 0
        %v6593 = vsel %vm6585, %v6275, 0
        %v6596 = vsel %vm6585, %v6278, 0
        %v6599 = vsel %vm6585, %v6281, 0
        %v6602 = vsel %vm6585, %v6284, 0
        %v6605 = vsel %vm6585, %v6287, 0
        %v6608 = vsel %vm6585, %v6290, 0
        %v6611 = vsel %vm6585, %v6293, 0
        %v6614 = vsel %vm6585, %v6296, 0
        %v6617 = vsel %vm6585, %v6299, 0
        %v6620 = vsel %vm6585, %v6302, 0
        %v6623 = vsel %vm6585, %v6305, 0
        %v6626 = vsel %vm6585, %v6308, 0
        %v6629 = vsel %vm6585, %v6311, 0
        %v6632 = vsel %vm6585, %v6314, 0
        %v6635 = vsel %vm6585, %v6317, 0
        %v6638 = vsel %vm6585, %v6320, 0
        %v6641 = vsel %vm6585, %v6323, 0
        %v6644 = vsel %vm6585, %v6326, 0
        %v6647 = vsel %vm6585, %v6329, 0
        %v6650 = vsel %vm6585, %v6332, 0
        %v6653 = vsel %vm6585, %v6335, 0
        %v6656 = vsel %vm6585, %v6338, 0
        %v6659 = vsel %vm6585, %v6341, 0
        %v6662 = vsel %vm6585, %v6344, 0
        %v6665 = vsel %vm6585, %v6347, 0
        %v6668 = vsel %vm6585, %v6350, 0
        %v6671 = vsel %vm6585, %v6353, 0
        %v6674 = vsel %vm6585, %v6356, 0
        %v6677 = vsel %vm6585, %v6359, 0
        %v6680 = vsel %vm6585, %v6362, 0
        %v6683 = vsel %vm6585, %v6365, 0
        %v6686 = vsel %vm6585, %v6368, 0
        %v6689 = vsel %vm6585, %v6371, 0
        %v6692 = vsel %vm6585, %v6374, 0
        %v6695 = vsel %vm6585, %v6377, 0
        %v6698 = vsel %vm6585, %v6380, 0
        %v6701 = vsel %vm6585, %v6383, 0
        %v6704 = vsel %vm6585, %v6386, 0
        %v6707 = vsel %vm6585, %v6389, 0
        %v6710 = vsel %vm6585, %v6392, 0
        %6712 = vmatprep.subr.bf16.mxu0 0
        %6713 = vmatpush1.bf16.msra.mxu0 %v6556
        %6714 = vmatprep.subr.bf16.mxu0 0
        %6715 = vmatpush1.bf16.msra.mxu0 %v6555
        %6716 = vmatprep.subr.bf16.mxu0 0
        %6717 = vmatpush1.bf16.msra.mxu0 %v6554
        %6718 = vmatprep.subr.bf16.mxu0 0
        %6719 = vmatpush1.bf16.msra.mxu0 %v6553
        %6720 = vmatprep.subr.bf16.mxu0 0
        %6721 = vmatpush1.bf16.msra.mxu0 %v6552
        %6722 = vmatprep.subr.bf16.mxu0 0
        %6723 = vmatpush1.bf16.msra.mxu0 %v6551
        %6724 = vmatprep.subr.bf16.mxu0 0
        %6725 = vmatpush1.bf16.msra.mxu0 %v6550
        %6726 = vmatprep.subr.bf16.mxu0 0
        %6727 = vmatpush1.bf16.msra.mxu0 %v6549
        %6728 = vmatprep.subr.bf16.mxu0 0
        %6729 = vmatpush2.bf16.msra.mxu0 %v6564
        %6730 = vmatprep.subr.bf16.mxu0 0
        %6731 = vmatpush2.bf16.msra.mxu0 %v6563
        %6732 = vmatprep.subr.bf16.mxu0 0
        %6733 = vmatpush2.bf16.msra.mxu0 %v6562
        %6734 = vmatprep.subr.bf16.mxu0 0
        %6735 = vmatpush2.bf16.msra.mxu0 %v6561
        %6736 = vmatprep.subr.bf16.mxu0 0
        %6737 = vmatpush2.bf16.msra.mxu0 %v6560
        %6738 = vmatprep.subr.bf16.mxu0 0
        %6739 = vmatpush2.bf16.msra.mxu0 %v6559
        %6740 = vmatprep.subr.bf16.mxu0 0
        %6741 = vmatpush2.bf16.msra.mxu0 %v6558
        %6742 = vmatprep.subr.bf16.mxu0 0
        %6743 = vmatpush2.bf16.msra.mxu0 %v6557
        %6744 = vmatprep.mubr.bf16.mxu0 %v6268
        %6745 = vmatmul.mubr.bf16.gmra.mxu0 %v6267
        %v6746 = vpop.f32.mrf.mxu0
        %v6747 = vadd.f32 %v5845, %v6746
        %v6748 = vpop.f32.mrf.mxu0
        %v6749 = vpop.f32.mrf.mxu0
        %v6750 = vadd.f32 %v5845, %v6749
        %v6751 = vpop.f32.mrf.mxu0
        %6752 = vmatprep.mubr.bf16.mxu0 %v6271
        %6753 = vmatmul.mubr.bf16.gmra.mxu0 %v6270
        %v6754 = vpop.f32.mrf.mxu0
        %v6755 = vadd.f32 %v5845, %v6754
        %v6756 = vpop.f32.mrf.mxu0
        %v6757 = vpop.f32.mrf.mxu0
        %v6758 = vadd.f32 %v5845, %v6757
        %v6759 = vpop.f32.mrf.mxu0
        %6760 = vmatprep.mubr.bf16.mxu0 %v6274
        %6761 = vmatmul.mubr.bf16.gmra.mxu0 %v6273
        %v6762 = vpop.f32.mrf.mxu0
        %v6763 = vadd.f32 %v5845, %v6762
        %v6764 = vpop.f32.mrf.mxu0
        %v6765 = vpop.f32.mrf.mxu0
        %v6766 = vadd.f32 %v5845, %v6765
        %v6767 = vpop.f32.mrf.mxu0
        %6768 = vmatprep.mubr.bf16.mxu0 %v6277
        %6769 = vmatmul.mubr.bf16.gmra.mxu0 %v6276
        %v6770 = vpop.f32.mrf.mxu0
        %v6771 = vadd.f32 %v5845, %v6770
        %v6772 = vpop.f32.mrf.mxu0
        %v6773 = vpop.f32.mrf.mxu0
        %v6774 = vadd.f32 %v5845, %v6773
        %v6775 = vpop.f32.mrf.mxu0
        %6776 = vmatprep.mubr.bf16.mxu0 %v6280
        %6777 = vmatmul.mubr.bf16.gmra.mxu0 %v6279
        %v6778 = vpop.f32.mrf.mxu0
        %v6779 = vadd.f32 %v5845, %v6778
        %v6780 = vpop.f32.mrf.mxu0
        %v6781 = vpop.f32.mrf.mxu0
        %v6782 = vadd.f32 %v5845, %v6781
        %v6783 = vpop.f32.mrf.mxu0
        %6784 = vmatprep.mubr.bf16.mxu0 %v6283
        %6785 = vmatmul.mubr.bf16.gmra.mxu0 %v6282
        %v6786 = vpop.f32.mrf.mxu0
        %v6787 = vadd.f32 %v5845, %v6786
        %v6788 = vpop.f32.mrf.mxu0
        %v6789 = vpop.f32.mrf.mxu0
        %v6790 = vadd.f32 %v5845, %v6789
        %v6791 = vpop.f32.mrf.mxu0
        %6792 = vmatprep.mubr.bf16.mxu0 %v6286
        %6793 = vmatmul.mubr.bf16.gmra.mxu0 %v6285
        %v6794 = vpop.f32.mrf.mxu0
        %v6795 = vadd.f32 %v5845, %v6794
        %v6796 = vpop.f32.mrf.mxu0
        %v6797 = vpop.f32.mrf.mxu0
        %v6798 = vadd.f32 %v5845, %v6797
        %v6799 = vpop.f32.mrf.mxu0
        %6800 = vmatprep.mubr.bf16.mxu0 %v6289
        %6801 = vmatmul.mubr.bf16.gmra.mxu0 %v6288
        %v6802 = vpop.f32.mrf.mxu0
        %v6803 = vadd.f32 %v5845, %v6802
        %v6804 = vpop.f32.mrf.mxu0
        %v6805 = vpop.f32.mrf.mxu0
        %v6806 = vadd.f32 %v5845, %v6805
        %v6807 = vpop.f32.mrf.mxu0
        %6808 = vmatprep.mubr.bf16.mxu0 %v6292
        %6809 = vmatmul.mubr.bf16.gmra.mxu0 %v6291
        %v6810 = vpop.f32.mrf.mxu0
        %v6811 = vadd.f32 %v5845, %v6810
        %v6812 = vpop.f32.mrf.mxu0
        %v6813 = vpop.f32.mrf.mxu0
        %v6814 = vadd.f32 %v5845, %v6813
        %v6815 = vpop.f32.mrf.mxu0
        %6816 = vmatprep.mubr.bf16.mxu0 %v6295
        %6817 = vmatmul.mubr.bf16.gmra.mxu0 %v6294
        %v6818 = vpop.f32.mrf.mxu0
        %v6819 = vadd.f32 %v5845, %v6818
        %v6820 = vpop.f32.mrf.mxu0
        %v6821 = vpop.f32.mrf.mxu0
        %v6822 = vadd.f32 %v5845, %v6821
        %v6823 = vpop.f32.mrf.mxu0
        %6824 = vmatprep.mubr.bf16.mxu0 %v6298
        %6825 = vmatmul.mubr.bf16.gmra.mxu0 %v6297
        %v6826 = vpop.f32.mrf.mxu0
        %v6827 = vadd.f32 %v5845, %v6826
        %v6828 = vpop.f32.mrf.mxu0
        %v6829 = vpop.f32.mrf.mxu0
        %v6830 = vadd.f32 %v5845, %v6829
        %v6831 = vpop.f32.mrf.mxu0
        %6832 = vmatprep.mubr.bf16.mxu0 %v6301
        %6833 = vmatmul.mubr.bf16.gmra.mxu0 %v6300
        %v6834 = vpop.f32.mrf.mxu0
        %v6835 = vadd.f32 %v5845, %v6834
        %v6836 = vpop.f32.mrf.mxu0
        %v6837 = vpop.f32.mrf.mxu0
        %v6838 = vadd.f32 %v5845, %v6837
        %v6839 = vpop.f32.mrf.mxu0
        %6840 = vmatprep.mubr.bf16.mxu0 %v6304
        %6841 = vmatmul.mubr.bf16.gmra.mxu0 %v6303
        %v6842 = vpop.f32.mrf.mxu0
        %v6843 = vadd.f32 %v5845, %v6842
        %v6844 = vpop.f32.mrf.mxu0
        %v6845 = vpop.f32.mrf.mxu0
        %v6846 = vadd.f32 %v5845, %v6845
        %v6847 = vpop.f32.mrf.mxu0
        %6848 = vmatprep.mubr.bf16.mxu0 %v6307
        %6849 = vmatmul.mubr.bf16.gmra.mxu0 %v6306
        %v6850 = vpop.f32.mrf.mxu0
        %v6851 = vadd.f32 %v5845, %v6850
        %v6852 = vpop.f32.mrf.mxu0
        %v6853 = vpop.f32.mrf.mxu0
        %v6854 = vadd.f32 %v5845, %v6853
        %v6855 = vpop.f32.mrf.mxu0
        %6856 = vmatprep.mubr.bf16.mxu0 %v6310
        %6857 = vmatmul.mubr.bf16.gmra.mxu0 %v6309
        %v6858 = vpop.f32.mrf.mxu0
        %v6859 = vadd.f32 %v5845, %v6858
        %v6860 = vpop.f32.mrf.mxu0
        %v6861 = vpop.f32.mrf.mxu0
        %v6862 = vadd.f32 %v5845, %v6861
        %v6863 = vpop.f32.mrf.mxu0
        %6864 = vmatprep.mubr.bf16.mxu0 %v6313
        %6865 = vmatmul.mubr.bf16.gmra.mxu0 %v6312
        %v6866 = vpop.f32.mrf.mxu0
        %v6867 = vadd.f32 %v5845, %v6866
        %v6868 = vpop.f32.mrf.mxu0
        %v6869 = vpop.f32.mrf.mxu0
        %v6870 = vadd.f32 %v5845, %v6869
        %v6871 = vpop.f32.mrf.mxu0
        %6872 = vmatprep.mubr.bf16.mxu0 %v6316
        %6873 = vmatmul.mubr.bf16.gmra.mxu0 %v6315
        %v6874 = vpop.f32.mrf.mxu0
        %v6875 = vadd.f32 %v5845, %v6874
        %v6876 = vpop.f32.mrf.mxu0
        %v6877 = vpop.f32.mrf.mxu0
        %v6878 = vadd.f32 %v5845, %v6877
        %v6879 = vpop.f32.mrf.mxu0
        %6880 = vmatprep.mubr.bf16.mxu0 %v6319
        %6881 = vmatmul.mubr.bf16.gmra.mxu0 %v6318
        %v6882 = vpop.f32.mrf.mxu0
        %v6883 = vadd.f32 %v5845, %v6882
        %v6884 = vpop.f32.mrf.mxu0
        %v6885 = vpop.f32.mrf.mxu0
        %v6886 = vadd.f32 %v5845, %v6885
        %v6887 = vpop.f32.mrf.mxu0
        %6888 = vmatprep.mubr.bf16.mxu0 %v6322
        %6889 = vmatmul.mubr.bf16.gmra.mxu0 %v6321
        %v6890 = vpop.f32.mrf.mxu0
        %v6891 = vadd.f32 %v5845, %v6890
        %v6892 = vpop.f32.mrf.mxu0
        %v6893 = vpop.f32.mrf.mxu0
        %v6894 = vadd.f32 %v5845, %v6893
        %v6895 = vpop.f32.mrf.mxu0
        %6896 = vmatprep.mubr.bf16.mxu0 %v6325
        %6897 = vmatmul.mubr.bf16.gmra.mxu0 %v6324
        %v6898 = vpop.f32.mrf.mxu0
        %v6899 = vadd.f32 %v5845, %v6898
        %v6900 = vpop.f32.mrf.mxu0
        %v6901 = vpop.f32.mrf.mxu0
        %v6902 = vadd.f32 %v5845, %v6901
        %v6903 = vpop.f32.mrf.mxu0
        %6904 = vmatprep.mubr.bf16.mxu0 %v6328
        %6905 = vmatmul.mubr.bf16.gmra.mxu0 %v6327
        %v6906 = vpop.f32.mrf.mxu0
        %v6907 = vadd.f32 %v5845, %v6906
        %v6908 = vpop.f32.mrf.mxu0
        %v6909 = vpop.f32.mrf.mxu0
        %v6910 = vadd.f32 %v5845, %v6909
        %v6911 = vpop.f32.mrf.mxu0
        %6912 = vmatprep.mubr.bf16.mxu0 %v6331
        %6913 = vmatmul.mubr.bf16.gmra.mxu0 %v6330
        %v6914 = vpop.f32.mrf.mxu0
        %v6915 = vadd.f32 %v5845, %v6914
        %v6916 = vpop.f32.mrf.mxu0
        %v6917 = vpop.f32.mrf.mxu0
        %v6918 = vadd.f32 %v5845, %v6917
        %v6919 = vpop.f32.mrf.mxu0
        %6920 = vmatprep.mubr.bf16.mxu0 %v6334
        %6921 = vmatmul.mubr.bf16.gmra.mxu0 %v6333
        %v6922 = vpop.f32.mrf.mxu0
        %v6923 = vadd.f32 %v5845, %v6922
        %v6924 = vpop.f32.mrf.mxu0
        %v6925 = vpop.f32.mrf.mxu0
        %v6926 = vadd.f32 %v5845, %v6925
        %v6927 = vpop.f32.mrf.mxu0
        %6928 = vmatprep.mubr.bf16.mxu0 %v6337
        %6929 = vmatmul.mubr.bf16.gmra.mxu0 %v6336
        %v6930 = vpop.f32.mrf.mxu0
        %v6931 = vadd.f32 %v5845, %v6930
        %v6932 = vpop.f32.mrf.mxu0
        %v6933 = vpop.f32.mrf.mxu0
        %v6934 = vadd.f32 %v5845, %v6933
        %v6935 = vpop.f32.mrf.mxu0
        %6936 = vmatprep.mubr.bf16.mxu0 %v6340
        %6937 = vmatmul.mubr.bf16.gmra.mxu0 %v6339
        %v6938 = vpop.f32.mrf.mxu0
        %v6939 = vadd.f32 %v5845, %v6938
        %v6940 = vpop.f32.mrf.mxu0
        %v6941 = vpop.f32.mrf.mxu0
        %v6942 = vadd.f32 %v5845, %v6941
        %v6943 = vpop.f32.mrf.mxu0
        %6944 = vmatprep.mubr.bf16.mxu0 %v6343
        %6945 = vmatmul.mubr.bf16.gmra.mxu0 %v6342
        %v6946 = vpop.f32.mrf.mxu0
        %v6947 = vadd.f32 %v5845, %v6946
        %v6948 = vpop.f32.mrf.mxu0
        %v6949 = vpop.f32.mrf.mxu0
        %v6950 = vadd.f32 %v5845, %v6949
        %v6951 = vpop.f32.mrf.mxu0
        %6952 = vmatprep.mubr.bf16.mxu0 %v6346
        %6953 = vmatmul.mubr.bf16.gmra.mxu0 %v6345
        %v6954 = vpop.f32.mrf.mxu0
        %v6955 = vadd.f32 %v5845, %v6954
        %v6956 = vpop.f32.mrf.mxu0
        %v6957 = vpop.f32.mrf.mxu0
        %v6958 = vadd.f32 %v5845, %v6957
        %v6959 = vpop.f32.mrf.mxu0
        %6960 = vmatprep.mubr.bf16.mxu0 %v6349
        %6961 = vmatmul.mubr.bf16.gmra.mxu0 %v6348
        %v6962 = vpop.f32.mrf.mxu0
        %v6963 = vadd.f32 %v5845, %v6962
        %v6964 = vpop.f32.mrf.mxu0
        %v6965 = vpop.f32.mrf.mxu0
        %v6966 = vadd.f32 %v5845, %v6965
        %v6967 = vpop.f32.mrf.mxu0
        %6968 = vmatprep.mubr.bf16.mxu0 %v6352
        %6969 = vmatmul.mubr.bf16.gmra.mxu0 %v6351
        %v6970 = vpop.f32.mrf.mxu0
        %v6971 = vadd.f32 %v5845, %v6970
        %v6972 = vpop.f32.mrf.mxu0
        %v6973 = vpop.f32.mrf.mxu0
        %v6974 = vadd.f32 %v5845, %v6973
        %v6975 = vpop.f32.mrf.mxu0
        %6976 = vmatprep.mubr.bf16.mxu0 %v6355
        %6977 = vmatmul.mubr.bf16.gmra.mxu0 %v6354
        %v6978 = vpop.f32.mrf.mxu0
        %v6979 = vadd.f32 %v5845, %v6978
        %v6980 = vpop.f32.mrf.mxu0
        %v6981 = vpop.f32.mrf.mxu0
        %v6982 = vadd.f32 %v5845, %v6981
        %v6983 = vpop.f32.mrf.mxu0
        %6984 = vmatprep.mubr.bf16.mxu0 %v6358
        %6985 = vmatmul.mubr.bf16.gmra.mxu0 %v6357
        %v6986 = vpop.f32.mrf.mxu0
        %v6987 = vadd.f32 %v5845, %v6986
        %v6988 = vpop.f32.mrf.mxu0
        %v6989 = vpop.f32.mrf.mxu0
        %v6990 = vadd.f32 %v5845, %v6989
        %v6991 = vpop.f32.mrf.mxu0
        %6992 = vmatprep.mubr.bf16.mxu0 %v6361
        %6993 = vmatmul.mubr.bf16.gmra.mxu0 %v6360
        %v6994 = vpop.f32.mrf.mxu0
        %v6995 = vadd.f32 %v5845, %v6994
        %v6996 = vpop.f32.mrf.mxu0
        %v6997 = vpop.f32.mrf.mxu0
        %v6998 = vadd.f32 %v5845, %v6997
        %v6999 = vpop.f32.mrf.mxu0
        %7000 = vmatprep.mubr.bf16.mxu0 %v6364
        %7001 = vmatmul.mubr.bf16.gmra.mxu0 %v6363
        %v7002 = vpop.f32.mrf.mxu0
        %v7003 = vadd.f32 %v5845, %v7002
        %v7004 = vpop.f32.mrf.mxu0
        %v7005 = vpop.f32.mrf.mxu0
        %v7006 = vadd.f32 %v5845, %v7005
        %v7007 = vpop.f32.mrf.mxu0
        %7008 = vmatprep.mubr.bf16.mxu0 %v6367
        %7009 = vmatmul.mubr.bf16.gmra.mxu0 %v6366
        %v7010 = vpop.f32.mrf.mxu0
        %v7011 = vadd.f32 %v5845, %v7010
        %v7012 = vpop.f32.mrf.mxu0
        %v7013 = vpop.f32.mrf.mxu0
        %v7014 = vadd.f32 %v5845, %v7013
        %v7015 = vpop.f32.mrf.mxu0
        %7016 = vmatprep.mubr.bf16.mxu0 %v6370
        %7017 = vmatmul.mubr.bf16.gmra.mxu0 %v6369
        %v7018 = vpop.f32.mrf.mxu0
        %v7019 = vadd.f32 %v5845, %v7018
        %v7020 = vpop.f32.mrf.mxu0
        %v7021 = vpop.f32.mrf.mxu0
        %v7022 = vadd.f32 %v5845, %v7021
        %v7023 = vpop.f32.mrf.mxu0
        %7024 = vmatprep.mubr.bf16.mxu0 %v6373
        %7025 = vmatmul.mubr.bf16.gmra.mxu0 %v6372
        %v7026 = vpop.f32.mrf.mxu0
        %v7027 = vadd.f32 %v5845, %v7026
        %v7028 = vpop.f32.mrf.mxu0
        %v7029 = vpop.f32.mrf.mxu0
        %v7030 = vadd.f32 %v5845, %v7029
        %v7031 = vpop.f32.mrf.mxu0
        %7032 = vmatprep.mubr.bf16.mxu0 %v6376
        %7033 = vmatmul.mubr.bf16.gmra.mxu0 %v6375
        %v7034 = vpop.f32.mrf.mxu0
        %v7035 = vadd.f32 %v5845, %v7034
        %v7036 = vpop.f32.mrf.mxu0
        %v7037 = vpop.f32.mrf.mxu0
        %v7038 = vadd.f32 %v5845, %v7037
        %v7039 = vpop.f32.mrf.mxu0
        %7040 = vmatprep.mubr.bf16.mxu0 %v6379
        %7041 = vmatmul.mubr.bf16.gmra.mxu0 %v6378
        %v7042 = vpop.f32.mrf.mxu0
        %v7043 = vadd.f32 %v5845, %v7042
        %v7044 = vpop.f32.mrf.mxu0
        %v7045 = vpop.f32.mrf.mxu0
        %v7046 = vadd.f32 %v5845, %v7045
        %v7047 = vpop.f32.mrf.mxu0
        %7048 = vmatprep.mubr.bf16.mxu0 %v6382
        %7049 = vmatmul.mubr.bf16.gmra.mxu0 %v6381
        %v7050 = vpop.f32.mrf.mxu0
        %v7051 = vadd.f32 %v5845, %v7050
        %v7052 = vpop.f32.mrf.mxu0
        %v7053 = vpop.f32.mrf.mxu0
        %v7054 = vadd.f32 %v5845, %v7053
        %v7055 = vpop.f32.mrf.mxu0
        %7056 = vmatprep.mubr.bf16.mxu0 %v6385
        %7057 = vmatmul.mubr.bf16.gmra.mxu0 %v6384
        %v7058 = vpop.f32.mrf.mxu0
        %v7059 = vadd.f32 %v5845, %v7058
        %v7060 = vpop.f32.mrf.mxu0
        %v7061 = vpop.f32.mrf.mxu0
        %v7062 = vadd.f32 %v5845, %v7061
        %v7063 = vpop.f32.mrf.mxu0
        %7064 = vmatprep.mubr.bf16.mxu0 %v6388
        %7065 = vmatmul.mubr.bf16.gmra.mxu0 %v6387
        %v7066 = vpop.f32.mrf.mxu0
        %v7067 = vadd.f32 %v5845, %v7066
        %v7068 = vpop.f32.mrf.mxu0
        %v7069 = vpop.f32.mrf.mxu0
        %v7070 = vadd.f32 %v5845, %v7069
        %v7071 = vpop.f32.mrf.mxu0
        %7072 = vmatprep.mubr.bf16.mxu0 %v6391
        %7073 = vmatmul.mubr.bf16.gmra.mxu0 %v6390
        %v7074 = vpop.f32.mrf.mxu0
        %v7075 = vadd.f32 %v5845, %v7074
        %v7076 = vpop.f32.mrf.mxu0
        %v7077 = vpop.f32.mrf.mxu0
        %v7078 = vadd.f32 %v5845, %v7077
        %v7079 = vpop.f32.mrf.mxu0
        %7080 = vdwg.mxu0
        %7081 = vmatprep.subr.bf16.mxu0 0
        %7082 = vmatpush1.bf16.msra.mxu0 0
        %7083 = vmatprep.subr.bf16.mxu0 0
        %7084 = vmatpush1.bf16.msra.mxu0 0
        %7085 = vmatprep.subr.bf16.mxu0 0
        %7086 = vmatpush1.bf16.msra.mxu0 0
        %7087 = vmatprep.subr.bf16.mxu0 0
        %7088 = vmatpush1.bf16.msra.mxu0 0
        %7089 = vmatprep.subr.bf16.mxu0 0
        %7090 = vmatpush1.bf16.msra.mxu0 0
        %7091 = vmatprep.subr.bf16.mxu0 0
        %7092 = vmatpush1.bf16.msra.mxu0 0
        %7093 = vmatprep.subr.bf16.mxu0 0
        %7094 = vmatpush1.bf16.msra.mxu0 %v6566
        %7095 = vmatprep.subr.bf16.mxu0 0
        %7096 = vmatpush1.bf16.msra.mxu0 %v6565
        %7097 = vmatprep.subr.bf16.mxu0 0
        %7098 = vmatpush2.bf16.msra.mxu0 0
        %7099 = vmatprep.subr.bf16.mxu0 0
        %7100 = vmatpush2.bf16.msra.mxu0 0
        %7101 = vmatprep.subr.bf16.mxu0 0
        %7102 = vmatpush2.bf16.msra.mxu0 0
        %7103 = vmatprep.subr.bf16.mxu0 0
        %7104 = vmatpush2.bf16.msra.mxu0 0
        %7105 = vmatprep.subr.bf16.mxu0 0
        %7106 = vmatpush2.bf16.msra.mxu0 0
        %7107 = vmatprep.subr.bf16.mxu0 0
        %7108 = vmatpush2.bf16.msra.mxu0 0
        %7109 = vmatprep.subr.bf16.mxu0 0
        %7110 = vmatpush2.bf16.msra.mxu0 0
        %7111 = vmatprep.subr.bf16.mxu0 0
        %7112 = vmatpush2.bf16.msra.mxu0 0
        %7113 = vmatprep.mubr.bf16.mxu0 0
        %7114 = vmatmul.mubr.bf16.gmra.mxu0 %v6587
        %v7115 = vpop.f32.mrf.mxu0
        %v7116 = vadd.f32 %v6747, %v7115
        %v7117 = vpop.f32.mrf.mxu0
        %v7118 = vpop.f32.mrf.mxu0
        %v7119 = vadd.f32 %v6750, %v7118
        %v7120 = vpop.f32.mrf.mxu0
        %7121 = vmatprep.mubr.bf16.mxu0 0
        %7122 = vmatmul.mubr.bf16.gmra.mxu0 %v6590
        %v7123 = vpop.f32.mrf.mxu0
        %v7124 = vadd.f32 %v6755, %v7123
        %v7125 = vpop.f32.mrf.mxu0
        %v7126 = vpop.f32.mrf.mxu0
        %v7127 = vadd.f32 %v6758, %v7126
        %v7128 = vpop.f32.mrf.mxu0
        %7129 = vmatprep.mubr.bf16.mxu0 0
        %7130 = vmatmul.mubr.bf16.gmra.mxu0 %v6593
        %v7131 = vpop.f32.mrf.mxu0
        %v7132 = vadd.f32 %v6763, %v7131
        %v7133 = vpop.f32.mrf.mxu0
        %v7134 = vpop.f32.mrf.mxu0
        %v7135 = vadd.f32 %v6766, %v7134
        %v7136 = vpop.f32.mrf.mxu0
        %7137 = vmatprep.mubr.bf16.mxu0 0
        %7138 = vmatmul.mubr.bf16.gmra.mxu0 %v6596
        %v7139 = vpop.f32.mrf.mxu0
        %v7140 = vadd.f32 %v6771, %v7139
        %v7141 = vpop.f32.mrf.mxu0
        %v7142 = vpop.f32.mrf.mxu0
        %v7143 = vadd.f32 %v6774, %v7142
        %v7144 = vpop.f32.mrf.mxu0
        %7145 = vmatprep.mubr.bf16.mxu0 0
        %7146 = vmatmul.mubr.bf16.gmra.mxu0 %v6599
        %v7147 = vpop.f32.mrf.mxu0
        %v7148 = vadd.f32 %v6779, %v7147
        %v7149 = vpop.f32.mrf.mxu0
        %v7150 = vpop.f32.mrf.mxu0
        %v7151 = vadd.f32 %v6782, %v7150
        %v7152 = vpop.f32.mrf.mxu0
        %7153 = vmatprep.mubr.bf16.mxu0 0
        %7154 = vmatmul.mubr.bf16.gmra.mxu0 %v6602
        %v7155 = vpop.f32.mrf.mxu0
        %v7156 = vadd.f32 %v6787, %v7155
        %v7157 = vpop.f32.mrf.mxu0
        %v7158 = vpop.f32.mrf.mxu0
        %v7159 = vadd.f32 %v6790, %v7158
        %v7160 = vpop.f32.mrf.mxu0
        %7161 = vmatprep.mubr.bf16.mxu0 0
        %7162 = vmatmul.mubr.bf16.gmra.mxu0 %v6605
        %v7163 = vpop.f32.mrf.mxu0
        %v7164 = vadd.f32 %v6795, %v7163
        %v7165 = vpop.f32.mrf.mxu0
        %v7166 = vpop.f32.mrf.mxu0
        %v7167 = vadd.f32 %v6798, %v7166
        %v7168 = vpop.f32.mrf.mxu0
        %7169 = vmatprep.mubr.bf16.mxu0 0
        %7170 = vmatmul.mubr.bf16.gmra.mxu0 %v6608
        %v7171 = vpop.f32.mrf.mxu0
        %v7172 = vadd.f32 %v6803, %v7171
        %v7173 = vpop.f32.mrf.mxu0
        %v7174 = vpop.f32.mrf.mxu0
        %v7175 = vadd.f32 %v6806, %v7174
        %v7176 = vpop.f32.mrf.mxu0
        %7177 = vmatprep.mubr.bf16.mxu0 0
        %7178 = vmatmul.mubr.bf16.gmra.mxu0 %v6611
        %v7179 = vpop.f32.mrf.mxu0
        %v7180 = vadd.f32 %v6811, %v7179
        %v7181 = vpop.f32.mrf.mxu0
        %v7182 = vpop.f32.mrf.mxu0
        %v7183 = vadd.f32 %v6814, %v7182
        %v7184 = vpop.f32.mrf.mxu0
        %7185 = vmatprep.mubr.bf16.mxu0 0
        %7186 = vmatmul.mubr.bf16.gmra.mxu0 %v6614
        %v7187 = vpop.f32.mrf.mxu0
        %v7188 = vadd.f32 %v6819, %v7187
        %v7189 = vpop.f32.mrf.mxu0
        %v7190 = vpop.f32.mrf.mxu0
        %v7191 = vadd.f32 %v6822, %v7190
        %v7192 = vpop.f32.mrf.mxu0
        %7193 = vmatprep.mubr.bf16.mxu0 0
        %7194 = vmatmul.mubr.bf16.gmra.mxu0 %v6617
        %v7195 = vpop.f32.mrf.mxu0
        %v7196 = vadd.f32 %v6827, %v7195
        %v7197 = vpop.f32.mrf.mxu0
        %v7198 = vpop.f32.mrf.mxu0
        %v7199 = vadd.f32 %v6830, %v7198
        %v7200 = vpop.f32.mrf.mxu0
        %7201 = vmatprep.mubr.bf16.mxu0 0
        %7202 = vmatmul.mubr.bf16.gmra.mxu0 %v6620
        %v7203 = vpop.f32.mrf.mxu0
        %v7204 = vadd.f32 %v6835, %v7203
        %v7205 = vpop.f32.mrf.mxu0
        %v7206 = vpop.f32.mrf.mxu0
        %v7207 = vadd.f32 %v6838, %v7206
        %v7208 = vpop.f32.mrf.mxu0
        %7209 = vmatprep.mubr.bf16.mxu0 0
        %7210 = vmatmul.mubr.bf16.gmra.mxu0 %v6623
        %v7211 = vpop.f32.mrf.mxu0
        %v7212 = vadd.f32 %v6843, %v7211
        %v7213 = vpop.f32.mrf.mxu0
        %v7214 = vpop.f32.mrf.mxu0
        %v7215 = vadd.f32 %v6846, %v7214
        %v7216 = vpop.f32.mrf.mxu0
        %7217 = vmatprep.mubr.bf16.mxu0 0
        %7218 = vmatmul.mubr.bf16.gmra.mxu0 %v6626
        %v7219 = vpop.f32.mrf.mxu0
        %v7220 = vadd.f32 %v6851, %v7219
        %v7221 = vpop.f32.mrf.mxu0
        %v7222 = vpop.f32.mrf.mxu0
        %v7223 = vadd.f32 %v6854, %v7222
        %v7224 = vpop.f32.mrf.mxu0
        %7225 = vmatprep.mubr.bf16.mxu0 0
        %7226 = vmatmul.mubr.bf16.gmra.mxu0 %v6629
        %v7227 = vpop.f32.mrf.mxu0
        %v7228 = vadd.f32 %v6859, %v7227
        %v7229 = vpop.f32.mrf.mxu0
        %v7230 = vpop.f32.mrf.mxu0
        %v7231 = vadd.f32 %v6862, %v7230
        %v7232 = vpop.f32.mrf.mxu0
        %7233 = vmatprep.mubr.bf16.mxu0 0
        %7234 = vmatmul.mubr.bf16.gmra.mxu0 %v6632
        %v7235 = vpop.f32.mrf.mxu0
        %v7236 = vadd.f32 %v6867, %v7235
        %v7237 = vpop.f32.mrf.mxu0
        %v7238 = vpop.f32.mrf.mxu0
        %v7239 = vadd.f32 %v6870, %v7238
        %v7240 = vpop.f32.mrf.mxu0
        %7241 = vmatprep.mubr.bf16.mxu0 0
        %7242 = vmatmul.mubr.bf16.gmra.mxu0 %v6635
        %v7243 = vpop.f32.mrf.mxu0
        %v7244 = vadd.f32 %v6875, %v7243
        %v7245 = vpop.f32.mrf.mxu0
        %v7246 = vpop.f32.mrf.mxu0
        %v7247 = vadd.f32 %v6878, %v7246
        %v7248 = vpop.f32.mrf.mxu0
        %7249 = vmatprep.mubr.bf16.mxu0 0
        %7250 = vmatmul.mubr.bf16.gmra.mxu0 %v6638
        %v7251 = vpop.f32.mrf.mxu0
        %v7252 = vadd.f32 %v6883, %v7251
        %v7253 = vpop.f32.mrf.mxu0
        %v7254 = vpop.f32.mrf.mxu0
        %v7255 = vadd.f32 %v6886, %v7254
        %v7256 = vpop.f32.mrf.mxu0
        %7257 = vmatprep.mubr.bf16.mxu0 0
        %7258 = vmatmul.mubr.bf16.gmra.mxu0 %v6641
        %v7259 = vpop.f32.mrf.mxu0
        %v7260 = vadd.f32 %v6891, %v7259
        %v7261 = vpop.f32.mrf.mxu0
        %v7262 = vpop.f32.mrf.mxu0
        %v7263 = vadd.f32 %v6894, %v7262
        %v7264 = vpop.f32.mrf.mxu0
        %7265 = vmatprep.mubr.bf16.mxu0 0
        %7266 = vmatmul.mubr.bf16.gmra.mxu0 %v6644
        %v7267 = vpop.f32.mrf.mxu0
        %v7268 = vadd.f32 %v6899, %v7267
        %v7269 = vpop.f32.mrf.mxu0
        %v7270 = vpop.f32.mrf.mxu0
        %v7271 = vadd.f32 %v6902, %v7270
        %v7272 = vpop.f32.mrf.mxu0
        %7273 = vmatprep.mubr.bf16.mxu0 0
        %7274 = vmatmul.mubr.bf16.gmra.mxu0 %v6647
        %v7275 = vpop.f32.mrf.mxu0
        %v7276 = vadd.f32 %v6907, %v7275
        %v7277 = vpop.f32.mrf.mxu0
        %v7278 = vpop.f32.mrf.mxu0
        %v7279 = vadd.f32 %v6910, %v7278
        %v7280 = vpop.f32.mrf.mxu0
        %7281 = vmatprep.mubr.bf16.mxu0 0
        %7282 = vmatmul.mubr.bf16.gmra.mxu0 %v6650
        %v7283 = vpop.f32.mrf.mxu0
        %v7284 = vadd.f32 %v6915, %v7283
        %v7285 = vpop.f32.mrf.mxu0
        %v7286 = vpop.f32.mrf.mxu0
        %v7287 = vadd.f32 %v6918, %v7286
        %v7288 = vpop.f32.mrf.mxu0
        %7289 = vmatprep.mubr.bf16.mxu0 0
        %7290 = vmatmul.mubr.bf16.gmra.mxu0 %v6653
        %v7291 = vpop.f32.mrf.mxu0
        %v7292 = vadd.f32 %v6923, %v7291
        %v7293 = vpop.f32.mrf.mxu0
        %v7294 = vpop.f32.mrf.mxu0
        %v7295 = vadd.f32 %v6926, %v7294
        %v7296 = vpop.f32.mrf.mxu0
        %7297 = vmatprep.mubr.bf16.mxu0 0
        %7298 = vmatmul.mubr.bf16.gmra.mxu0 %v6656
        %v7299 = vpop.f32.mrf.mxu0
        %v7300 = vadd.f32 %v6931, %v7299
        %v7301 = vpop.f32.mrf.mxu0
        %v7302 = vpop.f32.mrf.mxu0
        %v7303 = vadd.f32 %v6934, %v7302
        %v7304 = vpop.f32.mrf.mxu0
        %7305 = vmatprep.mubr.bf16.mxu0 0
        %7306 = vmatmul.mubr.bf16.gmra.mxu0 %v6659
        %v7307 = vpop.f32.mrf.mxu0
        %v7308 = vadd.f32 %v6939, %v7307
        %v7309 = vpop.f32.mrf.mxu0
        %v7310 = vpop.f32.mrf.mxu0
        %v7311 = vadd.f32 %v6942, %v7310
        %v7312 = vpop.f32.mrf.mxu0
        %7313 = vmatprep.mubr.bf16.mxu0 0
        %7314 = vmatmul.mubr.bf16.gmra.mxu0 %v6662
        %v7315 = vpop.f32.mrf.mxu0
        %v7316 = vadd.f32 %v6947, %v7315
        %v7317 = vpop.f32.mrf.mxu0
        %v7318 = vpop.f32.mrf.mxu0
        %v7319 = vadd.f32 %v6950, %v7318
        %v7320 = vpop.f32.mrf.mxu0
        %7321 = vmatprep.mubr.bf16.mxu0 0
        %7322 = vmatmul.mubr.bf16.gmra.mxu0 %v6665
        %v7323 = vpop.f32.mrf.mxu0
        %v7324 = vadd.f32 %v6955, %v7323
        %v7325 = vpop.f32.mrf.mxu0
        %v7326 = vpop.f32.mrf.mxu0
        %v7327 = vadd.f32 %v6958, %v7326
        %v7328 = vpop.f32.mrf.mxu0
        %7329 = vmatprep.mubr.bf16.mxu0 0
        %7330 = vmatmul.mubr.bf16.gmra.mxu0 %v6668
        %v7331 = vpop.f32.mrf.mxu0
        %v7332 = vadd.f32 %v6963, %v7331
        %v7333 = vpop.f32.mrf.mxu0
        %v7334 = vpop.f32.mrf.mxu0
        %v7335 = vadd.f32 %v6966, %v7334
        %v7336 = vpop.f32.mrf.mxu0
        %7337 = vmatprep.mubr.bf16.mxu0 0
        %7338 = vmatmul.mubr.bf16.gmra.mxu0 %v6671
        %v7339 = vpop.f32.mrf.mxu0
        %v7340 = vadd.f32 %v6971, %v7339
        %v7341 = vpop.f32.mrf.mxu0
        %v7342 = vpop.f32.mrf.mxu0
        %v7343 = vadd.f32 %v6974, %v7342
        %v7344 = vpop.f32.mrf.mxu0
        %7345 = vmatprep.mubr.bf16.mxu0 0
        %7346 = vmatmul.mubr.bf16.gmra.mxu0 %v6674
        %v7347 = vpop.f32.mrf.mxu0
        %v7348 = vadd.f32 %v6979, %v7347
        %v7349 = vpop.f32.mrf.mxu0
        %v7350 = vpop.f32.mrf.mxu0
        %v7351 = vadd.f32 %v6982, %v7350
        %v7352 = vpop.f32.mrf.mxu0
        %7353 = vmatprep.mubr.bf16.mxu0 0
        %7354 = vmatmul.mubr.bf16.gmra.mxu0 %v6677
        %v7355 = vpop.f32.mrf.mxu0
        %v7356 = vadd.f32 %v6987, %v7355
        %v7357 = vpop.f32.mrf.mxu0
        %v7358 = vpop.f32.mrf.mxu0
        %v7359 = vadd.f32 %v6990, %v7358
        %v7360 = vpop.f32.mrf.mxu0
        %7361 = vmatprep.mubr.bf16.mxu0 0
        %7362 = vmatmul.mubr.bf16.gmra.mxu0 %v6680
        %v7363 = vpop.f32.mrf.mxu0
        %v7364 = vadd.f32 %v6995, %v7363
        %v7365 = vpop.f32.mrf.mxu0
        %v7366 = vpop.f32.mrf.mxu0
        %v7367 = vadd.f32 %v6998, %v7366
        %v7368 = vpop.f32.mrf.mxu0
        %7369 = vmatprep.mubr.bf16.mxu0 0
        %7370 = vmatmul.mubr.bf16.gmra.mxu0 %v6683
        %v7371 = vpop.f32.mrf.mxu0
        %v7372 = vadd.f32 %v7003, %v7371
        %v7373 = vpop.f32.mrf.mxu0
        %v7374 = vpop.f32.mrf.mxu0
        %v7375 = vadd.f32 %v7006, %v7374
        %v7376 = vpop.f32.mrf.mxu0
        %7377 = vmatprep.mubr.bf16.mxu0 0
        %7378 = vmatmul.mubr.bf16.gmra.mxu0 %v6686
        %v7379 = vpop.f32.mrf.mxu0
        %v7380 = vadd.f32 %v7011, %v7379
        %v7381 = vpop.f32.mrf.mxu0
        %v7382 = vpop.f32.mrf.mxu0
        %v7383 = vadd.f32 %v7014, %v7382
        %v7384 = vpop.f32.mrf.mxu0
        %7385 = vmatprep.mubr.bf16.mxu0 0
        %7386 = vmatmul.mubr.bf16.gmra.mxu0 %v6689
        %v7387 = vpop.f32.mrf.mxu0
        %v7388 = vadd.f32 %v7019, %v7387
        %v7389 = vpop.f32.mrf.mxu0
        %v7390 = vpop.f32.mrf.mxu0
        %v7391 = vadd.f32 %v7022, %v7390
        %v7392 = vpop.f32.mrf.mxu0
        %7393 = vmatprep.mubr.bf16.mxu0 0
        %7394 = vmatmul.mubr.bf16.gmra.mxu0 %v6692
        %v7395 = vpop.f32.mrf.mxu0
        %v7396 = vadd.f32 %v7027, %v7395
        %v7397 = vpop.f32.mrf.mxu0
        %v7398 = vpop.f32.mrf.mxu0
        %v7399 = vadd.f32 %v7030, %v7398
        %v7400 = vpop.f32.mrf.mxu0
        %7401 = vmatprep.mubr.bf16.mxu0 0
        %7402 = vmatmul.mubr.bf16.gmra.mxu0 %v6695
        %v7403 = vpop.f32.mrf.mxu0
        %v7404 = vadd.f32 %v7035, %v7403
        %v7405 = vpop.f32.mrf.mxu0
        %v7406 = vpop.f32.mrf.mxu0
        %v7407 = vadd.f32 %v7038, %v7406
        %v7408 = vpop.f32.mrf.mxu0
        %7409 = vmatprep.mubr.bf16.mxu0 0
        %7410 = vmatmul.mubr.bf16.gmra.mxu0 %v6698
        %v7411 = vpop.f32.mrf.mxu0
        %v7412 = vadd.f32 %v7043, %v7411
        %v7413 = vpop.f32.mrf.mxu0
        %v7414 = vpop.f32.mrf.mxu0
        %v7415 = vadd.f32 %v7046, %v7414
        %v7416 = vpop.f32.mrf.mxu0
        %7417 = vmatprep.mubr.bf16.mxu0 0
        %7418 = vmatmul.mubr.bf16.gmra.mxu0 %v6701
        %v7419 = vpop.f32.mrf.mxu0
        %v7420 = vadd.f32 %v7051, %v7419
        %v7421 = vpop.f32.mrf.mxu0
        %v7422 = vpop.f32.mrf.mxu0
        %v7423 = vadd.f32 %v7054, %v7422
        %v7424 = vpop.f32.mrf.mxu0
        %7425 = vmatprep.mubr.bf16.mxu0 0
        %7426 = vmatmul.mubr.bf16.gmra.mxu0 %v6704
        %v7427 = vpop.f32.mrf.mxu0
        %v7428 = vadd.f32 %v7059, %v7427
        %v7429 = vpop.f32.mrf.mxu0
        %v7430 = vpop.f32.mrf.mxu0
        %v7431 = vadd.f32 %v7062, %v7430
        %v7432 = vpop.f32.mrf.mxu0
        %7433 = vmatprep.mubr.bf16.mxu0 0
        %7434 = vmatmul.mubr.bf16.gmra.mxu0 %v6707
        %v7435 = vpop.f32.mrf.mxu0
        %v7436 = vadd.f32 %v7067, %v7435
        %v7437 = vpop.f32.mrf.mxu0
        %v7438 = vpop.f32.mrf.mxu0
        %v7439 = vadd.f32 %v7070, %v7438
        %v7440 = vpop.f32.mrf.mxu0
        %7441 = vmatprep.mubr.bf16.mxu0 0
        %7442 = vmatmul.mubr.bf16.gmra.mxu0 %v6710
        %v7443 = vpop.f32.mrf.mxu0
        %v7444 = vadd.f32 %v7075, %v7443
        %v7445 = vpop.f32.mrf.mxu0
        %v7446 = vpop.f32.mrf.mxu0
        %v7447 = vadd.f32 %v7078, %v7446
        %v7448 = vpop.f32.mrf.mxu0
        %7449 = vdwg.mxu0
        %v7450 = vmax.f32 %v7116, 0.0
        %v7451 = vmax.f32 %v7119, 0.0
        %v7452 = vmax.f32 %v7124, 0.0
        %v7453 = vmax.f32 %v7127, 0.0
        %v7454 = vmax.f32 %v7132, 0.0
        %v7455 = vmax.f32 %v7135, 0.0
        %v7456 = vmax.f32 %v7140, 0.0
        %v7457 = vmax.f32 %v7143, 0.0
        %v7458 = vmax.f32 %v7148, 0.0
        %v7459 = vmax.f32 %v7151, 0.0
        %v7460 = vmax.f32 %v7156, 0.0
        %v7461 = vmax.f32 %v7159, 0.0
        %v7462 = vmax.f32 %v7164, 0.0
        %v7463 = vmax.f32 %v7167, 0.0
        %v7464 = vmax.f32 %v7172, 0.0
        %v7465 = vmax.f32 %v7175, 0.0
        %v7466 = vmax.f32 %v7180, 0.0
        %v7467 = vmax.f32 %v7183, 0.0
        %v7468 = vmax.f32 %v7188, 0.0
        %v7469 = vmax.f32 %v7191, 0.0
        %v7470 = vmax.f32 %v7196, 0.0
        %v7471 = vmax.f32 %v7199, 0.0
        %v7472 = vmax.f32 %v7204, 0.0
        %v7473 = vmax.f32 %v7207, 0.0
        %v7474 = vmax.f32 %v7212, 0.0
        %v7475 = vmax.f32 %v7215, 0.0
        %v7476 = vmax.f32 %v7220, 0.0
        %v7477 = vmax.f32 %v7223, 0.0
        %v7478 = vmax.f32 %v7228, 0.0
        %v7479 = vmax.f32 %v7231, 0.0
        %v7480 = vmax.f32 %v7236, 0.0
        %v7481 = vmax.f32 %v7239, 0.0
        %v7482 = vmax.f32 %v7244, 0.0
        %v7483 = vmax.f32 %v7247, 0.0
        %v7484 = vmax.f32 %v7252, 0.0
        %v7485 = vmax.f32 %v7255, 0.0
        %v7486 = vmax.f32 %v7260, 0.0
        %v7487 = vmax.f32 %v7263, 0.0
        %v7488 = vmax.f32 %v7268, 0.0
        %v7489 = vmax.f32 %v7271, 0.0
        %v7490 = vmax.f32 %v7276, 0.0
        %v7491 = vmax.f32 %v7279, 0.0
        %v7492 = vmax.f32 %v7284, 0.0
        %v7493 = vmax.f32 %v7287, 0.0
        %v7494 = vmax.f32 %v7292, 0.0
        %v7495 = vmax.f32 %v7295, 0.0
        %v7496 = vmax.f32 %v7300, 0.0
        %v7497 = vmax.f32 %v7303, 0.0
        %v7498 = vmax.f32 %v7308, 0.0
        %v7499 = vmax.f32 %v7311, 0.0
        %v7500 = vmax.f32 %v7316, 0.0
        %v7501 = vmax.f32 %v7319, 0.0
        %v7502 = vmax.f32 %v7324, 0.0
        %v7503 = vmax.f32 %v7327, 0.0
        %v7504 = vmax.f32 %v7332, 0.0
        %v7505 = vmax.f32 %v7335, 0.0
        %v7506 = vmax.f32 %v7340, 0.0
        %v7507 = vmax.f32 %v7343, 0.0
        %v7508 = vmax.f32 %v7348, 0.0
        %v7509 = vmax.f32 %v7351, 0.0
        %v7510 = vmax.f32 %v7356, 0.0
        %v7511 = vmax.f32 %v7359, 0.0
        %v7512 = vmax.f32 %v7364, 0.0
        %v7513 = vmax.f32 %v7367, 0.0
        %v7514 = vmax.f32 %v7372, 0.0
        %v7515 = vmax.f32 %v7375, 0.0
        %v7516 = vmax.f32 %v7380, 0.0
        %v7517 = vmax.f32 %v7383, 0.0
        %v7518 = vmax.f32 %v7388, 0.0
        %v7519 = vmax.f32 %v7391, 0.0
        %v7520 = vmax.f32 %v7396, 0.0
        %v7521 = vmax.f32 %v7399, 0.0
        %v7522 = vmax.f32 %v7404, 0.0
        %v7523 = vmax.f32 %v7407, 0.0
        %v7524 = vmax.f32 %v7412, 0.0
        %v7525 = vmax.f32 %v7415, 0.0
        %v7526 = vmax.f32 %v7420, 0.0
        %v7527 = vmax.f32 %v7423, 0.0
        %v7528 = vmax.f32 %v7428, 0.0
        %v7529 = vmax.f32 %v7431, 0.0
        %v7530 = vmax.f32 %v7436, 0.0
        %v7531 = vmax.f32 %v7439, 0.0
        %v7532 = vmax.f32 %v7444, 0.0
        %v7533 = vmax.f32 %v7447, 0.0
        %v7534 = vpack.c.bf16 %v7451, %v7450
        %v7535 = vpack.c.bf16 %v7453, %v7452
        %v7536 = vpack.c.bf16 %v7455, %v7454
        %v7537 = vpack.c.bf16 %v7457, %v7456
        %v7538 = vpack.c.bf16 %v7459, %v7458
        %v7539 = vpack.c.bf16 %v7461, %v7460
        %v7540 = vpack.c.bf16 %v7463, %v7462
        %v7541 = vpack.c.bf16 %v7465, %v7464
        %v7542 = vpack.c.bf16 %v7467, %v7466
        %v7543 = vpack.c.bf16 %v7469, %v7468
        %v7544 = vpack.c.bf16 %v7471, %v7470
        %v7545 = vpack.c.bf16 %v7473, %v7472
        %v7546 = vpack.c.bf16 %v7475, %v7474
        %v7547 = vpack.c.bf16 %v7477, %v7476
        %v7548 = vpack.c.bf16 %v7479, %v7478
        %v7549 = vpack.c.bf16 %v7481, %v7480
        %v7550 = vpack.c.bf16 %v7483, %v7482
        %v7551 = vpack.c.bf16 %v7485, %v7484
        %v7552 = vpack.c.bf16 %v7487, %v7486
        %v7553 = vpack.c.bf16 %v7489, %v7488
        %v7554 = vpack.c.bf16 %v7491, %v7490
        %v7555 = vpack.c.bf16 %v7493, %v7492
        %v7556 = vpack.c.bf16 %v7495, %v7494
        %v7557 = vpack.c.bf16 %v7497, %v7496
        %v7558 = vpack.c.bf16 %v7499, %v7498
        %v7559 = vpack.c.bf16 %v7501, %v7500
        %v7560 = vpack.c.bf16 %v7503, %v7502
        %v7561 = vpack.c.bf16 %v7505, %v7504
        %v7562 = vpack.c.bf16 %v7507, %v7506
        %v7563 = vpack.c.bf16 %v7509, %v7508
        %v7564 = vpack.c.bf16 %v7511, %v7510
        %v7565 = vpack.c.bf16 %v7513, %v7512
        %v7566 = vpack.c.bf16 %v7515, %v7514
        %v7567 = vpack.c.bf16 %v7517, %v7516
        %v7568 = vpack.c.bf16 %v7519, %v7518
        %v7569 = vpack.c.bf16 %v7521, %v7520
        %v7570 = vpack.c.bf16 %v7523, %v7522
        %v7571 = vpack.c.bf16 %v7525, %v7524
        %v7572 = vpack.c.bf16 %v7527, %v7526
        %v7573 = vpack.c.bf16 %v7529, %v7528
        %v7574 = vpack.c.bf16 %v7531, %v7530
        %v7575 = vpack.c.bf16 %v7533, %v7532
        %7577 = vrot.lane.b32.xlu0 %v7535, 64
        %v7578 = vpop.permute.xlu0 %7577
        %vm7579 = vcmask 523264
        %v7582 = vsel %vm7579, %v7534, %v7578
        %v7584 = vunpack.c.l.b16 %v7582
        %v7585 = vunpack.c.h.b16 %v7582
        %v7586 = vpack.c.b16 %v7584, %v7584
        %v7587 = vpack.c.b16 %v7585, %v7585
        %7590 = vst [vmem:[#allocation4] sm:$0xf] %v7586
        %7591 = vst [vmem:[#allocation4 + $0x54] sm:$0xf] %v7587
        %7593 = vrot.lane.b32.xlu0 %v7537, 64
        %v7594 = vpop.permute.xlu0 %7593
        %v7597 = vsel %vm7579, %v7536, %v7594
        %v7599 = vunpack.c.l.b16 %v7597
        %v7600 = vunpack.c.h.b16 %v7597
        %v7601 = vpack.c.b16 %v7599, %v7599
        %v7602 = vpack.c.b16 %v7600, %v7600
        %7605 = vst [vmem:[#allocation4 + $0x4] sm:$0xf] %v7601
        %7606 = vst [vmem:[#allocation4 + $0x58] sm:$0xf] %v7602
        %7608 = vrot.lane.b32.xlu0 %v7539, 64
        %v7609 = vpop.permute.xlu0 %7608
        %v7612 = vsel %vm7579, %v7538, %v7609
        %v7614 = vunpack.c.l.b16 %v7612
        %v7615 = vunpack.c.h.b16 %v7612
        %v7616 = vpack.c.b16 %v7614, %v7614
        %v7617 = vpack.c.b16 %v7615, %v7615
        %7620 = vst [vmem:[#allocation4 + $0x8] sm:$0xf] %v7616
        %7621 = vst [vmem:[#allocation4 + $0x5c] sm:$0xf] %v7617
        %7623 = vrot.lane.b32.xlu0 %v7541, 64
        %v7624 = vpop.permute.xlu0 %7623
        %v7627 = vsel %vm7579, %v7540, %v7624
        %v7629 = vunpack.c.l.b16 %v7627
        %v7630 = vunpack.c.h.b16 %v7627
        %v7631 = vpack.c.b16 %v7629, %v7629
        %v7632 = vpack.c.b16 %v7630, %v7630
        %7635 = vst [vmem:[#allocation4 + $0xc] sm:$0xf] %v7631
        %7636 = vst [vmem:[#allocation4 + $0x60] sm:$0xf] %v7632
        %7638 = vrot.lane.b32.xlu0 %v7543, 64
        %v7639 = vpop.permute.xlu0 %7638
        %v7642 = vsel %vm7579, %v7542, %v7639
        %v7644 = vunpack.c.l.b16 %v7642
        %v7645 = vunpack.c.h.b16 %v7642
        %v7646 = vpack.c.b16 %v7644, %v7644
        %v7647 = vpack.c.b16 %v7645, %v7645
        %7650 = vst [vmem:[#allocation4 + $0x10] sm:$0xf] %v7646
        %7651 = vst [vmem:[#allocation4 + $0x64] sm:$0xf] %v7647
        %7653 = vrot.lane.b32.xlu0 %v7545, 64
        %v7654 = vpop.permute.xlu0 %7653
        %v7657 = vsel %vm7579, %v7544, %v7654
        %v7659 = vunpack.c.l.b16 %v7657
        %v7660 = vunpack.c.h.b16 %v7657
        %v7661 = vpack.c.b16 %v7659, %v7659
        %v7662 = vpack.c.b16 %v7660, %v7660
        %7665 = vst [vmem:[#allocation4 + $0x14] sm:$0xf] %v7661
        %7666 = vst [vmem:[#allocation4 + $0x68] sm:$0xf] %v7662
        %7668 = vrot.lane.b32.xlu0 %v7547, 64
        %v7669 = vpop.permute.xlu0 %7668
        %v7672 = vsel %vm7579, %v7546, %v7669
        %v7674 = vunpack.c.l.b16 %v7672
        %v7675 = vunpack.c.h.b16 %v7672
        %v7676 = vpack.c.b16 %v7674, %v7674
        %v7677 = vpack.c.b16 %v7675, %v7675
        %7680 = vst [vmem:[#allocation4 + $0x18] sm:$0xf] %v7676
        %7681 = vst [vmem:[#allocation4 + $0x6c] sm:$0xf] %v7677
        %7683 = vrot.lane.b32.xlu0 %v7549, 64
        %v7684 = vpop.permute.xlu0 %7683
        %v7687 = vsel %vm7579, %v7548, %v7684
        %v7689 = vunpack.c.l.b16 %v7687
        %v7690 = vunpack.c.h.b16 %v7687
        %v7691 = vpack.c.b16 %v7689, %v7689
        %v7692 = vpack.c.b16 %v7690, %v7690
        %7695 = vst [vmem:[#allocation4 + $0x1c] sm:$0xf] %v7691
        %7696 = vst [vmem:[#allocation4 + $0x70] sm:$0xf] %v7692
        %7698 = vrot.lane.b32.xlu0 %v7551, 64
        %v7699 = vpop.permute.xlu0 %7698
        %v7702 = vsel %vm7579, %v7550, %v7699
        %v7704 = vunpack.c.l.b16 %v7702
        %v7705 = vunpack.c.h.b16 %v7702
        %v7706 = vpack.c.b16 %v7704, %v7704
        %v7707 = vpack.c.b16 %v7705, %v7705
        %7710 = vst [vmem:[#allocation4 + $0x20] sm:$0xf] %v7706
        %7711 = vst [vmem:[#allocation4 + $0x74] sm:$0xf] %v7707
        %7713 = vrot.lane.b32.xlu0 %v7553, 64
        %v7714 = vpop.permute.xlu0 %7713
        %v7717 = vsel %vm7579, %v7552, %v7714
        %v7719 = vunpack.c.l.b16 %v7717
        %v7720 = vunpack.c.h.b16 %v7717
        %v7721 = vpack.c.b16 %v7719, %v7719
        %v7722 = vpack.c.b16 %v7720, %v7720
        %7725 = vst [vmem:[#allocation4 + $0x24] sm:$0xf] %v7721
        %7726 = vst [vmem:[#allocation4 + $0x78] sm:$0xf] %v7722
        %7728 = vrot.lane.b32.xlu0 %v7555, 64
        %v7729 = vpop.permute.xlu0 %7728
        %v7732 = vsel %vm7579, %v7554, %v7729
        %v7734 = vunpack.c.l.b16 %v7732
        %v7735 = vunpack.c.h.b16 %v7732
        %v7736 = vpack.c.b16 %v7734, %v7734
        %v7737 = vpack.c.b16 %v7735, %v7735
        %7740 = vst [vmem:[#allocation4 + $0x28] sm:$0xf] %v7736
        %7741 = vst [vmem:[#allocation4 + $0x7c] sm:$0xf] %v7737
        %7743 = vrot.lane.b32.xlu0 %v7557, 64
        %v7744 = vpop.permute.xlu0 %7743
        %v7747 = vsel %vm7579, %v7556, %v7744
        %v7749 = vunpack.c.l.b16 %v7747
        %v7750 = vunpack.c.h.b16 %v7747
        %v7751 = vpack.c.b16 %v7749, %v7749
        %v7752 = vpack.c.b16 %v7750, %v7750
        %7755 = vst [vmem:[#allocation4 + $0x2c] sm:$0xf] %v7751
        %7756 = vst [vmem:[#allocation4 + $0x80] sm:$0xf] %v7752
        %7758 = vrot.lane.b32.xlu0 %v7559, 64
        %v7759 = vpop.permute.xlu0 %7758
        %v7762 = vsel %vm7579, %v7558, %v7759
        %v7764 = vunpack.c.l.b16 %v7762
        %v7765 = vunpack.c.h.b16 %v7762
        %v7766 = vpack.c.b16 %v7764, %v7764
        %v7767 = vpack.c.b16 %v7765, %v7765
        %7770 = vst [vmem:[#allocation4 + $0x30] sm:$0xf] %v7766
        %7771 = vst [vmem:[#allocation4 + $0x84] sm:$0xf] %v7767
        %7773 = vrot.lane.b32.xlu0 %v7561, 64
        %v7774 = vpop.permute.xlu0 %7773
        %v7777 = vsel %vm7579, %v7560, %v7774
        %v7779 = vunpack.c.l.b16 %v7777
        %v7780 = vunpack.c.h.b16 %v7777
        %v7781 = vpack.c.b16 %v7779, %v7779
        %v7782 = vpack.c.b16 %v7780, %v7780
        %7785 = vst [vmem:[#allocation4 + $0x34] sm:$0xf] %v7781
        %7786 = vst [vmem:[#allocation4 + $0x88] sm:$0xf] %v7782
        %7788 = vrot.lane.b32.xlu0 %v7563, 64
        %v7789 = vpop.permute.xlu0 %7788
        %v7792 = vsel %vm7579, %v7562, %v7789
        %v7794 = vunpack.c.l.b16 %v7792
        %v7795 = vunpack.c.h.b16 %v7792
        %v7796 = vpack.c.b16 %v7794, %v7794
        %v7797 = vpack.c.b16 %v7795, %v7795
        %7800 = vst [vmem:[#allocation4 + $0x38] sm:$0xf] %v7796
        %7801 = vst [vmem:[#allocation4 + $0x8c] sm:$0xf] %v7797
        %7803 = vrot.lane.b32.xlu0 %v7565, 64
        %v7804 = vpop.permute.xlu0 %7803
        %v7807 = vsel %vm7579, %v7564, %v7804
        %v7809 = vunpack.c.l.b16 %v7807
        %v7810 = vunpack.c.h.b16 %v7807
        %v7811 = vpack.c.b16 %v7809, %v7809
        %v7812 = vpack.c.b16 %v7810, %v7810
        %7815 = vst [vmem:[#allocation4 + $0x3c] sm:$0xf] %v7811
        %7816 = vst [vmem:[#allocation4 + $0x90] sm:$0xf] %v7812
        %7818 = vrot.lane.b32.xlu0 %v7567, 64
        %v7819 = vpop.permute.xlu0 %7818
        %v7822 = vsel %vm7579, %v7566, %v7819
        %v7824 = vunpack.c.l.b16 %v7822
        %v7825 = vunpack.c.h.b16 %v7822
        %v7826 = vpack.c.b16 %v7824, %v7824
        %v7827 = vpack.c.b16 %v7825, %v7825
        %7830 = vst [vmem:[#allocation4 + $0x40] sm:$0xf] %v7826
        %7831 = vst [vmem:[#allocation4 + $0x94] sm:$0xf] %v7827
        %7833 = vrot.lane.b32.xlu0 %v7569, 64
        %v7834 = vpop.permute.xlu0 %7833
        %v7837 = vsel %vm7579, %v7568, %v7834
        %v7839 = vunpack.c.l.b16 %v7837
        %v7840 = vunpack.c.h.b16 %v7837
        %v7841 = vpack.c.b16 %v7839, %v7839
        %v7842 = vpack.c.b16 %v7840, %v7840
        %7845 = vst [vmem:[#allocation4 + $0x44] sm:$0xf] %v7841
        %7846 = vst [vmem:[#allocation4 + $0x98] sm:$0xf] %v7842
        %7848 = vrot.lane.b32.xlu0 %v7571, 64
        %v7849 = vpop.permute.xlu0 %7848
        %v7852 = vsel %vm7579, %v7570, %v7849
        %v7854 = vunpack.c.l.b16 %v7852
        %v7855 = vunpack.c.h.b16 %v7852
        %v7856 = vpack.c.b16 %v7854, %v7854
        %v7857 = vpack.c.b16 %v7855, %v7855
        %7860 = vst [vmem:[#allocation4 + $0x48] sm:$0xf] %v7856
        %7861 = vst [vmem:[#allocation4 + $0x9c] sm:$0xf] %v7857
        %7863 = vrot.lane.b32.xlu0 %v7573, 64
        %v7864 = vpop.permute.xlu0 %7863
        %v7867 = vsel %vm7579, %v7572, %v7864
        %v7869 = vunpack.c.l.b16 %v7867
        %v7870 = vunpack.c.h.b16 %v7867
        %v7871 = vpack.c.b16 %v7869, %v7869
        %v7872 = vpack.c.b16 %v7870, %v7870
        %7875 = vst [vmem:[#allocation4 + $0x4c] sm:$0xf] %v7871
        %7876 = vst [vmem:[#allocation4 + $0xa0] sm:$0xf] %v7872
        %7878 = vrot.lane.b32.xlu0 %v7575, 64
        %v7879 = vpop.permute.xlu0 %7878
        %v7882 = vsel %vm7579, %v7574, %v7879
        %v7884 = vunpack.c.l.b16 %v7882
        %v7885 = vunpack.c.h.b16 %v7882
        %v7886 = vpack.c.b16 %v7884, %v7884
        %v7887 = vpack.c.b16 %v7885, %v7885
        %7890 = vst [vmem:[#allocation4 + $0x50] sm:$0xf] %v7886
        %7891 = vst [vmem:[#allocation4 + $0xa4] sm:$0xf] %v7887
        %v7892 = vld [vmem:[#allocation4] sm:$0xff]
        %v7893 = vld [vmem:[#allocation4 + $0x8] sm:$0xff]
        %v7894 = vld [vmem:[#allocation4 + $0x10] sm:$0xff]
        %v7895 = vld [vmem:[#allocation4 + $0x18] sm:$0xff]
        %v7896 = vld [vmem:[#allocation4 + $0x20] sm:$0xff]
        %v7897 = vld [vmem:[#allocation4 + $0x28] sm:$0xff]
        %v7898 = vld [vmem:[#allocation4 + $0x30] sm:$0xff]
        %v7899 = vld [vmem:[#allocation4 + $0x38] sm:$0xff]
        %v7900 = vld [vmem:[#allocation4 + $0x40] sm:$0xff]
        %v7901 = vld [vmem:[#allocation4 + $0x48] sm:$0xff]
        %v7902 = vld [vmem:[#allocation4 + $0x50] sm:$0xf]
        %v7903 = vld [vmem:[#allocation4 + $0x54] sm:$0xff]
        %v7904 = vld [vmem:[#allocation4 + $0x5c] sm:$0xff]
        %v7905 = vld [vmem:[#allocation4 + $0x64] sm:$0xff]
        %v7906 = vld [vmem:[#allocation4 + $0x6c] sm:$0xff]
        %v7907 = vld [vmem:[#allocation4 + $0x74] sm:$0xff]
        %v7908 = vld [vmem:[#allocation4 + $0x7c] sm:$0xff]
        %v7909 = vld [vmem:[#allocation4 + $0x84] sm:$0xff]
        %v7910 = vld [vmem:[#allocation4 + $0x8c] sm:$0xff]
        %v7911 = vld [vmem:[#allocation4 + $0x94] sm:$0xff]
        %v7912 = vld [vmem:[#allocation4 + $0x9c] sm:$0xff]
        %v7913 = vld [vmem:[#allocation4 + $0xa4] sm:$0xf]
        %v7914 = vld [vmem:[%s5] sm:$0xf]
        %v7915 = vld [vmem:[%s5 + $0x4] sm:$0xf]
        %v7916 = vld [vmem:[%s5 + $0x8] sm:$0xf]
        %v7917 = vld [vmem:[%s5 + $0xc] sm:$0xf]
        %v7918 = vld [vmem:[%s5 + $0x10] sm:$0xf]
        %v7919 = vld [vmem:[%s5 + $0x14] sm:$0xf]
        %v7920 = vld [vmem:[%s5 + $0x18] sm:$0xf]
        %v7921 = vld [vmem:[%s5 + $0x1c] sm:$0xf]
        %v7922 = vld [vmem:[%s5 + $0x20] sm:$0xf]
        %v7923 = vld [vmem:[%s5 + $0x24] sm:$0xf]
        %v7924 = vld [vmem:[%s5 + $0x28] sm:$0xf]
        %v7925 = vld [vmem:[%s5 + $0x2c] sm:$0xf]
        %v7926 = vld [vmem:[%s5 + $0x30] sm:$0xf]
        %v7927 = vld [vmem:[%s5 + $0x34] sm:$0xf]
        %v7928 = vld [vmem:[%s5 + $0x38] sm:$0xf]
        %v7929 = vld [vmem:[%s5 + $0x3c] sm:$0xf]
        %v7930 = vld [vmem:[%s5 + $0x40] sm:$0xf]
        %v7931 = vld [vmem:[%s5 + $0x44] sm:$0xf]
        %v7932 = vld [vmem:[%s5 + $0x48] sm:$0xf]
        %v7933 = vld [vmem:[%s5 + $0x4c] sm:$0xf]
        %v7934 = vld [vmem:[%s5 + $0x50] sm:$0xf]
        %v7935 = vld [vmem:[%s5 + $0x54] sm:$0xf]
        %v7936 = vld [vmem:[%s5 + $0x58] sm:$0xf]
        %v7937 = vld [vmem:[%s5 + $0x5c] sm:$0xf]
        %v7938 = vld [vmem:[%s5 + $0x60] sm:$0xf]
        %v7939 = vld [vmem:[%s5 + $0x64] sm:$0xf]
        %v7940 = vld [vmem:[%s5 + $0x68] sm:$0xf]
        %v7941 = vld [vmem:[%s5 + $0x6c] sm:$0xf]
        %v7942 = vld [vmem:[%s5 + $0x70] sm:$0xf]
        %v7943 = vld [vmem:[%s5 + $0x74] sm:$0xf]
        %v7944 = vld [vmem:[%s5 + $0x78] sm:$0xf]
        %v7945 = vld [vmem:[%s5 + $0x7c] sm:$0xf]
        %v7946 = vld [vmem:[%s5 + $0x80] sm:$0xf]
        %v7947 = vld [vmem:[%s5 + $0x84] sm:$0xf]
        %v7948 = vld [vmem:[%s5 + $0x88] sm:$0xf]
        %v7949 = vld [vmem:[%s5 + $0x8c] sm:$0xf]
        %v7950 = vld [vmem:[%s5 + $0x90] sm:$0xf]
        %v7951 = vld [vmem:[%s5 + $0x94] sm:$0xf]
        %v7952 = vld [vmem:[%s5 + $0x98] sm:$0xf]
        %v7953 = vld [vmem:[%s5 + $0x9c] sm:$0xf]
        %v7954 = vld [vmem:[%s5 + $0xa0] sm:$0xf]
        %v7955 = vld [vmem:[%s5 + $0xa4] sm:$0xf]
        %v7956 = vld [vmem:[%s5 + $0xa8] sm:$0xf]
        %v7957 = vld [vmem:[%s5 + $0xac] sm:$0xf]
        %v7958 = vld [vmem:[%s5 + $0xb0] sm:$0xf]
        %v7959 = vld [vmem:[%s5 + $0xb4] sm:$0xf]
        %v7960 = vld [vmem:[%s5 + $0xb8] sm:$0xf]
        %v7961 = vld [vmem:[%s5 + $0xbc] sm:$0xf]
        %v7962 = vld [vmem:[%s5 + $0xc0] sm:$0xf]
        %v7963 = vld [vmem:[%s5 + $0xc4] sm:$0xf]
        %v7964 = vld [vmem:[%s5 + $0xc8] sm:$0xf]
        %v7965 = vld [vmem:[%s5 + $0xcc] sm:$0xf]
        %v7966 = vld [vmem:[%s5 + $0xd0] sm:$0xf]
        %v7967 = vld [vmem:[%s5 + $0xd4] sm:$0xf]
        %v7968 = vld [vmem:[%s5 + $0xd8] sm:$0xf]
        %v7969 = vld [vmem:[%s5 + $0xdc] sm:$0xf]
        %v7970 = vld [vmem:[%s5 + $0xe0] sm:$0xf]
        %v7971 = vld [vmem:[%s5 + $0xe4] sm:$0xf]
        %v7972 = vld [vmem:[%s5 + $0xe8] sm:$0xf]
        %v7973 = vld [vmem:[%s5 + $0xec] sm:$0xf]
        %v7974 = vld [vmem:[%s5 + $0xf0] sm:$0xf]
        %v7975 = vld [vmem:[%s5 + $0xf4] sm:$0xf]
        %v7976 = vld [vmem:[%s5 + $0xf8] sm:$0xf]
        %v7977 = vld [vmem:[%s5 + $0xfc] sm:$0xf]
        %v7978 = vld [vmem:[%s5 + $0x100] sm:$0xf]
        %v7979 = vld [vmem:[%s5 + $0x104] sm:$0xf]
        %v7980 = vld [vmem:[%s5 + $0x108] sm:$0xf]
        %v7981 = vld [vmem:[%s5 + $0x10c] sm:$0xf]
        %v7982 = vld [vmem:[%s5 + $0x110] sm:$0xf]
        %v7983 = vld [vmem:[%s5 + $0x114] sm:$0xf]
        %v7984 = vld [vmem:[%s5 + $0x118] sm:$0xf]
        %v7985 = vld [vmem:[%s5 + $0x11c] sm:$0xf]
        %v7986 = vld [vmem:[%s5 + $0x120] sm:$0xf]
        %v7987 = vld [vmem:[%s5 + $0x124] sm:$0xf]
        %v7988 = vld [vmem:[%s5 + $0x128] sm:$0xf]
        %v7989 = vld [vmem:[%s5 + $0x12c] sm:$0xf]
        %v7990 = vld [vmem:[%s5 + $0x130] sm:$0xf]
        %v7991 = vld [vmem:[%s5 + $0x134] sm:$0xf]
        %v7992 = vld [vmem:[%s5 + $0x138] sm:$0xf]
        %v7993 = vld [vmem:[%s5 + $0x13c] sm:$0xf]
        %v7994 = vld [vmem:[%s5 + $0x140] sm:$0xf]
        %v7995 = vld [vmem:[%s5 + $0x144] sm:$0xf]
        %v7996 = vld [vmem:[%s5 + $0x148] sm:$0xf]
        %v7997 = vld [vmem:[%s5 + $0x14c] sm:$0xf]
        %v7998 = vld [vmem:[%s5 + $0x150] sm:$0xf]
        %v7999 = vld [vmem:[%s5 + $0x154] sm:$0xf]
        %v8000 = vld [vmem:[%s5 + $0x158] sm:$0xf]
        %v8001 = vld [vmem:[%s5 + $0x15c] sm:$0xf]
        %v8002 = vld [vmem:[%s5 + $0x160] sm:$0xf]
        %v8003 = vld [vmem:[%s5 + $0x164] sm:$0xf]
        %v8004 = vld [vmem:[%s5 + $0x168] sm:$0xf]
        %v8005 = vld [vmem:[%s5 + $0x16c] sm:$0xf]
        %v8006 = vld [vmem:[%s5 + $0x170] sm:$0xf]
        %v8007 = vld [vmem:[%s5 + $0x174] sm:$0xf]
        %v8008 = vld [vmem:[%s5 + $0x178] sm:$0xf]
        %v8009 = vld [vmem:[%s5 + $0x17c] sm:$0xf]
        %v8010 = vld [vmem:[%s5 + $0x180] sm:$0xf]
        %v8011 = vld [vmem:[%s5 + $0x184] sm:$0xf]
        %v8012 = vld [vmem:[%s5 + $0x188] sm:$0xf]
        %v8013 = vld [vmem:[%s5 + $0x18c] sm:$0xf]
        %v8014 = vld [vmem:[%s5 + $0x190] sm:$0xf]
        %v8015 = vld [vmem:[%s5 + $0x194] sm:$0xf]
        %v8016 = vld [vmem:[%s5 + $0x198] sm:$0xf]
        %v8017 = vld [vmem:[%s5 + $0x19c] sm:$0xf]
        %v8018 = vld [vmem:[%s5 + $0x1a0] sm:$0xf]
        %v8019 = vld [vmem:[%s5 + $0x1a4] sm:$0xf]
        %v8020 = vld [vmem:[%s5 + $0x1a8] sm:$0xf]
        %v8021 = vld [vmem:[%s5 + $0x1ac] sm:$0xf]
        %v8022 = vld [vmem:[%s5 + $0x1b0] sm:$0xf]
        %v8023 = vld [vmem:[%s5 + $0x1b4] sm:$0xf]
        %v8024 = vld [vmem:[%s5 + $0x1b8] sm:$0xf]
        %v8025 = vld [vmem:[%s5 + $0x1bc] sm:$0xf]
        %v8026 = vld [vmem:[%s5 + $0x1c0] sm:$0xf]
        %v8027 = vld [vmem:[%s5 + $0x1c4] sm:$0xf]
        %v8028 = vld [vmem:[%s5 + $0x1c8] sm:$0xf]
        %v8029 = vld [vmem:[%s5 + $0x1cc] sm:$0xf]
        %v8030 = vld [vmem:[%s5 + $0x1d0] sm:$0xf]
        %v8031 = vld [vmem:[%s5 + $0x1d4] sm:$0xf]
        %v8032 = vld [vmem:[%s5 + $0x1d8] sm:$0xf]
        %v8033 = vld [vmem:[%s5 + $0x1dc] sm:$0xf]
        %v8034 = vld [vmem:[%s5 + $0x1e0] sm:$0xf]
        %v8035 = vld [vmem:[%s5 + $0x1e4] sm:$0xf]
        %v8036 = vld [vmem:[%s5 + $0x1e8] sm:$0xf]
        %v8037 = vld [vmem:[%s5 + $0x1ec] sm:$0xf]
        %v8038 = vld [vmem:[%s5 + $0x1f0] sm:$0xf]
        %v8039 = vld [vmem:[%s5 + $0x1f4] sm:$0xf]
        %v8040 = vld [vmem:[%s5 + $0x1f8] sm:$0xf]
        %v8041 = vld [vmem:[%s5 + $0x1fc] sm:$0xf]
        %v8042 = vld [vmem:[%s5 + $0x200] sm:$0xf]
        %v8043 = vld [vmem:[%s5 + $0x204] sm:$0xf]
        %v8044 = vld [vmem:[%s5 + $0x208] sm:$0xf]
        %v8045 = vld [vmem:[%s5 + $0x20c] sm:$0xf]
        %v8046 = vld [vmem:[%s5 + $0x210] sm:$0xf]
        %v8047 = vld [vmem:[%s5 + $0x214] sm:$0xf]
        %v8048 = vld [vmem:[%s5 + $0x218] sm:$0xf]
        %v8049 = vld [vmem:[%s5 + $0x21c] sm:$0xf]
        %v8050 = vld [vmem:[%s5 + $0x220] sm:$0xf]
        %v8051 = vld [vmem:[%s5 + $0x224] sm:$0xf]
        %v8052 = vld [vmem:[%s5 + $0x228] sm:$0xf]
        %v8053 = vld [vmem:[%s5 + $0x22c] sm:$0xf]
        %v8054 = vld [vmem:[%s5 + $0x230] sm:$0xf]
        %v8055 = vld [vmem:[%s5 + $0x234] sm:$0xf]
        %v8056 = vld [vmem:[%s5 + $0x238] sm:$0xf]
        %v8057 = vld [vmem:[%s5 + $0x23c] sm:$0xf]
        %v8058 = vld [vmem:[%s5 + $0x240] sm:$0xf]
        %v8059 = vld [vmem:[%s5 + $0x244] sm:$0xf]
        %v8060 = vld [vmem:[%s5 + $0x248] sm:$0xf]
        %v8061 = vld [vmem:[%s5 + $0x24c] sm:$0xf]
        %v8062 = vld [vmem:[%s5 + $0x250] sm:$0xf]
        %v8063 = vld [vmem:[%s5 + $0x254] sm:$0xf]
        %v8064 = vld [vmem:[%s5 + $0x258] sm:$0xf]
        %v8065 = vld [vmem:[%s5 + $0x25c] sm:$0xf]
        %v8066 = vld [vmem:[%s5 + $0x260] sm:$0xf]
        %v8067 = vld [vmem:[%s5 + $0x264] sm:$0xf]
        %v8068 = vld [vmem:[%s5 + $0x268] sm:$0xf]
        %v8069 = vld [vmem:[%s5 + $0x26c] sm:$0xf]
        %v8070 = vld [vmem:[%s5 + $0x270] sm:$0xf]
        %v8071 = vld [vmem:[%s5 + $0x274] sm:$0xf]
        %v8072 = vld [vmem:[%s5 + $0x278] sm:$0xf]
        %v8073 = vld [vmem:[%s5 + $0x27c] sm:$0xf]
        %v8074 = vld [vmem:[%s5 + $0x280] sm:$0xf]
        %v8075 = vld [vmem:[%s5 + $0x284] sm:$0xf]
        %v8076 = vld [vmem:[%s5 + $0x288] sm:$0xf]
        %v8077 = vld [vmem:[%s5 + $0x28c] sm:$0xf]
        %v8078 = vld [vmem:[%s5 + $0x290] sm:$0xf]
        %v8079 = vld [vmem:[%s5 + $0x294] sm:$0xf]
        %v8080 = vld [vmem:[%s5 + $0x298] sm:$0xf]
        %v8081 = vld [vmem:[%s5 + $0x29c] sm:$0xf]
        %v8082 = vld [vmem:[%s5 + $0x2a0] sm:$0xf]
        %v8083 = vld [vmem:[%s5 + $0x2a4] sm:$0xf]
        %v8084 = vld [vmem:[%s5 + $0x2a8] sm:$0xf]
        %v8085 = vld [vmem:[%s5 + $0x2ac] sm:$0xf]
        %v8086 = vld [vmem:[%s5 + $0x2b0] sm:$0xf]
        %v8087 = vld [vmem:[%s5 + $0x2b4] sm:$0xf]
        %v8088 = vld [vmem:[%s5 + $0x2b8] sm:$0xf]
        %v8089 = vld [vmem:[%s5 + $0x2bc] sm:$0xf]
        %v8090 = vld [vmem:[%s5 + $0x2c0] sm:$0xf]
        %v8091 = vld [vmem:[%s5 + $0x2c4] sm:$0xf]
        %v8092 = vld [vmem:[%s5 + $0x2c8] sm:$0xf]
        %v8093 = vld [vmem:[%s5 + $0x2cc] sm:$0xf]
        %v8094 = vld [vmem:[%s5 + $0x2d0] sm:$0xf]
        %v8095 = vld [vmem:[%s5 + $0x2d4] sm:$0xf]
        %v8096 = vld [vmem:[%s5 + $0x2d8] sm:$0xf]
        %v8097 = vld [vmem:[%s5 + $0x2dc] sm:$0xf]
        %v8098 = vld [vmem:[%s5 + $0x2e0] sm:$0xf]
        %v8099 = vld [vmem:[%s5 + $0x2e4] sm:$0xf]
        %v8100 = vld [vmem:[%s5 + $0x2e8] sm:$0xf]
        %v8101 = vld [vmem:[%s5 + $0x2ec] sm:$0xf]
        %v8102 = vld [vmem:[%s5 + $0x2f0] sm:$0xf]
        %v8103 = vld [vmem:[%s5 + $0x2f4] sm:$0xf]
        %v8104 = vld [vmem:[%s5 + $0x2f8] sm:$0xf]
        %v8105 = vld [vmem:[%s5 + $0x2fc] sm:$0xf]
        %v8106 = vld [vmem:[%s5 + $0x300] sm:$0xf]
        %v8107 = vld [vmem:[%s5 + $0x304] sm:$0xf]
        %v8108 = vld [vmem:[%s5 + $0x308] sm:$0xf]
        %v8109 = vld [vmem:[%s5 + $0x30c] sm:$0xf]
        %v8110 = vld [vmem:[%s5 + $0x310] sm:$0xf]
        %v8111 = vld [vmem:[%s5 + $0x314] sm:$0xf]
        %v8112 = vld [vmem:[%s5 + $0x318] sm:$0xf]
        %v8113 = vld [vmem:[%s5 + $0x31c] sm:$0xf]
        %v8114 = vld [vmem:[%s5 + $0x320] sm:$0xf]
        %v8115 = vld [vmem:[%s5 + $0x324] sm:$0xf]
        %v8116 = vld [vmem:[%s5 + $0x328] sm:$0xf]
        %v8117 = vld [vmem:[%s5 + $0x32c] sm:$0xf]
        %v8118 = vld [vmem:[%s5 + $0x330] sm:$0xf]
        %v8119 = vld [vmem:[%s5 + $0x334] sm:$0xf]
        %v8120 = vld [vmem:[%s5 + $0x338] sm:$0xf]
        %v8121 = vld [vmem:[%s5 + $0x33c] sm:$0xf]
        %v8122 = vld [vmem:[%s5 + $0x340] sm:$0xf]
        %v8123 = vld [vmem:[%s5 + $0x344] sm:$0xf]
        %v8124 = vld [vmem:[%s5 + $0x348] sm:$0xf]
        %v8125 = vld [vmem:[%s5 + $0x34c] sm:$0xf]
        %v8126 = vld [vmem:[%s5 + $0x350] sm:$0xf]
        %v8127 = vld [vmem:[%s5 + $0x354] sm:$0xf]
        %v8128 = vld [vmem:[%s5 + $0x358] sm:$0xf]
        %v8129 = vld [vmem:[%s5 + $0x35c] sm:$0xf]
        %v8130 = vld [vmem:[%s5 + $0x360] sm:$0xf]
        %v8131 = vld [vmem:[%s5 + $0x364] sm:$0xf]
        %v8132 = vld [vmem:[%s5 + $0x368] sm:$0xf]
        %v8133 = vld [vmem:[%s5 + $0x36c] sm:$0xf]
        %v8134 = vld [vmem:[%s5 + $0x370] sm:$0xf]
        %v8135 = vld [vmem:[%s5 + $0x374] sm:$0xf]
        %v8136 = vld [vmem:[%s5 + $0x378] sm:$0xf]
        %v8137 = vld [vmem:[%s5 + $0x37c] sm:$0xf]
        %v8138 = vld [vmem:[%s5 + $0x380] sm:$0xf]
        %v8139 = vld [vmem:[%s5 + $0x384] sm:$0xf]
        %v8140 = vld [vmem:[%s5 + $0x388] sm:$0xf]
        %v8141 = vld [vmem:[%s5 + $0x38c] sm:$0xf]
        %v8142 = vld [vmem:[%s5 + $0x390] sm:$0xf]
        %v8143 = vld [vmem:[%s5 + $0x394] sm:$0xf]
        %v8144 = vld [vmem:[%s5 + $0x398] sm:$0xf]
        %v8145 = vld [vmem:[%s5 + $0x39c] sm:$0xf]
        %v8146 = vld [vmem:[%s5 + $0x3a0] sm:$0xf]
        %v8147 = vld [vmem:[%s5 + $0x3a4] sm:$0xf]
        %v8148 = vld [vmem:[%s5 + $0x3a8] sm:$0xf]
        %v8149 = vld [vmem:[%s5 + $0x3ac] sm:$0xf]
        %v8150 = vld [vmem:[%s5 + $0x3b0] sm:$0xf]
        %v8151 = vld [vmem:[%s5 + $0x3b4] sm:$0xf]
        %v8152 = vld [vmem:[%s5 + $0x3b8] sm:$0xf]
        %v8153 = vld [vmem:[%s5 + $0x3bc] sm:$0xf]
        %v8154 = vld [vmem:[%s5 + $0x3c0] sm:$0xf]
        %v8155 = vld [vmem:[%s5 + $0x3c4] sm:$0xf]
        %v8156 = vld [vmem:[%s5 + $0x3c8] sm:$0xf]
        %v8157 = vld [vmem:[%s5 + $0x3cc] sm:$0xf]
        %v8158 = vld [vmem:[%s5 + $0x3d0] sm:$0xf]
        %v8159 = vld [vmem:[%s5 + $0x3d4] sm:$0xf]
        %v8160 = vld [vmem:[%s5 + $0x3d8] sm:$0xf]
        %v8161 = vld [vmem:[%s5 + $0x3dc] sm:$0xf]
        %v8162 = vld [vmem:[%s5 + $0x3e0] sm:$0xf]
        %v8163 = vld [vmem:[%s5 + $0x3e4] sm:$0xf]
        %v8164 = vld [vmem:[%s5 + $0x3e8] sm:$0xf]
        %v8165 = vld [vmem:[%s5 + $0x3ec] sm:$0xf]
        %v8166 = vld [vmem:[%s5 + $0x3f0] sm:$0xf]
        %v8167 = vld [vmem:[%s5 + $0x3f4] sm:$0xf]
        %v8168 = vld [vmem:[%s5 + $0x3f8] sm:$0xf]
        %v8169 = vld [vmem:[%s5 + $0x3fc] sm:$0xf]
        %v8170 = vld [vmem:[%s5 + $0x400] sm:$0xf]
        %v8171 = vld [vmem:[%s5 + $0x404] sm:$0xf]
        %v8172 = vld [vmem:[%s5 + $0x408] sm:$0xf]
        %v8173 = vld [vmem:[%s5 + $0x40c] sm:$0xf]
        %v8174 = vld [vmem:[%s5 + $0x410] sm:$0xf]
        %v8175 = vld [vmem:[%s5 + $0x414] sm:$0xf]
        %v8176 = vld [vmem:[%s5 + $0x418] sm:$0xf]
        %v8177 = vld [vmem:[%s5 + $0x41c] sm:$0xf]
        %v8178 = vld [vmem:[%s5 + $0x420] sm:$0xf]
        %v8179 = vld [vmem:[%s5 + $0x424] sm:$0xf]
        %v8180 = vld [vmem:[%s5 + $0x428] sm:$0xf]
        %v8181 = vld [vmem:[%s5 + $0x42c] sm:$0xf]
        %v8182 = vld [vmem:[%s5 + $0x430] sm:$0xf]
        %v8183 = vld [vmem:[%s5 + $0x434] sm:$0xf]
        %v8184 = vld [vmem:[%s5 + $0x438] sm:$0xf]
        %v8185 = vld [vmem:[%s5 + $0x43c] sm:$0xf]
        %v8186 = vld [vmem:[%s5 + $0x440] sm:$0xf]
        %v8187 = vld [vmem:[%s5 + $0x444] sm:$0xf]
        %v8188 = vld [vmem:[%s5 + $0x448] sm:$0xf]
        %v8189 = vld [vmem:[%s5 + $0x44c] sm:$0xf]
        %v8190 = vld [vmem:[%s5 + $0x450] sm:$0xf]
        %v8191 = vld [vmem:[%s5 + $0x454] sm:$0xf]
        %v8192 = vld [vmem:[%s5 + $0x458] sm:$0xf]
        %v8193 = vld [vmem:[%s5 + $0x45c] sm:$0xf]
        %v8194 = vld [vmem:[%s5 + $0x460] sm:$0xf]
        %v8195 = vld [vmem:[%s5 + $0x464] sm:$0xf]
        %v8196 = vld [vmem:[%s5 + $0x468] sm:$0xf]
        %v8197 = vld [vmem:[%s5 + $0x46c] sm:$0xf]
        %v8198 = vld [vmem:[%s5 + $0x470] sm:$0xf]
        %v8199 = vld [vmem:[%s5 + $0x474] sm:$0xf]
        %v8200 = vld [vmem:[%s5 + $0x478] sm:$0xf]
        %v8201 = vld [vmem:[%s5 + $0x47c] sm:$0xf]
        %v8202 = vld [vmem:[%s5 + $0x480] sm:$0xf]
        %v8203 = vld [vmem:[%s5 + $0x484] sm:$0xf]
        %v8204 = vld [vmem:[%s5 + $0x488] sm:$0xf]
        %v8205 = vld [vmem:[%s5 + $0x48c] sm:$0xf]
        %v8206 = vld [vmem:[%s5 + $0x490] sm:$0xf]
        %v8207 = vld [vmem:[%s5 + $0x494] sm:$0xf]
        %v8208 = vld [vmem:[%s5 + $0x498] sm:$0xf]
        %v8209 = vld [vmem:[%s5 + $0x49c] sm:$0xf]
        %v8210 = vld [vmem:[%s5 + $0x4a0] sm:$0xf]
        %v8211 = vld [vmem:[%s5 + $0x4a4] sm:$0xf]
        %v8212 = vld [vmem:[%s5 + $0x4a8] sm:$0xf]
        %v8213 = vld [vmem:[%s5 + $0x4ac] sm:$0xf]
        %v8214 = vld [vmem:[%s5 + $0x4b0] sm:$0xf]
        %v8215 = vld [vmem:[%s5 + $0x4b4] sm:$0xf]
        %v8216 = vld [vmem:[%s5 + $0x4b8] sm:$0xf]
        %v8217 = vld [vmem:[%s5 + $0x4bc] sm:$0xf]
        %v8218 = vld [vmem:[%s5 + $0x4c0] sm:$0xf]
        %v8219 = vld [vmem:[%s5 + $0x4c4] sm:$0xf]
        %v8220 = vld [vmem:[%s5 + $0x4c8] sm:$0xf]
        %v8221 = vld [vmem:[%s5 + $0x4cc] sm:$0xf]
        %v8222 = vld [vmem:[%s5 + $0x4d0] sm:$0xf]
        %v8223 = vld [vmem:[%s5 + $0x4d4] sm:$0xf]
        %v8224 = vld [vmem:[%s5 + $0x4d8] sm:$0xf]
        %v8225 = vld [vmem:[%s5 + $0x4dc] sm:$0xf]
        %v8226 = vld [vmem:[%s5 + $0x4e0] sm:$0xf]
        %v8227 = vld [vmem:[%s5 + $0x4e4] sm:$0xf]
        %v8228 = vld [vmem:[%s5 + $0x4e8] sm:$0xf]
        %v8229 = vld [vmem:[%s5 + $0x4ec] sm:$0xf]
        %v8230 = vld [vmem:[%s5 + $0x4f0] sm:$0xf]
        %v8231 = vld [vmem:[%s5 + $0x4f4] sm:$0xf]
        %v8232 = vld [vmem:[%s5 + $0x4f8] sm:$0xf]
        %v8233 = vld [vmem:[%s5 + $0x4fc] sm:$0xf]
        %v8234 = vld [vmem:[%s5 + $0x500] sm:$0xf]
        %v8235 = vld [vmem:[%s5 + $0x504] sm:$0xf]
        %v8236 = vld [vmem:[%s5 + $0x508] sm:$0xf]
        %v8237 = vld [vmem:[%s5 + $0x50c] sm:$0xf]
        %v8238 = vld [vmem:[%s5 + $0x510] sm:$0xf]
        %v8239 = vld [vmem:[%s5 + $0x514] sm:$0xf]
        %v8240 = vld [vmem:[%s5 + $0x518] sm:$0xf]
        %v8241 = vld [vmem:[%s5 + $0x51c] sm:$0xf]
        %v8242 = vld [vmem:[%s5 + $0x520] sm:$0xf]
        %v8243 = vld [vmem:[%s5 + $0x524] sm:$0xf]
        %v8244 = vld [vmem:[%s5 + $0x528] sm:$0xf]
        %v8245 = vld [vmem:[%s5 + $0x52c] sm:$0xf]
        %v8246 = vld [vmem:[%s5 + $0x530] sm:$0xf]
        %v8247 = vld [vmem:[%s5 + $0x534] sm:$0xf]
        %v8248 = vld [vmem:[%s5 + $0x538] sm:$0xf]
        %v8249 = vld [vmem:[%s5 + $0x53c] sm:$0xf]
        %v8250 = vld [vmem:[%s6] sm:$0x1]
        %v8252 = vlaneseq
        %v8253 = vshrl.u32 %v8252, 7
        %v8254 = vsub.s32 0, %v8253
        %v8255 = vrot.slane %v8250, %v8254
        %v8279 = vunpack.c.l.b16 %v7892
        %v8280 = vunpack.c.h.b16 %v7892
        %v8281 = vunpack.c.l.b16 %v7893
        %v8282 = vunpack.c.h.b16 %v7893
        %v8283 = vunpack.c.l.b16 %v7894
        %v8284 = vunpack.c.h.b16 %v7894
        %v8285 = vunpack.c.l.b16 %v7895
        %v8286 = vunpack.c.h.b16 %v7895
        %v8287 = vunpack.c.l.b16 %v7896
        %v8288 = vunpack.c.h.b16 %v7896
        %v8289 = vunpack.c.l.b16 %v7897
        %v8290 = vunpack.c.h.b16 %v7897
        %v8291 = vunpack.c.l.b16 %v7898
        %v8292 = vunpack.c.h.b16 %v7898
        %v8293 = vunpack.c.l.b16 %v7899
        %v8294 = vunpack.c.h.b16 %v7899
        %v8295 = vunpack.c.l.b16 %v7900
        %v8296 = vunpack.c.h.b16 %v7900
        %v8297 = vunpack.c.l.b16 %v7901
        %v8298 = vunpack.c.h.b16 %v7901
        %v8299 = vunpack.c.l.b16 %v7902
        %v8300 = vunpack.c.l.b16 %v7903
        %v8301 = vunpack.c.h.b16 %v7903
        %v8302 = vunpack.c.l.b16 %v7904
        %v8303 = vunpack.c.h.b16 %v7904
        %v8304 = vunpack.c.l.b16 %v7905
        %v8305 = vunpack.c.h.b16 %v7905
        %v8306 = vunpack.c.l.b16 %v7906
        %v8307 = vunpack.c.h.b16 %v7906
        %v8308 = vunpack.c.l.b16 %v7907
        %v8309 = vunpack.c.h.b16 %v7907
        %v8310 = vunpack.c.l.b16 %v7908
        %v8311 = vunpack.c.h.b16 %v7908
        %v8312 = vunpack.c.l.b16 %v7909
        %v8313 = vunpack.c.h.b16 %v7909
        %v8314 = vunpack.c.l.b16 %v7910
        %v8315 = vunpack.c.h.b16 %v7910
        %v8316 = vunpack.c.l.b16 %v7911
        %v8317 = vunpack.c.h.b16 %v7911
        %v8318 = vunpack.c.l.b16 %v7912
        %v8319 = vunpack.c.h.b16 %v7912
        %v8320 = vunpack.c.l.b16 %v7913
        %v8321 = vpack.c.b16 %v8300, %v8279
        %v8322 = vpack.c.b16 %v8301, %v8280
        %v8323 = vpack.c.b16 %v8302, %v8281
        %v8324 = vpack.c.b16 %v8303, %v8282
        %v8325 = vpack.c.b16 %v8304, %v8283
        %v8326 = vpack.c.b16 %v8305, %v8284
        %v8327 = vpack.c.b16 %v8306, %v8285
        %v8328 = vpack.c.b16 %v8307, %v8286
        %v8329 = vpack.c.b16 %v8308, %v8287
        %v8330 = vpack.c.b16 %v8309, %v8288
        %v8331 = vpack.c.b16 %v8310, %v8289
        %v8332 = vpack.c.b16 %v8311, %v8290
        %v8333 = vpack.c.b16 %v8312, %v8291
        %v8334 = vpack.c.b16 %v8313, %v8292
        %v8335 = vpack.c.b16 %v8314, %v8293
        %v8336 = vpack.c.b16 %v8315, %v8294
        %v8337 = vpack.c.b16 %v8316, %v8295
        %v8338 = vpack.c.b16 %v8317, %v8296
        %v8339 = vpack.c.b16 %v8318, %v8297
        %v8340 = vpack.c.b16 %v8319, %v8298
        %v8341 = vpack.c.b16 %v8320, %v8299
        %v8699 = vunpack.c.l.b16 %v7914
        %v8700 = vunpack.c.l.b16 %v7915
        %v8701 = vunpack.c.l.b16 %v7916
        %v8702 = vunpack.c.l.b16 %v7917
        %v8703 = vunpack.c.l.b16 %v7918
        %v8704 = vunpack.c.l.b16 %v7919
        %v8705 = vunpack.c.l.b16 %v7920
        %v8706 = vunpack.c.l.b16 %v7921
        %v8707 = vunpack.c.l.b16 %v7922
        %v8708 = vunpack.c.l.b16 %v7923
        %v8709 = vunpack.c.l.b16 %v7924
        %v8710 = vunpack.c.l.b16 %v7925
        %v8711 = vunpack.c.l.b16 %v7926
        %v8712 = vunpack.c.l.b16 %v7927
        %v8713 = vunpack.c.l.b16 %v7928
        %v8714 = vunpack.c.l.b16 %v7929
        %v8715 = vunpack.c.l.b16 %v7930
        %v8716 = vunpack.c.l.b16 %v7931
        %v8717 = vunpack.c.l.b16 %v7932
        %v8718 = vunpack.c.l.b16 %v7933
        %v8719 = vunpack.c.l.b16 %v7934
        %v8720 = vunpack.c.l.b16 %v7935
        %v8721 = vunpack.c.l.b16 %v7936
        %v8722 = vunpack.c.l.b16 %v7937
        %v8723 = vunpack.c.l.b16 %v7938
        %v8724 = vunpack.c.l.b16 %v7939
        %v8725 = vunpack.c.l.b16 %v7940
        %v8726 = vunpack.c.l.b16 %v7941
        %v8727 = vunpack.c.l.b16 %v7942
        %v8728 = vunpack.c.l.b16 %v7943
        %v8729 = vunpack.c.l.b16 %v7944
        %v8730 = vunpack.c.l.b16 %v7945
        %v8731 = vunpack.c.l.b16 %v7946
        %v8732 = vunpack.c.l.b16 %v7947
        %v8733 = vunpack.c.l.b16 %v7948
        %v8734 = vunpack.c.l.b16 %v7949
        %v8735 = vunpack.c.l.b16 %v7950
        %v8736 = vunpack.c.l.b16 %v7951
        %v8737 = vunpack.c.l.b16 %v7952
        %v8738 = vunpack.c.l.b16 %v7953
        %v8739 = vunpack.c.l.b16 %v7954
        %v8740 = vunpack.c.l.b16 %v7955
        %v8741 = vunpack.c.l.b16 %v7956
        %v8742 = vunpack.c.l.b16 %v7957
        %v8743 = vunpack.c.l.b16 %v7958
        %v8744 = vunpack.c.l.b16 %v7959
        %v8745 = vunpack.c.l.b16 %v7960
        %v8746 = vunpack.c.l.b16 %v7961
        %v8747 = vunpack.c.l.b16 %v7962
        %v8748 = vunpack.c.l.b16 %v7963
        %v8749 = vunpack.c.l.b16 %v7964
        %v8750 = vunpack.c.l.b16 %v7965
        %v8751 = vunpack.c.l.b16 %v7966
        %v8752 = vunpack.c.l.b16 %v7967
        %v8753 = vunpack.c.l.b16 %v7968
        %v8754 = vunpack.c.l.b16 %v7969
        %v8755 = vunpack.c.l.b16 %v7970
        %v8756 = vunpack.c.l.b16 %v7971
        %v8757 = vunpack.c.l.b16 %v7972
        %v8758 = vunpack.c.l.b16 %v7973
        %v8759 = vunpack.c.l.b16 %v7974
        %v8760 = vunpack.c.l.b16 %v7975
        %v8761 = vunpack.c.l.b16 %v7976
        %v8762 = vunpack.c.l.b16 %v7977
        %v8763 = vunpack.c.l.b16 %v7978
        %v8764 = vunpack.c.l.b16 %v7979
        %v8765 = vunpack.c.l.b16 %v7980
        %v8766 = vunpack.c.l.b16 %v7981
        %v8767 = vunpack.c.l.b16 %v7982
        %v8768 = vunpack.c.l.b16 %v7983
        %v8769 = vunpack.c.l.b16 %v7984
        %v8770 = vunpack.c.l.b16 %v7985
        %v8771 = vunpack.c.l.b16 %v7986
        %v8772 = vunpack.c.l.b16 %v7987
        %v8773 = vunpack.c.l.b16 %v7988
        %v8774 = vunpack.c.l.b16 %v7989
        %v8775 = vunpack.c.l.b16 %v7990
        %v8776 = vunpack.c.l.b16 %v7991
        %v8777 = vunpack.c.l.b16 %v7992
        %v8778 = vunpack.c.l.b16 %v7993
        %v8779 = vunpack.c.l.b16 %v7994
        %v8780 = vunpack.c.l.b16 %v7995
        %v8781 = vunpack.c.l.b16 %v7996
        %v8782 = vunpack.c.l.b16 %v7997
        %v8783 = vunpack.c.l.b16 %v7998
        %v8784 = vunpack.c.l.b16 %v7999
        %v8785 = vunpack.c.l.b16 %v8000
        %v8786 = vunpack.c.l.b16 %v8001
        %v8787 = vunpack.c.l.b16 %v8002
        %v8788 = vunpack.c.l.b16 %v8003
        %v8789 = vunpack.c.l.b16 %v8004
        %v8790 = vunpack.c.l.b16 %v8005
        %v8791 = vunpack.c.l.b16 %v8006
        %v8792 = vunpack.c.l.b16 %v8007
        %v8793 = vunpack.c.l.b16 %v8008
        %v8794 = vunpack.c.l.b16 %v8009
        %v8795 = vunpack.c.l.b16 %v8010
        %v8796 = vunpack.c.l.b16 %v8011
        %v8797 = vunpack.c.l.b16 %v8012
        %v8798 = vunpack.c.l.b16 %v8013
        %v8799 = vunpack.c.l.b16 %v8014
        %v8800 = vunpack.c.l.b16 %v8015
        %v8801 = vunpack.c.l.b16 %v8016
        %v8802 = vunpack.c.l.b16 %v8017
        %v8803 = vunpack.c.l.b16 %v8018
        %v8804 = vunpack.c.l.b16 %v8019
        %v8805 = vunpack.c.l.b16 %v8020
        %v8806 = vunpack.c.l.b16 %v8021
        %v8807 = vunpack.c.l.b16 %v8022
        %v8808 = vunpack.c.l.b16 %v8023
        %v8809 = vunpack.c.l.b16 %v8024
        %v8810 = vunpack.c.l.b16 %v8025
        %v8811 = vunpack.c.l.b16 %v8026
        %v8812 = vunpack.c.l.b16 %v8027
        %v8813 = vunpack.c.l.b16 %v8028
        %v8814 = vunpack.c.l.b16 %v8029
        %v8815 = vunpack.c.l.b16 %v8030
        %v8816 = vunpack.c.l.b16 %v8031
        %v8817 = vunpack.c.l.b16 %v8032
        %v8818 = vunpack.c.l.b16 %v8033
        %v8819 = vunpack.c.l.b16 %v8034
        %v8820 = vunpack.c.l.b16 %v8035
        %v8821 = vunpack.c.l.b16 %v8036
        %v8822 = vunpack.c.l.b16 %v8037
        %v8823 = vunpack.c.l.b16 %v8038
        %v8824 = vunpack.c.l.b16 %v8039
        %v8825 = vunpack.c.l.b16 %v8040
        %v8826 = vunpack.c.l.b16 %v8041
        %v8827 = vunpack.c.l.b16 %v8042
        %v8828 = vunpack.c.l.b16 %v8043
        %v8829 = vunpack.c.l.b16 %v8044
        %v8830 = vunpack.c.l.b16 %v8045
        %v8831 = vunpack.c.l.b16 %v8046
        %v8832 = vunpack.c.l.b16 %v8047
        %v8833 = vunpack.c.l.b16 %v8048
        %v8834 = vunpack.c.l.b16 %v8049
        %v8835 = vunpack.c.l.b16 %v8050
        %v8836 = vunpack.c.l.b16 %v8051
        %v8837 = vunpack.c.l.b16 %v8052
        %v8838 = vunpack.c.l.b16 %v8053
        %v8839 = vunpack.c.l.b16 %v8054
        %v8840 = vunpack.c.l.b16 %v8055
        %v8841 = vunpack.c.l.b16 %v8056
        %v8842 = vunpack.c.l.b16 %v8057
        %v8843 = vunpack.c.l.b16 %v8058
        %v8844 = vunpack.c.l.b16 %v8059
        %v8845 = vunpack.c.l.b16 %v8060
        %v8846 = vunpack.c.l.b16 %v8061
        %v8847 = vunpack.c.l.b16 %v8062
        %v8848 = vunpack.c.l.b16 %v8063
        %v8849 = vunpack.c.l.b16 %v8064
        %v8850 = vunpack.c.l.b16 %v8065
        %v8851 = vunpack.c.l.b16 %v8066
        %v8852 = vunpack.c.l.b16 %v8067
        %v8853 = vunpack.c.l.b16 %v8068
        %v8854 = vunpack.c.l.b16 %v8069
        %v8855 = vunpack.c.l.b16 %v8070
        %v8856 = vunpack.c.l.b16 %v8071
        %v8857 = vunpack.c.l.b16 %v8072
        %v8858 = vunpack.c.l.b16 %v8073
        %v8859 = vunpack.c.l.b16 %v8074
        %v8860 = vunpack.c.l.b16 %v8075
        %v8861 = vunpack.c.l.b16 %v8076
        %v8862 = vunpack.c.l.b16 %v8077
        %v8863 = vunpack.c.l.b16 %v8078
        %v8864 = vunpack.c.l.b16 %v8079
        %v8865 = vunpack.c.l.b16 %v8080
        %v8866 = vunpack.c.l.b16 %v8081
        %v8867 = vunpack.c.l.b16 %v8082
        %v8868 = vunpack.c.l.b16 %v8083
        %v8869 = vunpack.c.l.b16 %v8084
        %v8870 = vunpack.c.l.b16 %v8085
        %v8871 = vunpack.c.l.b16 %v8086
        %v8872 = vunpack.c.l.b16 %v8087
        %v8873 = vunpack.c.l.b16 %v8088
        %v8874 = vunpack.c.l.b16 %v8089
        %v8875 = vunpack.c.l.b16 %v8090
        %v8876 = vunpack.c.l.b16 %v8091
        %v8877 = vunpack.c.l.b16 %v8092
        %v8878 = vunpack.c.l.b16 %v8093
        %v8879 = vunpack.c.l.b16 %v8094
        %v8880 = vunpack.c.l.b16 %v8095
        %v8881 = vunpack.c.l.b16 %v8096
        %v8882 = vunpack.c.l.b16 %v8097
        %v8883 = vunpack.c.l.b16 %v8098
        %v8884 = vunpack.c.l.b16 %v8099
        %v8885 = vunpack.c.l.b16 %v8100
        %v8886 = vunpack.c.l.b16 %v8101
        %v8887 = vunpack.c.l.b16 %v8102
        %v8888 = vunpack.c.l.b16 %v8103
        %v8889 = vunpack.c.l.b16 %v8104
        %v8890 = vunpack.c.l.b16 %v8105
        %v8891 = vunpack.c.l.b16 %v8106
        %v8892 = vunpack.c.l.b16 %v8107
        %v8893 = vunpack.c.l.b16 %v8108
        %v8894 = vunpack.c.l.b16 %v8109
        %v8895 = vunpack.c.l.b16 %v8110
        %v8896 = vunpack.c.l.b16 %v8111
        %v8897 = vunpack.c.l.b16 %v8112
        %v8898 = vunpack.c.l.b16 %v8113
        %v8899 = vunpack.c.l.b16 %v8114
        %v8900 = vunpack.c.l.b16 %v8115
        %v8901 = vunpack.c.l.b16 %v8116
        %v8902 = vunpack.c.l.b16 %v8117
        %v8903 = vunpack.c.l.b16 %v8118
        %v8904 = vunpack.c.l.b16 %v8119
        %v8905 = vunpack.c.l.b16 %v8120
        %v8906 = vunpack.c.l.b16 %v8121
        %v8907 = vunpack.c.l.b16 %v8122
        %v8908 = vunpack.c.l.b16 %v8123
        %v8909 = vunpack.c.l.b16 %v8124
        %v8910 = vunpack.c.l.b16 %v8125
        %v8911 = vunpack.c.l.b16 %v8126
        %v8912 = vunpack.c.l.b16 %v8127
        %v8913 = vunpack.c.l.b16 %v8128
        %v8914 = vunpack.c.l.b16 %v8129
        %v8915 = vunpack.c.l.b16 %v8130
        %v8916 = vunpack.c.l.b16 %v8131
        %v8917 = vunpack.c.l.b16 %v8132
        %v8918 = vunpack.c.l.b16 %v8133
        %v8919 = vunpack.c.l.b16 %v8134
        %v8920 = vunpack.c.l.b16 %v8135
        %v8921 = vunpack.c.l.b16 %v8136
        %v8922 = vunpack.c.l.b16 %v8137
        %v8923 = vunpack.c.l.b16 %v8138
        %v8924 = vunpack.c.l.b16 %v8139
        %v8925 = vunpack.c.l.b16 %v8140
        %v8926 = vunpack.c.l.b16 %v8141
        %v8927 = vunpack.c.l.b16 %v8142
        %v8928 = vunpack.c.l.b16 %v8143
        %v8929 = vunpack.c.l.b16 %v8144
        %v8930 = vunpack.c.l.b16 %v8145
        %v8931 = vunpack.c.l.b16 %v8146
        %v8932 = vunpack.c.l.b16 %v8147
        %v8933 = vunpack.c.l.b16 %v8148
        %v8934 = vunpack.c.l.b16 %v8149
        %v8935 = vunpack.c.l.b16 %v8150
        %v8936 = vunpack.c.l.b16 %v8151
        %v8937 = vunpack.c.l.b16 %v8152
        %v8938 = vunpack.c.l.b16 %v8153
        %v8939 = vunpack.c.l.b16 %v8154
        %v8940 = vunpack.c.l.b16 %v8155
        %v8941 = vunpack.c.l.b16 %v8156
        %v8942 = vunpack.c.l.b16 %v8157
        %v8943 = vunpack.c.l.b16 %v8158
        %v8944 = vunpack.c.l.b16 %v8159
        %v8945 = vunpack.c.l.b16 %v8160
        %v8946 = vunpack.c.l.b16 %v8161
        %v8947 = vunpack.c.l.b16 %v8162
        %v8948 = vunpack.c.l.b16 %v8163
        %v8949 = vunpack.c.l.b16 %v8164
        %v8950 = vunpack.c.l.b16 %v8165
        %v8951 = vunpack.c.l.b16 %v8166
        %v8952 = vunpack.c.l.b16 %v8167
        %v8953 = vunpack.c.l.b16 %v8168
        %v8954 = vunpack.c.l.b16 %v8169
        %v8955 = vunpack.c.l.b16 %v8170
        %v8956 = vunpack.c.l.b16 %v8171
        %v8957 = vunpack.c.l.b16 %v8172
        %v8958 = vunpack.c.l.b16 %v8173
        %v8959 = vunpack.c.l.b16 %v8174
        %v8960 = vunpack.c.l.b16 %v8175
        %v8961 = vunpack.c.l.b16 %v8176
        %v8962 = vunpack.c.l.b16 %v8177
        %v8963 = vunpack.c.l.b16 %v8178
        %v8964 = vunpack.c.l.b16 %v8179
        %v8965 = vunpack.c.l.b16 %v8180
        %v8966 = vunpack.c.l.b16 %v8181
        %v8967 = vunpack.c.l.b16 %v8182
        %v8968 = vunpack.c.l.b16 %v8183
        %v8969 = vunpack.c.l.b16 %v8184
        %v8970 = vunpack.c.l.b16 %v8185
        %v8971 = vunpack.c.l.b16 %v8186
        %v8972 = vunpack.c.l.b16 %v8187
        %v8973 = vunpack.c.l.b16 %v8188
        %v8974 = vunpack.c.l.b16 %v8189
        %v8975 = vunpack.c.l.b16 %v8190
        %v8976 = vunpack.c.l.b16 %v8191
        %v8977 = vunpack.c.l.b16 %v8192
        %v8978 = vunpack.c.l.b16 %v8193
        %v8979 = vunpack.c.l.b16 %v8194
        %v8980 = vunpack.c.l.b16 %v8195
        %v8981 = vunpack.c.l.b16 %v8196
        %v8982 = vunpack.c.l.b16 %v8197
        %v8983 = vunpack.c.l.b16 %v8198
        %v8984 = vunpack.c.l.b16 %v8199
        %v8985 = vunpack.c.l.b16 %v8200
        %v8986 = vunpack.c.l.b16 %v8201
        %v8987 = vunpack.c.l.b16 %v8202
        %v8988 = vunpack.c.l.b16 %v8203
        %v8989 = vunpack.c.l.b16 %v8204
        %v8990 = vunpack.c.l.b16 %v8205
        %v8991 = vunpack.c.l.b16 %v8206
        %v8992 = vunpack.c.l.b16 %v8207
        %v8993 = vunpack.c.l.b16 %v8208
        %v8994 = vunpack.c.l.b16 %v8209
        %v8995 = vunpack.c.l.b16 %v8210
        %v8996 = vunpack.c.l.b16 %v8211
        %v8997 = vunpack.c.l.b16 %v8212
        %v8998 = vunpack.c.l.b16 %v8213
        %v8999 = vunpack.c.l.b16 %v8214
        %v9000 = vunpack.c.l.b16 %v8215
        %v9001 = vunpack.c.l.b16 %v8216
        %v9002 = vunpack.c.l.b16 %v8217
        %v9003 = vunpack.c.l.b16 %v8218
        %v9004 = vunpack.c.l.b16 %v8219
        %v9005 = vunpack.c.l.b16 %v8220
        %v9006 = vunpack.c.l.b16 %v8221
        %v9007 = vunpack.c.l.b16 %v8222
        %v9008 = vunpack.c.l.b16 %v8223
        %v9009 = vunpack.c.l.b16 %v8224
        %v9010 = vunpack.c.l.b16 %v8225
        %v9011 = vunpack.c.l.b16 %v8226
        %v9012 = vunpack.c.l.b16 %v8227
        %v9013 = vunpack.c.l.b16 %v8228
        %v9014 = vunpack.c.l.b16 %v8229
        %v9015 = vunpack.c.l.b16 %v8230
        %v9016 = vunpack.c.l.b16 %v8231
        %v9017 = vunpack.c.l.b16 %v8232
        %v9018 = vunpack.c.l.b16 %v8233
        %v9019 = vunpack.c.l.b16 %v8234
        %v9020 = vunpack.c.l.b16 %v8235
        %v9021 = vunpack.c.l.b16 %v8236
        %v9022 = vunpack.c.l.b16 %v8237
        %v9023 = vunpack.c.l.b16 %v8238
        %v9024 = vunpack.c.l.b16 %v8239
        %v9025 = vunpack.c.l.b16 %v8240
        %v9026 = vunpack.c.l.b16 %v8241
        %v9027 = vunpack.c.l.b16 %v8242
        %v9028 = vunpack.c.l.b16 %v8243
        %v9029 = vunpack.c.l.b16 %v8244
        %v9030 = vunpack.c.l.b16 %v8245
        %v9031 = vunpack.c.l.b16 %v8246
        %v9032 = vunpack.c.l.b16 %v8247
        %v9033 = vunpack.c.l.b16 %v8248
        %v9034 = vunpack.c.l.b16 %v8249
        %v9035 = vpack.c.b16 %v8700, %v8699
        %v9036 = vpack.c.b16 %v8702, %v8701
        %v9037 = vpack.c.b16 %v8704, %v8703
        %v9038 = vpack.c.b16 %v8706, %v8705
        %v9039 = vpack.c.b16 %v8708, %v8707
        %v9040 = vpack.c.b16 %v8710, %v8709
        %v9041 = vpack.c.b16 %v8712, %v8711
        %v9042 = vpack.c.b16 %v8714, %v8713
        %v9043 = vpack.c.b16 %v8716, %v8715
        %v9044 = vpack.c.b16 %v8718, %v8717
        %v9045 = vpack.c.b16 %v8720, %v8719
        %v9046 = vpack.c.b16 %v8722, %v8721
        %v9047 = vpack.c.b16 %v8724, %v8723
        %v9048 = vpack.c.b16 %v8726, %v8725
        %v9049 = vpack.c.b16 %v8728, %v8727
        %v9050 = vpack.c.b16 %v8730, %v8729
        %v9051 = vpack.c.b16 %v8732, %v8731
        %v9052 = vpack.c.b16 %v8734, %v8733
        %v9053 = vpack.c.b16 %v8736, %v8735
        %v9054 = vpack.c.b16 %v8738, %v8737
        %v9055 = vpack.c.b16 %v8740, %v8739
        %v9056 = vpack.c.b16 %v8742, %v8741
        %v9057 = vpack.c.b16 %v8744, %v8743
        %v9058 = vpack.c.b16 %v8746, %v8745
        %v9059 = vpack.c.b16 %v8748, %v8747
        %v9060 = vpack.c.b16 %v8750, %v8749
        %v9061 = vpack.c.b16 %v8752, %v8751
        %v9062 = vpack.c.b16 %v8754, %v8753
        %v9063 = vpack.c.b16 %v8756, %v8755
        %v9064 = vpack.c.b16 %v8758, %v8757
        %v9065 = vpack.c.b16 %v8760, %v8759
        %v9066 = vpack.c.b16 %v8762, %v8761
        %v9067 = vpack.c.b16 %v8764, %v8763
        %v9068 = vpack.c.b16 %v8766, %v8765
        %v9069 = vpack.c.b16 %v8768, %v8767
        %v9070 = vpack.c.b16 %v8770, %v8769
        %v9071 = vpack.c.b16 %v8772, %v8771
        %v9072 = vpack.c.b16 %v8774, %v8773
        %v9073 = vpack.c.b16 %v8776, %v8775
        %v9074 = vpack.c.b16 %v8778, %v8777
        %v9075 = vpack.c.b16 %v8780, %v8779
        %v9076 = vpack.c.b16 %v8782, %v8781
        %v9077 = vpack.c.b16 %v8784, %v8783
        %v9078 = vpack.c.b16 %v8786, %v8785
        %v9079 = vpack.c.b16 %v8788, %v8787
        %v9080 = vpack.c.b16 %v8790, %v8789
        %v9081 = vpack.c.b16 %v8792, %v8791
        %v9082 = vpack.c.b16 %v8794, %v8793
        %v9083 = vpack.c.b16 %v8796, %v8795
        %v9084 = vpack.c.b16 %v8798, %v8797
        %v9085 = vpack.c.b16 %v8800, %v8799
        %v9086 = vpack.c.b16 %v8802, %v8801
        %v9087 = vpack.c.b16 %v8804, %v8803
        %v9088 = vpack.c.b16 %v8806, %v8805
        %v9089 = vpack.c.b16 %v8808, %v8807
        %v9090 = vpack.c.b16 %v8810, %v8809
        %v9091 = vpack.c.b16 %v8812, %v8811
        %v9092 = vpack.c.b16 %v8814, %v8813
        %v9093 = vpack.c.b16 %v8816, %v8815
        %v9094 = vpack.c.b16 %v8818, %v8817
        %v9095 = vpack.c.b16 %v8820, %v8819
        %v9096 = vpack.c.b16 %v8822, %v8821
        %v9097 = vpack.c.b16 %v8824, %v8823
        %v9098 = vpack.c.b16 %v8826, %v8825
        %v9099 = vpack.c.b16 %v8828, %v8827
        %v9100 = vpack.c.b16 %v8830, %v8829
        %v9101 = vpack.c.b16 %v8832, %v8831
        %v9102 = vpack.c.b16 %v8834, %v8833
        %v9103 = vpack.c.b16 %v8836, %v8835
        %v9104 = vpack.c.b16 %v8838, %v8837
        %v9105 = vpack.c.b16 %v8840, %v8839
        %v9106 = vpack.c.b16 %v8842, %v8841
        %v9107 = vpack.c.b16 %v8844, %v8843
        %v9108 = vpack.c.b16 %v8846, %v8845
        %v9109 = vpack.c.b16 %v8848, %v8847
        %v9110 = vpack.c.b16 %v8850, %v8849
        %v9111 = vpack.c.b16 %v8852, %v8851
        %v9112 = vpack.c.b16 %v8854, %v8853
        %v9113 = vpack.c.b16 %v8856, %v8855
        %v9114 = vpack.c.b16 %v8858, %v8857
        %v9115 = vpack.c.b16 %v8860, %v8859
        %v9116 = vpack.c.b16 %v8862, %v8861
        %v9117 = vpack.c.b16 %v8864, %v8863
        %v9118 = vpack.c.b16 %v8866, %v8865
        %v9119 = vpack.c.b16 %v8868, %v8867
        %v9120 = vpack.c.b16 %v8870, %v8869
        %v9121 = vpack.c.b16 %v8872, %v8871
        %v9122 = vpack.c.b16 %v8874, %v8873
        %v9123 = vpack.c.b16 %v8876, %v8875
        %v9124 = vpack.c.b16 %v8878, %v8877
        %v9125 = vpack.c.b16 %v8880, %v8879
        %v9126 = vpack.c.b16 %v8882, %v8881
        %v9127 = vpack.c.b16 %v8884, %v8883
        %v9128 = vpack.c.b16 %v8886, %v8885
        %v9129 = vpack.c.b16 %v8888, %v8887
        %v9130 = vpack.c.b16 %v8890, %v8889
        %v9131 = vpack.c.b16 %v8892, %v8891
        %v9132 = vpack.c.b16 %v8894, %v8893
        %v9133 = vpack.c.b16 %v8896, %v8895
        %v9134 = vpack.c.b16 %v8898, %v8897
        %v9135 = vpack.c.b16 %v8900, %v8899
        %v9136 = vpack.c.b16 %v8902, %v8901
        %v9137 = vpack.c.b16 %v8904, %v8903
        %v9138 = vpack.c.b16 %v8906, %v8905
        %v9139 = vpack.c.b16 %v8908, %v8907
        %v9140 = vpack.c.b16 %v8910, %v8909
        %v9141 = vpack.c.b16 %v8912, %v8911
        %v9142 = vpack.c.b16 %v8914, %v8913
        %v9143 = vpack.c.b16 %v8916, %v8915
        %v9144 = vpack.c.b16 %v8918, %v8917
        %v9145 = vpack.c.b16 %v8920, %v8919
        %v9146 = vpack.c.b16 %v8922, %v8921
        %v9147 = vpack.c.b16 %v8924, %v8923
        %v9148 = vpack.c.b16 %v8926, %v8925
        %v9149 = vpack.c.b16 %v8928, %v8927
        %v9150 = vpack.c.b16 %v8930, %v8929
        %v9151 = vpack.c.b16 %v8932, %v8931
        %v9152 = vpack.c.b16 %v8934, %v8933
        %v9153 = vpack.c.b16 %v8936, %v8935
        %v9154 = vpack.c.b16 %v8938, %v8937
        %v9155 = vpack.c.b16 %v8940, %v8939
        %v9156 = vpack.c.b16 %v8942, %v8941
        %v9157 = vpack.c.b16 %v8944, %v8943
        %v9158 = vpack.c.b16 %v8946, %v8945
        %v9159 = vpack.c.b16 %v8948, %v8947
        %v9160 = vpack.c.b16 %v8950, %v8949
        %v9161 = vpack.c.b16 %v8952, %v8951
        %v9162 = vpack.c.b16 %v8954, %v8953
        %v9163 = vpack.c.b16 %v8956, %v8955
        %v9164 = vpack.c.b16 %v8958, %v8957
        %v9165 = vpack.c.b16 %v8960, %v8959
        %v9166 = vpack.c.b16 %v8962, %v8961
        %v9167 = vpack.c.b16 %v8964, %v8963
        %v9168 = vpack.c.b16 %v8966, %v8965
        %v9169 = vpack.c.b16 %v8968, %v8967
        %v9170 = vpack.c.b16 %v8970, %v8969
        %v9171 = vpack.c.b16 %v8972, %v8971
        %v9172 = vpack.c.b16 %v8974, %v8973
        %v9173 = vpack.c.b16 %v8976, %v8975
        %v9174 = vpack.c.b16 %v8978, %v8977
        %v9175 = vpack.c.b16 %v8980, %v8979
        %v9176 = vpack.c.b16 %v8982, %v8981
        %v9177 = vpack.c.b16 %v8984, %v8983
        %v9178 = vpack.c.b16 %v8986, %v8985
        %v9179 = vpack.c.b16 %v8988, %v8987
        %v9180 = vpack.c.b16 %v8990, %v8989
        %v9181 = vpack.c.b16 %v8992, %v8991
        %v9182 = vpack.c.b16 %v8994, %v8993
        %v9183 = vpack.c.b16 %v8996, %v8995
        %v9184 = vpack.c.b16 %v8998, %v8997
        %v9185 = vpack.c.b16 %v9000, %v8999
        %v9186 = vpack.c.b16 %v9002, %v9001
        %v9187 = vpack.c.b16 %v9004, %v9003
        %v9188 = vpack.c.b16 %v9006, %v9005
        %v9189 = vpack.c.b16 %v9008, %v9007
        %v9190 = vpack.c.b16 %v9010, %v9009
        %v9191 = vpack.c.b16 %v9012, %v9011
        %v9192 = vpack.c.b16 %v9014, %v9013
        %v9193 = vpack.c.b16 %v9016, %v9015
        %v9194 = vpack.c.b16 %v9018, %v9017
        %v9195 = vpack.c.b16 %v9020, %v9019
        %v9196 = vpack.c.b16 %v9022, %v9021
        %v9197 = vpack.c.b16 %v9024, %v9023
        %v9198 = vpack.c.b16 %v9026, %v9025
        %v9199 = vpack.c.b16 %v9028, %v9027
        %v9200 = vpack.c.b16 %v9030, %v9029
        %v9201 = vpack.c.b16 %v9032, %v9031
        %v9202 = vpack.c.b16 %v9034, %v9033
        %9371 = vmatprep.subr.bf16.mxu0 0
        %9372 = vmatpush1.bf16.msra.mxu0 %v9042
        %9373 = vmatprep.subr.bf16.mxu0 0
        %9374 = vmatpush1.bf16.msra.mxu0 %v9041
        %9375 = vmatprep.subr.bf16.mxu0 0
        %9376 = vmatpush1.bf16.msra.mxu0 %v9040
        %9377 = vmatprep.subr.bf16.mxu0 0
        %9378 = vmatpush1.bf16.msra.mxu0 %v9039
        %9379 = vmatprep.subr.bf16.mxu0 0
        %9380 = vmatpush1.bf16.msra.mxu0 %v9038
        %9381 = vmatprep.subr.bf16.mxu0 0
        %9382 = vmatpush1.bf16.msra.mxu0 %v9037
        %9383 = vmatprep.subr.bf16.mxu0 0
        %9384 = vmatpush1.bf16.msra.mxu0 %v9036
        %9385 = vmatprep.subr.bf16.mxu0 0
        %9386 = vmatpush1.bf16.msra.mxu0 %v9035
        %9387 = vmatprep.subr.bf16.mxu0 0
        %9388 = vmatpush2.bf16.msra.mxu0 %v9050
        %9389 = vmatprep.subr.bf16.mxu0 0
        %9390 = vmatpush2.bf16.msra.mxu0 %v9049
        %9391 = vmatprep.subr.bf16.mxu0 0
        %9392 = vmatpush2.bf16.msra.mxu0 %v9048
        %9393 = vmatprep.subr.bf16.mxu0 0
        %9394 = vmatpush2.bf16.msra.mxu0 %v9047
        %9395 = vmatprep.subr.bf16.mxu0 0
        %9396 = vmatpush2.bf16.msra.mxu0 %v9046
        %9397 = vmatprep.subr.bf16.mxu0 0
        %9398 = vmatpush2.bf16.msra.mxu0 %v9045
        %9399 = vmatprep.subr.bf16.mxu0 0
        %9400 = vmatpush2.bf16.msra.mxu0 %v9044
        %9401 = vmatprep.subr.bf16.mxu0 0
        %9402 = vmatpush2.bf16.msra.mxu0 %v9043
        %9403 = vmatprep.mubr.bf16.mxu0 %v8322
        %9404 = vmatmul.mubr.bf16.gmra.mxu0 %v8321
        %v9405 = vpop.f32.mrf.mxu0
        %v9406 = vadd.f32 %v8255, %v9405
        %v9407 = vpop.f32.mrf.mxu0
        %v9408 = vpop.f32.mrf.mxu0
        %v9409 = vadd.f32 %v8255, %v9408
        %v9410 = vpop.f32.mrf.mxu0
        %9411 = vdwg.mxu0
        %9412 = vmatprep.subr.bf16.mxu0 0
        %9413 = vmatpush1.bf16.msra.mxu0 %v9058
        %9414 = vmatprep.subr.bf16.mxu0 0
        %9415 = vmatpush1.bf16.msra.mxu0 %v9057
        %9416 = vmatprep.subr.bf16.mxu0 0
        %9417 = vmatpush1.bf16.msra.mxu0 %v9056
        %9418 = vmatprep.subr.bf16.mxu0 0
        %9419 = vmatpush1.bf16.msra.mxu0 %v9055
        %9420 = vmatprep.subr.bf16.mxu0 0
        %9421 = vmatpush1.bf16.msra.mxu0 %v9054
        %9422 = vmatprep.subr.bf16.mxu0 0
        %9423 = vmatpush1.bf16.msra.mxu0 %v9053
        %9424 = vmatprep.subr.bf16.mxu0 0
        %9425 = vmatpush1.bf16.msra.mxu0 %v9052
        %9426 = vmatprep.subr.bf16.mxu0 0
        %9427 = vmatpush1.bf16.msra.mxu0 %v9051
        %9428 = vmatprep.subr.bf16.mxu0 0
        %9429 = vmatpush2.bf16.msra.mxu0 %v9066
        %9430 = vmatprep.subr.bf16.mxu0 0
        %9431 = vmatpush2.bf16.msra.mxu0 %v9065
        %9432 = vmatprep.subr.bf16.mxu0 0
        %9433 = vmatpush2.bf16.msra.mxu0 %v9064
        %9434 = vmatprep.subr.bf16.mxu0 0
        %9435 = vmatpush2.bf16.msra.mxu0 %v9063
        %9436 = vmatprep.subr.bf16.mxu0 0
        %9437 = vmatpush2.bf16.msra.mxu0 %v9062
        %9438 = vmatprep.subr.bf16.mxu0 0
        %9439 = vmatpush2.bf16.msra.mxu0 %v9061
        %9440 = vmatprep.subr.bf16.mxu0 0
        %9441 = vmatpush2.bf16.msra.mxu0 %v9060
        %9442 = vmatprep.subr.bf16.mxu0 0
        %9443 = vmatpush2.bf16.msra.mxu0 %v9059
        %9444 = vmatprep.mubr.bf16.mxu0 %v8324
        %9445 = vmatmul.mubr.bf16.gmra.mxu0 %v8323
        %v9446 = vpop.f32.mrf.mxu0
        %v9447 = vadd.f32 %v9406, %v9446
        %v9448 = vpop.f32.mrf.mxu0
        %v9449 = vpop.f32.mrf.mxu0
        %v9450 = vadd.f32 %v9409, %v9449
        %v9451 = vpop.f32.mrf.mxu0
        %9452 = vdwg.mxu0
        %9453 = vmatprep.subr.bf16.mxu0 0
        %9454 = vmatpush1.bf16.msra.mxu0 %v9074
        %9455 = vmatprep.subr.bf16.mxu0 0
        %9456 = vmatpush1.bf16.msra.mxu0 %v9073
        %9457 = vmatprep.subr.bf16.mxu0 0
        %9458 = vmatpush1.bf16.msra.mxu0 %v9072
        %9459 = vmatprep.subr.bf16.mxu0 0
        %9460 = vmatpush1.bf16.msra.mxu0 %v9071
        %9461 = vmatprep.subr.bf16.mxu0 0
        %9462 = vmatpush1.bf16.msra.mxu0 %v9070
        %9463 = vmatprep.subr.bf16.mxu0 0
        %9464 = vmatpush1.bf16.msra.mxu0 %v9069
        %9465 = vmatprep.subr.bf16.mxu0 0
        %9466 = vmatpush1.bf16.msra.mxu0 %v9068
        %9467 = vmatprep.subr.bf16.mxu0 0
        %9468 = vmatpush1.bf16.msra.mxu0 %v9067
        %9469 = vmatprep.subr.bf16.mxu0 0
        %9470 = vmatpush2.bf16.msra.mxu0 %v9082
        %9471 = vmatprep.subr.bf16.mxu0 0
        %9472 = vmatpush2.bf16.msra.mxu0 %v9081
        %9473 = vmatprep.subr.bf16.mxu0 0
        %9474 = vmatpush2.bf16.msra.mxu0 %v9080
        %9475 = vmatprep.subr.bf16.mxu0 0
        %9476 = vmatpush2.bf16.msra.mxu0 %v9079
        %9477 = vmatprep.subr.bf16.mxu0 0
        %9478 = vmatpush2.bf16.msra.mxu0 %v9078
        %9479 = vmatprep.subr.bf16.mxu0 0
        %9480 = vmatpush2.bf16.msra.mxu0 %v9077
        %9481 = vmatprep.subr.bf16.mxu0 0
        %9482 = vmatpush2.bf16.msra.mxu0 %v9076
        %9483 = vmatprep.subr.bf16.mxu0 0
        %9484 = vmatpush2.bf16.msra.mxu0 %v9075
        %9485 = vmatprep.mubr.bf16.mxu0 %v8326
        %9486 = vmatmul.mubr.bf16.gmra.mxu0 %v8325
        %v9487 = vpop.f32.mrf.mxu0
        %v9488 = vadd.f32 %v9447, %v9487
        %v9489 = vpop.f32.mrf.mxu0
        %v9490 = vpop.f32.mrf.mxu0
        %v9491 = vadd.f32 %v9450, %v9490
        %v9492 = vpop.f32.mrf.mxu0
        %9493 = vdwg.mxu0
        %9494 = vmatprep.subr.bf16.mxu0 0
        %9495 = vmatpush1.bf16.msra.mxu0 %v9090
        %9496 = vmatprep.subr.bf16.mxu0 0
        %9497 = vmatpush1.bf16.msra.mxu0 %v9089
        %9498 = vmatprep.subr.bf16.mxu0 0
        %9499 = vmatpush1.bf16.msra.mxu0 %v9088
        %9500 = vmatprep.subr.bf16.mxu0 0
        %9501 = vmatpush1.bf16.msra.mxu0 %v9087
        %9502 = vmatprep.subr.bf16.mxu0 0
        %9503 = vmatpush1.bf16.msra.mxu0 %v9086
        %9504 = vmatprep.subr.bf16.mxu0 0
        %9505 = vmatpush1.bf16.msra.mxu0 %v9085
        %9506 = vmatprep.subr.bf16.mxu0 0
        %9507 = vmatpush1.bf16.msra.mxu0 %v9084
        %9508 = vmatprep.subr.bf16.mxu0 0
        %9509 = vmatpush1.bf16.msra.mxu0 %v9083
        %9510 = vmatprep.subr.bf16.mxu0 0
        %9511 = vmatpush2.bf16.msra.mxu0 %v9098
        %9512 = vmatprep.subr.bf16.mxu0 0
        %9513 = vmatpush2.bf16.msra.mxu0 %v9097
        %9514 = vmatprep.subr.bf16.mxu0 0
        %9515 = vmatpush2.bf16.msra.mxu0 %v9096
        %9516 = vmatprep.subr.bf16.mxu0 0
        %9517 = vmatpush2.bf16.msra.mxu0 %v9095
        %9518 = vmatprep.subr.bf16.mxu0 0
        %9519 = vmatpush2.bf16.msra.mxu0 %v9094
        %9520 = vmatprep.subr.bf16.mxu0 0
        %9521 = vmatpush2.bf16.msra.mxu0 %v9093
        %9522 = vmatprep.subr.bf16.mxu0 0
        %9523 = vmatpush2.bf16.msra.mxu0 %v9092
        %9524 = vmatprep.subr.bf16.mxu0 0
        %9525 = vmatpush2.bf16.msra.mxu0 %v9091
        %9526 = vmatprep.mubr.bf16.mxu0 %v8328
        %9527 = vmatmul.mubr.bf16.gmra.mxu0 %v8327
        %v9528 = vpop.f32.mrf.mxu0
        %v9529 = vadd.f32 %v9488, %v9528
        %v9530 = vpop.f32.mrf.mxu0
        %v9531 = vpop.f32.mrf.mxu0
        %v9532 = vadd.f32 %v9491, %v9531
        %v9533 = vpop.f32.mrf.mxu0
        %9534 = vdwg.mxu0
        %9535 = vmatprep.subr.bf16.mxu0 0
        %9536 = vmatpush1.bf16.msra.mxu0 %v9106
        %9537 = vmatprep.subr.bf16.mxu0 0
        %9538 = vmatpush1.bf16.msra.mxu0 %v9105
        %9539 = vmatprep.subr.bf16.mxu0 0
        %9540 = vmatpush1.bf16.msra.mxu0 %v9104
        %9541 = vmatprep.subr.bf16.mxu0 0
        %9542 = vmatpush1.bf16.msra.mxu0 %v9103
        %9543 = vmatprep.subr.bf16.mxu0 0
        %9544 = vmatpush1.bf16.msra.mxu0 %v9102
        %9545 = vmatprep.subr.bf16.mxu0 0
        %9546 = vmatpush1.bf16.msra.mxu0 %v9101
        %9547 = vmatprep.subr.bf16.mxu0 0
        %9548 = vmatpush1.bf16.msra.mxu0 %v9100
        %9549 = vmatprep.subr.bf16.mxu0 0
        %9550 = vmatpush1.bf16.msra.mxu0 %v9099
        %9551 = vmatprep.subr.bf16.mxu0 0
        %9552 = vmatpush2.bf16.msra.mxu0 %v9114
        %9553 = vmatprep.subr.bf16.mxu0 0
        %9554 = vmatpush2.bf16.msra.mxu0 %v9113
        %9555 = vmatprep.subr.bf16.mxu0 0
        %9556 = vmatpush2.bf16.msra.mxu0 %v9112
        %9557 = vmatprep.subr.bf16.mxu0 0
        %9558 = vmatpush2.bf16.msra.mxu0 %v9111
        %9559 = vmatprep.subr.bf16.mxu0 0
        %9560 = vmatpush2.bf16.msra.mxu0 %v9110
        %9561 = vmatprep.subr.bf16.mxu0 0
        %9562 = vmatpush2.bf16.msra.mxu0 %v9109
        %9563 = vmatprep.subr.bf16.mxu0 0
        %9564 = vmatpush2.bf16.msra.mxu0 %v9108
        %9565 = vmatprep.subr.bf16.mxu0 0
        %9566 = vmatpush2.bf16.msra.mxu0 %v9107
        %9567 = vmatprep.mubr.bf16.mxu0 %v8330
        %9568 = vmatmul.mubr.bf16.gmra.mxu0 %v8329
        %v9569 = vpop.f32.mrf.mxu0
        %v9570 = vadd.f32 %v9529, %v9569
        %v9571 = vpop.f32.mrf.mxu0
        %v9572 = vpop.f32.mrf.mxu0
        %v9573 = vadd.f32 %v9532, %v9572
        %v9574 = vpop.f32.mrf.mxu0
        %9575 = vdwg.mxu0
        %9576 = vmatprep.subr.bf16.mxu0 0
        %9577 = vmatpush1.bf16.msra.mxu0 %v9122
        %9578 = vmatprep.subr.bf16.mxu0 0
        %9579 = vmatpush1.bf16.msra.mxu0 %v9121
        %9580 = vmatprep.subr.bf16.mxu0 0
        %9581 = vmatpush1.bf16.msra.mxu0 %v9120
        %9582 = vmatprep.subr.bf16.mxu0 0
        %9583 = vmatpush1.bf16.msra.mxu0 %v9119
        %9584 = vmatprep.subr.bf16.mxu0 0
        %9585 = vmatpush1.bf16.msra.mxu0 %v9118
        %9586 = vmatprep.subr.bf16.mxu0 0
        %9587 = vmatpush1.bf16.msra.mxu0 %v9117
        %9588 = vmatprep.subr.bf16.mxu0 0
        %9589 = vmatpush1.bf16.msra.mxu0 %v9116
        %9590 = vmatprep.subr.bf16.mxu0 0
        %9591 = vmatpush1.bf16.msra.mxu0 %v9115
        %9592 = vmatprep.subr.bf16.mxu0 0
        %9593 = vmatpush2.bf16.msra.mxu0 %v9130
        %9594 = vmatprep.subr.bf16.mxu0 0
        %9595 = vmatpush2.bf16.msra.mxu0 %v9129
        %9596 = vmatprep.subr.bf16.mxu0 0
        %9597 = vmatpush2.bf16.msra.mxu0 %v9128
        %9598 = vmatprep.subr.bf16.mxu0 0
        %9599 = vmatpush2.bf16.msra.mxu0 %v9127
        %9600 = vmatprep.subr.bf16.mxu0 0
        %9601 = vmatpush2.bf16.msra.mxu0 %v9126
        %9602 = vmatprep.subr.bf16.mxu0 0
        %9603 = vmatpush2.bf16.msra.mxu0 %v9125
        %9604 = vmatprep.subr.bf16.mxu0 0
        %9605 = vmatpush2.bf16.msra.mxu0 %v9124
        %9606 = vmatprep.subr.bf16.mxu0 0
        %9607 = vmatpush2.bf16.msra.mxu0 %v9123
        %9608 = vmatprep.mubr.bf16.mxu0 %v8332
        %9609 = vmatmul.mubr.bf16.gmra.mxu0 %v8331
        %v9610 = vpop.f32.mrf.mxu0
        %v9611 = vadd.f32 %v9570, %v9610
        %v9612 = vpop.f32.mrf.mxu0
        %v9613 = vpop.f32.mrf.mxu0
        %v9614 = vadd.f32 %v9573, %v9613
        %v9615 = vpop.f32.mrf.mxu0
        %9616 = vdwg.mxu0
        %9617 = vmatprep.subr.bf16.mxu0 0
        %9618 = vmatpush1.bf16.msra.mxu0 %v9138
        %9619 = vmatprep.subr.bf16.mxu0 0
        %9620 = vmatpush1.bf16.msra.mxu0 %v9137
        %9621 = vmatprep.subr.bf16.mxu0 0
        %9622 = vmatpush1.bf16.msra.mxu0 %v9136
        %9623 = vmatprep.subr.bf16.mxu0 0
        %9624 = vmatpush1.bf16.msra.mxu0 %v9135
        %9625 = vmatprep.subr.bf16.mxu0 0
        %9626 = vmatpush1.bf16.msra.mxu0 %v9134
        %9627 = vmatprep.subr.bf16.mxu0 0
        %9628 = vmatpush1.bf16.msra.mxu0 %v9133
        %9629 = vmatprep.subr.bf16.mxu0 0
        %9630 = vmatpush1.bf16.msra.mxu0 %v9132
        %9631 = vmatprep.subr.bf16.mxu0 0
        %9632 = vmatpush1.bf16.msra.mxu0 %v9131
        %9633 = vmatprep.subr.bf16.mxu0 0
        %9634 = vmatpush2.bf16.msra.mxu0 %v9146
        %9635 = vmatprep.subr.bf16.mxu0 0
        %9636 = vmatpush2.bf16.msra.mxu0 %v9145
        %9637 = vmatprep.subr.bf16.mxu0 0
        %9638 = vmatpush2.bf16.msra.mxu0 %v9144
        %9639 = vmatprep.subr.bf16.mxu0 0
        %9640 = vmatpush2.bf16.msra.mxu0 %v9143
        %9641 = vmatprep.subr.bf16.mxu0 0
        %9642 = vmatpush2.bf16.msra.mxu0 %v9142
        %9643 = vmatprep.subr.bf16.mxu0 0
        %9644 = vmatpush2.bf16.msra.mxu0 %v9141
        %9645 = vmatprep.subr.bf16.mxu0 0
        %9646 = vmatpush2.bf16.msra.mxu0 %v9140
        %9647 = vmatprep.subr.bf16.mxu0 0
        %9648 = vmatpush2.bf16.msra.mxu0 %v9139
        %9649 = vmatprep.mubr.bf16.mxu0 %v8334
        %9650 = vmatmul.mubr.bf16.gmra.mxu0 %v8333
        %v9651 = vpop.f32.mrf.mxu0
        %v9652 = vadd.f32 %v9611, %v9651
        %v9653 = vpop.f32.mrf.mxu0
        %v9654 = vpop.f32.mrf.mxu0
        %v9655 = vadd.f32 %v9614, %v9654
        %v9656 = vpop.f32.mrf.mxu0
        %9657 = vdwg.mxu0
        %9658 = vmatprep.subr.bf16.mxu0 0
        %9659 = vmatpush1.bf16.msra.mxu0 %v9154
        %9660 = vmatprep.subr.bf16.mxu0 0
        %9661 = vmatpush1.bf16.msra.mxu0 %v9153
        %9662 = vmatprep.subr.bf16.mxu0 0
        %9663 = vmatpush1.bf16.msra.mxu0 %v9152
        %9664 = vmatprep.subr.bf16.mxu0 0
        %9665 = vmatpush1.bf16.msra.mxu0 %v9151
        %9666 = vmatprep.subr.bf16.mxu0 0
        %9667 = vmatpush1.bf16.msra.mxu0 %v9150
        %9668 = vmatprep.subr.bf16.mxu0 0
        %9669 = vmatpush1.bf16.msra.mxu0 %v9149
        %9670 = vmatprep.subr.bf16.mxu0 0
        %9671 = vmatpush1.bf16.msra.mxu0 %v9148
        %9672 = vmatprep.subr.bf16.mxu0 0
        %9673 = vmatpush1.bf16.msra.mxu0 %v9147
        %9674 = vmatprep.subr.bf16.mxu0 0
        %9675 = vmatpush2.bf16.msra.mxu0 %v9162
        %9676 = vmatprep.subr.bf16.mxu0 0
        %9677 = vmatpush2.bf16.msra.mxu0 %v9161
        %9678 = vmatprep.subr.bf16.mxu0 0
        %9679 = vmatpush2.bf16.msra.mxu0 %v9160
        %9680 = vmatprep.subr.bf16.mxu0 0
        %9681 = vmatpush2.bf16.msra.mxu0 %v9159
        %9682 = vmatprep.subr.bf16.mxu0 0
        %9683 = vmatpush2.bf16.msra.mxu0 %v9158
        %9684 = vmatprep.subr.bf16.mxu0 0
        %9685 = vmatpush2.bf16.msra.mxu0 %v9157
        %9686 = vmatprep.subr.bf16.mxu0 0
        %9687 = vmatpush2.bf16.msra.mxu0 %v9156
        %9688 = vmatprep.subr.bf16.mxu0 0
        %9689 = vmatpush2.bf16.msra.mxu0 %v9155
        %9690 = vmatprep.mubr.bf16.mxu0 %v8336
        %9691 = vmatmul.mubr.bf16.gmra.mxu0 %v8335
        %v9692 = vpop.f32.mrf.mxu0
        %v9693 = vadd.f32 %v9652, %v9692
        %v9694 = vpop.f32.mrf.mxu0
        %v9695 = vpop.f32.mrf.mxu0
        %v9696 = vadd.f32 %v9655, %v9695
        %v9697 = vpop.f32.mrf.mxu0
        %9698 = vdwg.mxu0
        %9699 = vmatprep.subr.bf16.mxu0 0
        %9700 = vmatpush1.bf16.msra.mxu0 %v9170
        %9701 = vmatprep.subr.bf16.mxu0 0
        %9702 = vmatpush1.bf16.msra.mxu0 %v9169
        %9703 = vmatprep.subr.bf16.mxu0 0
        %9704 = vmatpush1.bf16.msra.mxu0 %v9168
        %9705 = vmatprep.subr.bf16.mxu0 0
        %9706 = vmatpush1.bf16.msra.mxu0 %v9167
        %9707 = vmatprep.subr.bf16.mxu0 0
        %9708 = vmatpush1.bf16.msra.mxu0 %v9166
        %9709 = vmatprep.subr.bf16.mxu0 0
        %9710 = vmatpush1.bf16.msra.mxu0 %v9165
        %9711 = vmatprep.subr.bf16.mxu0 0
        %9712 = vmatpush1.bf16.msra.mxu0 %v9164
        %9713 = vmatprep.subr.bf16.mxu0 0
        %9714 = vmatpush1.bf16.msra.mxu0 %v9163
        %9715 = vmatprep.subr.bf16.mxu0 0
        %9716 = vmatpush2.bf16.msra.mxu0 %v9178
        %9717 = vmatprep.subr.bf16.mxu0 0
        %9718 = vmatpush2.bf16.msra.mxu0 %v9177
        %9719 = vmatprep.subr.bf16.mxu0 0
        %9720 = vmatpush2.bf16.msra.mxu0 %v9176
        %9721 = vmatprep.subr.bf16.mxu0 0
        %9722 = vmatpush2.bf16.msra.mxu0 %v9175
        %9723 = vmatprep.subr.bf16.mxu0 0
        %9724 = vmatpush2.bf16.msra.mxu0 %v9174
        %9725 = vmatprep.subr.bf16.mxu0 0
        %9726 = vmatpush2.bf16.msra.mxu0 %v9173
        %9727 = vmatprep.subr.bf16.mxu0 0
        %9728 = vmatpush2.bf16.msra.mxu0 %v9172
        %9729 = vmatprep.subr.bf16.mxu0 0
        %9730 = vmatpush2.bf16.msra.mxu0 %v9171
        %9731 = vmatprep.mubr.bf16.mxu0 %v8338
        %9732 = vmatmul.mubr.bf16.gmra.mxu0 %v8337
        %v9733 = vpop.f32.mrf.mxu0
        %v9734 = vadd.f32 %v9693, %v9733
        %v9735 = vpop.f32.mrf.mxu0
        %v9736 = vpop.f32.mrf.mxu0
        %v9737 = vadd.f32 %v9696, %v9736
        %v9738 = vpop.f32.mrf.mxu0
        %9739 = vdwg.mxu0
        %9740 = vmatprep.subr.bf16.mxu0 0
        %9741 = vmatpush1.bf16.msra.mxu0 %v9186
        %9742 = vmatprep.subr.bf16.mxu0 0
        %9743 = vmatpush1.bf16.msra.mxu0 %v9185
        %9744 = vmatprep.subr.bf16.mxu0 0
        %9745 = vmatpush1.bf16.msra.mxu0 %v9184
        %9746 = vmatprep.subr.bf16.mxu0 0
        %9747 = vmatpush1.bf16.msra.mxu0 %v9183
        %9748 = vmatprep.subr.bf16.mxu0 0
        %9749 = vmatpush1.bf16.msra.mxu0 %v9182
        %9750 = vmatprep.subr.bf16.mxu0 0
        %9751 = vmatpush1.bf16.msra.mxu0 %v9181
        %9752 = vmatprep.subr.bf16.mxu0 0
        %9753 = vmatpush1.bf16.msra.mxu0 %v9180
        %9754 = vmatprep.subr.bf16.mxu0 0
        %9755 = vmatpush1.bf16.msra.mxu0 %v9179
        %9756 = vmatprep.subr.bf16.mxu0 0
        %9757 = vmatpush2.bf16.msra.mxu0 %v9194
        %9758 = vmatprep.subr.bf16.mxu0 0
        %9759 = vmatpush2.bf16.msra.mxu0 %v9193
        %9760 = vmatprep.subr.bf16.mxu0 0
        %9761 = vmatpush2.bf16.msra.mxu0 %v9192
        %9762 = vmatprep.subr.bf16.mxu0 0
        %9763 = vmatpush2.bf16.msra.mxu0 %v9191
        %9764 = vmatprep.subr.bf16.mxu0 0
        %9765 = vmatpush2.bf16.msra.mxu0 %v9190
        %9766 = vmatprep.subr.bf16.mxu0 0
        %9767 = vmatpush2.bf16.msra.mxu0 %v9189
        %9768 = vmatprep.subr.bf16.mxu0 0
        %9769 = vmatpush2.bf16.msra.mxu0 %v9188
        %9770 = vmatprep.subr.bf16.mxu0 0
        %9771 = vmatpush2.bf16.msra.mxu0 %v9187
        %9772 = vmatprep.mubr.bf16.mxu0 %v8340
        %9773 = vmatmul.mubr.bf16.gmra.mxu0 %v8339
        %v9774 = vpop.f32.mrf.mxu0
        %v9775 = vadd.f32 %v9734, %v9774
        %v9776 = vpop.f32.mrf.mxu0
        %v9777 = vpop.f32.mrf.mxu0
        %v9778 = vadd.f32 %v9737, %v9777
        %v9779 = vpop.f32.mrf.mxu0
        %9780 = vdwg.mxu0
        %9781 = vmatprep.subr.bf16.mxu0 0
        %9782 = vmatpush1.bf16.msra.mxu0 %v9202
        %9783 = vmatprep.subr.bf16.mxu0 0
        %9784 = vmatpush1.bf16.msra.mxu0 %v9201
        %9785 = vmatprep.subr.bf16.mxu0 0
        %9786 = vmatpush1.bf16.msra.mxu0 %v9200
        %9787 = vmatprep.subr.bf16.mxu0 0
        %9788 = vmatpush1.bf16.msra.mxu0 %v9199
        %9789 = vmatprep.subr.bf16.mxu0 0
        %9790 = vmatpush1.bf16.msra.mxu0 %v9198
        %9791 = vmatprep.subr.bf16.mxu0 0
        %9792 = vmatpush1.bf16.msra.mxu0 %v9197
        %9793 = vmatprep.subr.bf16.mxu0 0
        %9794 = vmatpush1.bf16.msra.mxu0 %v9196
        %9795 = vmatprep.subr.bf16.mxu0 0
        %9796 = vmatpush1.bf16.msra.mxu0 %v9195
        %9797 = vmatprep.subr.bf16.mxu0 0
        %9798 = vmatpush2.bf16.msra.mxu0 0
        %9799 = vmatprep.subr.bf16.mxu0 0
        %9800 = vmatpush2.bf16.msra.mxu0 0
        %9801 = vmatprep.subr.bf16.mxu0 0
        %9802 = vmatpush2.bf16.msra.mxu0 0
        %9803 = vmatprep.subr.bf16.mxu0 0
        %9804 = vmatpush2.bf16.msra.mxu0 0
        %9805 = vmatprep.subr.bf16.mxu0 0
        %9806 = vmatpush2.bf16.msra.mxu0 0
        %9807 = vmatprep.subr.bf16.mxu0 0
        %9808 = vmatpush2.bf16.msra.mxu0 0
        %9809 = vmatprep.subr.bf16.mxu0 0
        %9810 = vmatpush2.bf16.msra.mxu0 0
        %9811 = vmatprep.subr.bf16.mxu0 0
        %9812 = vmatpush2.bf16.msra.mxu0 0
        %9813 = vmatprep.mubr.bf16.mxu0 0
        %9814 = vmatmul.mubr.bf16.gmra.mxu0 %v8341
        %v9815 = vpop.f32.mrf.mxu0
        %v9816 = vadd.f32 %v9775, %v9815
        %v9817 = vpop.f32.mrf.mxu0
        %v9818 = vpop.f32.mrf.mxu0
        %v9819 = vadd.f32 %v9778, %v9818
        %v9820 = vpop.f32.mrf.mxu0
        %9821 = vdwg.mxu0
        %v9822 = vmax.f32 %v9816, 0.0
        %v9823 = vmax.f32 %v9819, 0.0
        %v9824 = vpack.c.bf16 %v9823, %v9822
        %v9825 = vld [vmem:[%s7] sm:$0xf]
        %v9826 = vld [vmem:[%s7 + $0x4] sm:$0xf]
        %v9827 = vld [vmem:[%s7 + $0x8] sm:$0xf]
        %v9828 = vld [vmem:[%s7 + $0xc] sm:$0xf]
        %v9829 = vld [vmem:[%s7 + $0x10] sm:$0xf]
        %v9830 = vld [vmem:[%s7 + $0x14] sm:$0xf]
        %v9831 = vld [vmem:[%s7 + $0x18] sm:$0xf]
        %v9832 = vld [vmem:[%s7 + $0x1c] sm:$0xf]
        %v9833 = vld [vmem:[%s7 + $0x20] sm:$0xf]
        %v9834 = vld [vmem:[%s7 + $0x24] sm:$0xf]
        %v9835 = vld [vmem:[%s7 + $0x28] sm:$0xf]
        %v9836 = vld [vmem:[%s7 + $0x2c] sm:$0xf]
        %v9837 = vld [vmem:[%s7 + $0x30] sm:$0xf]
        %v9838 = vld [vmem:[%s7 + $0x34] sm:$0xf]
        %v9839 = vld [vmem:[%s7 + $0x38] sm:$0xf]
        %v9840 = vld [vmem:[%s7 + $0x3c] sm:$0xf]
        %v9841 = vld [vmem:[%s8] sm:$0x1]
        %v9843 = vlaneseq
        %v9844 = vshrl.u32 %v9843, 7
        %v9845 = vsub.s32 0, %v9844
        %v9846 = vrot.slane %v9841, %v9845
        %v9864 = vunpack.c.l.b16 %v9825
        %v9865 = vunpack.c.l.b16 %v9826
        %v9866 = vunpack.c.l.b16 %v9827
        %v9867 = vunpack.c.l.b16 %v9828
        %v9868 = vunpack.c.l.b16 %v9829
        %v9869 = vunpack.c.l.b16 %v9830
        %v9870 = vunpack.c.l.b16 %v9831
        %v9871 = vunpack.c.l.b16 %v9832
        %v9872 = vunpack.c.l.b16 %v9833
        %v9873 = vunpack.c.l.b16 %v9834
        %v9874 = vunpack.c.l.b16 %v9835
        %v9875 = vunpack.c.l.b16 %v9836
        %v9876 = vunpack.c.l.b16 %v9837
        %v9877 = vunpack.c.l.b16 %v9838
        %v9878 = vunpack.c.l.b16 %v9839
        %v9879 = vunpack.c.l.b16 %v9840
        %v9880 = vpack.c.b16 %v9865, %v9864
        %v9881 = vpack.c.b16 %v9867, %v9866
        %v9882 = vpack.c.b16 %v9869, %v9868
        %v9883 = vpack.c.b16 %v9871, %v9870
        %v9884 = vpack.c.b16 %v9873, %v9872
        %v9885 = vpack.c.b16 %v9875, %v9874
        %v9886 = vpack.c.b16 %v9877, %v9876
        %v9887 = vpack.c.b16 %v9879, %v9878
        %9896 = vmatprep.subr.bf16.mxu0 0
        %9897 = vmatpush1.bf16.msra.mxu0 %v9887
        %9898 = vmatprep.subr.bf16.mxu0 0
        %9899 = vmatpush1.bf16.msra.mxu0 %v9886
        %9900 = vmatprep.subr.bf16.mxu0 0
        %9901 = vmatpush1.bf16.msra.mxu0 %v9885
        %9902 = vmatprep.subr.bf16.mxu0 0
        %9903 = vmatpush1.bf16.msra.mxu0 %v9884
        %9904 = vmatprep.subr.bf16.mxu0 0
        %9905 = vmatpush1.bf16.msra.mxu0 %v9883
        %9906 = vmatprep.subr.bf16.mxu0 0
        %9907 = vmatpush1.bf16.msra.mxu0 %v9882
        %9908 = vmatprep.subr.bf16.mxu0 0
        %9909 = vmatpush1.bf16.msra.mxu0 %v9881
        %9910 = vmatprep.subr.bf16.mxu0 0
        %9911 = vmatpush1.bf16.msra.mxu0 %v9880
        %9912 = vmatprep.subr.bf16.mxu0 0
        %9913 = vmatpush2.bf16.msra.mxu0 0
        %9914 = vmatprep.subr.bf16.mxu0 0
        %9915 = vmatpush2.bf16.msra.mxu0 0
        %9916 = vmatprep.subr.bf16.mxu0 0
        %9917 = vmatpush2.bf16.msra.mxu0 0
        %9918 = vmatprep.subr.bf16.mxu0 0
        %9919 = vmatpush2.bf16.msra.mxu0 0
        %9920 = vmatprep.subr.bf16.mxu0 0
        %9921 = vmatpush2.bf16.msra.mxu0 0
        %9922 = vmatprep.subr.bf16.mxu0 0
        %9923 = vmatpush2.bf16.msra.mxu0 0
        %9924 = vmatprep.subr.bf16.mxu0 0
        %9925 = vmatpush2.bf16.msra.mxu0 0
        %9926 = vmatprep.subr.bf16.mxu0 0
        %9927 = vmatpush2.bf16.msra.mxu0 0
        %9928 = vmatprep.mubr.bf16.mxu0 0
        %9929 = vmatmul.mubr.bf16.gmra.mxu0 %v9824
        %v9930 = vpop.f32.mrf.mxu0
        %v9931 = vadd.f32 %v9846, %v9930
        %v9932 = vpop.f32.mrf.mxu0
        %v9933 = vpop.f32.mrf.mxu0
        %v9934 = vadd.f32 %v9846, %v9933
        %v9935 = vpop.f32.mrf.mxu0
        %9936 = vdwg.mxu0
        %9937 = vst [vmem:[%s709] sm:$0xff] %v9931
        %9938 = vst [vmem:[%s709 + $0x8] sm:$0xff] %v9934
        %s9939 = smul.u32 2, %s20
        %p9940 = scmp.lt.s32.totalorder %s9939, 3
        %s9941 = scalar_select %p9940, %s9939, 3
        %s9942 = smul.addr %s9941, 8
        %s9943 = scalar_lea.vmem %s9, %s9942
        // Predicated region
        $region98: #{dqn_forward.1} parent=92 // pred_check
          %p9944 = pneg %p232
        $region99: #{dqn_forward.1} parent=92 // pred_check_branch
          %9946 = sbr.rel (%p9944) target = $region101
        $region100: #{dqn_forward.1} parent=92 // pred_region
          %s9947 = smul.u32 2, %s20
        $region101: #{dqn_forward.1} parent=92 // pred_fallthru
          _
      $region93: #{dqn_forward.1} parent=5 // pred_fallthru
        _
      %p9948 = scmp.le.s32.totalorder 2, %s15
      // Predicated region
      $region102: #{dqn_forward.1} parent=5 // pred_check
        %p9949 = pneg %p9948
      $region103: #{dqn_forward.1} parent=5 // pred_check_branch
        %9951 = sbr.rel (%p9949) target = $region105
      $region104: #{dqn_forward.1} parent=5 // pred_region
        %s9952 = ssub.s32 %s15, 2
        // Predicated region
        $region106: #{dqn_forward.1} parent=104 // pred_check
          %p9953 = pneg %p238
        $region107: #{dqn_forward.1} parent=104 // pred_check_branch
          %9955 = sbr.rel (%p9953) target = $region109
        $region108: #{dqn_forward.1} parent=104 // pred_region
          %s9956 = smul.u32 2, %s21
          %p9957 = scmp.lt.s32.totalorder %s9956, 3
          %s9958 = scalar_select %p9957, %s9956, 3
          %s9959 = smul.addr %s9958, 8
          %s9960 = scalar_lea.vmem %s9, %s9959
        $region109: #{dqn_forward.1} parent=104 // pred_fallthru
          _
      $region105: #{dqn_forward.1} parent=5 // pred_fallthru
        _
    $region6: #{dqn_forward.1} parent=1 // loop_footer
      %s19 = sadd.s32 1, %s15
    $region7: #{dqn_forward.1} parent=1 // loop_footer_branch
      %14 = sbr.rel target = $region3
    $region8: #{dqn_forward.1} parent=1 // loop_exit
      _

</llo_original>
